<compile_context>
chip_gen: v7x
topology: tpu7x:2x2x1
jax: 0.10.0
libtpu: 0.0.40
codegen_flags: <defaults>
</compile_context>

<pallas_src>
import functools

import numpy as np
import jax
import jax.numpy as jnp
from jax.experimental import pallas as pl
from jax.experimental.pallas import tpu as pltpu

NUM_LAYERS = 10          # 1 input layer + 8 hidden + 1 output
MAX_FEAT = 8             # feature dims padded to 8 (one sublane group)


def mlp_kernel(dims, col_offsets, chunk, w_ref, x_ref, o_ref):
    """dims: static tuple (d0, ..., d10) of per-layer feature sizes.
    col_offsets: static tuple; layer l's columns start at col_offsets[l].
    chunk: static lane width of the inner compute chunk (multiple of 128).

    w_ref: (8, ncols*chunk) f32, column (col_offsets[l]+k) holds W_l[:, k]
           zero-padded to 8 rows and replicated across `chunk` lanes.
    x_ref: (in_dim, block_b) f32, batch on lanes.
    o_ref: (out_dim, block_b) f32, batch on lanes (lane-dense, unmasked stores).
    """
    block_b = x_ref.shape[-1]
    nchunks = block_b // chunk

    # Static Python loop over lane chunks: static slices are free, and the per-chunk
    # live set (~10-20 vregs at chunk<=512) never spills.
    for c in range(nchunks):
        c0 = c * chunk
        h = x_ref[:, c0:c0 + chunk].astype(jnp.float32)        # (in_dim, chunk)
        for l in range(len(dims) - 1):
            in_l = dims[l]
            acc = None
            for k in range(in_l):
                col0 = (col_offsets[l] + k) * chunk
                w_blk = w_ref[:, col0:col0 + chunk]             # (8, chunk) plain vld
                term = w_blk * h[k:k + 1, :]                    # sublane-bcast * VPU mul
                acc = term if acc is None else acc + term
            # leaky_relu(negative_slope=0.01); zero-padded rows stay exactly 0.
            h = jnp.where(acc > 0, acc, 0.01 * acc)             # (8, chunk)
        o_ref[:, c0:c0 + chunk] = h[:o_ref.shape[0], :].astype(o_ref.dtype)


def pack_weights(weights, dims, chunk):
    """Pack all layer weights (PyTorch (out, in) layout) into one (8, ncols*chunk) f32
    block, each column zero-padded to 8 rows and replicated across `chunk` lanes.
    Starting from zeros keeps the padded-row correctness invariant."""
    ncols = int(sum(dims[:-1]))
    w_packed = np.zeros((MAX_FEAT, ncols * chunk), np.float32)
    off = 0
    for w in weights:
        w_np = np.asarray(w, dtype=np.float32)                  # (out_l, in_l)
        out_l, in_l = w_np.shape
        for k in range(in_l):
            col0 = (off + k) * chunk
            w_packed[:out_l, col0:col0 + chunk] = w_np[:, k:k + 1]   # lane-replicated
        off += in_l
    return jnp.asarray(w_packed)


def mlp_forward_fm(x_fm, weights, *, block_b=4096, chunk=256):
    """Feature-major forward (no wrapper transposes).

    x_fm: (in_dim, B) f32, batch on the trailing (lane) axis.
    weights: list of 10 (out, in) matrices (PyTorch nn.Linear layout).
    Returns (out_dim, B) f32.
    """
    in_dim, B = x_fm.shape
    out_dim = int(weights[-1].shape[0])
    dims = tuple([in_dim] + [int(w.shape[0]) for w in weights])
    col_offsets = tuple(int(sum(dims[:l])) for l in range(len(dims) - 1))
    ncols = int(sum(dims[:-1]))

    block_b = min(block_b, B)
    chunk = min(chunk, block_b)
    # v7x has 2 TensorCores; keep >= 2 "parallel" grid steps when the batch allows it.
    if B // block_b < 2 and B % (2 * chunk) == 0:
        block_b = B // 2
    assert B % block_b == 0, "batch must divide evenly into lane tiles"
    assert block_b % chunk == 0, "lane tile must divide into inner chunks"
    assert chunk % 128 == 0, "inner chunk must be 128-lane aligned"

    w_packed = pack_weights(weights, dims, chunk)     # (8, ncols*chunk), resident

    flops = 2 * B * sum(int(w.shape[0] * w.shape[1]) for w in weights)
    bytes_accessed = B * (in_dim + out_dim) * 4 + int(w_packed.size) * 4

    out_fm = pl.pallas_call(
        functools.partial(mlp_kernel, dims, col_offsets, chunk),
        out_shape=jax.ShapeDtypeStruct((out_dim, B), jnp.float32),
        grid_spec=pltpu.PrefetchScalarGridSpec(
            num_scalar_prefetch=0,
            grid=(B // block_b,),
            in_specs=[
                # Packed weights: constant block index -> loaded once, resident in VMEM.
                pl.BlockSpec((MAX_FEAT, ncols * chunk), lambda i: (0, 0)),
                # x tile: lane-dense (batch on lanes).
                pl.BlockSpec((in_dim, block_b), lambda i: (0, i)),
            ],
            out_specs=pl.BlockSpec((out_dim, block_b), lambda i: (0, i)),
        ),
        compiler_params=pltpu.CompilerParams(
            dimension_semantics=("parallel",)),
        cost_estimate=pl.CostEstimate(
            flops=flops, transcendentals=0, bytes_accessed=bytes_accessed),
    )(w_packed, x_fm.astype(jnp.float32))

    return out_fm


def mlp_forward(x, weights, **kw):
    """Batch-major convenience wrapper matching the PyTorch (B, in_dim) -> (B, out_dim)
    API.  NOTE: for this tiny MLP the two transposes cost roughly as much as the kernel;
    prefer mlp_forward_fm when the producer/consumer can work feature-major."""
    return jnp.transpose(mlp_forward_fm(jnp.transpose(x), weights, **kw))


def make_weights(key, input_dim=2, hidden_dim=7, output_dim=1):
    """Deterministic synthetic weights in PyTorch (out, in) layout."""
    dims = [input_dim] + [hidden_dim] * 9 + [output_dim]
    weights = []
    for i in range(NUM_LAYERS):
        key, sub = jax.random.split(key)
        fan_in, fan_out = dims[i], dims[i + 1]
        bound = 1.0 / (fan_in ** 0.5)                  # matches nn.Linear default scale
        w = jax.random.uniform(sub, (fan_out, fan_in), jnp.float32,
                               minval=-bound, maxval=bound)
        weights.append(w)
    return weights


def reference_forward(x_bm, weights):
    h = x_bm
    for w in weights:
        h = h @ w.T
        h = jnp.where(h > 0, h, 0.01 * h)
    return h


if __name__ == "__main__":
    key = jax.random.PRNGKey(0)
    k_x, k_w = jax.random.split(key)

    input_dim, hidden_dim, output_dim = 2, 7, 1
    batch = 2048                                       # 2 "parallel" grid steps of 1024

    # Feature-major input (in_dim, batch): batch lives on the lane axis, no transposes.
    x_fm = jax.random.normal(k_x, (input_dim, batch), jnp.float32)
    weights = make_weights(k_w, input_dim, hidden_dim, output_dim)

    out_fm = mlp_forward_fm(x_fm, weights, block_b=1024, chunk=256)
    out_fm = jax.block_until_ready(out_fm)

    ref_bm = reference_forward(jnp.transpose(x_fm), weights)      # (batch, out_dim)
    ref_fm = jnp.transpose(ref_bm)                                # (out_dim, batch)

    assert out_fm.shape == (output_dim, batch)
    assert jnp.allclose(out_fm, ref_fm, atol=1e-5, rtol=1e-5)

    # Batch-major wrapper parity with the PyTorch module's (B, in) -> (B, out) API.
    out_bm = jax.block_until_ready(
        mlp_forward(jnp.transpose(x_fm), weights, block_b=1024, chunk=256))
    assert out_bm.shape == (batch, output_dim)
    assert jnp.allclose(out_bm, ref_bm, atol=1e-5, rtol=1e-5)

    print("KERNEL_OK")
</pallas_src>

<mosaic_0001>
module attributes {stable_mosaic.version = 11 : i64} {
  func.func @mlp_kernel(%arg0: i32, %arg1: memref<8x16640xf32, #tpu.memory_space<vmem>>, %arg2: memref<2x1024xf32, #tpu.memory_space<vmem>>, %arg3: memref<1x1024xf32, #tpu.memory_space<vmem>>) attributes {dimension_semantics = [#tpu.dimension_semantics<parallel>], iteration_bounds = array<i64: 2>, scalar_prefetch = 0 : i64, scratch_operands = 0 : i64, tpu.core_type = #tpu.core_type<tc>, window_params = [{pipeline_mode = #tpu.pipeline_mode<synchronous>, transform_indices = @transform_0, window_bounds = array<i64: 8, 16640>}, {transform_indices = @transform_1, window_bounds = array<i64: 2, 1024>}, {transform_indices = @transform_2, window_bounds = array<i64: 1, 1024>}]} {
    %c0 = arith.constant 0 : index
    %c0_0 = arith.constant 0 : index
    %0 = vector.load %arg2[%c0, %c0_0] : memref<2x1024xf32, #tpu.memory_space<vmem>>, vector<2x256xf32>
    %c0_1 = arith.constant 0 : index
    %c0_2 = arith.constant 0 : index
    %1 = vector.load %arg1[%c0_1, %c0_2] : memref<8x16640xf32, #tpu.memory_space<vmem>>, vector<8x256xf32>
    %2 = vector.extract_strided_slice %0 {offsets = [0, 0], sizes = [1, 256], strides = [1, 1]} : vector<2x256xf32> to vector<1x256xf32>
    %3 = vector.broadcast %2 : vector<1x256xf32> to vector<8x256xf32>
    %4 = arith.mulf %1, %3 : vector<8x256xf32>
    %c0_3 = arith.constant 0 : index
    %c256 = arith.constant 256 : index
    %5 = vector.load %arg1[%c0_3, %c256] : memref<8x16640xf32, #tpu.memory_space<vmem>>, vector<8x256xf32>
    %6 = vector.extract_strided_slice %0 {offsets = [1, 0], sizes = [1, 256], strides = [1, 1]} : vector<2x256xf32> to vector<1x256xf32>
    %7 = vector.broadcast %6 : vector<1x256xf32> to vector<8x256xf32>
    %8 = arith.mulf %5, %7 : vector<8x256xf32>
    %9 = arith.addf %4, %8 : vector<8x256xf32>
    %cst = arith.constant 0.000000e+00 : f32
    %10 = vector.broadcast %cst : f32 to vector<8x256xf32>
    %11 = arith.cmpf ogt, %9, %10 : vector<8x256xf32>
    %cst_4 = arith.constant 0.00999999977 : f32
    %12 = vector.broadcast %cst_4 : f32 to vector<8x256xf32>
    %13 = arith.mulf %12, %9 : vector<8x256xf32>
    %14 = arith.select %11, %9, %13 : vector<8x256xi1>, vector<8x256xf32>
    %c0_5 = arith.constant 0 : index
    %c512 = arith.constant 512 : index
    %15 = vector.load %arg1[%c0_5, %c512] : memref<8x16640xf32, #tpu.memory_space<vmem>>, vector<8x256xf32>
    %16 = vector.extract_strided_slice %14 {offsets = [0, 0], sizes = [1, 256], strides = [1, 1]} : vector<8x256xf32> to vector<1x256xf32>
    %17 = vector.broadcast %16 : vector<1x256xf32> to vector<8x256xf32>
    %18 = arith.mulf %15, %17 : vector<8x256xf32>
    %c0_6 = arith.constant 0 : index
    %c768 = arith.constant 768 : index
    %19 = vector.load %arg1[%c0_6, %c768] : memref<8x16640xf32, #tpu.memory_space<vmem>>, vector<8x256xf32>
    %20 = vector.extract_strided_slice %14 {offsets = [1, 0], sizes = [1, 256], strides = [1, 1]} : vector<8x256xf32> to vector<1x256xf32>
    %21 = vector.broadcast %20 : vector<1x256xf32> to vector<8x256xf32>
    %22 = arith.mulf %19, %21 : vector<8x256xf32>
    %23 = arith.addf %18, %22 : vector<8x256xf32>
    %c0_7 = arith.constant 0 : index
    %c1024 = arith.constant 1024 : index
    %24 = vector.load %arg1[%c0_7, %c1024] : memref<8x16640xf32, #tpu.memory_space<vmem>>, vector<8x256xf32>
    %25 = vector.extract_strided_slice %14 {offsets = [2, 0], sizes = [1, 256], strides = [1, 1]} : vector<8x256xf32> to vector<1x256xf32>
    %26 = vector.broadcast %25 : vector<1x256xf32> to vector<8x256xf32>
    %27 = arith.mulf %24, %26 : vector<8x256xf32>
    %28 = arith.addf %23, %27 : vector<8x256xf32>
    %c0_8 = arith.constant 0 : index
    %c1280 = arith.constant 1280 : index
    %29 = vector.load %arg1[%c0_8, %c1280] : memref<8x16640xf32, #tpu.memory_space<vmem>>, vector<8x256xf32>
    %30 = vector.extract_strided_slice %14 {offsets = [3, 0], sizes = [1, 256], strides = [1, 1]} : vector<8x256xf32> to vector<1x256xf32>
    %31 = vector.broadcast %30 : vector<1x256xf32> to vector<8x256xf32>
    %32 = arith.mulf %29, %31 : vector<8x256xf32>
    %33 = arith.addf %28, %32 : vector<8x256xf32>
    %c0_9 = arith.constant 0 : index
    %c1536 = arith.constant 1536 : index
    %34 = vector.load %arg1[%c0_9, %c1536] : memref<8x16640xf32, #tpu.memory_space<vmem>>, vector<8x256xf32>
    %35 = vector.extract_strided_slice %14 {offsets = [4, 0], sizes = [1, 256], strides = [1, 1]} : vector<8x256xf32> to vector<1x256xf32>
    %36 = vector.broadcast %35 : vector<1x256xf32> to vector<8x256xf32>
    %37 = arith.mulf %34, %36 : vector<8x256xf32>
    %38 = arith.addf %33, %37 : vector<8x256xf32>
    %c0_10 = arith.constant 0 : index
    %c1792 = arith.constant 1792 : index
    %39 = vector.load %arg1[%c0_10, %c1792] : memref<8x16640xf32, #tpu.memory_space<vmem>>, vector<8x256xf32>
    %40 = vector.extract_strided_slice %14 {offsets = [5, 0], sizes = [1, 256], strides = [1, 1]} : vector<8x256xf32> to vector<1x256xf32>
    %41 = vector.broadcast %40 : vector<1x256xf32> to vector<8x256xf32>
    %42 = arith.mulf %39, %41 : vector<8x256xf32>
    %43 = arith.addf %38, %42 : vector<8x256xf32>
    %c0_11 = arith.constant 0 : index
    %c2048 = arith.constant 2048 : index
    %44 = vector.load %arg1[%c0_11, %c2048] : memref<8x16640xf32, #tpu.memory_space<vmem>>, vector<8x256xf32>
    %45 = vector.extract_strided_slice %14 {offsets = [6, 0], sizes = [1, 256], strides = [1, 1]} : vector<8x256xf32> to vector<1x256xf32>
    %46 = vector.broadcast %45 : vector<1x256xf32> to vector<8x256xf32>
    %47 = arith.mulf %44, %46 : vector<8x256xf32>
    %48 = arith.addf %43, %47 : vector<8x256xf32>
    %cst_12 = arith.constant 0.000000e+00 : f32
    %49 = vector.broadcast %cst_12 : f32 to vector<8x256xf32>
    %50 = arith.cmpf ogt, %48, %49 : vector<8x256xf32>
    %cst_13 = arith.constant 0.00999999977 : f32
    %51 = vector.broadcast %cst_13 : f32 to vector<8x256xf32>
    %52 = arith.mulf %51, %48 : vector<8x256xf32>
    %53 = arith.select %50, %48, %52 : vector<8x256xi1>, vector<8x256xf32>
    %c0_14 = arith.constant 0 : index
    %c2304 = arith.constant 2304 : index
    %54 = vector.load %arg1[%c0_14, %c2304] : memref<8x16640xf32, #tpu.memory_space<vmem>>, vector<8x256xf32>
    %55 = vector.extract_strided_slice %53 {offsets = [0, 0], sizes = [1, 256], strides = [1, 1]} : vector<8x256xf32> to vector<1x256xf32>
    %56 = vector.broadcast %55 : vector<1x256xf32> to vector<8x256xf32>
    %57 = arith.mulf %54, %56 : vector<8x256xf32>
    %c0_15 = arith.constant 0 : index
    %c2560 = arith.constant 2560 : index
    %58 = vector.load %arg1[%c0_15, %c2560] : memref<8x16640xf32, #tpu.memory_space<vmem>>, vector<8x256xf32>
    %59 = vector.extract_strided_slice %53 {offsets = [1, 0], sizes = [1, 256], strides = [1, 1]} : vector<8x256xf32> to vector<1x256xf32>
    %60 = vector.broadcast %59 : vector<1x256xf32> to vector<8x256xf32>
    %61 = arith.mulf %58, %60 : vector<8x256xf32>
    %62 = arith.addf %57, %61 : vector<8x256xf32>
    %c0_16 = arith.constant 0 : index
    %c2816 = arith.constant 2816 : index
    %63 = vector.load %arg1[%c0_16, %c2816] : memref<8x16640xf32, #tpu.memory_space<vmem>>, vector<8x256xf32>
    %64 = vector.extract_strided_slice %53 {offsets = [2, 0], sizes = [1, 256], strides = [1, 1]} : vector<8x256xf32> to vector<1x256xf32>
    %65 = vector.broadcast %64 : vector<1x256xf32> to vector<8x256xf32>
    %66 = arith.mulf %63, %65 : vector<8x256xf32>
    %67 = arith.addf %62, %66 : vector<8x256xf32>
    %c0_17 = arith.constant 0 : index
    %c3072 = arith.constant 3072 : index
    %68 = vector.load %arg1[%c0_17, %c3072] : memref<8x16640xf32, #tpu.memory_space<vmem>>, vector<8x256xf32>
    %69 = vector.extract_strided_slice %53 {offsets = [3, 0], sizes = [1, 256], strides = [1, 1]} : vector<8x256xf32> to vector<1x256xf32>
    %70 = vector.broadcast %69 : vector<1x256xf32> to vector<8x256xf32>
    %71 = arith.mulf %68, %70 : vector<8x256xf32>
    %72 = arith.addf %67, %71 : vector<8x256xf32>
    %c0_18 = arith.constant 0 : index
    %c3328 = arith.constant 3328 : index
    %73 = vector.load %arg1[%c0_18, %c3328] : memref<8x16640xf32, #tpu.memory_space<vmem>>, vector<8x256xf32>
    %74 = vector.extract_strided_slice %53 {offsets = [4, 0], sizes = [1, 256], strides = [1, 1]} : vector<8x256xf32> to vector<1x256xf32>
    %75 = vector.broadcast %74 : vector<1x256xf32> to vector<8x256xf32>
    %76 = arith.mulf %73, %75 : vector<8x256xf32>
    %77 = arith.addf %72, %76 : vector<8x256xf32>
    %c0_19 = arith.constant 0 : index
    %c3584 = arith.constant 3584 : index
    %78 = vector.load %arg1[%c0_19, %c3584] : memref<8x16640xf32, #tpu.memory_space<vmem>>, vector<8x256xf32>
    %79 = vector.extract_strided_slice %53 {offsets = [5, 0], sizes = [1, 256], strides = [1, 1]} : vector<8x256xf32> to vector<1x256xf32>
    %80 = vector.broadcast %79 : vector<1x256xf32> to vector<8x256xf32>
    %81 = arith.mulf %78, %80 : vector<8x256xf32>
    %82 = arith.addf %77, %81 : vector<8x256xf32>
    %c0_20 = arith.constant 0 : index
    %c3840 = arith.constant 3840 : index
    %83 = vector.load %arg1[%c0_20, %c3840] : memref<8x16640xf32, #tpu.memory_space<vmem>>, vector<8x256xf32>
    %84 = vector.extract_strided_slice %53 {offsets = [6, 0], sizes = [1, 256], strides = [1, 1]} : vector<8x256xf32> to vector<1x256xf32>
    %85 = vector.broadcast %84 : vector<1x256xf32> to vector<8x256xf32>
    %86 = arith.mulf %83, %85 : vector<8x256xf32>
    %87 = arith.addf %82, %86 : vector<8x256xf32>
    %cst_21 = arith.constant 0.000000e+00 : f32
    %88 = vector.broadcast %cst_21 : f32 to vector<8x256xf32>
    %89 = arith.cmpf ogt, %87, %88 : vector<8x256xf32>
    %cst_22 = arith.constant 0.00999999977 : f32
    %90 = vector.broadcast %cst_22 : f32 to vector<8x256xf32>
    %91 = arith.mulf %90, %87 : vector<8x256xf32>
    %92 = arith.select %89, %87, %91 : vector<8x256xi1>, vector<8x256xf32>
    %c0_23 = arith.constant 0 : index
    %c4096 = arith.constant 4096 : index
    %93 = vector.load %arg1[%c0_23, %c4096] : memref<8x16640xf32, #tpu.memory_space<vmem>>, vector<8x256xf32>
    %94 = vector.extract_strided_slice %92 {offsets = [0, 0], sizes = [1, 256], strides = [1, 1]} : vector<8x256xf32> to vector<1x256xf32>
    %95 = vector.broadcast %94 : vector<1x256xf32> to vector<8x256xf32>
    %96 = arith.mulf %93, %95 : vector<8x256xf32>
    %c0_24 = arith.constant 0 : index
    %c4352 = arith.constant 4352 : index
    %97 = vector.load %arg1[%c0_24, %c4352] : memref<8x16640xf32, #tpu.memory_space<vmem>>, vector<8x256xf32>
    %98 = vector.extract_strided_slice %92 {offsets = [1, 0], sizes = [1, 256], strides = [1, 1]} : vector<8x256xf32> to vector<1x256xf32>
    %99 = vector.broadcast %98 : vector<1x256xf32> to vector<8x256xf32>
    %100 = arith.mulf %97, %99 : vector<8x256xf32>
    %101 = arith.addf %96, %100 : vector<8x256xf32>
    %c0_25 = arith.constant 0 : index
    %c4608 = arith.constant 4608 : index
    %102 = vector.load %arg1[%c0_25, %c4608] : memref<8x16640xf32, #tpu.memory_space<vmem>>, vector<8x256xf32>
    %103 = vector.extract_strided_slice %92 {offsets = [2, 0], sizes = [1, 256], strides = [1, 1]} : vector<8x256xf32> to vector<1x256xf32>
    %104 = vector.broadcast %103 : vector<1x256xf32> to vector<8x256xf32>
    %105 = arith.mulf %102, %104 : vector<8x256xf32>
    %106 = arith.addf %101, %105 : vector<8x256xf32>
    %c0_26 = arith.constant 0 : index
    %c4864 = arith.constant 4864 : index
    %107 = vector.load %arg1[%c0_26, %c4864] : memref<8x16640xf32, #tpu.memory_space<vmem>>, vector<8x256xf32>
    %108 = vector.extract_strided_slice %92 {offsets = [3, 0], sizes = [1, 256], strides = [1, 1]} : vector<8x256xf32> to vector<1x256xf32>
    %109 = vector.broadcast %108 : vector<1x256xf32> to vector<8x256xf32>
    %110 = arith.mulf %107, %109 : vector<8x256xf32>
    %111 = arith.addf %106, %110 : vector<8x256xf32>
    %c0_27 = arith.constant 0 : index
    %c5120 = arith.constant 5120 : index
    %112 = vector.load %arg1[%c0_27, %c5120] : memref<8x16640xf32, #tpu.memory_space<vmem>>, vector<8x256xf32>
    %113 = vector.extract_strided_slice %92 {offsets = [4, 0], sizes = [1, 256], strides = [1, 1]} : vector<8x256xf32> to vector<1x256xf32>
    %114 = vector.broadcast %113 : vector<1x256xf32> to vector<8x256xf32>
    %115 = arith.mulf %112, %114 : vector<8x256xf32>
    %116 = arith.addf %111, %115 : vector<8x256xf32>
    %c0_28 = arith.constant 0 : index
    %c5376 = arith.constant 5376 : index
    %117 = vector.load %arg1[%c0_28, %c5376] : memref<8x16640xf32, #tpu.memory_space<vmem>>, vector<8x256xf32>
    %118 = vector.extract_strided_slice %92 {offsets = [5, 0], sizes = [1, 256], strides = [1, 1]} : vector<8x256xf32> to vector<1x256xf32>
    %119 = vector.broadcast %118 : vector<1x256xf32> to vector<8x256xf32>
    %120 = arith.mulf %117, %119 : vector<8x256xf32>
    %121 = arith.addf %116, %120 : vector<8x256xf32>
    %c0_29 = arith.constant 0 : index
    %c5632 = arith.constant 5632 : index
    %122 = vector.load %arg1[%c0_29, %c5632] : memref<8x16640xf32, #tpu.memory_space<vmem>>, vector<8x256xf32>
    %123 = vector.extract_strided_slice %92 {offsets = [6, 0], sizes = [1, 256], strides = [1, 1]} : vector<8x256xf32> to vector<1x256xf32>
    %124 = vector.broadcast %123 : vector<1x256xf32> to vector<8x256xf32>
    %125 = arith.mulf %122, %124 : vector<8x256xf32>
    %126 = arith.addf %121, %125 : vector<8x256xf32>
    %cst_30 = arith.constant 0.000000e+00 : f32
    %127 = vector.broadcast %cst_30 : f32 to vector<8x256xf32>
    %128 = arith.cmpf ogt, %126, %127 : vector<8x256xf32>
    %cst_31 = arith.constant 0.00999999977 : f32
    %129 = vector.broadcast %cst_31 : f32 to vector<8x256xf32>
    %130 = arith.mulf %129, %126 : vector<8x256xf32>
    %131 = arith.select %128, %126, %130 : vector<8x256xi1>, vector<8x256xf32>
    %c0_32 = arith.constant 0 : index
    %c5888 = arith.constant 5888 : index
    %132 = vector.load %arg1[%c0_32, %c5888] : memref<8x16640xf32, #tpu.memory_space<vmem>>, vector<8x256xf32>
    %133 = vector.extract_strided_slice %131 {offsets = [0, 0], sizes = [1, 256], strides = [1, 1]} : vector<8x256xf32> to vector<1x256xf32>
    %134 = vector.broadcast %133 : vector<1x256xf32> to vector<8x256xf32>
    %135 = arith.mulf %132, %134 : vector<8x256xf32>
    %c0_33 = arith.constant 0 : index
    %c6144 = arith.constant 6144 : index
    %136 = vector.load %arg1[%c0_33, %c6144] : memref<8x16640xf32, #tpu.memory_space<vmem>>, vector<8x256xf32>
    %137 = vector.extract_strided_slice %131 {offsets = [1, 0], sizes = [1, 256], strides = [1, 1]} : vector<8x256xf32> to vector<1x256xf32>
    %138 = vector.broadcast %137 : vector<1x256xf32> to vector<8x256xf32>
    %139 = arith.mulf %136, %138 : vector<8x256xf32>
    %140 = arith.addf %135, %139 : vector<8x256xf32>
    %c0_34 = arith.constant 0 : index
    %c6400 = arith.constant 6400 : index
    %141 = vector.load %arg1[%c0_34, %c6400] : memref<8x16640xf32, #tpu.memory_space<vmem>>, vector<8x256xf32>
    %142 = vector.extract_strided_slice %131 {offsets = [2, 0], sizes = [1, 256], strides = [1, 1]} : vector<8x256xf32> to vector<1x256xf32>
    %143 = vector.broadcast %142 : vector<1x256xf32> to vector<8x256xf32>
    %144 = arith.mulf %141, %143 : vector<8x256xf32>
    %145 = arith.addf %140, %144 : vector<8x256xf32>
    %c0_35 = arith.constant 0 : index
    %c6656 = arith.constant 6656 : index
    %146 = vector.load %arg1[%c0_35, %c6656] : memref<8x16640xf32, #tpu.memory_space<vmem>>, vector<8x256xf32>
    %147 = vector.extract_strided_slice %131 {offsets = [3, 0], sizes = [1, 256], strides = [1, 1]} : vector<8x256xf32> to vector<1x256xf32>
    %148 = vector.broadcast %147 : vector<1x256xf32> to vector<8x256xf32>
    %149 = arith.mulf %146, %148 : vector<8x256xf32>
    %150 = arith.addf %145, %149 : vector<8x256xf32>
    %c0_36 = arith.constant 0 : index
    %c6912 = arith.constant 6912 : index
    %151 = vector.load %arg1[%c0_36, %c6912] : memref<8x16640xf32, #tpu.memory_space<vmem>>, vector<8x256xf32>
    %152 = vector.extract_strided_slice %131 {offsets = [4, 0], sizes = [1, 256], strides = [1, 1]} : vector<8x256xf32> to vector<1x256xf32>
    %153 = vector.broadcast %152 : vector<1x256xf32> to vector<8x256xf32>
    %154 = arith.mulf %151, %153 : vector<8x256xf32>
    %155 = arith.addf %150, %154 : vector<8x256xf32>
    %c0_37 = arith.constant 0 : index
    %c7168 = arith.constant 7168 : index
    %156 = vector.load %arg1[%c0_37, %c7168] : memref<8x16640xf32, #tpu.memory_space<vmem>>, vector<8x256xf32>
    %157 = vector.extract_strided_slice %131 {offsets = [5, 0], sizes = [1, 256], strides = [1, 1]} : vector<8x256xf32> to vector<1x256xf32>
    %158 = vector.broadcast %157 : vector<1x256xf32> to vector<8x256xf32>
    %159 = arith.mulf %156, %158 : vector<8x256xf32>
    %160 = arith.addf %155, %159 : vector<8x256xf32>
    %c0_38 = arith.constant 0 : index
    %c7424 = arith.constant 7424 : index
    %161 = vector.load %arg1[%c0_38, %c7424] : memref<8x16640xf32, #tpu.memory_space<vmem>>, vector<8x256xf32>
    %162 = vector.extract_strided_slice %131 {offsets = [6, 0], sizes = [1, 256], strides = [1, 1]} : vector<8x256xf32> to vector<1x256xf32>
    %163 = vector.broadcast %162 : vector<1x256xf32> to vector<8x256xf32>
    %164 = arith.mulf %161, %163 : vector<8x256xf32>
    %165 = arith.addf %160, %164 : vector<8x256xf32>
    %cst_39 = arith.constant 0.000000e+00 : f32
    %166 = vector.broadcast %cst_39 : f32 to vector<8x256xf32>
    %167 = arith.cmpf ogt, %165, %166 : vector<8x256xf32>
    %cst_40 = arith.constant 0.00999999977 : f32
    %168 = vector.broadcast %cst_40 : f32 to vector<8x256xf32>
    %169 = arith.mulf %168, %165 : vector<8x256xf32>
    %170 = arith.select %167, %165, %169 : vector<8x256xi1>, vector<8x256xf32>
    %c0_41 = arith.constant 0 : index
    %c7680 = arith.constant 7680 : index
    %171 = vector.load %arg1[%c0_41, %c7680] : memref<8x16640xf32, #tpu.memory_space<vmem>>, vector<8x256xf32>
    %172 = vector.extract_strided_slice %170 {offsets = [0, 0], sizes = [1, 256], strides = [1, 1]} : vector<8x256xf32> to vector<1x256xf32>
    %173 = vector.broadcast %172 : vector<1x256xf32> to vector<8x256xf32>
    %174 = arith.mulf %171, %173 : vector<8x256xf32>
    %c0_42 = arith.constant 0 : index
    %c7936 = arith.constant 7936 : index
    %175 = vector.load %arg1[%c0_42, %c7936] : memref<8x16640xf32, #tpu.memory_space<vmem>>, vector<8x256xf32>
    %176 = vector.extract_strided_slice %170 {offsets = [1, 0], sizes = [1, 256], strides = [1, 1]} : vector<8x256xf32> to vector<1x256xf32>
    %177 = vector.broadcast %176 : vector<1x256xf32> to vector<8x256xf32>
    %178 = arith.mulf %175, %177 : vector<8x256xf32>
    %179 = arith.addf %174, %178 : vector<8x256xf32>
    %c0_43 = arith.constant 0 : index
    %c8192 = arith.constant 8192 : index
    %180 = vector.load %arg1[%c0_43, %c8192] : memref<8x16640xf32, #tpu.memory_space<vmem>>, vector<8x256xf32>
    %181 = vector.extract_strided_slice %170 {offsets = [2, 0], sizes = [1, 256], strides = [1, 1]} : vector<8x256xf32> to vector<1x256xf32>
    %182 = vector.broadcast %181 : vector<1x256xf32> to vector<8x256xf32>
    %183 = arith.mulf %180, %182 : vector<8x256xf32>
    %184 = arith.addf %179, %183 : vector<8x256xf32>
    %c0_44 = arith.constant 0 : index
    %c8448 = arith.constant 8448 : index
    %185 = vector.load %arg1[%c0_44, %c8448] : memref<8x16640xf32, #tpu.memory_space<vmem>>, vector<8x256xf32>
    %186 = vector.extract_strided_slice %170 {offsets = [3, 0], sizes = [1, 256], strides = [1, 1]} : vector<8x256xf32> to vector<1x256xf32>
    %187 = vector.broadcast %186 : vector<1x256xf32> to vector<8x256xf32>
    %188 = arith.mulf %185, %187 : vector<8x256xf32>
    %189 = arith.addf %184, %188 : vector<8x256xf32>
    %c0_45 = arith.constant 0 : index
    %c8704 = arith.constant 8704 : index
    %190 = vector.load %arg1[%c0_45, %c8704] : memref<8x16640xf32, #tpu.memory_space<vmem>>, vector<8x256xf32>
    %191 = vector.extract_strided_slice %170 {offsets = [4, 0], sizes = [1, 256], strides = [1, 1]} : vector<8x256xf32> to vector<1x256xf32>
    %192 = vector.broadcast %191 : vector<1x256xf32> to vector<8x256xf32>
    %193 = arith.mulf %190, %192 : vector<8x256xf32>
    %194 = arith.addf %189, %193 : vector<8x256xf32>
    %c0_46 = arith.constant 0 : index
    %c8960 = arith.constant 8960 : index
    %195 = vector.load %arg1[%c0_46, %c8960] : memref<8x16640xf32, #tpu.memory_space<vmem>>, vector<8x256xf32>
    %196 = vector.extract_strided_slice %170 {offsets = [5, 0], sizes = [1, 256], strides = [1, 1]} : vector<8x256xf32> to vector<1x256xf32>
    %197 = vector.broadcast %196 : vector<1x256xf32> to vector<8x256xf32>
    %198 = arith.mulf %195, %197 : vector<8x256xf32>
    %199 = arith.addf %194, %198 : vector<8x256xf32>
    %c0_47 = arith.constant 0 : index
    %c9216 = arith.constant 9216 : index
    %200 = vector.load %arg1[%c0_47, %c9216] : memref<8x16640xf32, #tpu.memory_space<vmem>>, vector<8x256xf32>
    %201 = vector.extract_strided_slice %170 {offsets = [6, 0], sizes = [1, 256], strides = [1, 1]} : vector<8x256xf32> to vector<1x256xf32>
    %202 = vector.broadcast %201 : vector<1x256xf32> to vector<8x256xf32>
    %203 = arith.mulf %200, %202 : vector<8x256xf32>
    %204 = arith.addf %199, %203 : vector<8x256xf32>
    %cst_48 = arith.constant 0.000000e+00 : f32
    %205 = vector.broadcast %cst_48 : f32 to vector<8x256xf32>
    %206 = arith.cmpf ogt, %204, %205 : vector<8x256xf32>
    %cst_49 = arith.constant 0.00999999977 : f32
    %207 = vector.broadcast %cst_49 : f32 to vector<8x256xf32>
    %208 = arith.mulf %207, %204 : vector<8x256xf32>
    %209 = arith.select %206, %204, %208 : vector<8x256xi1>, vector<8x256xf32>
    %c0_50 = arith.constant 0 : index
    %c9472 = arith.constant 9472 : index
    %210 = vector.load %arg1[%c0_50, %c9472] : memref<8x16640xf32, #tpu.memory_space<vmem>>, vector<8x256xf32>
    %211 = vector.extract_strided_slice %209 {offsets = [0, 0], sizes = [1, 256], strides = [1, 1]} : vector<8x256xf32> to vector<1x256xf32>
    %212 = vector.broadcast %211 : vector<1x256xf32> to vector<8x256xf32>
    %213 = arith.mulf %210, %212 : vector<8x256xf32>
    %c0_51 = arith.constant 0 : index
    %c9728 = arith.constant 9728 : index
    %214 = vector.load %arg1[%c0_51, %c9728] : memref<8x16640xf32, #tpu.memory_space<vmem>>, vector<8x256xf32>
    %215 = vector.extract_strided_slice %209 {offsets = [1, 0], sizes = [1, 256], strides = [1, 1]} : vector<8x256xf32> to vector<1x256xf32>
    %216 = vector.broadcast %215 : vector<1x256xf32> to vector<8x256xf32>
    %217 = arith.mulf %214, %216 : vector<8x256xf32>
    %218 = arith.addf %213, %217 : vector<8x256xf32>
    %c0_52 = arith.constant 0 : index
    %c9984 = arith.constant 9984 : index
    %219 = vector.load %arg1[%c0_52, %c9984] : memref<8x16640xf32, #tpu.memory_space<vmem>>, vector<8x256xf32>
    %220 = vector.extract_strided_slice %209 {offsets = [2, 0], sizes = [1, 256], strides = [1, 1]} : vector<8x256xf32> to vector<1x256xf32>
    %221 = vector.broadcast %220 : vector<1x256xf32> to vector<8x256xf32>
    %222 = arith.mulf %219, %221 : vector<8x256xf32>
    %223 = arith.addf %218, %222 : vector<8x256xf32>
    %c0_53 = arith.constant 0 : index
    %c10240 = arith.constant 10240 : index
    %224 = vector.load %arg1[%c0_53, %c10240] : memref<8x16640xf32, #tpu.memory_space<vmem>>, vector<8x256xf32>
    %225 = vector.extract_strided_slice %209 {offsets = [3, 0], sizes = [1, 256], strides = [1, 1]} : vector<8x256xf32> to vector<1x256xf32>
    %226 = vector.broadcast %225 : vector<1x256xf32> to vector<8x256xf32>
    %227 = arith.mulf %224, %226 : vector<8x256xf32>
    %228 = arith.addf %223, %227 : vector<8x256xf32>
    %c0_54 = arith.constant 0 : index
    %c10496 = arith.constant 10496 : index
    %229 = vector.load %arg1[%c0_54, %c10496] : memref<8x16640xf32, #tpu.memory_space<vmem>>, vector<8x256xf32>
    %230 = vector.extract_strided_slice %209 {offsets = [4, 0], sizes = [1, 256], strides = [1, 1]} : vector<8x256xf32> to vector<1x256xf32>
    %231 = vector.broadcast %230 : vector<1x256xf32> to vector<8x256xf32>
    %232 = arith.mulf %229, %231 : vector<8x256xf32>
    %233 = arith.addf %228, %232 : vector<8x256xf32>
    %c0_55 = arith.constant 0 : index
    %c10752 = arith.constant 10752 : index
    %234 = vector.load %arg1[%c0_55, %c10752] : memref<8x16640xf32, #tpu.memory_space<vmem>>, vector<8x256xf32>
    %235 = vector.extract_strided_slice %209 {offsets = [5, 0], sizes = [1, 256], strides = [1, 1]} : vector<8x256xf32> to vector<1x256xf32>
    %236 = vector.broadcast %235 : vector<1x256xf32> to vector<8x256xf32>
    %237 = arith.mulf %234, %236 : vector<8x256xf32>
    %238 = arith.addf %233, %237 : vector<8x256xf32>
    %c0_56 = arith.constant 0 : index
    %c11008 = arith.constant 11008 : index
    %239 = vector.load %arg1[%c0_56, %c11008] : memref<8x16640xf32, #tpu.memory_space<vmem>>, vector<8x256xf32>
    %240 = vector.extract_strided_slice %209 {offsets = [6, 0], sizes = [1, 256], strides = [1, 1]} : vector<8x256xf32> to vector<1x256xf32>
    %241 = vector.broadcast %240 : vector<1x256xf32> to vector<8x256xf32>
    %242 = arith.mulf %239, %241 : vector<8x256xf32>
    %243 = arith.addf %238, %242 : vector<8x256xf32>
    %cst_57 = arith.constant 0.000000e+00 : f32
    %244 = vector.broadcast %cst_57 : f32 to vector<8x256xf32>
    %245 = arith.cmpf ogt, %243, %244 : vector<8x256xf32>
    %cst_58 = arith.constant 0.00999999977 : f32
    %246 = vector.broadcast %cst_58 : f32 to vector<8x256xf32>
    %247 = arith.mulf %246, %243 : vector<8x256xf32>
    %248 = arith.select %245, %243, %247 : vector<8x256xi1>, vector<8x256xf32>
    %c0_59 = arith.constant 0 : index
    %c11264 = arith.constant 11264 : index
    %249 = vector.load %arg1[%c0_59, %c11264] : memref<8x16640xf32, #tpu.memory_space<vmem>>, vector<8x256xf32>
    %250 = vector.extract_strided_slice %248 {offsets = [0, 0], sizes = [1, 256], strides = [1, 1]} : vector<8x256xf32> to vector<1x256xf32>
    %251 = vector.broadcast %250 : vector<1x256xf32> to vector<8x256xf32>
    %252 = arith.mulf %249, %251 : vector<8x256xf32>
    %c0_60 = arith.constant 0 : index
    %c11520 = arith.constant 11520 : index
    %253 = vector.load %arg1[%c0_60, %c11520] : memref<8x16640xf32, #tpu.memory_space<vmem>>, vector<8x256xf32>
    %254 = vector.extract_strided_slice %248 {offsets = [1, 0], sizes = [1, 256], strides = [1, 1]} : vector<8x256xf32> to vector<1x256xf32>
    %255 = vector.broadcast %254 : vector<1x256xf32> to vector<8x256xf32>
    %256 = arith.mulf %253, %255 : vector<8x256xf32>
    %257 = arith.addf %252, %256 : vector<8x256xf32>
    %c0_61 = arith.constant 0 : index
    %c11776 = arith.constant 11776 : index
    %258 = vector.load %arg1[%c0_61, %c11776] : memref<8x16640xf32, #tpu.memory_space<vmem>>, vector<8x256xf32>
    %259 = vector.extract_strided_slice %248 {offsets = [2, 0], sizes = [1, 256], strides = [1, 1]} : vector<8x256xf32> to vector<1x256xf32>
    %260 = vector.broadcast %259 : vector<1x256xf32> to vector<8x256xf32>
    %261 = arith.mulf %258, %260 : vector<8x256xf32>
    %262 = arith.addf %257, %261 : vector<8x256xf32>
    %c0_62 = arith.constant 0 : index
    %c12032 = arith.constant 12032 : index
    %263 = vector.load %arg1[%c0_62, %c12032] : memref<8x16640xf32, #tpu.memory_space<vmem>>, vector<8x256xf32>
    %264 = vector.extract_strided_slice %248 {offsets = [3, 0], sizes = [1, 256], strides = [1, 1]} : vector<8x256xf32> to vector<1x256xf32>
    %265 = vector.broadcast %264 : vector<1x256xf32> to vector<8x256xf32>
    %266 = arith.mulf %263, %265 : vector<8x256xf32>
    %267 = arith.addf %262, %266 : vector<8x256xf32>
    %c0_63 = arith.constant 0 : index
    %c12288 = arith.constant 12288 : index
    %268 = vector.load %arg1[%c0_63, %c12288] : memref<8x16640xf32, #tpu.memory_space<vmem>>, vector<8x256xf32>
    %269 = vector.extract_strided_slice %248 {offsets = [4, 0], sizes = [1, 256], strides = [1, 1]} : vector<8x256xf32> to vector<1x256xf32>
    %270 = vector.broadcast %269 : vector<1x256xf32> to vector<8x256xf32>
    %271 = arith.mulf %268, %270 : vector<8x256xf32>
    %272 = arith.addf %267, %271 : vector<8x256xf32>
    %c0_64 = arith.constant 0 : index
    %c12544 = arith.constant 12544 : index
    %273 = vector.load %arg1[%c0_64, %c12544] : memref<8x16640xf32, #tpu.memory_space<vmem>>, vector<8x256xf32>
    %274 = vector.extract_strided_slice %248 {offsets = [5, 0], sizes = [1, 256], strides = [1, 1]} : vector<8x256xf32> to vector<1x256xf32>
    %275 = vector.broadcast %274 : vector<1x256xf32> to vector<8x256xf32>
    %276 = arith.mulf %273, %275 : vector<8x256xf32>
    %277 = arith.addf %272, %276 : vector<8x256xf32>
    %c0_65 = arith.constant 0 : index
    %c12800 = arith.constant 12800 : index
    %278 = vector.load %arg1[%c0_65, %c12800] : memref<8x16640xf32, #tpu.memory_space<vmem>>, vector<8x256xf32>
    %279 = vector.extract_strided_slice %248 {offsets = [6, 0], sizes = [1, 256], strides = [1, 1]} : vector<8x256xf32> to vector<1x256xf32>
    %280 = vector.broadcast %279 : vector<1x256xf32> to vector<8x256xf32>
    %281 = arith.mulf %278, %280 : vector<8x256xf32>
    %282 = arith.addf %277, %281 : vector<8x256xf32>
    %cst_66 = arith.constant 0.000000e+00 : f32
    %283 = vector.broadcast %cst_66 : f32 to vector<8x256xf32>
    %284 = arith.cmpf ogt, %282, %283 : vector<8x256xf32>
    %cst_67 = arith.constant 0.00999999977 : f32
    %285 = vector.broadcast %cst_67 : f32 to vector<8x256xf32>
    %286 = arith.mulf %285, %282 : vector<8x256xf32>
    %287 = arith.select %284, %282, %286 : vector<8x256xi1>, vector<8x256xf32>
    %c0_68 = arith.constant 0 : index
    %c13056 = arith.constant 13056 : index
    %288 = vector.load %arg1[%c0_68, %c13056] : memref<8x16640xf32, #tpu.memory_space<vmem>>, vector<8x256xf32>
    %289 = vector.extract_strided_slice %287 {offsets = [0, 0], sizes = [1, 256], strides = [1, 1]} : vector<8x256xf32> to vector<1x256xf32>
    %290 = vector.broadcast %289 : vector<1x256xf32> to vector<8x256xf32>
    %291 = arith.mulf %288, %290 : vector<8x256xf32>
    %c0_69 = arith.constant 0 : index
    %c13312 = arith.constant 13312 : index
    %292 = vector.load %arg1[%c0_69, %c13312] : memref<8x16640xf32, #tpu.memory_space<vmem>>, vector<8x256xf32>
    %293 = vector.extract_strided_slice %287 {offsets = [1, 0], sizes = [1, 256], strides = [1, 1]} : vector<8x256xf32> to vector<1x256xf32>
    %294 = vector.broadcast %293 : vector<1x256xf32> to vector<8x256xf32>
    %295 = arith.mulf %292, %294 : vector<8x256xf32>
    %296 = arith.addf %291, %295 : vector<8x256xf32>
    %c0_70 = arith.constant 0 : index
    %c13568 = arith.constant 13568 : index
    %297 = vector.load %arg1[%c0_70, %c13568] : memref<8x16640xf32, #tpu.memory_space<vmem>>, vector<8x256xf32>
    %298 = vector.extract_strided_slice %287 {offsets = [2, 0], sizes = [1, 256], strides = [1, 1]} : vector<8x256xf32> to vector<1x256xf32>
    %299 = vector.broadcast %298 : vector<1x256xf32> to vector<8x256xf32>
    %300 = arith.mulf %297, %299 : vector<8x256xf32>
    %301 = arith.addf %296, %300 : vector<8x256xf32>
    %c0_71 = arith.constant 0 : index
    %c13824 = arith.constant 13824 : index
    %302 = vector.load %arg1[%c0_71, %c13824] : memref<8x16640xf32, #tpu.memory_space<vmem>>, vector<8x256xf32>
    %303 = vector.extract_strided_slice %287 {offsets = [3, 0], sizes = [1, 256], strides = [1, 1]} : vector<8x256xf32> to vector<1x256xf32>
    %304 = vector.broadcast %303 : vector<1x256xf32> to vector<8x256xf32>
    %305 = arith.mulf %302, %304 : vector<8x256xf32>
    %306 = arith.addf %301, %305 : vector<8x256xf32>
    %c0_72 = arith.constant 0 : index
    %c14080 = arith.constant 14080 : index
    %307 = vector.load %arg1[%c0_72, %c14080] : memref<8x16640xf32, #tpu.memory_space<vmem>>, vector<8x256xf32>
    %308 = vector.extract_strided_slice %287 {offsets = [4, 0], sizes = [1, 256], strides = [1, 1]} : vector<8x256xf32> to vector<1x256xf32>
    %309 = vector.broadcast %308 : vector<1x256xf32> to vector<8x256xf32>
    %310 = arith.mulf %307, %309 : vector<8x256xf32>
    %311 = arith.addf %306, %310 : vector<8x256xf32>
    %c0_73 = arith.constant 0 : index
    %c14336 = arith.constant 14336 : index
    %312 = vector.load %arg1[%c0_73, %c14336] : memref<8x16640xf32, #tpu.memory_space<vmem>>, vector<8x256xf32>
    %313 = vector.extract_strided_slice %287 {offsets = [5, 0], sizes = [1, 256], strides = [1, 1]} : vector<8x256xf32> to vector<1x256xf32>
    %314 = vector.broadcast %313 : vector<1x256xf32> to vector<8x256xf32>
    %315 = arith.mulf %312, %314 : vector<8x256xf32>
    %316 = arith.addf %311, %315 : vector<8x256xf32>
    %c0_74 = arith.constant 0 : index
    %c14592 = arith.constant 14592 : index
    %317 = vector.load %arg1[%c0_74, %c14592] : memref<8x16640xf32, #tpu.memory_space<vmem>>, vector<8x256xf32>
    %318 = vector.extract_strided_slice %287 {offsets = [6, 0], sizes = [1, 256], strides = [1, 1]} : vector<8x256xf32> to vector<1x256xf32>
    %319 = vector.broadcast %318 : vector<1x256xf32> to vector<8x256xf32>
    %320 = arith.mulf %317, %319 : vector<8x256xf32>
    %321 = arith.addf %316, %320 : vector<8x256xf32>
    %cst_75 = arith.constant 0.000000e+00 : f32
    %322 = vector.broadcast %cst_75 : f32 to vector<8x256xf32>
    %323 = arith.cmpf ogt, %321, %322 : vector<8x256xf32>
    %cst_76 = arith.constant 0.00999999977 : f32
    %324 = vector.broadcast %cst_76 : f32 to vector<8x256xf32>
    %325 = arith.mulf %324, %321 : vector<8x256xf32>
    %326 = arith.select %323, %321, %325 : vector<8x256xi1>, vector<8x256xf32>
    %c0_77 = arith.constant 0 : index
    %c14848 = arith.constant 14848 : index
    %327 = vector.load %arg1[%c0_77, %c14848] : memref<8x16640xf32, #tpu.memory_space<vmem>>, vector<8x256xf32>
    %328 = vector.extract_strided_slice %326 {offsets = [0, 0], sizes = [1, 256], strides = [1, 1]} : vector<8x256xf32> to vector<1x256xf32>
    %329 = vector.broadcast %328 : vector<1x256xf32> to vector<8x256xf32>
    %330 = arith.mulf %327, %329 : vector<8x256xf32>
    %c0_78 = arith.constant 0 : index
    %c15104 = arith.constant 15104 : index
    %331 = vector.load %arg1[%c0_78, %c15104] : memref<8x16640xf32, #tpu.memory_space<vmem>>, vector<8x256xf32>
    %332 = vector.extract_strided_slice %326 {offsets = [1, 0], sizes = [1, 256], strides = [1, 1]} : vector<8x256xf32> to vector<1x256xf32>
    %333 = vector.broadcast %332 : vector<1x256xf32> to vector<8x256xf32>
    %334 = arith.mulf %331, %333 : vector<8x256xf32>
    %335 = arith.addf %330, %334 : vector<8x256xf32>
    %c0_79 = arith.constant 0 : index
    %c15360 = arith.constant 15360 : index
    %336 = vector.load %arg1[%c0_79, %c15360] : memref<8x16640xf32, #tpu.memory_space<vmem>>, vector<8x256xf32>
    %337 = vector.extract_strided_slice %326 {offsets = [2, 0], sizes = [1, 256], strides = [1, 1]} : vector<8x256xf32> to vector<1x256xf32>
    %338 = vector.broadcast %337 : vector<1x256xf32> to vector<8x256xf32>
    %339 = arith.mulf %336, %338 : vector<8x256xf32>
    %340 = arith.addf %335, %339 : vector<8x256xf32>
    %c0_80 = arith.constant 0 : index
    %c15616 = arith.constant 15616 : index
    %341 = vector.load %arg1[%c0_80, %c15616] : memref<8x16640xf32, #tpu.memory_space<vmem>>, vector<8x256xf32>
    %342 = vector.extract_strided_slice %326 {offsets = [3, 0], sizes = [1, 256], strides = [1, 1]} : vector<8x256xf32> to vector<1x256xf32>
    %343 = vector.broadcast %342 : vector<1x256xf32> to vector<8x256xf32>
    %344 = arith.mulf %341, %343 : vector<8x256xf32>
    %345 = arith.addf %340, %344 : vector<8x256xf32>
    %c0_81 = arith.constant 0 : index
    %c15872 = arith.constant 15872 : index
    %346 = vector.load %arg1[%c0_81, %c15872] : memref<8x16640xf32, #tpu.memory_space<vmem>>, vector<8x256xf32>
    %347 = vector.extract_strided_slice %326 {offsets = [4, 0], sizes = [1, 256], strides = [1, 1]} : vector<8x256xf32> to vector<1x256xf32>
    %348 = vector.broadcast %347 : vector<1x256xf32> to vector<8x256xf32>
    %349 = arith.mulf %346, %348 : vector<8x256xf32>
    %350 = arith.addf %345, %349 : vector<8x256xf32>
    %c0_82 = arith.constant 0 : index
    %c16128 = arith.constant 16128 : index
    %351 = vector.load %arg1[%c0_82, %c16128] : memref<8x16640xf32, #tpu.memory_space<vmem>>, vector<8x256xf32>
    %352 = vector.extract_strided_slice %326 {offsets = [5, 0], sizes = [1, 256], strides = [1, 1]} : vector<8x256xf32> to vector<1x256xf32>
    %353 = vector.broadcast %352 : vector<1x256xf32> to vector<8x256xf32>
    %354 = arith.mulf %351, %353 : vector<8x256xf32>
    %355 = arith.addf %350, %354 : vector<8x256xf32>
    %c0_83 = arith.constant 0 : index
    %c16384 = arith.constant 16384 : index
    %356 = vector.load %arg1[%c0_83, %c16384] : memref<8x16640xf32, #tpu.memory_space<vmem>>, vector<8x256xf32>
    %357 = vector.extract_strided_slice %326 {offsets = [6, 0], sizes = [1, 256], strides = [1, 1]} : vector<8x256xf32> to vector<1x256xf32>
    %358 = vector.broadcast %357 : vector<1x256xf32> to vector<8x256xf32>
    %359 = arith.mulf %356, %358 : vector<8x256xf32>
    %360 = arith.addf %355, %359 : vector<8x256xf32>
    %cst_84 = arith.constant 0.000000e+00 : f32
    %361 = vector.broadcast %cst_84 : f32 to vector<8x256xf32>
    %362 = arith.cmpf ogt, %360, %361 : vector<8x256xf32>
    %cst_85 = arith.constant 0.00999999977 : f32
    %363 = vector.broadcast %cst_85 : f32 to vector<8x256xf32>
    %364 = arith.mulf %363, %360 : vector<8x256xf32>
    %365 = arith.select %362, %360, %364 : vector<8x256xi1>, vector<8x256xf32>
    %366 = vector.extract_strided_slice %365 {offsets = [0, 0], sizes = [1, 256], strides = [1, 1]} : vector<8x256xf32> to vector<1x256xf32>
    %c0_86 = arith.constant 0 : index
    %c0_87 = arith.constant 0 : index
    %367 = vector.load %arg3[%c0_86, %c0_87] : memref<1x1024xf32, #tpu.memory_space<vmem>>, vector<1x256xf32>
    tpu.vector_store %arg3[%c0_86, %c0_87], %366 {strides = array<i32>} : memref<1x1024xf32, #tpu.memory_space<vmem>>, vector<1x256xf32>,
    %c0_88 = arith.constant 0 : index
    %c256_89 = arith.constant 256 : index
    %368 = vector.load %arg2[%c0_88, %c256_89] : memref<2x1024xf32, #tpu.memory_space<vmem>>, vector<2x256xf32>
    %c0_90 = arith.constant 0 : index
    %c0_91 = arith.constant 0 : index
    %369 = vector.load %arg1[%c0_90, %c0_91] : memref<8x16640xf32, #tpu.memory_space<vmem>>, vector<8x256xf32>
    %370 = vector.extract_strided_slice %368 {offsets = [0, 0], sizes = [1, 256], strides = [1, 1]} : vector<2x256xf32> to vector<1x256xf32>
    %371 = vector.broadcast %370 : vector<1x256xf32> to vector<8x256xf32>
    %372 = arith.mulf %369, %371 : vector<8x256xf32>
    %c0_92 = arith.constant 0 : index
    %c256_93 = arith.constant 256 : index
    %373 = vector.load %arg1[%c0_92, %c256_93] : memref<8x16640xf32, #tpu.memory_space<vmem>>, vector<8x256xf32>
    %374 = vector.extract_strided_slice %368 {offsets = [1, 0], sizes = [1, 256], strides = [1, 1]} : vector<2x256xf32> to vector<1x256xf32>
    %375 = vector.broadcast %374 : vector<1x256xf32> to vector<8x256xf32>
    %376 = arith.mulf %373, %375 : vector<8x256xf32>
    %377 = arith.addf %372, %376 : vector<8x256xf32>
    %cst_94 = arith.constant 0.000000e+00 : f32
    %378 = vector.broadcast %cst_94 : f32 to vector<8x256xf32>
    %379 = arith.cmpf ogt, %377, %378 : vector<8x256xf32>
    %cst_95 = arith.constant 0.00999999977 : f32
    %380 = vector.broadcast %cst_95 : f32 to vector<8x256xf32>
    %381 = arith.mulf %380, %377 : vector<8x256xf32>
    %382 = arith.select %379, %377, %381 : vector<8x256xi1>, vector<8x256xf32>
    %c0_96 = arith.constant 0 : index
    %c512_97 = arith.constant 512 : index
    %383 = vector.load %arg1[%c0_96, %c512_97] : memref<8x16640xf32, #tpu.memory_space<vmem>>, vector<8x256xf32>
    %384 = vector.extract_strided_slice %382 {offsets = [0, 0], sizes = [1, 256], strides = [1, 1]} : vector<8x256xf32> to vector<1x256xf32>
    %385 = vector.broadcast %384 : vector<1x256xf32> to vector<8x256xf32>
    %386 = arith.mulf %383, %385 : vector<8x256xf32>
    %c0_98 = arith.constant 0 : index
    %c768_99 = arith.constant 768 : index
    %387 = vector.load %arg1[%c0_98, %c768_99] : memref<8x16640xf32, #tpu.memory_space<vmem>>, vector<8x256xf32>
    %388 = vector.extract_strided_slice %382 {offsets = [1, 0], sizes = [1, 256], strides = [1, 1]} : vector<8x256xf32> to vector<1x256xf32>
    %389 = vector.broadcast %388 : vector<1x256xf32> to vector<8x256xf32>
    %390 = arith.mulf %387, %389 : vector<8x256xf32>
    %391 = arith.addf %386, %390 : vector<8x256xf32>
    %c0_100 = arith.constant 0 : index
    %c1024_101 = arith.constant 1024 : index
    %392 = vector.load %arg1[%c0_100, %c1024_101] : memref<8x16640xf32, #tpu.memory_space<vmem>>, vector<8x256xf32>
    %393 = vector.extract_strided_slice %382 {offsets = [2, 0], sizes = [1, 256], strides = [1, 1]} : vector<8x256xf32> to vector<1x256xf32>
    %394 = vector.broadcast %393 : vector<1x256xf32> to vector<8x256xf32>
    %395 = arith.mulf %392, %394 : vector<8x256xf32>
    %396 = arith.addf %391, %395 : vector<8x256xf32>
    %c0_102 = arith.constant 0 : index
    %c1280_103 = arith.constant 1280 : index
    %397 = vector.load %arg1[%c0_102, %c1280_103] : memref<8x16640xf32, #tpu.memory_space<vmem>>, vector<8x256xf32>
    %398 = vector.extract_strided_slice %382 {offsets = [3, 0], sizes = [1, 256], strides = [1, 1]} : vector<8x256xf32> to vector<1x256xf32>
    %399 = vector.broadcast %398 : vector<1x256xf32> to vector<8x256xf32>
    %400 = arith.mulf %397, %399 : vector<8x256xf32>
    %401 = arith.addf %396, %400 : vector<8x256xf32>
    %c0_104 = arith.constant 0 : index
    %c1536_105 = arith.constant 1536 : index
    %402 = vector.load %arg1[%c0_104, %c1536_105] : memref<8x16640xf32, #tpu.memory_space<vmem>>, vector<8x256xf32>
    %403 = vector.extract_strided_slice %382 {offsets = [4, 0], sizes = [1, 256], strides = [1, 1]} : vector<8x256xf32> to vector<1x256xf32>
    %404 = vector.broadcast %403 : vector<1x256xf32> to vector<8x256xf32>
    %405 = arith.mulf %402, %404 : vector<8x256xf32>
    %406 = arith.addf %401, %405 : vector<8x256xf32>
    %c0_106 = arith.constant 0 : index
    %c1792_107 = arith.constant 1792 : index
    %407 = vector.load %arg1[%c0_106, %c1792_107] : memref<8x16640xf32, #tpu.memory_space<vmem>>, vector<8x256xf32>
    %408 = vector.extract_strided_slice %382 {offsets = [5, 0], sizes = [1, 256], strides = [1, 1]} : vector<8x256xf32> to vector<1x256xf32>
    %409 = vector.broadcast %408 : vector<1x256xf32> to vector<8x256xf32>
    %410 = arith.mulf %407, %409 : vector<8x256xf32>
    %411 = arith.addf %406, %410 : vector<8x256xf32>
    %c0_108 = arith.constant 0 : index
    %c2048_109 = arith.constant 2048 : index
    %412 = vector.load %arg1[%c0_108, %c2048_109] : memref<8x16640xf32, #tpu.memory_space<vmem>>, vector<8x256xf32>
    %413 = vector.extract_strided_slice %382 {offsets = [6, 0], sizes = [1, 256], strides = [1, 1]} : vector<8x256xf32> to vector<1x256xf32>
    %414 = vector.broadcast %413 : vector<1x256xf32> to vector<8x256xf32>
    %415 = arith.mulf %412, %414 : vector<8x256xf32>
    %416 = arith.addf %411, %415 : vector<8x256xf32>
    %cst_110 = arith.constant 0.000000e+00 : f32
    %417 = vector.broadcast %cst_110 : f32 to vector<8x256xf32>
    %418 = arith.cmpf ogt, %416, %417 : vector<8x256xf32>
    %cst_111 = arith.constant 0.00999999977 : f32
    %419 = vector.broadcast %cst_111 : f32 to vector<8x256xf32>
    %420 = arith.mulf %419, %416 : vector<8x256xf32>
    %421 = arith.select %418, %416, %420 : vector<8x256xi1>, vector<8x256xf32>
    %c0_112 = arith.constant 0 : index
    %c2304_113 = arith.constant 2304 : index
    %422 = vector.load %arg1[%c0_112, %c2304_113] : memref<8x16640xf32, #tpu.memory_space<vmem>>, vector<8x256xf32>
    %423 = vector.extract_strided_slice %421 {offsets = [0, 0], sizes = [1, 256], strides = [1, 1]} : vector<8x256xf32> to vector<1x256xf32>
    %424 = vector.broadcast %423 : vector<1x256xf32> to vector<8x256xf32>
    %425 = arith.mulf %422, %424 : vector<8x256xf32>
    %c0_114 = arith.constant 0 : index
    %c2560_115 = arith.constant 2560 : index
    %426 = vector.load %arg1[%c0_114, %c2560_115] : memref<8x16640xf32, #tpu.memory_space<vmem>>, vector<8x256xf32>
    %427 = vector.extract_strided_slice %421 {offsets = [1, 0], sizes = [1, 256], strides = [1, 1]} : vector<8x256xf32> to vector<1x256xf32>
    %428 = vector.broadcast %427 : vector<1x256xf32> to vector<8x256xf32>
    %429 = arith.mulf %426, %428 : vector<8x256xf32>
    %430 = arith.addf %425, %429 : vector<8x256xf32>
    %c0_116 = arith.constant 0 : index
    %c2816_117 = arith.constant 2816 : index
    %431 = vector.load %arg1[%c0_116, %c2816_117] : memref<8x16640xf32, #tpu.memory_space<vmem>>, vector<8x256xf32>
    %432 = vector.extract_strided_slice %421 {offsets = [2, 0], sizes = [1, 256], strides = [1, 1]} : vector<8x256xf32> to vector<1x256xf32>
    %433 = vector.broadcast %432 : vector<1x256xf32> to vector<8x256xf32>
    %434 = arith.mulf %431, %433 : vector<8x256xf32>
    %435 = arith.addf %430, %434 : vector<8x256xf32>
    %c0_118 = arith.constant 0 : index
    %c3072_119 = arith.constant 3072 : index
    %436 = vector.load %arg1[%c0_118, %c3072_119] : memref<8x16640xf32, #tpu.memory_space<vmem>>, vector<8x256xf32>
    %437 = vector.extract_strided_slice %421 {offsets = [3, 0], sizes = [1, 256], strides = [1, 1]} : vector<8x256xf32> to vector<1x256xf32>
    %438 = vector.broadcast %437 : vector<1x256xf32> to vector<8x256xf32>
    %439 = arith.mulf %436, %438 : vector<8x256xf32>
    %440 = arith.addf %435, %439 : vector<8x256xf32>
    %c0_120 = arith.constant 0 : index
    %c3328_121 = arith.constant 3328 : index
    %441 = vector.load %arg1[%c0_120, %c3328_121] : memref<8x16640xf32, #tpu.memory_space<vmem>>, vector<8x256xf32>
    %442 = vector.extract_strided_slice %421 {offsets = [4, 0], sizes = [1, 256], strides = [1, 1]} : vector<8x256xf32> to vector<1x256xf32>
    %443 = vector.broadcast %442 : vector<1x256xf32> to vector<8x256xf32>
    %444 = arith.mulf %441, %443 : vector<8x256xf32>
    %445 = arith.addf %440, %444 : vector<8x256xf32>
    %c0_122 = arith.constant 0 : index
    %c3584_123 = arith.constant 3584 : index
    %446 = vector.load %arg1[%c0_122, %c3584_123] : memref<8x16640xf32, #tpu.memory_space<vmem>>, vector<8x256xf32>
    %447 = vector.extract_strided_slice %421 {offsets = [5, 0], sizes = [1, 256], strides = [1, 1]} : vector<8x256xf32> to vector<1x256xf32>
    %448 = vector.broadcast %447 : vector<1x256xf32> to vector<8x256xf32>
    %449 = arith.mulf %446, %448 : vector<8x256xf32>
    %450 = arith.addf %445, %449 : vector<8x256xf32>
    %c0_124 = arith.constant 0 : index
    %c3840_125 = arith.constant 3840 : index
    %451 = vector.load %arg1[%c0_124, %c3840_125] : memref<8x16640xf32, #tpu.memory_space<vmem>>, vector<8x256xf32>
    %452 = vector.extract_strided_slice %421 {offsets = [6, 0], sizes = [1, 256], strides = [1, 1]} : vector<8x256xf32> to vector<1x256xf32>
    %453 = vector.broadcast %452 : vector<1x256xf32> to vector<8x256xf32>
    %454 = arith.mulf %451, %453 : vector<8x256xf32>
    %455 = arith.addf %450, %454 : vector<8x256xf32>
    %cst_126 = arith.constant 0.000000e+00 : f32
    %456 = vector.broadcast %cst_126 : f32 to vector<8x256xf32>
    %457 = arith.cmpf ogt, %455, %456 : vector<8x256xf32>
    %cst_127 = arith.constant 0.00999999977 : f32
    %458 = vector.broadcast %cst_127 : f32 to vector<8x256xf32>
    %459 = arith.mulf %458, %455 : vector<8x256xf32>
    %460 = arith.select %457, %455, %459 : vector<8x256xi1>, vector<8x256xf32>
    %c0_128 = arith.constant 0 : index
    %c4096_129 = arith.constant 4096 : index
    %461 = vector.load %arg1[%c0_128, %c4096_129] : memref<8x16640xf32, #tpu.memory_space<vmem>>, vector<8x256xf32>
    %462 = vector.extract_strided_slice %460 {offsets = [0, 0], sizes = [1, 256], strides = [1, 1]} : vector<8x256xf32> to vector<1x256xf32>
    %463 = vector.broadcast %462 : vector<1x256xf32> to vector<8x256xf32>
    %464 = arith.mulf %461, %463 : vector<8x256xf32>
    %c0_130 = arith.constant 0 : index
    %c4352_131 = arith.constant 4352 : index
    %465 = vector.load %arg1[%c0_130, %c4352_131] : memref<8x16640xf32, #tpu.memory_space<vmem>>, vector<8x256xf32>
    %466 = vector.extract_strided_slice %460 {offsets = [1, 0], sizes = [1, 256], strides = [1, 1]} : vector<8x256xf32> to vector<1x256xf32>
    %467 = vector.broadcast %466 : vector<1x256xf32> to vector<8x256xf32>
    %468 = arith.mulf %465, %467 : vector<8x256xf32>
    %469 = arith.addf %464, %468 : vector<8x256xf32>
    %c0_132 = arith.constant 0 : index
    %c4608_133 = arith.constant 4608 : index
    %470 = vector.load %arg1[%c0_132, %c4608_133] : memref<8x16640xf32, #tpu.memory_space<vmem>>, vector<8x256xf32>
    %471 = vector.extract_strided_slice %460 {offsets = [2, 0], sizes = [1, 256], strides = [1, 1]} : vector<8x256xf32> to vector<1x256xf32>
    %472 = vector.broadcast %471 : vector<1x256xf32> to vector<8x256xf32>
    %473 = arith.mulf %470, %472 : vector<8x256xf32>
    %474 = arith.addf %469, %473 : vector<8x256xf32>
    %c0_134 = arith.constant 0 : index
    %c4864_135 = arith.constant 4864 : index
    %475 = vector.load %arg1[%c0_134, %c4864_135] : memref<8x16640xf32, #tpu.memory_space<vmem>>, vector<8x256xf32>
    %476 = vector.extract_strided_slice %460 {offsets = [3, 0], sizes = [1, 256], strides = [1, 1]} : vector<8x256xf32> to vector<1x256xf32>
    %477 = vector.broadcast %476 : vector<1x256xf32> to vector<8x256xf32>
    %478 = arith.mulf %475, %477 : vector<8x256xf32>
    %479 = arith.addf %474, %478 : vector<8x256xf32>
    %c0_136 = arith.constant 0 : index
    %c5120_137 = arith.constant 5120 : index
    %480 = vector.load %arg1[%c0_136, %c5120_137] : memref<8x16640xf32, #tpu.memory_space<vmem>>, vector<8x256xf32>
    %481 = vector.extract_strided_slice %460 {offsets = [4, 0], sizes = [1, 256], strides = [1, 1]} : vector<8x256xf32> to vector<1x256xf32>
    %482 = vector.broadcast %481 : vector<1x256xf32> to vector<8x256xf32>
    %483 = arith.mulf %480, %482 : vector<8x256xf32>
    %484 = arith.addf %479, %483 : vector<8x256xf32>
    %c0_138 = arith.constant 0 : index
    %c5376_139 = arith.constant 5376 : index
    %485 = vector.load %arg1[%c0_138, %c5376_139] : memref<8x16640xf32, #tpu.memory_space<vmem>>, vector<8x256xf32>
    %486 = vector.extract_strided_slice %460 {offsets = [5, 0], sizes = [1, 256], strides = [1, 1]} : vector<8x256xf32> to vector<1x256xf32>
    %487 = vector.broadcast %486 : vector<1x256xf32> to vector<8x256xf32>
    %488 = arith.mulf %485, %487 : vector<8x256xf32>
    %489 = arith.addf %484, %488 : vector<8x256xf32>
    %c0_140 = arith.constant 0 : index
    %c5632_141 = arith.constant 5632 : index
    %490 = vector.load %arg1[%c0_140, %c5632_141] : memref<8x16640xf32, #tpu.memory_space<vmem>>, vector<8x256xf32>
    %491 = vector.extract_strided_slice %460 {offsets = [6, 0], sizes = [1, 256], strides = [1, 1]} : vector<8x256xf32> to vector<1x256xf32>
    %492 = vector.broadcast %491 : vector<1x256xf32> to vector<8x256xf32>
    %493 = arith.mulf %490, %492 : vector<8x256xf32>
    %494 = arith.addf %489, %493 : vector<8x256xf32>
    %cst_142 = arith.constant 0.000000e+00 : f32
    %495 = vector.broadcast %cst_142 : f32 to vector<8x256xf32>
    %496 = arith.cmpf ogt, %494, %495 : vector<8x256xf32>
    %cst_143 = arith.constant 0.00999999977 : f32
    %497 = vector.broadcast %cst_143 : f32 to vector<8x256xf32>
    %498 = arith.mulf %497, %494 : vector<8x256xf32>
    %499 = arith.select %496, %494, %498 : vector<8x256xi1>, vector<8x256xf32>
    %c0_144 = arith.constant 0 : index
    %c5888_145 = arith.constant 5888 : index
    %500 = vector.load %arg1[%c0_144, %c5888_145] : memref<8x16640xf32, #tpu.memory_space<vmem>>, vector<8x256xf32>
    %501 = vector.extract_strided_slice %499 {offsets = [0, 0], sizes = [1, 256], strides = [1, 1]} : vector<8x256xf32> to vector<1x256xf32>
    %502 = vector.broadcast %501 : vector<1x256xf32> to vector<8x256xf32>
    %503 = arith.mulf %500, %502 : vector<8x256xf32>
    %c0_146 = arith.constant 0 : index
    %c6144_147 = arith.constant 6144 : index
    %504 = vector.load %arg1[%c0_146, %c6144_147] : memref<8x16640xf32, #tpu.memory_space<vmem>>, vector<8x256xf32>
    %505 = vector.extract_strided_slice %499 {offsets = [1, 0], sizes = [1, 256], strides = [1, 1]} : vector<8x256xf32> to vector<1x256xf32>
    %506 = vector.broadcast %505 : vector<1x256xf32> to vector<8x256xf32>
    %507 = arith.mulf %504, %506 : vector<8x256xf32>
    %508 = arith.addf %503, %507 : vector<8x256xf32>
    %c0_148 = arith.constant 0 : index
    %c6400_149 = arith.constant 6400 : index
    %509 = vector.load %arg1[%c0_148, %c6400_149] : memref<8x16640xf32, #tpu.memory_space<vmem>>, vector<8x256xf32>
    %510 = vector.extract_strided_slice %499 {offsets = [2, 0], sizes = [1, 256], strides = [1, 1]} : vector<8x256xf32> to vector<1x256xf32>
    %511 = vector.broadcast %510 : vector<1x256xf32> to vector<8x256xf32>
    %512 = arith.mulf %509, %511 : vector<8x256xf32>
    %513 = arith.addf %508, %512 : vector<8x256xf32>
    %c0_150 = arith.constant 0 : index
    %c6656_151 = arith.constant 6656 : index
    %514 = vector.load %arg1[%c0_150, %c6656_151] : memref<8x16640xf32, #tpu.memory_space<vmem>>, vector<8x256xf32>
    %515 = vector.extract_strided_slice %499 {offsets = [3, 0], sizes = [1, 256], strides = [1, 1]} : vector<8x256xf32> to vector<1x256xf32>
    %516 = vector.broadcast %515 : vector<1x256xf32> to vector<8x256xf32>
    %517 = arith.mulf %514, %516 : vector<8x256xf32>
    %518 = arith.addf %513, %517 : vector<8x256xf32>
    %c0_152 = arith.constant 0 : index
    %c6912_153 = arith.constant 6912 : index
    %519 = vector.load %arg1[%c0_152, %c6912_153] : memref<8x16640xf32, #tpu.memory_space<vmem>>, vector<8x256xf32>
    %520 = vector.extract_strided_slice %499 {offsets = [4, 0], sizes = [1, 256], strides = [1, 1]} : vector<8x256xf32> to vector<1x256xf32>
    %521 = vector.broadcast %520 : vector<1x256xf32> to vector<8x256xf32>
    %522 = arith.mulf %519, %521 : vector<8x256xf32>
    %523 = arith.addf %518, %522 : vector<8x256xf32>
    %c0_154 = arith.constant 0 : index
    %c7168_155 = arith.constant 7168 : index
    %524 = vector.load %arg1[%c0_154, %c7168_155] : memref<8x16640xf32, #tpu.memory_space<vmem>>, vector<8x256xf32>
    %525 = vector.extract_strided_slice %499 {offsets = [5, 0], sizes = [1, 256], strides = [1, 1]} : vector<8x256xf32> to vector<1x256xf32>
    %526 = vector.broadcast %525 : vector<1x256xf32> to vector<8x256xf32>
    %527 = arith.mulf %524, %526 : vector<8x256xf32>
    %528 = arith.addf %523, %527 : vector<8x256xf32>
    %c0_156 = arith.constant 0 : index
    %c7424_157 = arith.constant 7424 : index
    %529 = vector.load %arg1[%c0_156, %c7424_157] : memref<8x16640xf32, #tpu.memory_space<vmem>>, vector<8x256xf32>
    %530 = vector.extract_strided_slice %499 {offsets = [6, 0], sizes = [1, 256], strides = [1, 1]} : vector<8x256xf32> to vector<1x256xf32>
    %531 = vector.broadcast %530 : vector<1x256xf32> to vector<8x256xf32>
    %532 = arith.mulf %529, %531 : vector<8x256xf32>
    %533 = arith.addf %528, %532 : vector<8x256xf32>
    %cst_158 = arith.constant 0.000000e+00 : f32
    %534 = vector.broadcast %cst_158 : f32 to vector<8x256xf32>
    %535 = arith.cmpf ogt, %533, %534 : vector<8x256xf32>
    %cst_159 = arith.constant 0.00999999977 : f32
    %536 = vector.broadcast %cst_159 : f32 to vector<8x256xf32>
    %537 = arith.mulf %536, %533 : vector<8x256xf32>
    %538 = arith.select %535, %533, %537 : vector<8x256xi1>, vector<8x256xf32>
    %c0_160 = arith.constant 0 : index
    %c7680_161 = arith.constant 7680 : index
    %539 = vector.load %arg1[%c0_160, %c7680_161] : memref<8x16640xf32, #tpu.memory_space<vmem>>, vector<8x256xf32>
    %540 = vector.extract_strided_slice %538 {offsets = [0, 0], sizes = [1, 256], strides = [1, 1]} : vector<8x256xf32> to vector<1x256xf32>
    %541 = vector.broadcast %540 : vector<1x256xf32> to vector<8x256xf32>
    %542 = arith.mulf %539, %541 : vector<8x256xf32>
    %c0_162 = arith.constant 0 : index
    %c7936_163 = arith.constant 7936 : index
    %543 = vector.load %arg1[%c0_162, %c7936_163] : memref<8x16640xf32, #tpu.memory_space<vmem>>, vector<8x256xf32>
    %544 = vector.extract_strided_slice %538 {offsets = [1, 0], sizes = [1, 256], strides = [1, 1]} : vector<8x256xf32> to vector<1x256xf32>
    %545 = vector.broadcast %544 : vector<1x256xf32> to vector<8x256xf32>
    %546 = arith.mulf %543, %545 : vector<8x256xf32>
    %547 = arith.addf %542, %546 : vector<8x256xf32>
    %c0_164 = arith.constant 0 : index
    %c8192_165 = arith.constant 8192 : index
    %548 = vector.load %arg1[%c0_164, %c8192_165] : memref<8x16640xf32, #tpu.memory_space<vmem>>, vector<8x256xf32>
    %549 = vector.extract_strided_slice %538 {offsets = [2, 0], sizes = [1, 256], strides = [1, 1]} : vector<8x256xf32> to vector<1x256xf32>
    %550 = vector.broadcast %549 : vector<1x256xf32> to vector<8x256xf32>
    %551 = arith.mulf %548, %550 : vector<8x256xf32>
    %552 = arith.addf %547, %551 : vector<8x256xf32>
    %c0_166 = arith.constant 0 : index
    %c8448_167 = arith.constant 8448 : index
    %553 = vector.load %arg1[%c0_166, %c8448_167] : memref<8x16640xf32, #tpu.memory_space<vmem>>, vector<8x256xf32>
    %554 = vector.extract_strided_slice %538 {offsets = [3, 0], sizes = [1, 256], strides = [1, 1]} : vector<8x256xf32> to vector<1x256xf32>
    %555 = vector.broadcast %554 : vector<1x256xf32> to vector<8x256xf32>
    %556 = arith.mulf %553, %555 : vector<8x256xf32>
    %557 = arith.addf %552, %556 : vector<8x256xf32>
    %c0_168 = arith.constant 0 : index
    %c8704_169 = arith.constant 8704 : index
    %558 = vector.load %arg1[%c0_168, %c8704_169] : memref<8x16640xf32, #tpu.memory_space<vmem>>, vector<8x256xf32>
    %559 = vector.extract_strided_slice %538 {offsets = [4, 0], sizes = [1, 256], strides = [1, 1]} : vector<8x256xf32> to vector<1x256xf32>
    %560 = vector.broadcast %559 : vector<1x256xf32> to vector<8x256xf32>
    %561 = arith.mulf %558, %560 : vector<8x256xf32>
    %562 = arith.addf %557, %561 : vector<8x256xf32>
    %c0_170 = arith.constant 0 : index
    %c8960_171 = arith.constant 8960 : index
    %563 = vector.load %arg1[%c0_170, %c8960_171] : memref<8x16640xf32, #tpu.memory_space<vmem>>, vector<8x256xf32>
    %564 = vector.extract_strided_slice %538 {offsets = [5, 0], sizes = [1, 256], strides = [1, 1]} : vector<8x256xf32> to vector<1x256xf32>
    %565 = vector.broadcast %564 : vector<1x256xf32> to vector<8x256xf32>
    %566 = arith.mulf %563, %565 : vector<8x256xf32>
    %567 = arith.addf %562, %566 : vector<8x256xf32>
    %c0_172 = arith.constant 0 : index
    %c9216_173 = arith.constant 9216 : index
    %568 = vector.load %arg1[%c0_172, %c9216_173] : memref<8x16640xf32, #tpu.memory_space<vmem>>, vector<8x256xf32>
    %569 = vector.extract_strided_slice %538 {offsets = [6, 0], sizes = [1, 256], strides = [1, 1]} : vector<8x256xf32> to vector<1x256xf32>
    %570 = vector.broadcast %569 : vector<1x256xf32> to vector<8x256xf32>
    %571 = arith.mulf %568, %570 : vector<8x256xf32>
    %572 = arith.addf %567, %571 : vector<8x256xf32>
    %cst_174 = arith.constant 0.000000e+00 : f32
    %573 = vector.broadcast %cst_174 : f32 to vector<8x256xf32>
    %574 = arith.cmpf ogt, %572, %573 : vector<8x256xf32>
    %cst_175 = arith.constant 0.00999999977 : f32
    %575 = vector.broadcast %cst_175 : f32 to vector<8x256xf32>
    %576 = arith.mulf %575, %572 : vector<8x256xf32>
    %577 = arith.select %574, %572, %576 : vector<8x256xi1>, vector<8x256xf32>
    %c0_176 = arith.constant 0 : index
    %c9472_177 = arith.constant 9472 : index
    %578 = vector.load %arg1[%c0_176, %c9472_177] : memref<8x16640xf32, #tpu.memory_space<vmem>>, vector<8x256xf32>
    %579 = vector.extract_strided_slice %577 {offsets = [0, 0], sizes = [1, 256], strides = [1, 1]} : vector<8x256xf32> to vector<1x256xf32>
    %580 = vector.broadcast %579 : vector<1x256xf32> to vector<8x256xf32>
    %581 = arith.mulf %578, %580 : vector<8x256xf32>
    %c0_178 = arith.constant 0 : index
    %c9728_179 = arith.constant 9728 : index
    %582 = vector.load %arg1[%c0_178, %c9728_179] : memref<8x16640xf32, #tpu.memory_space<vmem>>, vector<8x256xf32>
    %583 = vector.extract_strided_slice %577 {offsets = [1, 0], sizes = [1, 256], strides = [1, 1]} : vector<8x256xf32> to vector<1x256xf32>
    %584 = vector.broadcast %583 : vector<1x256xf32> to vector<8x256xf32>
    %585 = arith.mulf %582, %584 : vector<8x256xf32>
    %586 = arith.addf %581, %585 : vector<8x256xf32>
    %c0_180 = arith.constant 0 : index
    %c9984_181 = arith.constant 9984 : index
    %587 = vector.load %arg1[%c0_180, %c9984_181] : memref<8x16640xf32, #tpu.memory_space<vmem>>, vector<8x256xf32>
    %588 = vector.extract_strided_slice %577 {offsets = [2, 0], sizes = [1, 256], strides = [1, 1]} : vector<8x256xf32> to vector<1x256xf32>
    %589 = vector.broadcast %588 : vector<1x256xf32> to vector<8x256xf32>
    %590 = arith.mulf %587, %589 : vector<8x256xf32>
    %591 = arith.addf %586, %590 : vector<8x256xf32>
    %c0_182 = arith.constant 0 : index
    %c10240_183 = arith.constant 10240 : index
    %592 = vector.load %arg1[%c0_182, %c10240_183] : memref<8x16640xf32, #tpu.memory_space<vmem>>, vector<8x256xf32>
    %593 = vector.extract_strided_slice %577 {offsets = [3, 0], sizes = [1, 256], strides = [1, 1]} : vector<8x256xf32> to vector<1x256xf32>
    %594 = vector.broadcast %593 : vector<1x256xf32> to vector<8x256xf32>
    %595 = arith.mulf %592, %594 : vector<8x256xf32>
    %596 = arith.addf %591, %595 : vector<8x256xf32>
    %c0_184 = arith.constant 0 : index
    %c10496_185 = arith.constant 10496 : index
    %597 = vector.load %arg1[%c0_184, %c10496_185] : memref<8x16640xf32, #tpu.memory_space<vmem>>, vector<8x256xf32>
    %598 = vector.extract_strided_slice %577 {offsets = [4, 0], sizes = [1, 256], strides = [1, 1]} : vector<8x256xf32> to vector<1x256xf32>
    %599 = vector.broadcast %598 : vector<1x256xf32> to vector<8x256xf32>
    %600 = arith.mulf %597, %599 : vector<8x256xf32>
    %601 = arith.addf %596, %600 : vector<8x256xf32>
    %c0_186 = arith.constant 0 : index
    %c10752_187 = arith.constant 10752 : index
    %602 = vector.load %arg1[%c0_186, %c10752_187] : memref<8x16640xf32, #tpu.memory_space<vmem>>, vector<8x256xf32>
    %603 = vector.extract_strided_slice %577 {offsets = [5, 0], sizes = [1, 256], strides = [1, 1]} : vector<8x256xf32> to vector<1x256xf32>
    %604 = vector.broadcast %603 : vector<1x256xf32> to vector<8x256xf32>
    %605 = arith.mulf %602, %604 : vector<8x256xf32>
    %606 = arith.addf %601, %605 : vector<8x256xf32>
    %c0_188 = arith.constant 0 : index
    %c11008_189 = arith.constant 11008 : index
    %607 = vector.load %arg1[%c0_188, %c11008_189] : memref<8x16640xf32, #tpu.memory_space<vmem>>, vector<8x256xf32>
    %608 = vector.extract_strided_slice %577 {offsets = [6, 0], sizes = [1, 256], strides = [1, 1]} : vector<8x256xf32> to vector<1x256xf32>
    %609 = vector.broadcast %608 : vector<1x256xf32> to vector<8x256xf32>
    %610 = arith.mulf %607, %609 : vector<8x256xf32>
    %611 = arith.addf %606, %610 : vector<8x256xf32>
    %cst_190 = arith.constant 0.000000e+00 : f32
    %612 = vector.broadcast %cst_190 : f32 to vector<8x256xf32>
    %613 = arith.cmpf ogt, %611, %612 : vector<8x256xf32>
    %cst_191 = arith.constant 0.00999999977 : f32
    %614 = vector.broadcast %cst_191 : f32 to vector<8x256xf32>
    %615 = arith.mulf %614, %611 : vector<8x256xf32>
    %616 = arith.select %613, %611, %615 : vector<8x256xi1>, vector<8x256xf32>
    %c0_192 = arith.constant 0 : index
    %c11264_193 = arith.constant 11264 : index
    %617 = vector.load %arg1[%c0_192, %c11264_193] : memref<8x16640xf32, #tpu.memory_space<vmem>>, vector<8x256xf32>
    %618 = vector.extract_strided_slice %616 {offsets = [0, 0], sizes = [1, 256], strides = [1, 1]} : vector<8x256xf32> to vector<1x256xf32>
    %619 = vector.broadcast %618 : vector<1x256xf32> to vector<8x256xf32>
    %620 = arith.mulf %617, %619 : vector<8x256xf32>
    %c0_194 = arith.constant 0 : index
    %c11520_195 = arith.constant 11520 : index
    %621 = vector.load %arg1[%c0_194, %c11520_195] : memref<8x16640xf32, #tpu.memory_space<vmem>>, vector<8x256xf32>
    %622 = vector.extract_strided_slice %616 {offsets = [1, 0], sizes = [1, 256], strides = [1, 1]} : vector<8x256xf32> to vector<1x256xf32>
    %623 = vector.broadcast %622 : vector<1x256xf32> to vector<8x256xf32>
    %624 = arith.mulf %621, %623 : vector<8x256xf32>
    %625 = arith.addf %620, %624 : vector<8x256xf32>
    %c0_196 = arith.constant 0 : index
    %c11776_197 = arith.constant 11776 : index
    %626 = vector.load %arg1[%c0_196, %c11776_197] : memref<8x16640xf32, #tpu.memory_space<vmem>>, vector<8x256xf32>
    %627 = vector.extract_strided_slice %616 {offsets = [2, 0], sizes = [1, 256], strides = [1, 1]} : vector<8x256xf32> to vector<1x256xf32>
    %628 = vector.broadcast %627 : vector<1x256xf32> to vector<8x256xf32>
    %629 = arith.mulf %626, %628 : vector<8x256xf32>
    %630 = arith.addf %625, %629 : vector<8x256xf32>
    %c0_198 = arith.constant 0 : index
    %c12032_199 = arith.constant 12032 : index
    %631 = vector.load %arg1[%c0_198, %c12032_199] : memref<8x16640xf32, #tpu.memory_space<vmem>>, vector<8x256xf32>
    %632 = vector.extract_strided_slice %616 {offsets = [3, 0], sizes = [1, 256], strides = [1, 1]} : vector<8x256xf32> to vector<1x256xf32>
    %633 = vector.broadcast %632 : vector<1x256xf32> to vector<8x256xf32>
    %634 = arith.mulf %631, %633 : vector<8x256xf32>
    %635 = arith.addf %630, %634 : vector<8x256xf32>
    %c0_200 = arith.constant 0 : index
    %c12288_201 = arith.constant 12288 : index
    %636 = vector.load %arg1[%c0_200, %c12288_201] : memref<8x16640xf32, #tpu.memory_space<vmem>>, vector<8x256xf32>
    %637 = vector.extract_strided_slice %616 {offsets = [4, 0], sizes = [1, 256], strides = [1, 1]} : vector<8x256xf32> to vector<1x256xf32>
    %638 = vector.broadcast %637 : vector<1x256xf32> to vector<8x256xf32>
    %639 = arith.mulf %636, %638 : vector<8x256xf32>
    %640 = arith.addf %635, %639 : vector<8x256xf32>
    %c0_202 = arith.constant 0 : index
    %c12544_203 = arith.constant 12544 : index
    %641 = vector.load %arg1[%c0_202, %c12544_203] : memref<8x16640xf32, #tpu.memory_space<vmem>>, vector<8x256xf32>
    %642 = vector.extract_strided_slice %616 {offsets = [5, 0], sizes = [1, 256], strides = [1, 1]} : vector<8x256xf32> to vector<1x256xf32>
    %643 = vector.broadcast %642 : vector<1x256xf32> to vector<8x256xf32>
    %644 = arith.mulf %641, %643 : vector<8x256xf32>
    %645 = arith.addf %640, %644 : vector<8x256xf32>
    %c0_204 = arith.constant 0 : index
    %c12800_205 = arith.constant 12800 : index
    %646 = vector.load %arg1[%c0_204, %c12800_205] : memref<8x16640xf32, #tpu.memory_space<vmem>>, vector<8x256xf32>
    %647 = vector.extract_strided_slice %616 {offsets = [6, 0], sizes = [1, 256], strides = [1, 1]} : vector<8x256xf32> to vector<1x256xf32>
    %648 = vector.broadcast %647 : vector<1x256xf32> to vector<8x256xf32>
    %649 = arith.mulf %646, %648 : vector<8x256xf32>
    %650 = arith.addf %645, %649 : vector<8x256xf32>
    %cst_206 = arith.constant 0.000000e+00 : f32
    %651 = vector.broadcast %cst_206 : f32 to vector<8x256xf32>
    %652 = arith.cmpf ogt, %650, %651 : vector<8x256xf32>
    %cst_207 = arith.constant 0.00999999977 : f32
    %653 = vector.broadcast %cst_207 : f32 to vector<8x256xf32>
    %654 = arith.mulf %653, %650 : vector<8x256xf32>
    %655 = arith.select %652, %650, %654 : vector<8x256xi1>, vector<8x256xf32>
    %c0_208 = arith.constant 0 : index
    %c13056_209 = arith.constant 13056 : index
    %656 = vector.load %arg1[%c0_208, %c13056_209] : memref<8x16640xf32, #tpu.memory_space<vmem>>, vector<8x256xf32>
    %657 = vector.extract_strided_slice %655 {offsets = [0, 0], sizes = [1, 256], strides = [1, 1]} : vector<8x256xf32> to vector<1x256xf32>
    %658 = vector.broadcast %657 : vector<1x256xf32> to vector<8x256xf32>
    %659 = arith.mulf %656, %658 : vector<8x256xf32>
    %c0_210 = arith.constant 0 : index
    %c13312_211 = arith.constant 13312 : index
    %660 = vector.load %arg1[%c0_210, %c13312_211] : memref<8x16640xf32, #tpu.memory_space<vmem>>, vector<8x256xf32>
    %661 = vector.extract_strided_slice %655 {offsets = [1, 0], sizes = [1, 256], strides = [1, 1]} : vector<8x256xf32> to vector<1x256xf32>
    %662 = vector.broadcast %661 : vector<1x256xf32> to vector<8x256xf32>
    %663 = arith.mulf %660, %662 : vector<8x256xf32>
    %664 = arith.addf %659, %663 : vector<8x256xf32>
    %c0_212 = arith.constant 0 : index
    %c13568_213 = arith.constant 13568 : index
    %665 = vector.load %arg1[%c0_212, %c13568_213] : memref<8x16640xf32, #tpu.memory_space<vmem>>, vector<8x256xf32>
    %666 = vector.extract_strided_slice %655 {offsets = [2, 0], sizes = [1, 256], strides = [1, 1]} : vector<8x256xf32> to vector<1x256xf32>
    %667 = vector.broadcast %666 : vector<1x256xf32> to vector<8x256xf32>
    %668 = arith.mulf %665, %667 : vector<8x256xf32>
    %669 = arith.addf %664, %668 : vector<8x256xf32>
    %c0_214 = arith.constant 0 : index
    %c13824_215 = arith.constant 13824 : index
    %670 = vector.load %arg1[%c0_214, %c13824_215] : memref<8x16640xf32, #tpu.memory_space<vmem>>, vector<8x256xf32>
    %671 = vector.extract_strided_slice %655 {offsets = [3, 0], sizes = [1, 256], strides = [1, 1]} : vector<8x256xf32> to vector<1x256xf32>
    %672 = vector.broadcast %671 : vector<1x256xf32> to vector<8x256xf32>
    %673 = arith.mulf %670, %672 : vector<8x256xf32>
    %674 = arith.addf %669, %673 : vector<8x256xf32>
    %c0_216 = arith.constant 0 : index
    %c14080_217 = arith.constant 14080 : index
    %675 = vector.load %arg1[%c0_216, %c14080_217] : memref<8x16640xf32, #tpu.memory_space<vmem>>, vector<8x256xf32>
    %676 = vector.extract_strided_slice %655 {offsets = [4, 0], sizes = [1, 256], strides = [1, 1]} : vector<8x256xf32> to vector<1x256xf32>
    %677 = vector.broadcast %676 : vector<1x256xf32> to vector<8x256xf32>
    %678 = arith.mulf %675, %677 : vector<8x256xf32>
    %679 = arith.addf %674, %678 : vector<8x256xf32>
    %c0_218 = arith.constant 0 : index
    %c14336_219 = arith.constant 14336 : index
    %680 = vector.load %arg1[%c0_218, %c14336_219] : memref<8x16640xf32, #tpu.memory_space<vmem>>, vector<8x256xf32>
    %681 = vector.extract_strided_slice %655 {offsets = [5, 0], sizes = [1, 256], strides = [1, 1]} : vector<8x256xf32> to vector<1x256xf32>
    %682 = vector.broadcast %681 : vector<1x256xf32> to vector<8x256xf32>
    %683 = arith.mulf %680, %682 : vector<8x256xf32>
    %684 = arith.addf %679, %683 : vector<8x256xf32>
    %c0_220 = arith.constant 0 : index
    %c14592_221 = arith.constant 14592 : index
    %685 = vector.load %arg1[%c0_220, %c14592_221] : memref<8x16640xf32, #tpu.memory_space<vmem>>, vector<8x256xf32>
    %686 = vector.extract_strided_slice %655 {offsets = [6, 0], sizes = [1, 256], strides = [1, 1]} : vector<8x256xf32> to vector<1x256xf32>
    %687 = vector.broadcast %686 : vector<1x256xf32> to vector<8x256xf32>
    %688 = arith.mulf %685, %687 : vector<8x256xf32>
    %689 = arith.addf %684, %688 : vector<8x256xf32>
    %cst_222 = arith.constant 0.000000e+00 : f32
    %690 = vector.broadcast %cst_222 : f32 to vector<8x256xf32>
    %691 = arith.cmpf ogt, %689, %690 : vector<8x256xf32>
    %cst_223 = arith.constant 0.00999999977 : f32
    %692 = vector.broadcast %cst_223 : f32 to vector<8x256xf32>
    %693 = arith.mulf %692, %689 : vector<8x256xf32>
    %694 = arith.select %691, %689, %693 : vector<8x256xi1>, vector<8x256xf32>
    %c0_224 = arith.constant 0 : index
    %c14848_225 = arith.constant 14848 : index
    %695 = vector.load %arg1[%c0_224, %c14848_225] : memref<8x16640xf32, #tpu.memory_space<vmem>>, vector<8x256xf32>
    %696 = vector.extract_strided_slice %694 {offsets = [0, 0], sizes = [1, 256], strides = [1, 1]} : vector<8x256xf32> to vector<1x256xf32>
    %697 = vector.broadcast %696 : vector<1x256xf32> to vector<8x256xf32>
    %698 = arith.mulf %695, %697 : vector<8x256xf32>
    %c0_226 = arith.constant 0 : index
    %c15104_227 = arith.constant 15104 : index
    %699 = vector.load %arg1[%c0_226, %c15104_227] : memref<8x16640xf32, #tpu.memory_space<vmem>>, vector<8x256xf32>
    %700 = vector.extract_strided_slice %694 {offsets = [1, 0], sizes = [1, 256], strides = [1, 1]} : vector<8x256xf32> to vector<1x256xf32>
    %701 = vector.broadcast %700 : vector<1x256xf32> to vector<8x256xf32>
    %702 = arith.mulf %699, %701 : vector<8x256xf32>
    %703 = arith.addf %698, %702 : vector<8x256xf32>
    %c0_228 = arith.constant 0 : index
    %c15360_229 = arith.constant 15360 : index
    %704 = vector.load %arg1[%c0_228, %c15360_229] : memref<8x16640xf32, #tpu.memory_space<vmem>>, vector<8x256xf32>
    %705 = vector.extract_strided_slice %694 {offsets = [2, 0], sizes = [1, 256], strides = [1, 1]} : vector<8x256xf32> to vector<1x256xf32>
    %706 = vector.broadcast %705 : vector<1x256xf32> to vector<8x256xf32>
    %707 = arith.mulf %704, %706 : vector<8x256xf32>
    %708 = arith.addf %703, %707 : vector<8x256xf32>
    %c0_230 = arith.constant 0 : index
    %c15616_231 = arith.constant 15616 : index
    %709 = vector.load %arg1[%c0_230, %c15616_231] : memref<8x16640xf32, #tpu.memory_space<vmem>>, vector<8x256xf32>
    %710 = vector.extract_strided_slice %694 {offsets = [3, 0], sizes = [1, 256], strides = [1, 1]} : vector<8x256xf32> to vector<1x256xf32>
    %711 = vector.broadcast %710 : vector<1x256xf32> to vector<8x256xf32>
    %712 = arith.mulf %709, %711 : vector<8x256xf32>
    %713 = arith.addf %708, %712 : vector<8x256xf32>
    %c0_232 = arith.constant 0 : index
    %c15872_233 = arith.constant 15872 : index
    %714 = vector.load %arg1[%c0_232, %c15872_233] : memref<8x16640xf32, #tpu.memory_space<vmem>>, vector<8x256xf32>
    %715 = vector.extract_strided_slice %694 {offsets = [4, 0], sizes = [1, 256], strides = [1, 1]} : vector<8x256xf32> to vector<1x256xf32>
    %716 = vector.broadcast %715 : vector<1x256xf32> to vector<8x256xf32>
    %717 = arith.mulf %714, %716 : vector<8x256xf32>
    %718 = arith.addf %713, %717 : vector<8x256xf32>
    %c0_234 = arith.constant 0 : index
    %c16128_235 = arith.constant 16128 : index
    %719 = vector.load %arg1[%c0_234, %c16128_235] : memref<8x16640xf32, #tpu.memory_space<vmem>>, vector<8x256xf32>
    %720 = vector.extract_strided_slice %694 {offsets = [5, 0], sizes = [1, 256], strides = [1, 1]} : vector<8x256xf32> to vector<1x256xf32>
    %721 = vector.broadcast %720 : vector<1x256xf32> to vector<8x256xf32>
    %722 = arith.mulf %719, %721 : vector<8x256xf32>
    %723 = arith.addf %718, %722 : vector<8x256xf32>
    %c0_236 = arith.constant 0 : index
    %c16384_237 = arith.constant 16384 : index
    %724 = vector.load %arg1[%c0_236, %c16384_237] : memref<8x16640xf32, #tpu.memory_space<vmem>>, vector<8x256xf32>
    %725 = vector.extract_strided_slice %694 {offsets = [6, 0], sizes = [1, 256], strides = [1, 1]} : vector<8x256xf32> to vector<1x256xf32>
    %726 = vector.broadcast %725 : vector<1x256xf32> to vector<8x256xf32>
    %727 = arith.mulf %724, %726 : vector<8x256xf32>
    %728 = arith.addf %723, %727 : vector<8x256xf32>
    %cst_238 = arith.constant 0.000000e+00 : f32
    %729 = vector.broadcast %cst_238 : f32 to vector<8x256xf32>
    %730 = arith.cmpf ogt, %728, %729 : vector<8x256xf32>
    %cst_239 = arith.constant 0.00999999977 : f32
    %731 = vector.broadcast %cst_239 : f32 to vector<8x256xf32>
    %732 = arith.mulf %731, %728 : vector<8x256xf32>
    %733 = arith.select %730, %728, %732 : vector<8x256xi1>, vector<8x256xf32>
    %734 = vector.extract_strided_slice %733 {offsets = [0, 0], sizes = [1, 256], strides = [1, 1]} : vector<8x256xf32> to vector<1x256xf32>
    %c0_240 = arith.constant 0 : index
    %c256_241 = arith.constant 256 : index
    %735 = vector.load %arg3[%c0_240, %c256_241] : memref<1x1024xf32, #tpu.memory_space<vmem>>, vector<1x256xf32>
    tpu.vector_store %arg3[%c0_240, %c256_241], %734 {strides = array<i32>} : memref<1x1024xf32, #tpu.memory_space<vmem>>, vector<1x256xf32>,
    %c0_242 = arith.constant 0 : index
    %c512_243 = arith.constant 512 : index
    %736 = vector.load %arg2[%c0_242, %c512_243] : memref<2x1024xf32, #tpu.memory_space<vmem>>, vector<2x256xf32>
    %c0_244 = arith.constant 0 : index
    %c0_245 = arith.constant 0 : index
    %737 = vector.load %arg1[%c0_244, %c0_245] : memref<8x16640xf32, #tpu.memory_space<vmem>>, vector<8x256xf32>
    %738 = vector.extract_strided_slice %736 {offsets = [0, 0], sizes = [1, 256], strides = [1, 1]} : vector<2x256xf32> to vector<1x256xf32>
    %739 = vector.broadcast %738 : vector<1x256xf32> to vector<8x256xf32>
    %740 = arith.mulf %737, %739 : vector<8x256xf32>
    %c0_246 = arith.constant 0 : index
    %c256_247 = arith.constant 256 : index
    %741 = vector.load %arg1[%c0_246, %c256_247] : memref<8x16640xf32, #tpu.memory_space<vmem>>, vector<8x256xf32>
    %742 = vector.extract_strided_slice %736 {offsets = [1, 0], sizes = [1, 256], strides = [1, 1]} : vector<2x256xf32> to vector<1x256xf32>
    %743 = vector.broadcast %742 : vector<1x256xf32> to vector<8x256xf32>
    %744 = arith.mulf %741, %743 : vector<8x256xf32>
    %745 = arith.addf %740, %744 : vector<8x256xf32>
    %cst_248 = arith.constant 0.000000e+00 : f32
    %746 = vector.broadcast %cst_248 : f32 to vector<8x256xf32>
    %747 = arith.cmpf ogt, %745, %746 : vector<8x256xf32>
    %cst_249 = arith.constant 0.00999999977 : f32
    %748 = vector.broadcast %cst_249 : f32 to vector<8x256xf32>
    %749 = arith.mulf %748, %745 : vector<8x256xf32>
    %750 = arith.select %747, %745, %749 : vector<8x256xi1>, vector<8x256xf32>
    %c0_250 = arith.constant 0 : index
    %c512_251 = arith.constant 512 : index
    %751 = vector.load %arg1[%c0_250, %c512_251] : memref<8x16640xf32, #tpu.memory_space<vmem>>, vector<8x256xf32>
    %752 = vector.extract_strided_slice %750 {offsets = [0, 0], sizes = [1, 256], strides = [1, 1]} : vector<8x256xf32> to vector<1x256xf32>
    %753 = vector.broadcast %752 : vector<1x256xf32> to vector<8x256xf32>
    %754 = arith.mulf %751, %753 : vector<8x256xf32>
    %c0_252 = arith.constant 0 : index
    %c768_253 = arith.constant 768 : index
    %755 = vector.load %arg1[%c0_252, %c768_253] : memref<8x16640xf32, #tpu.memory_space<vmem>>, vector<8x256xf32>
    %756 = vector.extract_strided_slice %750 {offsets = [1, 0], sizes = [1, 256], strides = [1, 1]} : vector<8x256xf32> to vector<1x256xf32>
    %757 = vector.broadcast %756 : vector<1x256xf32> to vector<8x256xf32>
    %758 = arith.mulf %755, %757 : vector<8x256xf32>
    %759 = arith.addf %754, %758 : vector<8x256xf32>
    %c0_254 = arith.constant 0 : index
    %c1024_255 = arith.constant 1024 : index
    %760 = vector.load %arg1[%c0_254, %c1024_255] : memref<8x16640xf32, #tpu.memory_space<vmem>>, vector<8x256xf32>
    %761 = vector.extract_strided_slice %750 {offsets = [2, 0], sizes = [1, 256], strides = [1, 1]} : vector<8x256xf32> to vector<1x256xf32>
    %762 = vector.broadcast %761 : vector<1x256xf32> to vector<8x256xf32>
    %763 = arith.mulf %760, %762 : vector<8x256xf32>
    %764 = arith.addf %759, %763 : vector<8x256xf32>
    %c0_256 = arith.constant 0 : index
    %c1280_257 = arith.constant 1280 : index
    %765 = vector.load %arg1[%c0_256, %c1280_257] : memref<8x16640xf32, #tpu.memory_space<vmem>>, vector<8x256xf32>
    %766 = vector.extract_strided_slice %750 {offsets = [3, 0], sizes = [1, 256], strides = [1, 1]} : vector<8x256xf32> to vector<1x256xf32>
    %767 = vector.broadcast %766 : vector<1x256xf32> to vector<8x256xf32>
    %768 = arith.mulf %765, %767 : vector<8x256xf32>
    %769 = arith.addf %764, %768 : vector<8x256xf32>
    %c0_258 = arith.constant 0 : index
    %c1536_259 = arith.constant 1536 : index
    %770 = vector.load %arg1[%c0_258, %c1536_259] : memref<8x16640xf32, #tpu.memory_space<vmem>>, vector<8x256xf32>
    %771 = vector.extract_strided_slice %750 {offsets = [4, 0], sizes = [1, 256], strides = [1, 1]} : vector<8x256xf32> to vector<1x256xf32>
    %772 = vector.broadcast %771 : vector<1x256xf32> to vector<8x256xf32>
    %773 = arith.mulf %770, %772 : vector<8x256xf32>
    %774 = arith.addf %769, %773 : vector<8x256xf32>
    %c0_260 = arith.constant 0 : index
    %c1792_261 = arith.constant 1792 : index
    %775 = vector.load %arg1[%c0_260, %c1792_261] : memref<8x16640xf32, #tpu.memory_space<vmem>>, vector<8x256xf32>
    %776 = vector.extract_strided_slice %750 {offsets = [5, 0], sizes = [1, 256], strides = [1, 1]} : vector<8x256xf32> to vector<1x256xf32>
    %777 = vector.broadcast %776 : vector<1x256xf32> to vector<8x256xf32>
    %778 = arith.mulf %775, %777 : vector<8x256xf32>
    %779 = arith.addf %774, %778 : vector<8x256xf32>
    %c0_262 = arith.constant 0 : index
    %c2048_263 = arith.constant 2048 : index
    %780 = vector.load %arg1[%c0_262, %c2048_263] : memref<8x16640xf32, #tpu.memory_space<vmem>>, vector<8x256xf32>
    %781 = vector.extract_strided_slice %750 {offsets = [6, 0], sizes = [1, 256], strides = [1, 1]} : vector<8x256xf32> to vector<1x256xf32>
    %782 = vector.broadcast %781 : vector<1x256xf32> to vector<8x256xf32>
    %783 = arith.mulf %780, %782 : vector<8x256xf32>
    %784 = arith.addf %779, %783 : vector<8x256xf32>
    %cst_264 = arith.constant 0.000000e+00 : f32
    %785 = vector.broadcast %cst_264 : f32 to vector<8x256xf32>
    %786 = arith.cmpf ogt, %784, %785 : vector<8x256xf32>
    %cst_265 = arith.constant 0.00999999977 : f32
    %787 = vector.broadcast %cst_265 : f32 to vector<8x256xf32>
    %788 = arith.mulf %787, %784 : vector<8x256xf32>
    %789 = arith.select %786, %784, %788 : vector<8x256xi1>, vector<8x256xf32>
    %c0_266 = arith.constant 0 : index
    %c2304_267 = arith.constant 2304 : index
    %790 = vector.load %arg1[%c0_266, %c2304_267] : memref<8x16640xf32, #tpu.memory_space<vmem>>, vector<8x256xf32>
    %791 = vector.extract_strided_slice %789 {offsets = [0, 0], sizes = [1, 256], strides = [1, 1]} : vector<8x256xf32> to vector<1x256xf32>
    %792 = vector.broadcast %791 : vector<1x256xf32> to vector<8x256xf32>
    %793 = arith.mulf %790, %792 : vector<8x256xf32>
    %c0_268 = arith.constant 0 : index
    %c2560_269 = arith.constant 2560 : index
    %794 = vector.load %arg1[%c0_268, %c2560_269] : memref<8x16640xf32, #tpu.memory_space<vmem>>, vector<8x256xf32>
    %795 = vector.extract_strided_slice %789 {offsets = [1, 0], sizes = [1, 256], strides = [1, 1]} : vector<8x256xf32> to vector<1x256xf32>
    %796 = vector.broadcast %795 : vector<1x256xf32> to vector<8x256xf32>
    %797 = arith.mulf %794, %796 : vector<8x256xf32>
    %798 = arith.addf %793, %797 : vector<8x256xf32>
    %c0_270 = arith.constant 0 : index
    %c2816_271 = arith.constant 2816 : index
    %799 = vector.load %arg1[%c0_270, %c2816_271] : memref<8x16640xf32, #tpu.memory_space<vmem>>, vector<8x256xf32>
    %800 = vector.extract_strided_slice %789 {offsets = [2, 0], sizes = [1, 256], strides = [1, 1]} : vector<8x256xf32> to vector<1x256xf32>
    %801 = vector.broadcast %800 : vector<1x256xf32> to vector<8x256xf32>
    %802 = arith.mulf %799, %801 : vector<8x256xf32>
    %803 = arith.addf %798, %802 : vector<8x256xf32>
    %c0_272 = arith.constant 0 : index
    %c3072_273 = arith.constant 3072 : index
    %804 = vector.load %arg1[%c0_272, %c3072_273] : memref<8x16640xf32, #tpu.memory_space<vmem>>, vector<8x256xf32>
    %805 = vector.extract_strided_slice %789 {offsets = [3, 0], sizes = [1, 256], strides = [1, 1]} : vector<8x256xf32> to vector<1x256xf32>
    %806 = vector.broadcast %805 : vector<1x256xf32> to vector<8x256xf32>
    %807 = arith.mulf %804, %806 : vector<8x256xf32>
    %808 = arith.addf %803, %807 : vector<8x256xf32>
    %c0_274 = arith.constant 0 : index
    %c3328_275 = arith.constant 3328 : index
    %809 = vector.load %arg1[%c0_274, %c3328_275] : memref<8x16640xf32, #tpu.memory_space<vmem>>, vector<8x256xf32>
    %810 = vector.extract_strided_slice %789 {offsets = [4, 0], sizes = [1, 256], strides = [1, 1]} : vector<8x256xf32> to vector<1x256xf32>
    %811 = vector.broadcast %810 : vector<1x256xf32> to vector<8x256xf32>
    %812 = arith.mulf %809, %811 : vector<8x256xf32>
    %813 = arith.addf %808, %812 : vector<8x256xf32>
    %c0_276 = arith.constant 0 : index
    %c3584_277 = arith.constant 3584 : index
    %814 = vector.load %arg1[%c0_276, %c3584_277] : memref<8x16640xf32, #tpu.memory_space<vmem>>, vector<8x256xf32>
    %815 = vector.extract_strided_slice %789 {offsets = [5, 0], sizes = [1, 256], strides = [1, 1]} : vector<8x256xf32> to vector<1x256xf32>
    %816 = vector.broadcast %815 : vector<1x256xf32> to vector<8x256xf32>
    %817 = arith.mulf %814, %816 : vector<8x256xf32>
    %818 = arith.addf %813, %817 : vector<8x256xf32>
    %c0_278 = arith.constant 0 : index
    %c3840_279 = arith.constant 3840 : index
    %819 = vector.load %arg1[%c0_278, %c3840_279] : memref<8x16640xf32, #tpu.memory_space<vmem>>, vector<8x256xf32>
    %820 = vector.extract_strided_slice %789 {offsets = [6, 0], sizes = [1, 256], strides = [1, 1]} : vector<8x256xf32> to vector<1x256xf32>
    %821 = vector.broadcast %820 : vector<1x256xf32> to vector<8x256xf32>
    %822 = arith.mulf %819, %821 : vector<8x256xf32>
    %823 = arith.addf %818, %822 : vector<8x256xf32>
    %cst_280 = arith.constant 0.000000e+00 : f32
    %824 = vector.broadcast %cst_280 : f32 to vector<8x256xf32>
    %825 = arith.cmpf ogt, %823, %824 : vector<8x256xf32>
    %cst_281 = arith.constant 0.00999999977 : f32
    %826 = vector.broadcast %cst_281 : f32 to vector<8x256xf32>
    %827 = arith.mulf %826, %823 : vector<8x256xf32>
    %828 = arith.select %825, %823, %827 : vector<8x256xi1>, vector<8x256xf32>
    %c0_282 = arith.constant 0 : index
    %c4096_283 = arith.constant 4096 : index
    %829 = vector.load %arg1[%c0_282, %c4096_283] : memref<8x16640xf32, #tpu.memory_space<vmem>>, vector<8x256xf32>
    %830 = vector.extract_strided_slice %828 {offsets = [0, 0], sizes = [1, 256], strides = [1, 1]} : vector<8x256xf32> to vector<1x256xf32>
    %831 = vector.broadcast %830 : vector<1x256xf32> to vector<8x256xf32>
    %832 = arith.mulf %829, %831 : vector<8x256xf32>
    %c0_284 = arith.constant 0 : index
    %c4352_285 = arith.constant 4352 : index
    %833 = vector.load %arg1[%c0_284, %c4352_285] : memref<8x16640xf32, #tpu.memory_space<vmem>>, vector<8x256xf32>
    %834 = vector.extract_strided_slice %828 {offsets = [1, 0], sizes = [1, 256], strides = [1, 1]} : vector<8x256xf32> to vector<1x256xf32>
    %835 = vector.broadcast %834 : vector<1x256xf32> to vector<8x256xf32>
    %836 = arith.mulf %833, %835 : vector<8x256xf32>
    %837 = arith.addf %832, %836 : vector<8x256xf32>
    %c0_286 = arith.constant 0 : index
    %c4608_287 = arith.constant 4608 : index
    %838 = vector.load %arg1[%c0_286, %c4608_287] : memref<8x16640xf32, #tpu.memory_space<vmem>>, vector<8x256xf32>
    %839 = vector.extract_strided_slice %828 {offsets = [2, 0], sizes = [1, 256], strides = [1, 1]} : vector<8x256xf32> to vector<1x256xf32>
    %840 = vector.broadcast %839 : vector<1x256xf32> to vector<8x256xf32>
    %841 = arith.mulf %838, %840 : vector<8x256xf32>
    %842 = arith.addf %837, %841 : vector<8x256xf32>
    %c0_288 = arith.constant 0 : index
    %c4864_289 = arith.constant 4864 : index
    %843 = vector.load %arg1[%c0_288, %c4864_289] : memref<8x16640xf32, #tpu.memory_space<vmem>>, vector<8x256xf32>
    %844 = vector.extract_strided_slice %828 {offsets = [3, 0], sizes = [1, 256], strides = [1, 1]} : vector<8x256xf32> to vector<1x256xf32>
    %845 = vector.broadcast %844 : vector<1x256xf32> to vector<8x256xf32>
    %846 = arith.mulf %843, %845 : vector<8x256xf32>
    %847 = arith.addf %842, %846 : vector<8x256xf32>
    %c0_290 = arith.constant 0 : index
    %c5120_291 = arith.constant 5120 : index
    %848 = vector.load %arg1[%c0_290, %c5120_291] : memref<8x16640xf32, #tpu.memory_space<vmem>>, vector<8x256xf32>
    %849 = vector.extract_strided_slice %828 {offsets = [4, 0], sizes = [1, 256], strides = [1, 1]} : vector<8x256xf32> to vector<1x256xf32>
    %850 = vector.broadcast %849 : vector<1x256xf32> to vector<8x256xf32>
    %851 = arith.mulf %848, %850 : vector<8x256xf32>
    %852 = arith.addf %847, %851 : vector<8x256xf32>
    %c0_292 = arith.constant 0 : index
    %c5376_293 = arith.constant 5376 : index
    %853 = vector.load %arg1[%c0_292, %c5376_293] : memref<8x16640xf32, #tpu.memory_space<vmem>>, vector<8x256xf32>
    %854 = vector.extract_strided_slice %828 {offsets = [5, 0], sizes = [1, 256], strides = [1, 1]} : vector<8x256xf32> to vector<1x256xf32>
    %855 = vector.broadcast %854 : vector<1x256xf32> to vector<8x256xf32>
    %856 = arith.mulf %853, %855 : vector<8x256xf32>
    %857 = arith.addf %852, %856 : vector<8x256xf32>
    %c0_294 = arith.constant 0 : index
    %c5632_295 = arith.constant 5632 : index
    %858 = vector.load %arg1[%c0_294, %c5632_295] : memref<8x16640xf32, #tpu.memory_space<vmem>>, vector<8x256xf32>
    %859 = vector.extract_strided_slice %828 {offsets = [6, 0], sizes = [1, 256], strides = [1, 1]} : vector<8x256xf32> to vector<1x256xf32>
    %860 = vector.broadcast %859 : vector<1x256xf32> to vector<8x256xf32>
    %861 = arith.mulf %858, %860 : vector<8x256xf32>
    %862 = arith.addf %857, %861 : vector<8x256xf32>
    %cst_296 = arith.constant 0.000000e+00 : f32
    %863 = vector.broadcast %cst_296 : f32 to vector<8x256xf32>
    %864 = arith.cmpf ogt, %862, %863 : vector<8x256xf32>
    %cst_297 = arith.constant 0.00999999977 : f32
    %865 = vector.broadcast %cst_297 : f32 to vector<8x256xf32>
    %866 = arith.mulf %865, %862 : vector<8x256xf32>
    %867 = arith.select %864, %862, %866 : vector<8x256xi1>, vector<8x256xf32>
    %c0_298 = arith.constant 0 : index
    %c5888_299 = arith.constant 5888 : index
    %868 = vector.load %arg1[%c0_298, %c5888_299] : memref<8x16640xf32, #tpu.memory_space<vmem>>, vector<8x256xf32>
    %869 = vector.extract_strided_slice %867 {offsets = [0, 0], sizes = [1, 256], strides = [1, 1]} : vector<8x256xf32> to vector<1x256xf32>
    %870 = vector.broadcast %869 : vector<1x256xf32> to vector<8x256xf32>
    %871 = arith.mulf %868, %870 : vector<8x256xf32>
    %c0_300 = arith.constant 0 : index
    %c6144_301 = arith.constant 6144 : index
    %872 = vector.load %arg1[%c0_300, %c6144_301] : memref<8x16640xf32, #tpu.memory_space<vmem>>, vector<8x256xf32>
    %873 = vector.extract_strided_slice %867 {offsets = [1, 0], sizes = [1, 256], strides = [1, 1]} : vector<8x256xf32> to vector<1x256xf32>
    %874 = vector.broadcast %873 : vector<1x256xf32> to vector<8x256xf32>
    %875 = arith.mulf %872, %874 : vector<8x256xf32>
    %876 = arith.addf %871, %875 : vector<8x256xf32>
    %c0_302 = arith.constant 0 : index
    %c6400_303 = arith.constant 6400 : index
    %877 = vector.load %arg1[%c0_302, %c6400_303] : memref<8x16640xf32, #tpu.memory_space<vmem>>, vector<8x256xf32>
    %878 = vector.extract_strided_slice %867 {offsets = [2, 0], sizes = [1, 256], strides = [1, 1]} : vector<8x256xf32> to vector<1x256xf32>
    %879 = vector.broadcast %878 : vector<1x256xf32> to vector<8x256xf32>
    %880 = arith.mulf %877, %879 : vector<8x256xf32>
    %881 = arith.addf %876, %880 : vector<8x256xf32>
    %c0_304 = arith.constant 0 : index
    %c6656_305 = arith.constant 6656 : index
    %882 = vector.load %arg1[%c0_304, %c6656_305] : memref<8x16640xf32, #tpu.memory_space<vmem>>, vector<8x256xf32>
    %883 = vector.extract_strided_slice %867 {offsets = [3, 0], sizes = [1, 256], strides = [1, 1]} : vector<8x256xf32> to vector<1x256xf32>
    %884 = vector.broadcast %883 : vector<1x256xf32> to vector<8x256xf32>
    %885 = arith.mulf %882, %884 : vector<8x256xf32>
    %886 = arith.addf %881, %885 : vector<8x256xf32>
    %c0_306 = arith.constant 0 : index
    %c6912_307 = arith.constant 6912 : index
    %887 = vector.load %arg1[%c0_306, %c6912_307] : memref<8x16640xf32, #tpu.memory_space<vmem>>, vector<8x256xf32>
    %888 = vector.extract_strided_slice %867 {offsets = [4, 0], sizes = [1, 256], strides = [1, 1]} : vector<8x256xf32> to vector<1x256xf32>
    %889 = vector.broadcast %888 : vector<1x256xf32> to vector<8x256xf32>
    %890 = arith.mulf %887, %889 : vector<8x256xf32>
    %891 = arith.addf %886, %890 : vector<8x256xf32>
    %c0_308 = arith.constant 0 : index
    %c7168_309 = arith.constant 7168 : index
    %892 = vector.load %arg1[%c0_308, %c7168_309] : memref<8x16640xf32, #tpu.memory_space<vmem>>, vector<8x256xf32>
    %893 = vector.extract_strided_slice %867 {offsets = [5, 0], sizes = [1, 256], strides = [1, 1]} : vector<8x256xf32> to vector<1x256xf32>
    %894 = vector.broadcast %893 : vector<1x256xf32> to vector<8x256xf32>
    %895 = arith.mulf %892, %894 : vector<8x256xf32>
    %896 = arith.addf %891, %895 : vector<8x256xf32>
    %c0_310 = arith.constant 0 : index
    %c7424_311 = arith.constant 7424 : index
    %897 = vector.load %arg1[%c0_310, %c7424_311] : memref<8x16640xf32, #tpu.memory_space<vmem>>, vector<8x256xf32>
    %898 = vector.extract_strided_slice %867 {offsets = [6, 0], sizes = [1, 256], strides = [1, 1]} : vector<8x256xf32> to vector<1x256xf32>
    %899 = vector.broadcast %898 : vector<1x256xf32> to vector<8x256xf32>
    %900 = arith.mulf %897, %899 : vector<8x256xf32>
    %901 = arith.addf %896, %900 : vector<8x256xf32>
    %cst_312 = arith.constant 0.000000e+00 : f32
    %902 = vector.broadcast %cst_312 : f32 to vector<8x256xf32>
    %903 = arith.cmpf ogt, %901, %902 : vector<8x256xf32>
    %cst_313 = arith.constant 0.00999999977 : f32
    %904 = vector.broadcast %cst_313 : f32 to vector<8x256xf32>
    %905 = arith.mulf %904, %901 : vector<8x256xf32>
    %906 = arith.select %903, %901, %905 : vector<8x256xi1>, vector<8x256xf32>
    %c0_314 = arith.constant 0 : index
    %c7680_315 = arith.constant 7680 : index
    %907 = vector.load %arg1[%c0_314, %c7680_315] : memref<8x16640xf32, #tpu.memory_space<vmem>>, vector<8x256xf32>
    %908 = vector.extract_strided_slice %906 {offsets = [0, 0], sizes = [1, 256], strides = [1, 1]} : vector<8x256xf32> to vector<1x256xf32>
    %909 = vector.broadcast %908 : vector<1x256xf32> to vector<8x256xf32>
    %910 = arith.mulf %907, %909 : vector<8x256xf32>
    %c0_316 = arith.constant 0 : index
    %c7936_317 = arith.constant 7936 : index
    %911 = vector.load %arg1[%c0_316, %c7936_317] : memref<8x16640xf32, #tpu.memory_space<vmem>>, vector<8x256xf32>
    %912 = vector.extract_strided_slice %906 {offsets = [1, 0], sizes = [1, 256], strides = [1, 1]} : vector<8x256xf32> to vector<1x256xf32>
    %913 = vector.broadcast %912 : vector<1x256xf32> to vector<8x256xf32>
    %914 = arith.mulf %911, %913 : vector<8x256xf32>
    %915 = arith.addf %910, %914 : vector<8x256xf32>
    %c0_318 = arith.constant 0 : index
    %c8192_319 = arith.constant 8192 : index
    %916 = vector.load %arg1[%c0_318, %c8192_319] : memref<8x16640xf32, #tpu.memory_space<vmem>>, vector<8x256xf32>
    %917 = vector.extract_strided_slice %906 {offsets = [2, 0], sizes = [1, 256], strides = [1, 1]} : vector<8x256xf32> to vector<1x256xf32>
    %918 = vector.broadcast %917 : vector<1x256xf32> to vector<8x256xf32>
    %919 = arith.mulf %916, %918 : vector<8x256xf32>
    %920 = arith.addf %915, %919 : vector<8x256xf32>
    %c0_320 = arith.constant 0 : index
    %c8448_321 = arith.constant 8448 : index
    %921 = vector.load %arg1[%c0_320, %c8448_321] : memref<8x16640xf32, #tpu.memory_space<vmem>>, vector<8x256xf32>
    %922 = vector.extract_strided_slice %906 {offsets = [3, 0], sizes = [1, 256], strides = [1, 1]} : vector<8x256xf32> to vector<1x256xf32>
    %923 = vector.broadcast %922 : vector<1x256xf32> to vector<8x256xf32>
    %924 = arith.mulf %921, %923 : vector<8x256xf32>
    %925 = arith.addf %920, %924 : vector<8x256xf32>
    %c0_322 = arith.constant 0 : index
    %c8704_323 = arith.constant 8704 : index
    %926 = vector.load %arg1[%c0_322, %c8704_323] : memref<8x16640xf32, #tpu.memory_space<vmem>>, vector<8x256xf32>
    %927 = vector.extract_strided_slice %906 {offsets = [4, 0], sizes = [1, 256], strides = [1, 1]} : vector<8x256xf32> to vector<1x256xf32>
    %928 = vector.broadcast %927 : vector<1x256xf32> to vector<8x256xf32>
    %929 = arith.mulf %926, %928 : vector<8x256xf32>
    %930 = arith.addf %925, %929 : vector<8x256xf32>
    %c0_324 = arith.constant 0 : index
    %c8960_325 = arith.constant 8960 : index
    %931 = vector.load %arg1[%c0_324, %c8960_325] : memref<8x16640xf32, #tpu.memory_space<vmem>>, vector<8x256xf32>
    %932 = vector.extract_strided_slice %906 {offsets = [5, 0], sizes = [1, 256], strides = [1, 1]} : vector<8x256xf32> to vector<1x256xf32>
    %933 = vector.broadcast %932 : vector<1x256xf32> to vector<8x256xf32>
    %934 = arith.mulf %931, %933 : vector<8x256xf32>
    %935 = arith.addf %930, %934 : vector<8x256xf32>
    %c0_326 = arith.constant 0 : index
    %c9216_327 = arith.constant 9216 : index
    %936 = vector.load %arg1[%c0_326, %c9216_327] : memref<8x16640xf32, #tpu.memory_space<vmem>>, vector<8x256xf32>
    %937 = vector.extract_strided_slice %906 {offsets = [6, 0], sizes = [1, 256], strides = [1, 1]} : vector<8x256xf32> to vector<1x256xf32>
    %938 = vector.broadcast %937 : vector<1x256xf32> to vector<8x256xf32>
    %939 = arith.mulf %936, %938 : vector<8x256xf32>
    %940 = arith.addf %935, %939 : vector<8x256xf32>
    %cst_328 = arith.constant 0.000000e+00 : f32
    %941 = vector.broadcast %cst_328 : f32 to vector<8x256xf32>
    %942 = arith.cmpf ogt, %940, %941 : vector<8x256xf32>
    %cst_329 = arith.constant 0.00999999977 : f32
    %943 = vector.broadcast %cst_329 : f32 to vector<8x256xf32>
    %944 = arith.mulf %943, %940 : vector<8x256xf32>
    %945 = arith.select %942, %940, %944 : vector<8x256xi1>, vector<8x256xf32>
    %c0_330 = arith.constant 0 : index
    %c9472_331 = arith.constant 9472 : index
    %946 = vector.load %arg1[%c0_330, %c9472_331] : memref<8x16640xf32, #tpu.memory_space<vmem>>, vector<8x256xf32>
    %947 = vector.extract_strided_slice %945 {offsets = [0, 0], sizes = [1, 256], strides = [1, 1]} : vector<8x256xf32> to vector<1x256xf32>
    %948 = vector.broadcast %947 : vector<1x256xf32> to vector<8x256xf32>
    %949 = arith.mulf %946, %948 : vector<8x256xf32>
    %c0_332 = arith.constant 0 : index
    %c9728_333 = arith.constant 9728 : index
    %950 = vector.load %arg1[%c0_332, %c9728_333] : memref<8x16640xf32, #tpu.memory_space<vmem>>, vector<8x256xf32>
    %951 = vector.extract_strided_slice %945 {offsets = [1, 0], sizes = [1, 256], strides = [1, 1]} : vector<8x256xf32> to vector<1x256xf32>
    %952 = vector.broadcast %951 : vector<1x256xf32> to vector<8x256xf32>
    %953 = arith.mulf %950, %952 : vector<8x256xf32>
    %954 = arith.addf %949, %953 : vector<8x256xf32>
    %c0_334 = arith.constant 0 : index
    %c9984_335 = arith.constant 9984 : index
    %955 = vector.load %arg1[%c0_334, %c9984_335] : memref<8x16640xf32, #tpu.memory_space<vmem>>, vector<8x256xf32>
    %956 = vector.extract_strided_slice %945 {offsets = [2, 0], sizes = [1, 256], strides = [1, 1]} : vector<8x256xf32> to vector<1x256xf32>
    %957 = vector.broadcast %956 : vector<1x256xf32> to vector<8x256xf32>
    %958 = arith.mulf %955, %957 : vector<8x256xf32>
    %959 = arith.addf %954, %958 : vector<8x256xf32>
    %c0_336 = arith.constant 0 : index
    %c10240_337 = arith.constant 10240 : index
    %960 = vector.load %arg1[%c0_336, %c10240_337] : memref<8x16640xf32, #tpu.memory_space<vmem>>, vector<8x256xf32>
    %961 = vector.extract_strided_slice %945 {offsets = [3, 0], sizes = [1, 256], strides = [1, 1]} : vector<8x256xf32> to vector<1x256xf32>
    %962 = vector.broadcast %961 : vector<1x256xf32> to vector<8x256xf32>
    %963 = arith.mulf %960, %962 : vector<8x256xf32>
    %964 = arith.addf %959, %963 : vector<8x256xf32>
    %c0_338 = arith.constant 0 : index
    %c10496_339 = arith.constant 10496 : index
    %965 = vector.load %arg1[%c0_338, %c10496_339] : memref<8x16640xf32, #tpu.memory_space<vmem>>, vector<8x256xf32>
    %966 = vector.extract_strided_slice %945 {offsets = [4, 0], sizes = [1, 256], strides = [1, 1]} : vector<8x256xf32> to vector<1x256xf32>
    %967 = vector.broadcast %966 : vector<1x256xf32> to vector<8x256xf32>
    %968 = arith.mulf %965, %967 : vector<8x256xf32>
    %969 = arith.addf %964, %968 : vector<8x256xf32>
    %c0_340 = arith.constant 0 : index
    %c10752_341 = arith.constant 10752 : index
    %970 = vector.load %arg1[%c0_340, %c10752_341] : memref<8x16640xf32, #tpu.memory_space<vmem>>, vector<8x256xf32>
    %971 = vector.extract_strided_slice %945 {offsets = [5, 0], sizes = [1, 256], strides = [1, 1]} : vector<8x256xf32> to vector<1x256xf32>
    %972 = vector.broadcast %971 : vector<1x256xf32> to vector<8x256xf32>
    %973 = arith.mulf %970, %972 : vector<8x256xf32>
    %974 = arith.addf %969, %973 : vector<8x256xf32>
    %c0_342 = arith.constant 0 : index
    %c11008_343 = arith.constant 11008 : index
    %975 = vector.load %arg1[%c0_342, %c11008_343] : memref<8x16640xf32, #tpu.memory_space<vmem>>, vector<8x256xf32>
    %976 = vector.extract_strided_slice %945 {offsets = [6, 0], sizes = [1, 256], strides = [1, 1]} : vector<8x256xf32> to vector<1x256xf32>
    %977 = vector.broadcast %976 : vector<1x256xf32> to vector<8x256xf32>
    %978 = arith.mulf %975, %977 : vector<8x256xf32>
    %979 = arith.addf %974, %978 : vector<8x256xf32>
    %cst_344 = arith.constant 0.000000e+00 : f32
    %980 = vector.broadcast %cst_344 : f32 to vector<8x256xf32>
    %981 = arith.cmpf ogt, %979, %980 : vector<8x256xf32>
    %cst_345 = arith.constant 0.00999999977 : f32
    %982 = vector.broadcast %cst_345 : f32 to vector<8x256xf32>
    %983 = arith.mulf %982, %979 : vector<8x256xf32>
    %984 = arith.select %981, %979, %983 : vector<8x256xi1>, vector<8x256xf32>
    %c0_346 = arith.constant 0 : index
    %c11264_347 = arith.constant 11264 : index
    %985 = vector.load %arg1[%c0_346, %c11264_347] : memref<8x16640xf32, #tpu.memory_space<vmem>>, vector<8x256xf32>
    %986 = vector.extract_strided_slice %984 {offsets = [0, 0], sizes = [1, 256], strides = [1, 1]} : vector<8x256xf32> to vector<1x256xf32>
    %987 = vector.broadcast %986 : vector<1x256xf32> to vector<8x256xf32>
    %988 = arith.mulf %985, %987 : vector<8x256xf32>
    %c0_348 = arith.constant 0 : index
    %c11520_349 = arith.constant 11520 : index
    %989 = vector.load %arg1[%c0_348, %c11520_349] : memref<8x16640xf32, #tpu.memory_space<vmem>>, vector<8x256xf32>
    %990 = vector.extract_strided_slice %984 {offsets = [1, 0], sizes = [1, 256], strides = [1, 1]} : vector<8x256xf32> to vector<1x256xf32>
    %991 = vector.broadcast %990 : vector<1x256xf32> to vector<8x256xf32>
    %992 = arith.mulf %989, %991 : vector<8x256xf32>
    %993 = arith.addf %988, %992 : vector<8x256xf32>
    %c0_350 = arith.constant 0 : index
    %c11776_351 = arith.constant 11776 : index
    %994 = vector.load %arg1[%c0_350, %c11776_351] : memref<8x16640xf32, #tpu.memory_space<vmem>>, vector<8x256xf32>
    %995 = vector.extract_strided_slice %984 {offsets = [2, 0], sizes = [1, 256], strides = [1, 1]} : vector<8x256xf32> to vector<1x256xf32>
    %996 = vector.broadcast %995 : vector<1x256xf32> to vector<8x256xf32>
    %997 = arith.mulf %994, %996 : vector<8x256xf32>
    %998 = arith.addf %993, %997 : vector<8x256xf32>
    %c0_352 = arith.constant 0 : index
    %c12032_353 = arith.constant 12032 : index
    %999 = vector.load %arg1[%c0_352, %c12032_353] : memref<8x16640xf32, #tpu.memory_space<vmem>>, vector<8x256xf32>
    %1000 = vector.extract_strided_slice %984 {offsets = [3, 0], sizes = [1, 256], strides = [1, 1]} : vector<8x256xf32> to vector<1x256xf32>
    %1001 = vector.broadcast %1000 : vector<1x256xf32> to vector<8x256xf32>
    %1002 = arith.mulf %999, %1001 : vector<8x256xf32>
    %1003 = arith.addf %998, %1002 : vector<8x256xf32>
    %c0_354 = arith.constant 0 : index
    %c12288_355 = arith.constant 12288 : index
    %1004 = vector.load %arg1[%c0_354, %c12288_355] : memref<8x16640xf32, #tpu.memory_space<vmem>>, vector<8x256xf32>
    %1005 = vector.extract_strided_slice %984 {offsets = [4, 0], sizes = [1, 256], strides = [1, 1]} : vector<8x256xf32> to vector<1x256xf32>
    %1006 = vector.broadcast %1005 : vector<1x256xf32> to vector<8x256xf32>
    %1007 = arith.mulf %1004, %1006 : vector<8x256xf32>
    %1008 = arith.addf %1003, %1007 : vector<8x256xf32>
    %c0_356 = arith.constant 0 : index
    %c12544_357 = arith.constant 12544 : index
    %1009 = vector.load %arg1[%c0_356, %c12544_357] : memref<8x16640xf32, #tpu.memory_space<vmem>>, vector<8x256xf32>
    %1010 = vector.extract_strided_slice %984 {offsets = [5, 0], sizes = [1, 256], strides = [1, 1]} : vector<8x256xf32> to vector<1x256xf32>
    %1011 = vector.broadcast %1010 : vector<1x256xf32> to vector<8x256xf32>
    %1012 = arith.mulf %1009, %1011 : vector<8x256xf32>
    %1013 = arith.addf %1008, %1012 : vector<8x256xf32>
    %c0_358 = arith.constant 0 : index
    %c12800_359 = arith.constant 12800 : index
    %1014 = vector.load %arg1[%c0_358, %c12800_359] : memref<8x16640xf32, #tpu.memory_space<vmem>>, vector<8x256xf32>
    %1015 = vector.extract_strided_slice %984 {offsets = [6, 0], sizes = [1, 256], strides = [1, 1]} : vector<8x256xf32> to vector<1x256xf32>
    %1016 = vector.broadcast %1015 : vector<1x256xf32> to vector<8x256xf32>
    %1017 = arith.mulf %1014, %1016 : vector<8x256xf32>
    %1018 = arith.addf %1013, %1017 : vector<8x256xf32>
    %cst_360 = arith.constant 0.000000e+00 : f32
    %1019 = vector.broadcast %cst_360 : f32 to vector<8x256xf32>
    %1020 = arith.cmpf ogt, %1018, %1019 : vector<8x256xf32>
    %cst_361 = arith.constant 0.00999999977 : f32
    %1021 = vector.broadcast %cst_361 : f32 to vector<8x256xf32>
    %1022 = arith.mulf %1021, %1018 : vector<8x256xf32>
    %1023 = arith.select %1020, %1018, %1022 : vector<8x256xi1>, vector<8x256xf32>
    %c0_362 = arith.constant 0 : index
    %c13056_363 = arith.constant 13056 : index
    %1024 = vector.load %arg1[%c0_362, %c13056_363] : memref<8x16640xf32, #tpu.memory_space<vmem>>, vector<8x256xf32>
    %1025 = vector.extract_strided_slice %1023 {offsets = [0, 0], sizes = [1, 256], strides = [1, 1]} : vector<8x256xf32> to vector<1x256xf32>
    %1026 = vector.broadcast %1025 : vector<1x256xf32> to vector<8x256xf32>
    %1027 = arith.mulf %1024, %1026 : vector<8x256xf32>
    %c0_364 = arith.constant 0 : index
    %c13312_365 = arith.constant 13312 : index
    %1028 = vector.load %arg1[%c0_364, %c13312_365] : memref<8x16640xf32, #tpu.memory_space<vmem>>, vector<8x256xf32>
    %1029 = vector.extract_strided_slice %1023 {offsets = [1, 0], sizes = [1, 256], strides = [1, 1]} : vector<8x256xf32> to vector<1x256xf32>
    %1030 = vector.broadcast %1029 : vector<1x256xf32> to vector<8x256xf32>
    %1031 = arith.mulf %1028, %1030 : vector<8x256xf32>
    %1032 = arith.addf %1027, %1031 : vector<8x256xf32>
    %c0_366 = arith.constant 0 : index
    %c13568_367 = arith.constant 13568 : index
    %1033 = vector.load %arg1[%c0_366, %c13568_367] : memref<8x16640xf32, #tpu.memory_space<vmem>>, vector<8x256xf32>
    %1034 = vector.extract_strided_slice %1023 {offsets = [2, 0], sizes = [1, 256], strides = [1, 1]} : vector<8x256xf32> to vector<1x256xf32>
    %1035 = vector.broadcast %1034 : vector<1x256xf32> to vector<8x256xf32>
    %1036 = arith.mulf %1033, %1035 : vector<8x256xf32>
    %1037 = arith.addf %1032, %1036 : vector<8x256xf32>
    %c0_368 = arith.constant 0 : index
    %c13824_369 = arith.constant 13824 : index
    %1038 = vector.load %arg1[%c0_368, %c13824_369] : memref<8x16640xf32, #tpu.memory_space<vmem>>, vector<8x256xf32>
    %1039 = vector.extract_strided_slice %1023 {offsets = [3, 0], sizes = [1, 256], strides = [1, 1]} : vector<8x256xf32> to vector<1x256xf32>
    %1040 = vector.broadcast %1039 : vector<1x256xf32> to vector<8x256xf32>
    %1041 = arith.mulf %1038, %1040 : vector<8x256xf32>
    %1042 = arith.addf %1037, %1041 : vector<8x256xf32>
    %c0_370 = arith.constant 0 : index
    %c14080_371 = arith.constant 14080 : index
    %1043 = vector.load %arg1[%c0_370, %c14080_371] : memref<8x16640xf32, #tpu.memory_space<vmem>>, vector<8x256xf32>
    %1044 = vector.extract_strided_slice %1023 {offsets = [4, 0], sizes = [1, 256], strides = [1, 1]} : vector<8x256xf32> to vector<1x256xf32>
    %1045 = vector.broadcast %1044 : vector<1x256xf32> to vector<8x256xf32>
    %1046 = arith.mulf %1043, %1045 : vector<8x256xf32>
    %1047 = arith.addf %1042, %1046 : vector<8x256xf32>
    %c0_372 = arith.constant 0 : index
    %c14336_373 = arith.constant 14336 : index
    %1048 = vector.load %arg1[%c0_372, %c14336_373] : memref<8x16640xf32, #tpu.memory_space<vmem>>, vector<8x256xf32>
    %1049 = vector.extract_strided_slice %1023 {offsets = [5, 0], sizes = [1, 256], strides = [1, 1]} : vector<8x256xf32> to vector<1x256xf32>
    %1050 = vector.broadcast %1049 : vector<1x256xf32> to vector<8x256xf32>
    %1051 = arith.mulf %1048, %1050 : vector<8x256xf32>
    %1052 = arith.addf %1047, %1051 : vector<8x256xf32>
    %c0_374 = arith.constant 0 : index
    %c14592_375 = arith.constant 14592 : index
    %1053 = vector.load %arg1[%c0_374, %c14592_375] : memref<8x16640xf32, #tpu.memory_space<vmem>>, vector<8x256xf32>
    %1054 = vector.extract_strided_slice %1023 {offsets = [6, 0], sizes = [1, 256], strides = [1, 1]} : vector<8x256xf32> to vector<1x256xf32>
    %1055 = vector.broadcast %1054 : vector<1x256xf32> to vector<8x256xf32>
    %1056 = arith.mulf %1053, %1055 : vector<8x256xf32>
    %1057 = arith.addf %1052, %1056 : vector<8x256xf32>
    %cst_376 = arith.constant 0.000000e+00 : f32
    %1058 = vector.broadcast %cst_376 : f32 to vector<8x256xf32>
    %1059 = arith.cmpf ogt, %1057, %1058 : vector<8x256xf32>
    %cst_377 = arith.constant 0.00999999977 : f32
    %1060 = vector.broadcast %cst_377 : f32 to vector<8x256xf32>
    %1061 = arith.mulf %1060, %1057 : vector<8x256xf32>
    %1062 = arith.select %1059, %1057, %1061 : vector<8x256xi1>, vector<8x256xf32>
    %c0_378 = arith.constant 0 : index
    %c14848_379 = arith.constant 14848 : index
    %1063 = vector.load %arg1[%c0_378, %c14848_379] : memref<8x16640xf32, #tpu.memory_space<vmem>>, vector<8x256xf32>
    %1064 = vector.extract_strided_slice %1062 {offsets = [0, 0], sizes = [1, 256], strides = [1, 1]} : vector<8x256xf32> to vector<1x256xf32>
    %1065 = vector.broadcast %1064 : vector<1x256xf32> to vector<8x256xf32>
    %1066 = arith.mulf %1063, %1065 : vector<8x256xf32>
    %c0_380 = arith.constant 0 : index
    %c15104_381 = arith.constant 15104 : index
    %1067 = vector.load %arg1[%c0_380, %c15104_381] : memref<8x16640xf32, #tpu.memory_space<vmem>>, vector<8x256xf32>
    %1068 = vector.extract_strided_slice %1062 {offsets = [1, 0], sizes = [1, 256], strides = [1, 1]} : vector<8x256xf32> to vector<1x256xf32>
    %1069 = vector.broadcast %1068 : vector<1x256xf32> to vector<8x256xf32>
    %1070 = arith.mulf %1067, %1069 : vector<8x256xf32>
    %1071 = arith.addf %1066, %1070 : vector<8x256xf32>
    %c0_382 = arith.constant 0 : index
    %c15360_383 = arith.constant 15360 : index
    %1072 = vector.load %arg1[%c0_382, %c15360_383] : memref<8x16640xf32, #tpu.memory_space<vmem>>, vector<8x256xf32>
    %1073 = vector.extract_strided_slice %1062 {offsets = [2, 0], sizes = [1, 256], strides = [1, 1]} : vector<8x256xf32> to vector<1x256xf32>
    %1074 = vector.broadcast %1073 : vector<1x256xf32> to vector<8x256xf32>
    %1075 = arith.mulf %1072, %1074 : vector<8x256xf32>
    %1076 = arith.addf %1071, %1075 : vector<8x256xf32>
    %c0_384 = arith.constant 0 : index
    %c15616_385 = arith.constant 15616 : index
    %1077 = vector.load %arg1[%c0_384, %c15616_385] : memref<8x16640xf32, #tpu.memory_space<vmem>>, vector<8x256xf32>
    %1078 = vector.extract_strided_slice %1062 {offsets = [3, 0], sizes = [1, 256], strides = [1, 1]} : vector<8x256xf32> to vector<1x256xf32>
    %1079 = vector.broadcast %1078 : vector<1x256xf32> to vector<8x256xf32>
    %1080 = arith.mulf %1077, %1079 : vector<8x256xf32>
    %1081 = arith.addf %1076, %1080 : vector<8x256xf32>
    %c0_386 = arith.constant 0 : index
    %c15872_387 = arith.constant 15872 : index
    %1082 = vector.load %arg1[%c0_386, %c15872_387] : memref<8x16640xf32, #tpu.memory_space<vmem>>, vector<8x256xf32>
    %1083 = vector.extract_strided_slice %1062 {offsets = [4, 0], sizes = [1, 256], strides = [1, 1]} : vector<8x256xf32> to vector<1x256xf32>
    %1084 = vector.broadcast %1083 : vector<1x256xf32> to vector<8x256xf32>
    %1085 = arith.mulf %1082, %1084 : vector<8x256xf32>
    %1086 = arith.addf %1081, %1085 : vector<8x256xf32>
    %c0_388 = arith.constant 0 : index
    %c16128_389 = arith.constant 16128 : index
    %1087 = vector.load %arg1[%c0_388, %c16128_389] : memref<8x16640xf32, #tpu.memory_space<vmem>>, vector<8x256xf32>
    %1088 = vector.extract_strided_slice %1062 {offsets = [5, 0], sizes = [1, 256], strides = [1, 1]} : vector<8x256xf32> to vector<1x256xf32>
    %1089 = vector.broadcast %1088 : vector<1x256xf32> to vector<8x256xf32>
    %1090 = arith.mulf %1087, %1089 : vector<8x256xf32>
    %1091 = arith.addf %1086, %1090 : vector<8x256xf32>
    %c0_390 = arith.constant 0 : index
    %c16384_391 = arith.constant 16384 : index
    %1092 = vector.load %arg1[%c0_390, %c16384_391] : memref<8x16640xf32, #tpu.memory_space<vmem>>, vector<8x256xf32>
    %1093 = vector.extract_strided_slice %1062 {offsets = [6, 0], sizes = [1, 256], strides = [1, 1]} : vector<8x256xf32> to vector<1x256xf32>
    %1094 = vector.broadcast %1093 : vector<1x256xf32> to vector<8x256xf32>
    %1095 = arith.mulf %1092, %1094 : vector<8x256xf32>
    %1096 = arith.addf %1091, %1095 : vector<8x256xf32>
    %cst_392 = arith.constant 0.000000e+00 : f32
    %1097 = vector.broadcast %cst_392 : f32 to vector<8x256xf32>
    %1098 = arith.cmpf ogt, %1096, %1097 : vector<8x256xf32>
    %cst_393 = arith.constant 0.00999999977 : f32
    %1099 = vector.broadcast %cst_393 : f32 to vector<8x256xf32>
    %1100 = arith.mulf %1099, %1096 : vector<8x256xf32>
    %1101 = arith.select %1098, %1096, %1100 : vector<8x256xi1>, vector<8x256xf32>
    %1102 = vector.extract_strided_slice %1101 {offsets = [0, 0], sizes = [1, 256], strides = [1, 1]} : vector<8x256xf32> to vector<1x256xf32>
    %c0_394 = arith.constant 0 : index
    %c512_395 = arith.constant 512 : index
    %1103 = vector.load %arg3[%c0_394, %c512_395] : memref<1x1024xf32, #tpu.memory_space<vmem>>, vector<1x256xf32>
    tpu.vector_store %arg3[%c0_394, %c512_395], %1102 {strides = array<i32>} : memref<1x1024xf32, #tpu.memory_space<vmem>>, vector<1x256xf32>,
    %c0_396 = arith.constant 0 : index
    %c768_397 = arith.constant 768 : index
    %1104 = vector.load %arg2[%c0_396, %c768_397] : memref<2x1024xf32, #tpu.memory_space<vmem>>, vector<2x256xf32>
    %c0_398 = arith.constant 0 : index
    %c0_399 = arith.constant 0 : index
    %1105 = vector.load %arg1[%c0_398, %c0_399] : memref<8x16640xf32, #tpu.memory_space<vmem>>, vector<8x256xf32>
    %1106 = vector.extract_strided_slice %1104 {offsets = [0, 0], sizes = [1, 256], strides = [1, 1]} : vector<2x256xf32> to vector<1x256xf32>
    %1107 = vector.broadcast %1106 : vector<1x256xf32> to vector<8x256xf32>
    %1108 = arith.mulf %1105, %1107 : vector<8x256xf32>
    %c0_400 = arith.constant 0 : index
    %c256_401 = arith.constant 256 : index
    %1109 = vector.load %arg1[%c0_400, %c256_401] : memref<8x16640xf32, #tpu.memory_space<vmem>>, vector<8x256xf32>
    %1110 = vector.extract_strided_slice %1104 {offsets = [1, 0], sizes = [1, 256], strides = [1, 1]} : vector<2x256xf32> to vector<1x256xf32>
    %1111 = vector.broadcast %1110 : vector<1x256xf32> to vector<8x256xf32>
    %1112 = arith.mulf %1109, %1111 : vector<8x256xf32>
    %1113 = arith.addf %1108, %1112 : vector<8x256xf32>
    %cst_402 = arith.constant 0.000000e+00 : f32
    %1114 = vector.broadcast %cst_402 : f32 to vector<8x256xf32>
    %1115 = arith.cmpf ogt, %1113, %1114 : vector<8x256xf32>
    %cst_403 = arith.constant 0.00999999977 : f32
    %1116 = vector.broadcast %cst_403 : f32 to vector<8x256xf32>
    %1117 = arith.mulf %1116, %1113 : vector<8x256xf32>
    %1118 = arith.select %1115, %1113, %1117 : vector<8x256xi1>, vector<8x256xf32>
    %c0_404 = arith.constant 0 : index
    %c512_405 = arith.constant 512 : index
    %1119 = vector.load %arg1[%c0_404, %c512_405] : memref<8x16640xf32, #tpu.memory_space<vmem>>, vector<8x256xf32>
    %1120 = vector.extract_strided_slice %1118 {offsets = [0, 0], sizes = [1, 256], strides = [1, 1]} : vector<8x256xf32> to vector<1x256xf32>
    %1121 = vector.broadcast %1120 : vector<1x256xf32> to vector<8x256xf32>
    %1122 = arith.mulf %1119, %1121 : vector<8x256xf32>
    %c0_406 = arith.constant 0 : index
    %c768_407 = arith.constant 768 : index
    %1123 = vector.load %arg1[%c0_406, %c768_407] : memref<8x16640xf32, #tpu.memory_space<vmem>>, vector<8x256xf32>
    %1124 = vector.extract_strided_slice %1118 {offsets = [1, 0], sizes = [1, 256], strides = [1, 1]} : vector<8x256xf32> to vector<1x256xf32>
    %1125 = vector.broadcast %1124 : vector<1x256xf32> to vector<8x256xf32>
    %1126 = arith.mulf %1123, %1125 : vector<8x256xf32>
    %1127 = arith.addf %1122, %1126 : vector<8x256xf32>
    %c0_408 = arith.constant 0 : index
    %c1024_409 = arith.constant 1024 : index
    %1128 = vector.load %arg1[%c0_408, %c1024_409] : memref<8x16640xf32, #tpu.memory_space<vmem>>, vector<8x256xf32>
    %1129 = vector.extract_strided_slice %1118 {offsets = [2, 0], sizes = [1, 256], strides = [1, 1]} : vector<8x256xf32> to vector<1x256xf32>
    %1130 = vector.broadcast %1129 : vector<1x256xf32> to vector<8x256xf32>
    %1131 = arith.mulf %1128, %1130 : vector<8x256xf32>
    %1132 = arith.addf %1127, %1131 : vector<8x256xf32>
    %c0_410 = arith.constant 0 : index
    %c1280_411 = arith.constant 1280 : index
    %1133 = vector.load %arg1[%c0_410, %c1280_411] : memref<8x16640xf32, #tpu.memory_space<vmem>>, vector<8x256xf32>
    %1134 = vector.extract_strided_slice %1118 {offsets = [3, 0], sizes = [1, 256], strides = [1, 1]} : vector<8x256xf32> to vector<1x256xf32>
    %1135 = vector.broadcast %1134 : vector<1x256xf32> to vector<8x256xf32>
    %1136 = arith.mulf %1133, %1135 : vector<8x256xf32>
    %1137 = arith.addf %1132, %1136 : vector<8x256xf32>
    %c0_412 = arith.constant 0 : index
    %c1536_413 = arith.constant 1536 : index
    %1138 = vector.load %arg1[%c0_412, %c1536_413] : memref<8x16640xf32, #tpu.memory_space<vmem>>, vector<8x256xf32>
    %1139 = vector.extract_strided_slice %1118 {offsets = [4, 0], sizes = [1, 256], strides = [1, 1]} : vector<8x256xf32> to vector<1x256xf32>
    %1140 = vector.broadcast %1139 : vector<1x256xf32> to vector<8x256xf32>
    %1141 = arith.mulf %1138, %1140 : vector<8x256xf32>
    %1142 = arith.addf %1137, %1141 : vector<8x256xf32>
    %c0_414 = arith.constant 0 : index
    %c1792_415 = arith.constant 1792 : index
    %1143 = vector.load %arg1[%c0_414, %c1792_415] : memref<8x16640xf32, #tpu.memory_space<vmem>>, vector<8x256xf32>
    %1144 = vector.extract_strided_slice %1118 {offsets = [5, 0], sizes = [1, 256], strides = [1, 1]} : vector<8x256xf32> to vector<1x256xf32>
    %1145 = vector.broadcast %1144 : vector<1x256xf32> to vector<8x256xf32>
    %1146 = arith.mulf %1143, %1145 : vector<8x256xf32>
    %1147 = arith.addf %1142, %1146 : vector<8x256xf32>
    %c0_416 = arith.constant 0 : index
    %c2048_417 = arith.constant 2048 : index
    %1148 = vector.load %arg1[%c0_416, %c2048_417] : memref<8x16640xf32, #tpu.memory_space<vmem>>, vector<8x256xf32>
    %1149 = vector.extract_strided_slice %1118 {offsets = [6, 0], sizes = [1, 256], strides = [1, 1]} : vector<8x256xf32> to vector<1x256xf32>
    %1150 = vector.broadcast %1149 : vector<1x256xf32> to vector<8x256xf32>
    %1151 = arith.mulf %1148, %1150 : vector<8x256xf32>
    %1152 = arith.addf %1147, %1151 : vector<8x256xf32>
    %cst_418 = arith.constant 0.000000e+00 : f32
    %1153 = vector.broadcast %cst_418 : f32 to vector<8x256xf32>
    %1154 = arith.cmpf ogt, %1152, %1153 : vector<8x256xf32>
    %cst_419 = arith.constant 0.00999999977 : f32
    %1155 = vector.broadcast %cst_419 : f32 to vector<8x256xf32>
    %1156 = arith.mulf %1155, %1152 : vector<8x256xf32>
    %1157 = arith.select %1154, %1152, %1156 : vector<8x256xi1>, vector<8x256xf32>
    %c0_420 = arith.constant 0 : index
    %c2304_421 = arith.constant 2304 : index
    %1158 = vector.load %arg1[%c0_420, %c2304_421] : memref<8x16640xf32, #tpu.memory_space<vmem>>, vector<8x256xf32>
    %1159 = vector.extract_strided_slice %1157 {offsets = [0, 0], sizes = [1, 256], strides = [1, 1]} : vector<8x256xf32> to vector<1x256xf32>
    %1160 = vector.broadcast %1159 : vector<1x256xf32> to vector<8x256xf32>
    %1161 = arith.mulf %1158, %1160 : vector<8x256xf32>
    %c0_422 = arith.constant 0 : index
    %c2560_423 = arith.constant 2560 : index
    %1162 = vector.load %arg1[%c0_422, %c2560_423] : memref<8x16640xf32, #tpu.memory_space<vmem>>, vector<8x256xf32>
    %1163 = vector.extract_strided_slice %1157 {offsets = [1, 0], sizes = [1, 256], strides = [1, 1]} : vector<8x256xf32> to vector<1x256xf32>
    %1164 = vector.broadcast %1163 : vector<1x256xf32> to vector<8x256xf32>
    %1165 = arith.mulf %1162, %1164 : vector<8x256xf32>
    %1166 = arith.addf %1161, %1165 : vector<8x256xf32>
    %c0_424 = arith.constant 0 : index
    %c2816_425 = arith.constant 2816 : index
    %1167 = vector.load %arg1[%c0_424, %c2816_425] : memref<8x16640xf32, #tpu.memory_space<vmem>>, vector<8x256xf32>
    %1168 = vector.extract_strided_slice %1157 {offsets = [2, 0], sizes = [1, 256], strides = [1, 1]} : vector<8x256xf32> to vector<1x256xf32>
    %1169 = vector.broadcast %1168 : vector<1x256xf32> to vector<8x256xf32>
    %1170 = arith.mulf %1167, %1169 : vector<8x256xf32>
    %1171 = arith.addf %1166, %1170 : vector<8x256xf32>
    %c0_426 = arith.constant 0 : index
    %c3072_427 = arith.constant 3072 : index
    %1172 = vector.load %arg1[%c0_426, %c3072_427] : memref<8x16640xf32, #tpu.memory_space<vmem>>, vector<8x256xf32>
    %1173 = vector.extract_strided_slice %1157 {offsets = [3, 0], sizes = [1, 256], strides = [1, 1]} : vector<8x256xf32> to vector<1x256xf32>
    %1174 = vector.broadcast %1173 : vector<1x256xf32> to vector<8x256xf32>
    %1175 = arith.mulf %1172, %1174 : vector<8x256xf32>
    %1176 = arith.addf %1171, %1175 : vector<8x256xf32>
    %c0_428 = arith.constant 0 : index
    %c3328_429 = arith.constant 3328 : index
    %1177 = vector.load %arg1[%c0_428, %c3328_429] : memref<8x16640xf32, #tpu.memory_space<vmem>>, vector<8x256xf32>
    %1178 = vector.extract_strided_slice %1157 {offsets = [4, 0], sizes = [1, 256], strides = [1, 1]} : vector<8x256xf32> to vector<1x256xf32>
    %1179 = vector.broadcast %1178 : vector<1x256xf32> to vector<8x256xf32>
    %1180 = arith.mulf %1177, %1179 : vector<8x256xf32>
    %1181 = arith.addf %1176, %1180 : vector<8x256xf32>
    %c0_430 = arith.constant 0 : index
    %c3584_431 = arith.constant 3584 : index
    %1182 = vector.load %arg1[%c0_430, %c3584_431] : memref<8x16640xf32, #tpu.memory_space<vmem>>, vector<8x256xf32>
    %1183 = vector.extract_strided_slice %1157 {offsets = [5, 0], sizes = [1, 256], strides = [1, 1]} : vector<8x256xf32> to vector<1x256xf32>
    %1184 = vector.broadcast %1183 : vector<1x256xf32> to vector<8x256xf32>
    %1185 = arith.mulf %1182, %1184 : vector<8x256xf32>
    %1186 = arith.addf %1181, %1185 : vector<8x256xf32>
    %c0_432 = arith.constant 0 : index
    %c3840_433 = arith.constant 3840 : index
    %1187 = vector.load %arg1[%c0_432, %c3840_433] : memref<8x16640xf32, #tpu.memory_space<vmem>>, vector<8x256xf32>
    %1188 = vector.extract_strided_slice %1157 {offsets = [6, 0], sizes = [1, 256], strides = [1, 1]} : vector<8x256xf32> to vector<1x256xf32>
    %1189 = vector.broadcast %1188 : vector<1x256xf32> to vector<8x256xf32>
    %1190 = arith.mulf %1187, %1189 : vector<8x256xf32>
    %1191 = arith.addf %1186, %1190 : vector<8x256xf32>
    %cst_434 = arith.constant 0.000000e+00 : f32
    %1192 = vector.broadcast %cst_434 : f32 to vector<8x256xf32>
    %1193 = arith.cmpf ogt, %1191, %1192 : vector<8x256xf32>
    %cst_435 = arith.constant 0.00999999977 : f32
    %1194 = vector.broadcast %cst_435 : f32 to vector<8x256xf32>
    %1195 = arith.mulf %1194, %1191 : vector<8x256xf32>
    %1196 = arith.select %1193, %1191, %1195 : vector<8x256xi1>, vector<8x256xf32>
    %c0_436 = arith.constant 0 : index
    %c4096_437 = arith.constant 4096 : index
    %1197 = vector.load %arg1[%c0_436, %c4096_437] : memref<8x16640xf32, #tpu.memory_space<vmem>>, vector<8x256xf32>
    %1198 = vector.extract_strided_slice %1196 {offsets = [0, 0], sizes = [1, 256], strides = [1, 1]} : vector<8x256xf32> to vector<1x256xf32>
    %1199 = vector.broadcast %1198 : vector<1x256xf32> to vector<8x256xf32>
    %1200 = arith.mulf %1197, %1199 : vector<8x256xf32>
    %c0_438 = arith.constant 0 : index
    %c4352_439 = arith.constant 4352 : index
    %1201 = vector.load %arg1[%c0_438, %c4352_439] : memref<8x16640xf32, #tpu.memory_space<vmem>>, vector<8x256xf32>
    %1202 = vector.extract_strided_slice %1196 {offsets = [1, 0], sizes = [1, 256], strides = [1, 1]} : vector<8x256xf32> to vector<1x256xf32>
    %1203 = vector.broadcast %1202 : vector<1x256xf32> to vector<8x256xf32>
    %1204 = arith.mulf %1201, %1203 : vector<8x256xf32>
    %1205 = arith.addf %1200, %1204 : vector<8x256xf32>
    %c0_440 = arith.constant 0 : index
    %c4608_441 = arith.constant 4608 : index
    %1206 = vector.load %arg1[%c0_440, %c4608_441] : memref<8x16640xf32, #tpu.memory_space<vmem>>, vector<8x256xf32>
    %1207 = vector.extract_strided_slice %1196 {offsets = [2, 0], sizes = [1, 256], strides = [1, 1]} : vector<8x256xf32> to vector<1x256xf32>
    %1208 = vector.broadcast %1207 : vector<1x256xf32> to vector<8x256xf32>
    %1209 = arith.mulf %1206, %1208 : vector<8x256xf32>
    %1210 = arith.addf %1205, %1209 : vector<8x256xf32>
    %c0_442 = arith.constant 0 : index
    %c4864_443 = arith.constant 4864 : index
    %1211 = vector.load %arg1[%c0_442, %c4864_443] : memref<8x16640xf32, #tpu.memory_space<vmem>>, vector<8x256xf32>
    %1212 = vector.extract_strided_slice %1196 {offsets = [3, 0], sizes = [1, 256], strides = [1, 1]} : vector<8x256xf32> to vector<1x256xf32>
    %1213 = vector.broadcast %1212 : vector<1x256xf32> to vector<8x256xf32>
    %1214 = arith.mulf %1211, %1213 : vector<8x256xf32>
    %1215 = arith.addf %1210, %1214 : vector<8x256xf32>
    %c0_444 = arith.constant 0 : index
    %c5120_445 = arith.constant 5120 : index
    %1216 = vector.load %arg1[%c0_444, %c5120_445] : memref<8x16640xf32, #tpu.memory_space<vmem>>, vector<8x256xf32>
    %1217 = vector.extract_strided_slice %1196 {offsets = [4, 0], sizes = [1, 256], strides = [1, 1]} : vector<8x256xf32> to vector<1x256xf32>
    %1218 = vector.broadcast %1217 : vector<1x256xf32> to vector<8x256xf32>
    %1219 = arith.mulf %1216, %1218 : vector<8x256xf32>
    %1220 = arith.addf %1215, %1219 : vector<8x256xf32>
    %c0_446 = arith.constant 0 : index
    %c5376_447 = arith.constant 5376 : index
    %1221 = vector.load %arg1[%c0_446, %c5376_447] : memref<8x16640xf32, #tpu.memory_space<vmem>>, vector<8x256xf32>
    %1222 = vector.extract_strided_slice %1196 {offsets = [5, 0], sizes = [1, 256], strides = [1, 1]} : vector<8x256xf32> to vector<1x256xf32>
    %1223 = vector.broadcast %1222 : vector<1x256xf32> to vector<8x256xf32>
    %1224 = arith.mulf %1221, %1223 : vector<8x256xf32>
    %1225 = arith.addf %1220, %1224 : vector<8x256xf32>
    %c0_448 = arith.constant 0 : index
    %c5632_449 = arith.constant 5632 : index
    %1226 = vector.load %arg1[%c0_448, %c5632_449] : memref<8x16640xf32, #tpu.memory_space<vmem>>, vector<8x256xf32>
    %1227 = vector.extract_strided_slice %1196 {offsets = [6, 0], sizes = [1, 256], strides = [1, 1]} : vector<8x256xf32> to vector<1x256xf32>
    %1228 = vector.broadcast %1227 : vector<1x256xf32> to vector<8x256xf32>
    %1229 = arith.mulf %1226, %1228 : vector<8x256xf32>
    %1230 = arith.addf %1225, %1229 : vector<8x256xf32>
    %cst_450 = arith.constant 0.000000e+00 : f32
    %1231 = vector.broadcast %cst_450 : f32 to vector<8x256xf32>
    %1232 = arith.cmpf ogt, %1230, %1231 : vector<8x256xf32>
    %cst_451 = arith.constant 0.00999999977 : f32
    %1233 = vector.broadcast %cst_451 : f32 to vector<8x256xf32>
    %1234 = arith.mulf %1233, %1230 : vector<8x256xf32>
    %1235 = arith.select %1232, %1230, %1234 : vector<8x256xi1>, vector<8x256xf32>
    %c0_452 = arith.constant 0 : index
    %c5888_453 = arith.constant 5888 : index
    %1236 = vector.load %arg1[%c0_452, %c5888_453] : memref<8x16640xf32, #tpu.memory_space<vmem>>, vector<8x256xf32>
    %1237 = vector.extract_strided_slice %1235 {offsets = [0, 0], sizes = [1, 256], strides = [1, 1]} : vector<8x256xf32> to vector<1x256xf32>
    %1238 = vector.broadcast %1237 : vector<1x256xf32> to vector<8x256xf32>
    %1239 = arith.mulf %1236, %1238 : vector<8x256xf32>
    %c0_454 = arith.constant 0 : index
    %c6144_455 = arith.constant 6144 : index
    %1240 = vector.load %arg1[%c0_454, %c6144_455] : memref<8x16640xf32, #tpu.memory_space<vmem>>, vector<8x256xf32>
    %1241 = vector.extract_strided_slice %1235 {offsets = [1, 0], sizes = [1, 256], strides = [1, 1]} : vector<8x256xf32> to vector<1x256xf32>
    %1242 = vector.broadcast %1241 : vector<1x256xf32> to vector<8x256xf32>
    %1243 = arith.mulf %1240, %1242 : vector<8x256xf32>
    %1244 = arith.addf %1239, %1243 : vector<8x256xf32>
    %c0_456 = arith.constant 0 : index
    %c6400_457 = arith.constant 6400 : index
    %1245 = vector.load %arg1[%c0_456, %c6400_457] : memref<8x16640xf32, #tpu.memory_space<vmem>>, vector<8x256xf32>
    %1246 = vector.extract_strided_slice %1235 {offsets = [2, 0], sizes = [1, 256], strides = [1, 1]} : vector<8x256xf32> to vector<1x256xf32>
    %1247 = vector.broadcast %1246 : vector<1x256xf32> to vector<8x256xf32>
    %1248 = arith.mulf %1245, %1247 : vector<8x256xf32>
    %1249 = arith.addf %1244, %1248 : vector<8x256xf32>
    %c0_458 = arith.constant 0 : index
    %c6656_459 = arith.constant 6656 : index
    %1250 = vector.load %arg1[%c0_458, %c6656_459] : memref<8x16640xf32, #tpu.memory_space<vmem>>, vector<8x256xf32>
    %1251 = vector.extract_strided_slice %1235 {offsets = [3, 0], sizes = [1, 256], strides = [1, 1]} : vector<8x256xf32> to vector<1x256xf32>
    %1252 = vector.broadcast %1251 : vector<1x256xf32> to vector<8x256xf32>
    %1253 = arith.mulf %1250, %1252 : vector<8x256xf32>
    %1254 = arith.addf %1249, %1253 : vector<8x256xf32>
    %c0_460 = arith.constant 0 : index
    %c6912_461 = arith.constant 6912 : index
    %1255 = vector.load %arg1[%c0_460, %c6912_461] : memref<8x16640xf32, #tpu.memory_space<vmem>>, vector<8x256xf32>
    %1256 = vector.extract_strided_slice %1235 {offsets = [4, 0], sizes = [1, 256], strides = [1, 1]} : vector<8x256xf32> to vector<1x256xf32>
    %1257 = vector.broadcast %1256 : vector<1x256xf32> to vector<8x256xf32>
    %1258 = arith.mulf %1255, %1257 : vector<8x256xf32>
    %1259 = arith.addf %1254, %1258 : vector<8x256xf32>
    %c0_462 = arith.constant 0 : index
    %c7168_463 = arith.constant 7168 : index
    %1260 = vector.load %arg1[%c0_462, %c7168_463] : memref<8x16640xf32, #tpu.memory_space<vmem>>, vector<8x256xf32>
    %1261 = vector.extract_strided_slice %1235 {offsets = [5, 0], sizes = [1, 256], strides = [1, 1]} : vector<8x256xf32> to vector<1x256xf32>
    %1262 = vector.broadcast %1261 : vector<1x256xf32> to vector<8x256xf32>
    %1263 = arith.mulf %1260, %1262 : vector<8x256xf32>
    %1264 = arith.addf %1259, %1263 : vector<8x256xf32>
    %c0_464 = arith.constant 0 : index
    %c7424_465 = arith.constant 7424 : index
    %1265 = vector.load %arg1[%c0_464, %c7424_465] : memref<8x16640xf32, #tpu.memory_space<vmem>>, vector<8x256xf32>
    %1266 = vector.extract_strided_slice %1235 {offsets = [6, 0], sizes = [1, 256], strides = [1, 1]} : vector<8x256xf32> to vector<1x256xf32>
    %1267 = vector.broadcast %1266 : vector<1x256xf32> to vector<8x256xf32>
    %1268 = arith.mulf %1265, %1267 : vector<8x256xf32>
    %1269 = arith.addf %1264, %1268 : vector<8x256xf32>
    %cst_466 = arith.constant 0.000000e+00 : f32
    %1270 = vector.broadcast %cst_466 : f32 to vector<8x256xf32>
    %1271 = arith.cmpf ogt, %1269, %1270 : vector<8x256xf32>
    %cst_467 = arith.constant 0.00999999977 : f32
    %1272 = vector.broadcast %cst_467 : f32 to vector<8x256xf32>
    %1273 = arith.mulf %1272, %1269 : vector<8x256xf32>
    %1274 = arith.select %1271, %1269, %1273 : vector<8x256xi1>, vector<8x256xf32>
    %c0_468 = arith.constant 0 : index
    %c7680_469 = arith.constant 7680 : index
    %1275 = vector.load %arg1[%c0_468, %c7680_469] : memref<8x16640xf32, #tpu.memory_space<vmem>>, vector<8x256xf32>
    %1276 = vector.extract_strided_slice %1274 {offsets = [0, 0], sizes = [1, 256], strides = [1, 1]} : vector<8x256xf32> to vector<1x256xf32>
    %1277 = vector.broadcast %1276 : vector<1x256xf32> to vector<8x256xf32>
    %1278 = arith.mulf %1275, %1277 : vector<8x256xf32>
    %c0_470 = arith.constant 0 : index
    %c7936_471 = arith.constant 7936 : index
    %1279 = vector.load %arg1[%c0_470, %c7936_471] : memref<8x16640xf32, #tpu.memory_space<vmem>>, vector<8x256xf32>
    %1280 = vector.extract_strided_slice %1274 {offsets = [1, 0], sizes = [1, 256], strides = [1, 1]} : vector<8x256xf32> to vector<1x256xf32>
    %1281 = vector.broadcast %1280 : vector<1x256xf32> to vector<8x256xf32>
    %1282 = arith.mulf %1279, %1281 : vector<8x256xf32>
    %1283 = arith.addf %1278, %1282 : vector<8x256xf32>
    %c0_472 = arith.constant 0 : index
    %c8192_473 = arith.constant 8192 : index
    %1284 = vector.load %arg1[%c0_472, %c8192_473] : memref<8x16640xf32, #tpu.memory_space<vmem>>, vector<8x256xf32>
    %1285 = vector.extract_strided_slice %1274 {offsets = [2, 0], sizes = [1, 256], strides = [1, 1]} : vector<8x256xf32> to vector<1x256xf32>
    %1286 = vector.broadcast %1285 : vector<1x256xf32> to vector<8x256xf32>
    %1287 = arith.mulf %1284, %1286 : vector<8x256xf32>
    %1288 = arith.addf %1283, %1287 : vector<8x256xf32>
    %c0_474 = arith.constant 0 : index
    %c8448_475 = arith.constant 8448 : index
    %1289 = vector.load %arg1[%c0_474, %c8448_475] : memref<8x16640xf32, #tpu.memory_space<vmem>>, vector<8x256xf32>
    %1290 = vector.extract_strided_slice %1274 {offsets = [3, 0], sizes = [1, 256], strides = [1, 1]} : vector<8x256xf32> to vector<1x256xf32>
    %1291 = vector.broadcast %1290 : vector<1x256xf32> to vector<8x256xf32>
    %1292 = arith.mulf %1289, %1291 : vector<8x256xf32>
    %1293 = arith.addf %1288, %1292 : vector<8x256xf32>
    %c0_476 = arith.constant 0 : index
    %c8704_477 = arith.constant 8704 : index
    %1294 = vector.load %arg1[%c0_476, %c8704_477] : memref<8x16640xf32, #tpu.memory_space<vmem>>, vector<8x256xf32>
    %1295 = vector.extract_strided_slice %1274 {offsets = [4, 0], sizes = [1, 256], strides = [1, 1]} : vector<8x256xf32> to vector<1x256xf32>
    %1296 = vector.broadcast %1295 : vector<1x256xf32> to vector<8x256xf32>
    %1297 = arith.mulf %1294, %1296 : vector<8x256xf32>
    %1298 = arith.addf %1293, %1297 : vector<8x256xf32>
    %c0_478 = arith.constant 0 : index
    %c8960_479 = arith.constant 8960 : index
    %1299 = vector.load %arg1[%c0_478, %c8960_479] : memref<8x16640xf32, #tpu.memory_space<vmem>>, vector<8x256xf32>
    %1300 = vector.extract_strided_slice %1274 {offsets = [5, 0], sizes = [1, 256], strides = [1, 1]} : vector<8x256xf32> to vector<1x256xf32>
    %1301 = vector.broadcast %1300 : vector<1x256xf32> to vector<8x256xf32>
    %1302 = arith.mulf %1299, %1301 : vector<8x256xf32>
    %1303 = arith.addf %1298, %1302 : vector<8x256xf32>
    %c0_480 = arith.constant 0 : index
    %c9216_481 = arith.constant 9216 : index
    %1304 = vector.load %arg1[%c0_480, %c9216_481] : memref<8x16640xf32, #tpu.memory_space<vmem>>, vector<8x256xf32>
    %1305 = vector.extract_strided_slice %1274 {offsets = [6, 0], sizes = [1, 256], strides = [1, 1]} : vector<8x256xf32> to vector<1x256xf32>
    %1306 = vector.broadcast %1305 : vector<1x256xf32> to vector<8x256xf32>
    %1307 = arith.mulf %1304, %1306 : vector<8x256xf32>
    %1308 = arith.addf %1303, %1307 : vector<8x256xf32>
    %cst_482 = arith.constant 0.000000e+00 : f32
    %1309 = vector.broadcast %cst_482 : f32 to vector<8x256xf32>
    %1310 = arith.cmpf ogt, %1308, %1309 : vector<8x256xf32>
    %cst_483 = arith.constant 0.00999999977 : f32
    %1311 = vector.broadcast %cst_483 : f32 to vector<8x256xf32>
    %1312 = arith.mulf %1311, %1308 : vector<8x256xf32>
    %1313 = arith.select %1310, %1308, %1312 : vector<8x256xi1>, vector<8x256xf32>
    %c0_484 = arith.constant 0 : index
    %c9472_485 = arith.constant 9472 : index
    %1314 = vector.load %arg1[%c0_484, %c9472_485] : memref<8x16640xf32, #tpu.memory_space<vmem>>, vector<8x256xf32>
    %1315 = vector.extract_strided_slice %1313 {offsets = [0, 0], sizes = [1, 256], strides = [1, 1]} : vector<8x256xf32> to vector<1x256xf32>
    %1316 = vector.broadcast %1315 : vector<1x256xf32> to vector<8x256xf32>
    %1317 = arith.mulf %1314, %1316 : vector<8x256xf32>
    %c0_486 = arith.constant 0 : index
    %c9728_487 = arith.constant 9728 : index
    %1318 = vector.load %arg1[%c0_486, %c9728_487] : memref<8x16640xf32, #tpu.memory_space<vmem>>, vector<8x256xf32>
    %1319 = vector.extract_strided_slice %1313 {offsets = [1, 0], sizes = [1, 256], strides = [1, 1]} : vector<8x256xf32> to vector<1x256xf32>
    %1320 = vector.broadcast %1319 : vector<1x256xf32> to vector<8x256xf32>
    %1321 = arith.mulf %1318, %1320 : vector<8x256xf32>
    %1322 = arith.addf %1317, %1321 : vector<8x256xf32>
    %c0_488 = arith.constant 0 : index
    %c9984_489 = arith.constant 9984 : index
    %1323 = vector.load %arg1[%c0_488, %c9984_489] : memref<8x16640xf32, #tpu.memory_space<vmem>>, vector<8x256xf32>
    %1324 = vector.extract_strided_slice %1313 {offsets = [2, 0], sizes = [1, 256], strides = [1, 1]} : vector<8x256xf32> to vector<1x256xf32>
    %1325 = vector.broadcast %1324 : vector<1x256xf32> to vector<8x256xf32>
    %1326 = arith.mulf %1323, %1325 : vector<8x256xf32>
    %1327 = arith.addf %1322, %1326 : vector<8x256xf32>
    %c0_490 = arith.constant 0 : index
    %c10240_491 = arith.constant 10240 : index
    %1328 = vector.load %arg1[%c0_490, %c10240_491] : memref<8x16640xf32, #tpu.memory_space<vmem>>, vector<8x256xf32>
    %1329 = vector.extract_strided_slice %1313 {offsets = [3, 0], sizes = [1, 256], strides = [1, 1]} : vector<8x256xf32> to vector<1x256xf32>
    %1330 = vector.broadcast %1329 : vector<1x256xf32> to vector<8x256xf32>
    %1331 = arith.mulf %1328, %1330 : vector<8x256xf32>
    %1332 = arith.addf %1327, %1331 : vector<8x256xf32>
    %c0_492 = arith.constant 0 : index
    %c10496_493 = arith.constant 10496 : index
    %1333 = vector.load %arg1[%c0_492, %c10496_493] : memref<8x16640xf32, #tpu.memory_space<vmem>>, vector<8x256xf32>
    %1334 = vector.extract_strided_slice %1313 {offsets = [4, 0], sizes = [1, 256], strides = [1, 1]} : vector<8x256xf32> to vector<1x256xf32>
    %1335 = vector.broadcast %1334 : vector<1x256xf32> to vector<8x256xf32>
    %1336 = arith.mulf %1333, %1335 : vector<8x256xf32>
    %1337 = arith.addf %1332, %1336 : vector<8x256xf32>
    %c0_494 = arith.constant 0 : index
    %c10752_495 = arith.constant 10752 : index
    %1338 = vector.load %arg1[%c0_494, %c10752_495] : memref<8x16640xf32, #tpu.memory_space<vmem>>, vector<8x256xf32>
    %1339 = vector.extract_strided_slice %1313 {offsets = [5, 0], sizes = [1, 256], strides = [1, 1]} : vector<8x256xf32> to vector<1x256xf32>
    %1340 = vector.broadcast %1339 : vector<1x256xf32> to vector<8x256xf32>
    %1341 = arith.mulf %1338, %1340 : vector<8x256xf32>
    %1342 = arith.addf %1337, %1341 : vector<8x256xf32>
    %c0_496 = arith.constant 0 : index
    %c11008_497 = arith.constant 11008 : index
    %1343 = vector.load %arg1[%c0_496, %c11008_497] : memref<8x16640xf32, #tpu.memory_space<vmem>>, vector<8x256xf32>
    %1344 = vector.extract_strided_slice %1313 {offsets = [6, 0], sizes = [1, 256], strides = [1, 1]} : vector<8x256xf32> to vector<1x256xf32>
    %1345 = vector.broadcast %1344 : vector<1x256xf32> to vector<8x256xf32>
    %1346 = arith.mulf %1343, %1345 : vector<8x256xf32>
    %1347 = arith.addf %1342, %1346 : vector<8x256xf32>
    %cst_498 = arith.constant 0.000000e+00 : f32
    %1348 = vector.broadcast %cst_498 : f32 to vector<8x256xf32>
    %1349 = arith.cmpf ogt, %1347, %1348 : vector<8x256xf32>
    %cst_499 = arith.constant 0.00999999977 : f32
    %1350 = vector.broadcast %cst_499 : f32 to vector<8x256xf32>
    %1351 = arith.mulf %1350, %1347 : vector<8x256xf32>
    %1352 = arith.select %1349, %1347, %1351 : vector<8x256xi1>, vector<8x256xf32>
    %c0_500 = arith.constant 0 : index
    %c11264_501 = arith.constant 11264 : index
    %1353 = vector.load %arg1[%c0_500, %c11264_501] : memref<8x16640xf32, #tpu.memory_space<vmem>>, vector<8x256xf32>
    %1354 = vector.extract_strided_slice %1352 {offsets = [0, 0], sizes = [1, 256], strides = [1, 1]} : vector<8x256xf32> to vector<1x256xf32>
    %1355 = vector.broadcast %1354 : vector<1x256xf32> to vector<8x256xf32>
    %1356 = arith.mulf %1353, %1355 : vector<8x256xf32>
    %c0_502 = arith.constant 0 : index
    %c11520_503 = arith.constant 11520 : index
    %1357 = vector.load %arg1[%c0_502, %c11520_503] : memref<8x16640xf32, #tpu.memory_space<vmem>>, vector<8x256xf32>
    %1358 = vector.extract_strided_slice %1352 {offsets = [1, 0], sizes = [1, 256], strides = [1, 1]} : vector<8x256xf32> to vector<1x256xf32>
    %1359 = vector.broadcast %1358 : vector<1x256xf32> to vector<8x256xf32>
    %1360 = arith.mulf %1357, %1359 : vector<8x256xf32>
    %1361 = arith.addf %1356, %1360 : vector<8x256xf32>
    %c0_504 = arith.constant 0 : index
    %c11776_505 = arith.constant 11776 : index
    %1362 = vector.load %arg1[%c0_504, %c11776_505] : memref<8x16640xf32, #tpu.memory_space<vmem>>, vector<8x256xf32>
    %1363 = vector.extract_strided_slice %1352 {offsets = [2, 0], sizes = [1, 256], strides = [1, 1]} : vector<8x256xf32> to vector<1x256xf32>
    %1364 = vector.broadcast %1363 : vector<1x256xf32> to vector<8x256xf32>
    %1365 = arith.mulf %1362, %1364 : vector<8x256xf32>
    %1366 = arith.addf %1361, %1365 : vector<8x256xf32>
    %c0_506 = arith.constant 0 : index
    %c12032_507 = arith.constant 12032 : index
    %1367 = vector.load %arg1[%c0_506, %c12032_507] : memref<8x16640xf32, #tpu.memory_space<vmem>>, vector<8x256xf32>
    %1368 = vector.extract_strided_slice %1352 {offsets = [3, 0], sizes = [1, 256], strides = [1, 1]} : vector<8x256xf32> to vector<1x256xf32>
    %1369 = vector.broadcast %1368 : vector<1x256xf32> to vector<8x256xf32>
    %1370 = arith.mulf %1367, %1369 : vector<8x256xf32>
    %1371 = arith.addf %1366, %1370 : vector<8x256xf32>
    %c0_508 = arith.constant 0 : index
    %c12288_509 = arith.constant 12288 : index
    %1372 = vector.load %arg1[%c0_508, %c12288_509] : memref<8x16640xf32, #tpu.memory_space<vmem>>, vector<8x256xf32>
    %1373 = vector.extract_strided_slice %1352 {offsets = [4, 0], sizes = [1, 256], strides = [1, 1]} : vector<8x256xf32> to vector<1x256xf32>
    %1374 = vector.broadcast %1373 : vector<1x256xf32> to vector<8x256xf32>
    %1375 = arith.mulf %1372, %1374 : vector<8x256xf32>
    %1376 = arith.addf %1371, %1375 : vector<8x256xf32>
    %c0_510 = arith.constant 0 : index
    %c12544_511 = arith.constant 12544 : index
    %1377 = vector.load %arg1[%c0_510, %c12544_511] : memref<8x16640xf32, #tpu.memory_space<vmem>>, vector<8x256xf32>
    %1378 = vector.extract_strided_slice %1352 {offsets = [5, 0], sizes = [1, 256], strides = [1, 1]} : vector<8x256xf32> to vector<1x256xf32>
    %1379 = vector.broadcast %1378 : vector<1x256xf32> to vector<8x256xf32>
    %1380 = arith.mulf %1377, %1379 : vector<8x256xf32>
    %1381 = arith.addf %1376, %1380 : vector<8x256xf32>
    %c0_512 = arith.constant 0 : index
    %c12800_513 = arith.constant 12800 : index
    %1382 = vector.load %arg1[%c0_512, %c12800_513] : memref<8x16640xf32, #tpu.memory_space<vmem>>, vector<8x256xf32>
    %1383 = vector.extract_strided_slice %1352 {offsets = [6, 0], sizes = [1, 256], strides = [1, 1]} : vector<8x256xf32> to vector<1x256xf32>
    %1384 = vector.broadcast %1383 : vector<1x256xf32> to vector<8x256xf32>
    %1385 = arith.mulf %1382, %1384 : vector<8x256xf32>
    %1386 = arith.addf %1381, %1385 : vector<8x256xf32>
    %cst_514 = arith.constant 0.000000e+00 : f32
    %1387 = vector.broadcast %cst_514 : f32 to vector<8x256xf32>
    %1388 = arith.cmpf ogt, %1386, %1387 : vector<8x256xf32>
    %cst_515 = arith.constant 0.00999999977 : f32
    %1389 = vector.broadcast %cst_515 : f32 to vector<8x256xf32>
    %1390 = arith.mulf %1389, %1386 : vector<8x256xf32>
    %1391 = arith.select %1388, %1386, %1390 : vector<8x256xi1>, vector<8x256xf32>
    %c0_516 = arith.constant 0 : index
    %c13056_517 = arith.constant 13056 : index
    %1392 = vector.load %arg1[%c0_516, %c13056_517] : memref<8x16640xf32, #tpu.memory_space<vmem>>, vector<8x256xf32>
    %1393 = vector.extract_strided_slice %1391 {offsets = [0, 0], sizes = [1, 256], strides = [1, 1]} : vector<8x256xf32> to vector<1x256xf32>
    %1394 = vector.broadcast %1393 : vector<1x256xf32> to vector<8x256xf32>
    %1395 = arith.mulf %1392, %1394 : vector<8x256xf32>
    %c0_518 = arith.constant 0 : index
    %c13312_519 = arith.constant 13312 : index
    %1396 = vector.load %arg1[%c0_518, %c13312_519] : memref<8x16640xf32, #tpu.memory_space<vmem>>, vector<8x256xf32>
    %1397 = vector.extract_strided_slice %1391 {offsets = [1, 0], sizes = [1, 256], strides = [1, 1]} : vector<8x256xf32> to vector<1x256xf32>
    %1398 = vector.broadcast %1397 : vector<1x256xf32> to vector<8x256xf32>
    %1399 = arith.mulf %1396, %1398 : vector<8x256xf32>
    %1400 = arith.addf %1395, %1399 : vector<8x256xf32>
    %c0_520 = arith.constant 0 : index
    %c13568_521 = arith.constant 13568 : index
    %1401 = vector.load %arg1[%c0_520, %c13568_521] : memref<8x16640xf32, #tpu.memory_space<vmem>>, vector<8x256xf32>
    %1402 = vector.extract_strided_slice %1391 {offsets = [2, 0], sizes = [1, 256], strides = [1, 1]} : vector<8x256xf32> to vector<1x256xf32>
    %1403 = vector.broadcast %1402 : vector<1x256xf32> to vector<8x256xf32>
    %1404 = arith.mulf %1401, %1403 : vector<8x256xf32>
    %1405 = arith.addf %1400, %1404 : vector<8x256xf32>
    %c0_522 = arith.constant 0 : index
    %c13824_523 = arith.constant 13824 : index
    %1406 = vector.load %arg1[%c0_522, %c13824_523] : memref<8x16640xf32, #tpu.memory_space<vmem>>, vector<8x256xf32>
    %1407 = vector.extract_strided_slice %1391 {offsets = [3, 0], sizes = [1, 256], strides = [1, 1]} : vector<8x256xf32> to vector<1x256xf32>
    %1408 = vector.broadcast %1407 : vector<1x256xf32> to vector<8x256xf32>
    %1409 = arith.mulf %1406, %1408 : vector<8x256xf32>
    %1410 = arith.addf %1405, %1409 : vector<8x256xf32>
    %c0_524 = arith.constant 0 : index
    %c14080_525 = arith.constant 14080 : index
    %1411 = vector.load %arg1[%c0_524, %c14080_525] : memref<8x16640xf32, #tpu.memory_space<vmem>>, vector<8x256xf32>
    %1412 = vector.extract_strided_slice %1391 {offsets = [4, 0], sizes = [1, 256], strides = [1, 1]} : vector<8x256xf32> to vector<1x256xf32>
    %1413 = vector.broadcast %1412 : vector<1x256xf32> to vector<8x256xf32>
    %1414 = arith.mulf %1411, %1413 : vector<8x256xf32>
    %1415 = arith.addf %1410, %1414 : vector<8x256xf32>
    %c0_526 = arith.constant 0 : index
    %c14336_527 = arith.constant 14336 : index
    %1416 = vector.load %arg1[%c0_526, %c14336_527] : memref<8x16640xf32, #tpu.memory_space<vmem>>, vector<8x256xf32>
    %1417 = vector.extract_strided_slice %1391 {offsets = [5, 0], sizes = [1, 256], strides = [1, 1]} : vector<8x256xf32> to vector<1x256xf32>
    %1418 = vector.broadcast %1417 : vector<1x256xf32> to vector<8x256xf32>
    %1419 = arith.mulf %1416, %1418 : vector<8x256xf32>
    %1420 = arith.addf %1415, %1419 : vector<8x256xf32>
    %c0_528 = arith.constant 0 : index
    %c14592_529 = arith.constant 14592 : index
    %1421 = vector.load %arg1[%c0_528, %c14592_529] : memref<8x16640xf32, #tpu.memory_space<vmem>>, vector<8x256xf32>
    %1422 = vector.extract_strided_slice %1391 {offsets = [6, 0], sizes = [1, 256], strides = [1, 1]} : vector<8x256xf32> to vector<1x256xf32>
    %1423 = vector.broadcast %1422 : vector<1x256xf32> to vector<8x256xf32>
    %1424 = arith.mulf %1421, %1423 : vector<8x256xf32>
    %1425 = arith.addf %1420, %1424 : vector<8x256xf32>
    %cst_530 = arith.constant 0.000000e+00 : f32
    %1426 = vector.broadcast %cst_530 : f32 to vector<8x256xf32>
    %1427 = arith.cmpf ogt, %1425, %1426 : vector<8x256xf32>
    %cst_531 = arith.constant 0.00999999977 : f32
    %1428 = vector.broadcast %cst_531 : f32 to vector<8x256xf32>
    %1429 = arith.mulf %1428, %1425 : vector<8x256xf32>
    %1430 = arith.select %1427, %1425, %1429 : vector<8x256xi1>, vector<8x256xf32>
    %c0_532 = arith.constant 0 : index
    %c14848_533 = arith.constant 14848 : index
    %1431 = vector.load %arg1[%c0_532, %c14848_533] : memref<8x16640xf32, #tpu.memory_space<vmem>>, vector<8x256xf32>
    %1432 = vector.extract_strided_slice %1430 {offsets = [0, 0], sizes = [1, 256], strides = [1, 1]} : vector<8x256xf32> to vector<1x256xf32>
    %1433 = vector.broadcast %1432 : vector<1x256xf32> to vector<8x256xf32>
    %1434 = arith.mulf %1431, %1433 : vector<8x256xf32>
    %c0_534 = arith.constant 0 : index
    %c15104_535 = arith.constant 15104 : index
    %1435 = vector.load %arg1[%c0_534, %c15104_535] : memref<8x16640xf32, #tpu.memory_space<vmem>>, vector<8x256xf32>
    %1436 = vector.extract_strided_slice %1430 {offsets = [1, 0], sizes = [1, 256], strides = [1, 1]} : vector<8x256xf32> to vector<1x256xf32>
    %1437 = vector.broadcast %1436 : vector<1x256xf32> to vector<8x256xf32>
    %1438 = arith.mulf %1435, %1437 : vector<8x256xf32>
    %1439 = arith.addf %1434, %1438 : vector<8x256xf32>
    %c0_536 = arith.constant 0 : index
    %c15360_537 = arith.constant 15360 : index
    %1440 = vector.load %arg1[%c0_536, %c15360_537] : memref<8x16640xf32, #tpu.memory_space<vmem>>, vector<8x256xf32>
    %1441 = vector.extract_strided_slice %1430 {offsets = [2, 0], sizes = [1, 256], strides = [1, 1]} : vector<8x256xf32> to vector<1x256xf32>
    %1442 = vector.broadcast %1441 : vector<1x256xf32> to vector<8x256xf32>
    %1443 = arith.mulf %1440, %1442 : vector<8x256xf32>
    %1444 = arith.addf %1439, %1443 : vector<8x256xf32>
    %c0_538 = arith.constant 0 : index
    %c15616_539 = arith.constant 15616 : index
    %1445 = vector.load %arg1[%c0_538, %c15616_539] : memref<8x16640xf32, #tpu.memory_space<vmem>>, vector<8x256xf32>
    %1446 = vector.extract_strided_slice %1430 {offsets = [3, 0], sizes = [1, 256], strides = [1, 1]} : vector<8x256xf32> to vector<1x256xf32>
    %1447 = vector.broadcast %1446 : vector<1x256xf32> to vector<8x256xf32>
    %1448 = arith.mulf %1445, %1447 : vector<8x256xf32>
    %1449 = arith.addf %1444, %1448 : vector<8x256xf32>
    %c0_540 = arith.constant 0 : index
    %c15872_541 = arith.constant 15872 : index
    %1450 = vector.load %arg1[%c0_540, %c15872_541] : memref<8x16640xf32, #tpu.memory_space<vmem>>, vector<8x256xf32>
    %1451 = vector.extract_strided_slice %1430 {offsets = [4, 0], sizes = [1, 256], strides = [1, 1]} : vector<8x256xf32> to vector<1x256xf32>
    %1452 = vector.broadcast %1451 : vector<1x256xf32> to vector<8x256xf32>
    %1453 = arith.mulf %1450, %1452 : vector<8x256xf32>
    %1454 = arith.addf %1449, %1453 : vector<8x256xf32>
    %c0_542 = arith.constant 0 : index
    %c16128_543 = arith.constant 16128 : index
    %1455 = vector.load %arg1[%c0_542, %c16128_543] : memref<8x16640xf32, #tpu.memory_space<vmem>>, vector<8x256xf32>
    %1456 = vector.extract_strided_slice %1430 {offsets = [5, 0], sizes = [1, 256], strides = [1, 1]} : vector<8x256xf32> to vector<1x256xf32>
    %1457 = vector.broadcast %1456 : vector<1x256xf32> to vector<8x256xf32>
    %1458 = arith.mulf %1455, %1457 : vector<8x256xf32>
    %1459 = arith.addf %1454, %1458 : vector<8x256xf32>
    %c0_544 = arith.constant 0 : index
    %c16384_545 = arith.constant 16384 : index
    %1460 = vector.load %arg1[%c0_544, %c16384_545] : memref<8x16640xf32, #tpu.memory_space<vmem>>, vector<8x256xf32>
    %1461 = vector.extract_strided_slice %1430 {offsets = [6, 0], sizes = [1, 256], strides = [1, 1]} : vector<8x256xf32> to vector<1x256xf32>
    %1462 = vector.broadcast %1461 : vector<1x256xf32> to vector<8x256xf32>
    %1463 = arith.mulf %1460, %1462 : vector<8x256xf32>
    %1464 = arith.addf %1459, %1463 : vector<8x256xf32>
    %cst_546 = arith.constant 0.000000e+00 : f32
    %1465 = vector.broadcast %cst_546 : f32 to vector<8x256xf32>
    %1466 = arith.cmpf ogt, %1464, %1465 : vector<8x256xf32>
    %cst_547 = arith.constant 0.00999999977 : f32
    %1467 = vector.broadcast %cst_547 : f32 to vector<8x256xf32>
    %1468 = arith.mulf %1467, %1464 : vector<8x256xf32>
    %1469 = arith.select %1466, %1464, %1468 : vector<8x256xi1>, vector<8x256xf32>
    %1470 = vector.extract_strided_slice %1469 {offsets = [0, 0], sizes = [1, 256], strides = [1, 1]} : vector<8x256xf32> to vector<1x256xf32>
    %c0_548 = arith.constant 0 : index
    %c768_549 = arith.constant 768 : index
    %1471 = vector.load %arg3[%c0_548, %c768_549] : memref<1x1024xf32, #tpu.memory_space<vmem>>, vector<1x256xf32>
    tpu.vector_store %arg3[%c0_548, %c768_549], %1470 {strides = array<i32>} : memref<1x1024xf32, #tpu.memory_space<vmem>>, vector<1x256xf32>,
    return
  }
  func.func @transform_0(%arg0: i32) -> (i32, i32) {
    %c0_i32 = arith.constant 0 : i32
    %c0_i32_0 = arith.constant 0 : i32
    %c0_i32_1 = arith.constant 0 : i32
    return %c0_i32, %c0_i32_0 : i32, i32
  }
  func.func @transform_1(%arg0: i32) -> (i32, i32) {
    %c0_i32 = arith.constant 0 : i32
    %c0_i32_0 = arith.constant 0 : i32
    return %c0_i32, %arg0 : i32, i32
  }
  func.func @transform_2(%arg0: i32) -> (i32, i32) {
    %c0_i32 = arith.constant 0 : i32
    %c0_i32_0 = arith.constant 0 : i32
    return %c0_i32, %arg0 : i32, i32
  }
}

</mosaic_0001>

<llo_original>
// kernel: tpu_custom_call.1
$region0: #{tpu_custom_call.1}
  #allocation0 [shape = 'u32[]', space=smem, size = 0x4, offset = 0x4, fixed_abs, tag = 'smem constant byte address 0x4 - core index']
  #allocation1 [shape = 'u32[144,128]{1,0:T(1,128)}', space=vmem, size = 0x12000, scoped, tag = 'internal scratch']
  %s0 = inlined_call_operand.hbm [shape: f32[8,16640], index: 0, kind: input, shape index: {}]
  %s1 = inlined_call_operand.hbm [shape: f32[2,2048], index: 1, kind: input, shape index: {}]
  %s2 = inlined_call_operand.hbm [shape: f32[1,2048], index: 2, kind: output, shape index: {}]
  %s3 = sld [smem:[#allocation0]]
  $region49: #{tpu_custom_call.1} parent=0
    _
  %s5 = ssub.s32 1, %s3
  %s6 = scalar_select 0, %s5, %s3
  $region1: #{tpu_custom_call.1} parent=0
    #allocation2 [shape = 'u8[532480]{0}', space=vmem, size = 0x82000, scoped, tag = 'input window, operand 0, single buffered']
    #allocation3 [shape = 's32[2]{0}', space=sflag, size = 0x8, scoped, tag = 'scoped memory for tpu_custom_call.1']
    #allocation4 [shape = 's32[2]{0}', space=sflag, size = 0x8, scoped, tag = 'scoped memory for tpu_custom_call.1']
    #allocation5 [shape = 'u8[16384]{0}', space=vmem, size = 0x4000, scoped, tag = 'input window, operand 1']
    #allocation6 [shape = 's32[2]{0}', space=sflag, size = 0x8, scoped, tag = 'scoped memory for tpu_custom_call.1']
    #allocation7 [shape = 'u8[8192]{0}', space=vmem, size = 0x2000, scoped, tag = 'output window, operand 0']
    %7 = vsyncpa [#allocation3], 0
    %8 = vsyncpa [#allocation6], 0
    %s9 = scalar_lea.sflag [#allocation6], 1
    %10 = vsyncpa %s9, 0
    %11 = vsyncpa [#allocation4], 0
    %s12 = scalar_lea.sflag [#allocation4], 1
    %13 = vsyncpa %s12, 0
    loop: start=0, step=1, limit=4
    $region2: #{tpu_custom_call.1} parent=1 // loop_pre_header
      _
    $region3: #{tpu_custom_call.1} parent=1 // loop_header
      %s15 = sphi 0, %s19
      %p16 = scmp.ge.s32.totalorder %s15, 4
      %s23 = sphi 0, %s23
      %s25 = sphi 0, %s23
      %s26 = sphi 0, %s25
      %s40 = sphi 0, %s26
      %s46 = sphi 0, %s48
      %s49 = sphi 0, %s46
      %s50 = sphi 0, %s49
      %s66 = sphi 0, %s50
      %s72 = sphi 0, %s74
      %s75 = sphi 0, %s72
      %s76 = sphi 0, %s75
      %s92 = sphi 0, %s76
    $region4: #{tpu_custom_call.1} parent=1 // loop_header_branch
      %18 = sbr.rel (%p16) target = $region8
    $region5: #{tpu_custom_call.1} parent=1 // loop_body
      %s20 = ssub.s32 %s15, 1
      %s21 = ssub.s32 %s15, 2
      %s22 = sadd.s32 %s15, 1
      %s24 = sadd.s32 %s23, 1
      %p27 = scmp.eq.s32.totalorder %s15, 1
      %p28 = scmp.ne.s32.totalorder %s23, %s25
      %p29 = scmp.eq.s32.totalorder %s15, 0
      %p30 = por %p28, %p29
      %p31 = scmp.ne.s32.totalorder %s23, %s25
      %p32 = scmp.eq.s32.totalorder %s20, 1
      %p33 = por %p31, %p32
      %p34 = scmp.ne.s32.totalorder %s25, %s26
      %p35 = scmp.eq.s32.totalorder %s20, 0
      %p36 = por %p34, %p35
      %p37 = scmp.ne.s32.totalorder %s25, %s26
      %p38 = scmp.eq.s32.totalorder %s21, 1
      %p39 = por %p37, %p38
      %p41 = scmp.ne.s32.totalorder %s26, %s40
      %p42 = scmp.eq.s32.totalorder %s21, 0
      %p43 = por %p41, %p42
      %s44 = ssub.s32 %s15, %s22
      %p45 = scmp.eq.s32.totalorder %s44, 0
      %s47 = sadd.s32 %s46, 1
      %s48 = scalar_select %p45, %s46, %s47
      %p51 = pneg %p45
      %p52 = scmp.eq.s32.totalorder %s15, 1
      %p53 = por %p51, %p52
      %p54 = scmp.ne.s32.totalorder %s46, %s49
      %p55 = scmp.eq.s32.totalorder %s15, 0
      %p56 = por %p54, %p55
      %p57 = scmp.ne.s32.totalorder %s46, %s49
      %p58 = scmp.eq.s32.totalorder %s20, 1
      %p59 = por %p57, %p58
      %p60 = scmp.ne.s32.totalorder %s49, %s50
      %p61 = scmp.eq.s32.totalorder %s20, 0
      %p62 = por %p60, %p61
      %p63 = scmp.ne.s32.totalorder %s49, %s50
      %p64 = scmp.eq.s32.totalorder %s21, 1
      %p65 = por %p63, %p64
      %p67 = scmp.ne.s32.totalorder %s50, %s66
      %p68 = scmp.eq.s32.totalorder %s21, 0
      %p69 = por %p67, %p68
      %s70 = ssub.s32 %s15, %s22
      %p71 = scmp.eq.s32.totalorder %s70, 0
      %s73 = sadd.s32 %s72, 1
      %s74 = scalar_select %p71, %s72, %s73
      %p77 = pneg %p71
      %p78 = scmp.eq.s32.totalorder %s15, 1
      %p79 = por %p77, %p78
      %p80 = scmp.ne.s32.totalorder %s72, %s75
      %p81 = scmp.eq.s32.totalorder %s15, 0
      %p82 = por %p80, %p81
      %p83 = scmp.ne.s32.totalorder %s72, %s75
      %p84 = scmp.eq.s32.totalorder %s20, 1
      %p85 = por %p83, %p84
      %p86 = scmp.ne.s32.totalorder %s75, %s76
      %p87 = scmp.eq.s32.totalorder %s20, 0
      %p88 = por %p86, %p87
      %p89 = scmp.ne.s32.totalorder %s75, %s76
      %p90 = scmp.eq.s32.totalorder %s21, 1
      %p91 = por %p89, %p90
      %p93 = scmp.ne.s32.totalorder %s76, %s92
      %p94 = scmp.eq.s32.totalorder %s21, 0
      %p95 = por %p93, %p94
      %p96 = scmp.le.s32.totalorder 1, %s15
      %p97 = scmp.lt.s32.totalorder %s15, 3
      %p98 = pnand %p96, %p97
      %p99 = pneg %p98
      // Predicated region
      $region9: #{tpu_custom_call.1} parent=5 // pred_check
        _
      $region10: #{tpu_custom_call.1} parent=5 // pred_check_branch
        %101 = sbr.rel (%p98) target = $region12
      $region11: #{tpu_custom_call.1} parent=5 // pred_region
        %s102 = ssub.s32 %s15, 1
        // Predicated region
        $region13: #{tpu_custom_call.1} parent=11 // pred_check
          %p103 = pneg %p36
        $region14: #{tpu_custom_call.1} parent=11 // pred_check_branch
          %105 = sbr.rel (%p103) target = $region16
        $region15: #{tpu_custom_call.1} parent=11 // pred_region
          %s107 = ssub.s32 16640, 16640
          %108 = vsyncadd [#allocation3], %s107
          %s110 = sshll.u32 [#allocation2], 4
          %s111 = int_to_ptr.vmem [resolvable:$true] %s110
          %113 = dma.hbm_to_vmem [thread:$0]  %s0, 16640, %s111, [#allocation3]
        $region16: #{tpu_custom_call.1} parent=11 // pred_fallthru
          _
      $region12: #{tpu_custom_call.1} parent=5 // pred_fallthru
        _
      %p114 = scmp.lt.s32.totalorder %s15, 2
      // Predicated region
      $region17: #{tpu_custom_call.1} parent=5 // pred_check
        %p115 = pneg %p114
      $region18: #{tpu_custom_call.1} parent=5 // pred_check_branch
        %117 = sbr.rel (%p115) target = $region20
      $region19: #{tpu_custom_call.1} parent=5 // pred_region
        // Predicated region
        $region21: #{tpu_custom_call.1} parent=19 // pred_check
          %p118 = pneg %p56
        $region22: #{tpu_custom_call.1} parent=19 // pred_check_branch
          %120 = sbr.rel (%p118) target = $region24
        $region23: #{tpu_custom_call.1} parent=19 // pred_region
          %s121 = sand.u32 %s46, 1
          %s122 = scalar_lea.sflag [#allocation6], %s121
          %s123 = sand.u32 %s46, 1
          %s124 = smul.addr %s123, 16
          %s125 = scalar_lea.vmem [#allocation5], %s124
          %s126 = smul.u32 8, %s15
          %s128 = ssub.s32 256, 256
          %129 = vsyncadd %s122, %s128
          %s130 = smul.addr %s126, 32
          %s131 = scalar_lea.hbm %s1, %s130
          %s133 = sshll.u32 %s125, 4
          %s134 = int_to_ptr.vmem [resolvable:$true] %s133
          %136 = dma.hbm_to_vmem [thread:$0]  %s131, 256, %s134, %s122
        $region24: #{tpu_custom_call.1} parent=19 // pred_fallthru
          _
      $region20: #{tpu_custom_call.1} parent=5 // pred_fallthru
        _
      %p137 = scmp.le.s32.totalorder 1, %s15
      %p138 = scmp.lt.s32.totalorder %s15, 3
      %p139 = pnand %p137, %p138
      %p140 = pneg %p139
      // Predicated region
      $region25: #{tpu_custom_call.1} parent=5 // pred_check
        _
      $region26: #{tpu_custom_call.1} parent=5 // pred_check_branch
        %142 = sbr.rel (%p139) target = $region28
      $region27: #{tpu_custom_call.1} parent=5 // pred_region
        %s143 = ssub.s32 %s15, 1
        // Predicated region
        $region29: #{tpu_custom_call.1} parent=27 // pred_check
          %p144 = pneg %p36
        $region30: #{tpu_custom_call.1} parent=27 // pred_check_branch
          %146 = sbr.rel (%p144) target = $region32
        $region31: #{tpu_custom_call.1} parent=27 // pred_region
          %147 = dma.done [#allocation3], 16640
        $region32: #{tpu_custom_call.1} parent=27 // pred_fallthru
          _
        %s148 = sand.u32 %s49, 1
        %s149 = scalar_lea.sflag [#allocation6], %s148
        %s150 = sand.u32 %s49, 1
        %s151 = smul.addr %s150, 16
        %s152 = scalar_lea.vmem [#allocation5], %s151
        // Predicated region
        $region33: #{tpu_custom_call.1} parent=27 // pred_check
          %p153 = pneg %p62
        $region34: #{tpu_custom_call.1} parent=27 // pred_check_branch
          %155 = sbr.rel (%p153) target = $region36
        $region35: #{tpu_custom_call.1} parent=27 // pred_region
          %156 = dma.done %s149, 256
        $region36: #{tpu_custom_call.1} parent=27 // pred_fallthru
          _
        %p157 = pneg %p36
        %p158 = pneg %p33
        %s159 = sand.u32 %s49, 1
        %s160 = scalar_lea.sflag [#allocation6], %s159
        %s161 = sand.u32 %s49, 1
        %s162 = smul.addr %s161, 16
        %s163 = scalar_lea.vmem [#allocation5], %s162
        %p164 = pneg %p62
        %p165 = pneg %p59
        %p166 = pneg %p88
        %p167 = pneg %p85
        %s168 = sand.u32 %s75, 1
        %s169 = scalar_lea.sflag [#allocation4], %s168
        %s170 = sand.u32 %s75, 1
        %s171 = smul.addr %s170, 8
        %s172 = scalar_lea.vmem [#allocation7], %s171
        %s173 = smul.u32 8, %s20
        %s174 = smul.u32 8, %s20
        %v175 = vld [vmem:[%s152] sm:$0xf]
        %v176 = vld [vmem:[#allocation2] sm:$0xff]
        %v177 = vld [vmem:[#allocation2 + $0x8] sm:$0xff]
        %v179 = vlaneseq
        %v180 = vshrl.u32 %v179, 7
        %v181 = vsub.s32 0, %v180
        %v182 = vrot.slane %v175, %v181
        %v183 = vlaneseq
        %v184 = vshrl.u32 %v183, 7
        %v185 = vsub.s32 2, %v184
        %v186 = vrot.slane %v175, %v185
        %v189 = vlaneseq
        %v190 = vshrl.u32 %v189, 7
        %v191 = vsub.s32 0, %v190
        %v192 = vrot.slane %v182, %v191
        %v193 = vlaneseq
        %v194 = vshrl.u32 %v193, 7
        %v195 = vsub.s32 0, %v194
        %v196 = vrot.slane %v186, %v195
        %v197 = vmul.f32 %v176, %v192
        %v198 = vmul.f32 %v177, %v196
        %v199 = vld [vmem:[#allocation2 + $0x10] sm:$0xff]
        %v200 = vld [vmem:[#allocation2 + $0x18] sm:$0xff]
        %v201 = vlaneseq
        %v202 = vshrl.u32 %v201, 7
        %v203 = vsub.s32 1, %v202
        %v204 = vrot.slane %v175, %v203
        %v205 = vlaneseq
        %v206 = vshrl.u32 %v205, 7
        %v207 = vsub.s32 3, %v206
        %v208 = vrot.slane %v175, %v207
        %v211 = vlaneseq
        %v212 = vshrl.u32 %v211, 7
        %v213 = vsub.s32 1, %v212
        %v214 = vrot.slane %v204, %v213
        %v215 = vlaneseq
        %v216 = vshrl.u32 %v215, 7
        %v217 = vsub.s32 1, %v216
        %v218 = vrot.slane %v208, %v217
        %v219 = vmul.f32 %v199, %v214
        %v220 = vmul.f32 %v200, %v218
        %v221 = vadd.f32 %v197, %v219
        %v222 = vadd.f32 %v198, %v220
        %vm223 = vcmp.gt.f32.partialorder %v221, 0.0
        %vm224 = vcmp.gt.f32.partialorder %v222, 0.0
        %v225 = vmul.f32 %v221, 0.01
        %v226 = vmul.f32 %v222, 0.01
        %v227 = vsel %vm223, %v221, %v225
        %v228 = vsel %vm224, %v222, %v226
        %v229 = vld [vmem:[#allocation2 + $0x20] sm:$0xff]
        %v230 = vld [vmem:[#allocation2 + $0x28] sm:$0xff]
        %v231 = vlaneseq
        %v232 = vshrl.u32 %v231, 7
        %v233 = vsub.s32 0, %v232
        %v234 = vrot.slane %v227, %v233
        %v235 = vlaneseq
        %v236 = vshrl.u32 %v235, 7
        %v237 = vsub.s32 0, %v236
        %v238 = vrot.slane %v228, %v237
        %v239 = vmul.f32 %v229, %v234
        %v240 = vmul.f32 %v230, %v238
        %v241 = vld [vmem:[#allocation2 + $0x30] sm:$0xff]
        %v242 = vld [vmem:[#allocation2 + $0x38] sm:$0xff]
        %v243 = vlaneseq
        %v244 = vshrl.u32 %v243, 7
        %v245 = vsub.s32 1, %v244
        %v246 = vrot.slane %v227, %v245
        %v247 = vlaneseq
        %v248 = vshrl.u32 %v247, 7
        %v249 = vsub.s32 1, %v248
        %v250 = vrot.slane %v228, %v249
        %v251 = vmul.f32 %v241, %v246
        %v252 = vmul.f32 %v242, %v250
        %v253 = vadd.f32 %v239, %v251
        %v254 = vadd.f32 %v240, %v252
        %v255 = vld [vmem:[#allocation2 + $0x40] sm:$0xff]
        %v256 = vld [vmem:[#allocation2 + $0x48] sm:$0xff]
        %v257 = vlaneseq
        %v258 = vshrl.u32 %v257, 7
        %v259 = vsub.s32 2, %v258
        %v260 = vrot.slane %v227, %v259
        %v261 = vlaneseq
        %v262 = vshrl.u32 %v261, 7
        %v263 = vsub.s32 2, %v262
        %v264 = vrot.slane %v228, %v263
        %v265 = vmul.f32 %v255, %v260
        %v266 = vmul.f32 %v256, %v264
        %v267 = vadd.f32 %v253, %v265
        %v268 = vadd.f32 %v254, %v266
        %v269 = vld [vmem:[#allocation2 + $0x50] sm:$0xff]
        %v270 = vld [vmem:[#allocation2 + $0x58] sm:$0xff]
        %v271 = vlaneseq
        %v272 = vshrl.u32 %v271, 7
        %v273 = vsub.s32 3, %v272
        %v274 = vrot.slane %v227, %v273
        %v275 = vlaneseq
        %v276 = vshrl.u32 %v275, 7
        %v277 = vsub.s32 3, %v276
        %v278 = vrot.slane %v228, %v277
        %v279 = vmul.f32 %v269, %v274
        %v280 = vmul.f32 %v270, %v278
        %v281 = vadd.f32 %v267, %v279
        %v282 = vadd.f32 %v268, %v280
        %v283 = vld [vmem:[#allocation2 + $0x60] sm:$0xff]
        %v284 = vld [vmem:[#allocation2 + $0x68] sm:$0xff]
        %v285 = vlaneseq
        %v286 = vshrl.u32 %v285, 7
        %v287 = vsub.s32 4, %v286
        %v288 = vrot.slane %v227, %v287
        %v289 = vlaneseq
        %v290 = vshrl.u32 %v289, 7
        %v291 = vsub.s32 4, %v290
        %v292 = vrot.slane %v228, %v291
        %v293 = vmul.f32 %v283, %v288
        %v294 = vmul.f32 %v284, %v292
        %v295 = vadd.f32 %v281, %v293
        %v296 = vadd.f32 %v282, %v294
        %v297 = vld [vmem:[#allocation2 + $0x70] sm:$0xff]
        %v298 = vld [vmem:[#allocation2 + $0x78] sm:$0xff]
        %v299 = vlaneseq
        %v300 = vshrl.u32 %v299, 7
        %v301 = vsub.s32 5, %v300
        %v302 = vrot.slane %v227, %v301
        %v303 = vlaneseq
        %v304 = vshrl.u32 %v303, 7
        %v305 = vsub.s32 5, %v304
        %v306 = vrot.slane %v228, %v305
        %v307 = vmul.f32 %v297, %v302
        %v308 = vmul.f32 %v298, %v306
        %v309 = vadd.f32 %v295, %v307
        %v310 = vadd.f32 %v296, %v308
        %v311 = vld [vmem:[#allocation2 + $0x80] sm:$0xff]
        %v312 = vld [vmem:[#allocation2 + $0x88] sm:$0xff]
        %v313 = vlaneseq
        %v314 = vshrl.u32 %v313, 7
        %v315 = vsub.s32 6, %v314
        %v316 = vrot.slane %v227, %v315
        %v317 = vlaneseq
        %v318 = vshrl.u32 %v317, 7
        %v319 = vsub.s32 6, %v318
        %v320 = vrot.slane %v228, %v319
        %v321 = vmul.f32 %v311, %v316
        %v322 = vmul.f32 %v312, %v320
        %v323 = vadd.f32 %v309, %v321
        %v324 = vadd.f32 %v310, %v322
        %vm325 = vcmp.gt.f32.partialorder %v323, 0.0
        %vm326 = vcmp.gt.f32.partialorder %v324, 0.0
        %v327 = vmul.f32 %v323, 0.01
        %v328 = vmul.f32 %v324, 0.01
        %v329 = vsel %vm325, %v323, %v327
        %v330 = vsel %vm326, %v324, %v328
        %v331 = vld [vmem:[#allocation2 + $0x90] sm:$0xff]
        %v332 = vld [vmem:[#allocation2 + $0x98] sm:$0xff]
        %v333 = vlaneseq
        %v334 = vshrl.u32 %v333, 7
        %v335 = vsub.s32 0, %v334
        %v336 = vrot.slane %v329, %v335
        %v337 = vlaneseq
        %v338 = vshrl.u32 %v337, 7
        %v339 = vsub.s32 0, %v338
        %v340 = vrot.slane %v330, %v339
        %v341 = vmul.f32 %v331, %v336
        %v342 = vmul.f32 %v332, %v340
        %v343 = vld [vmem:[#allocation2 + $0xa0] sm:$0xff]
        %v344 = vld [vmem:[#allocation2 + $0xa8] sm:$0xff]
        %v345 = vlaneseq
        %v346 = vshrl.u32 %v345, 7
        %v347 = vsub.s32 1, %v346
        %v348 = vrot.slane %v329, %v347
        %v349 = vlaneseq
        %v350 = vshrl.u32 %v349, 7
        %v351 = vsub.s32 1, %v350
        %v352 = vrot.slane %v330, %v351
        %v353 = vmul.f32 %v343, %v348
        %v354 = vmul.f32 %v344, %v352
        %v355 = vadd.f32 %v341, %v353
        %v356 = vadd.f32 %v342, %v354
        %v357 = vld [vmem:[#allocation2 + $0xb0] sm:$0xff]
        %v358 = vld [vmem:[#allocation2 + $0xb8] sm:$0xff]
        %v359 = vlaneseq
        %v360 = vshrl.u32 %v359, 7
        %v361 = vsub.s32 2, %v360
        %v362 = vrot.slane %v329, %v361
        %v363 = vlaneseq
        %v364 = vshrl.u32 %v363, 7
        %v365 = vsub.s32 2, %v364
        %v366 = vrot.slane %v330, %v365
        %v367 = vmul.f32 %v357, %v362
        %v368 = vmul.f32 %v358, %v366
        %v369 = vadd.f32 %v355, %v367
        %v370 = vadd.f32 %v356, %v368
        %v371 = vld [vmem:[#allocation2 + $0xc0] sm:$0xff]
        %v372 = vld [vmem:[#allocation2 + $0xc8] sm:$0xff]
        %v373 = vlaneseq
        %v374 = vshrl.u32 %v373, 7
        %v375 = vsub.s32 3, %v374
        %v376 = vrot.slane %v329, %v375
        %v377 = vlaneseq
        %v378 = vshrl.u32 %v377, 7
        %v379 = vsub.s32 3, %v378
        %v380 = vrot.slane %v330, %v379
        %v381 = vmul.f32 %v371, %v376
        %v382 = vmul.f32 %v372, %v380
        %v383 = vadd.f32 %v369, %v381
        %v384 = vadd.f32 %v370, %v382
        %v385 = vld [vmem:[#allocation2 + $0xd0] sm:$0xff]
        %v386 = vld [vmem:[#allocation2 + $0xd8] sm:$0xff]
        %v387 = vlaneseq
        %v388 = vshrl.u32 %v387, 7
        %v389 = vsub.s32 4, %v388
        %v390 = vrot.slane %v329, %v389
        %v391 = vlaneseq
        %v392 = vshrl.u32 %v391, 7
        %v393 = vsub.s32 4, %v392
        %v394 = vrot.slane %v330, %v393
        %v395 = vmul.f32 %v385, %v390
        %v396 = vmul.f32 %v386, %v394
        %v397 = vadd.f32 %v383, %v395
        %v398 = vadd.f32 %v384, %v396
        %v399 = vld [vmem:[#allocation2 + $0xe0] sm:$0xff]
        %v400 = vld [vmem:[#allocation2 + $0xe8] sm:$0xff]
        %v401 = vlaneseq
        %v402 = vshrl.u32 %v401, 7
        %v403 = vsub.s32 5, %v402
        %v404 = vrot.slane %v329, %v403
        %v405 = vlaneseq
        %v406 = vshrl.u32 %v405, 7
        %v407 = vsub.s32 5, %v406
        %v408 = vrot.slane %v330, %v407
        %v409 = vmul.f32 %v399, %v404
        %v410 = vmul.f32 %v400, %v408
        %v411 = vadd.f32 %v397, %v409
        %v412 = vadd.f32 %v398, %v410
        %v413 = vld [vmem:[#allocation2 + $0xf0] sm:$0xff]
        %v414 = vld [vmem:[#allocation2 + $0xf8] sm:$0xff]
        %v415 = vlaneseq
        %v416 = vshrl.u32 %v415, 7
        %v417 = vsub.s32 6, %v416
        %v418 = vrot.slane %v329, %v417
        %v419 = vlaneseq
        %v420 = vshrl.u32 %v419, 7
        %v421 = vsub.s32 6, %v420
        %v422 = vrot.slane %v330, %v421
        %v423 = vmul.f32 %v413, %v418
        %v424 = vmul.f32 %v414, %v422
        %v425 = vadd.f32 %v411, %v423
        %v426 = vadd.f32 %v412, %v424
        %vm427 = vcmp.gt.f32.partialorder %v425, 0.0
        %vm428 = vcmp.gt.f32.partialorder %v426, 0.0
        %v429 = vmul.f32 %v425, 0.01
        %v430 = vmul.f32 %v426, 0.01
        %v431 = vsel %vm427, %v425, %v429
        %v432 = vsel %vm428, %v426, %v430
        %v433 = vld [vmem:[#allocation2 + $0x100] sm:$0xff]
        %v434 = vld [vmem:[#allocation2 + $0x108] sm:$0xff]
        %v435 = vlaneseq
        %v436 = vshrl.u32 %v435, 7
        %v437 = vsub.s32 0, %v436
        %v438 = vrot.slane %v431, %v437
        %v439 = vlaneseq
        %v440 = vshrl.u32 %v439, 7
        %v441 = vsub.s32 0, %v440
        %v442 = vrot.slane %v432, %v441
        %v443 = vmul.f32 %v433, %v438
        %v444 = vmul.f32 %v434, %v442
        %v445 = vld [vmem:[#allocation2 + $0x110] sm:$0xff]
        %v446 = vld [vmem:[#allocation2 + $0x118] sm:$0xff]
        %v447 = vlaneseq
        %v448 = vshrl.u32 %v447, 7
        %v449 = vsub.s32 1, %v448
        %v450 = vrot.slane %v431, %v449
        %v451 = vlaneseq
        %v452 = vshrl.u32 %v451, 7
        %v453 = vsub.s32 1, %v452
        %v454 = vrot.slane %v432, %v453
        %v455 = vmul.f32 %v445, %v450
        %v456 = vmul.f32 %v446, %v454
        %v457 = vadd.f32 %v443, %v455
        %v458 = vadd.f32 %v444, %v456
        %v459 = vld [vmem:[#allocation2 + $0x120] sm:$0xff]
        %v460 = vld [vmem:[#allocation2 + $0x128] sm:$0xff]
        %v461 = vlaneseq
        %v462 = vshrl.u32 %v461, 7
        %v463 = vsub.s32 2, %v462
        %v464 = vrot.slane %v431, %v463
        %v465 = vlaneseq
        %v466 = vshrl.u32 %v465, 7
        %v467 = vsub.s32 2, %v466
        %v468 = vrot.slane %v432, %v467
        %v469 = vmul.f32 %v459, %v464
        %v470 = vmul.f32 %v460, %v468
        %v471 = vadd.f32 %v457, %v469
        %v472 = vadd.f32 %v458, %v470
        %v473 = vld [vmem:[#allocation2 + $0x130] sm:$0xff]
        %v474 = vld [vmem:[#allocation2 + $0x138] sm:$0xff]
        %v475 = vlaneseq
        %v476 = vshrl.u32 %v475, 7
        %v477 = vsub.s32 3, %v476
        %v478 = vrot.slane %v431, %v477
        %v479 = vlaneseq
        %v480 = vshrl.u32 %v479, 7
        %v481 = vsub.s32 3, %v480
        %v482 = vrot.slane %v432, %v481
        %v483 = vmul.f32 %v473, %v478
        %v484 = vmul.f32 %v474, %v482
        %v485 = vadd.f32 %v471, %v483
        %v486 = vadd.f32 %v472, %v484
        %v487 = vld [vmem:[#allocation2 + $0x140] sm:$0xff]
        %v488 = vld [vmem:[#allocation2 + $0x148] sm:$0xff]
        %v489 = vlaneseq
        %v490 = vshrl.u32 %v489, 7
        %v491 = vsub.s32 4, %v490
        %v492 = vrot.slane %v431, %v491
        %v493 = vlaneseq
        %v494 = vshrl.u32 %v493, 7
        %v495 = vsub.s32 4, %v494
        %v496 = vrot.slane %v432, %v495
        %v497 = vmul.f32 %v487, %v492
        %v498 = vmul.f32 %v488, %v496
        %v499 = vadd.f32 %v485, %v497
        %v500 = vadd.f32 %v486, %v498
        %v501 = vld [vmem:[#allocation2 + $0x150] sm:$0xff]
        %v502 = vld [vmem:[#allocation2 + $0x158] sm:$0xff]
        %v503 = vlaneseq
        %v504 = vshrl.u32 %v503, 7
        %v505 = vsub.s32 5, %v504
        %v506 = vrot.slane %v431, %v505
        %v507 = vlaneseq
        %v508 = vshrl.u32 %v507, 7
        %v509 = vsub.s32 5, %v508
        %v510 = vrot.slane %v432, %v509
        %v511 = vmul.f32 %v501, %v506
        %v512 = vmul.f32 %v502, %v510
        %v513 = vadd.f32 %v499, %v511
        %v514 = vadd.f32 %v500, %v512
        %v515 = vld [vmem:[#allocation2 + $0x160] sm:$0xff]
        %v516 = vld [vmem:[#allocation2 + $0x168] sm:$0xff]
        %v517 = vlaneseq
        %v518 = vshrl.u32 %v517, 7
        %v519 = vsub.s32 6, %v518
        %v520 = vrot.slane %v431, %v519
        %v521 = vlaneseq
        %v522 = vshrl.u32 %v521, 7
        %v523 = vsub.s32 6, %v522
        %v524 = vrot.slane %v432, %v523
        %v525 = vmul.f32 %v515, %v520
        %v526 = vmul.f32 %v516, %v524
        %v527 = vadd.f32 %v513, %v525
        %v528 = vadd.f32 %v514, %v526
        %vm529 = vcmp.gt.f32.partialorder %v527, 0.0
        %vm530 = vcmp.gt.f32.partialorder %v528, 0.0
        %v531 = vmul.f32 %v527, 0.01
        %v532 = vmul.f32 %v528, 0.01
        %v533 = vsel %vm529, %v527, %v531
        %v534 = vsel %vm530, %v528, %v532
        %v535 = vld [vmem:[#allocation2 + $0x170] sm:$0xff]
        %v536 = vld [vmem:[#allocation2 + $0x178] sm:$0xff]
        %v537 = vlaneseq
        %v538 = vshrl.u32 %v537, 7
        %v539 = vsub.s32 0, %v538
        %v540 = vrot.slane %v533, %v539
        %v541 = vlaneseq
        %v542 = vshrl.u32 %v541, 7
        %v543 = vsub.s32 0, %v542
        %v544 = vrot.slane %v534, %v543
        %v545 = vmul.f32 %v535, %v540
        %v546 = vmul.f32 %v536, %v544
        %v547 = vld [vmem:[#allocation2 + $0x180] sm:$0xff]
        %v548 = vld [vmem:[#allocation2 + $0x188] sm:$0xff]
        %v549 = vlaneseq
        %v550 = vshrl.u32 %v549, 7
        %v551 = vsub.s32 1, %v550
        %v552 = vrot.slane %v533, %v551
        %v553 = vlaneseq
        %v554 = vshrl.u32 %v553, 7
        %v555 = vsub.s32 1, %v554
        %v556 = vrot.slane %v534, %v555
        %v557 = vmul.f32 %v547, %v552
        %v558 = vmul.f32 %v548, %v556
        %v559 = vadd.f32 %v545, %v557
        %v560 = vadd.f32 %v546, %v558
        %v561 = vld [vmem:[#allocation2 + $0x190] sm:$0xff]
        %v562 = vld [vmem:[#allocation2 + $0x198] sm:$0xff]
        %v563 = vlaneseq
        %v564 = vshrl.u32 %v563, 7
        %v565 = vsub.s32 2, %v564
        %v566 = vrot.slane %v533, %v565
        %v567 = vlaneseq
        %v568 = vshrl.u32 %v567, 7
        %v569 = vsub.s32 2, %v568
        %v570 = vrot.slane %v534, %v569
        %v571 = vmul.f32 %v561, %v566
        %v572 = vmul.f32 %v562, %v570
        %v573 = vadd.f32 %v559, %v571
        %v574 = vadd.f32 %v560, %v572
        %v575 = vld [vmem:[#allocation2 + $0x1a0] sm:$0xff]
        %v576 = vld [vmem:[#allocation2 + $0x1a8] sm:$0xff]
        %v577 = vlaneseq
        %v578 = vshrl.u32 %v577, 7
        %v579 = vsub.s32 3, %v578
        %v580 = vrot.slane %v533, %v579
        %v581 = vlaneseq
        %v582 = vshrl.u32 %v581, 7
        %v583 = vsub.s32 3, %v582
        %v584 = vrot.slane %v534, %v583
        %v585 = vmul.f32 %v575, %v580
        %v586 = vmul.f32 %v576, %v584
        %v587 = vadd.f32 %v573, %v585
        %v588 = vadd.f32 %v574, %v586
        %v589 = vld [vmem:[#allocation2 + $0x1b0] sm:$0xff]
        %v590 = vld [vmem:[#allocation2 + $0x1b8] sm:$0xff]
        %v591 = vlaneseq
        %v592 = vshrl.u32 %v591, 7
        %v593 = vsub.s32 4, %v592
        %v594 = vrot.slane %v533, %v593
        %v595 = vlaneseq
        %v596 = vshrl.u32 %v595, 7
        %v597 = vsub.s32 4, %v596
        %v598 = vrot.slane %v534, %v597
        %v599 = vmul.f32 %v589, %v594
        %v600 = vmul.f32 %v590, %v598
        %v601 = vadd.f32 %v587, %v599
        %v602 = vadd.f32 %v588, %v600
        %v603 = vld [vmem:[#allocation2 + $0x1c0] sm:$0xff]
        %v604 = vld [vmem:[#allocation2 + $0x1c8] sm:$0xff]
        %v605 = vlaneseq
        %v606 = vshrl.u32 %v605, 7
        %v607 = vsub.s32 5, %v606
        %v608 = vrot.slane %v533, %v607
        %v609 = vlaneseq
        %v610 = vshrl.u32 %v609, 7
        %v611 = vsub.s32 5, %v610
        %v612 = vrot.slane %v534, %v611
        %v613 = vmul.f32 %v603, %v608
        %v614 = vmul.f32 %v604, %v612
        %v615 = vadd.f32 %v601, %v613
        %v616 = vadd.f32 %v602, %v614
        %v617 = vld [vmem:[#allocation2 + $0x1d0] sm:$0xff]
        %v618 = vld [vmem:[#allocation2 + $0x1d8] sm:$0xff]
        %v619 = vlaneseq
        %v620 = vshrl.u32 %v619, 7
        %v621 = vsub.s32 6, %v620
        %v622 = vrot.slane %v533, %v621
        %v623 = vlaneseq
        %v624 = vshrl.u32 %v623, 7
        %v625 = vsub.s32 6, %v624
        %v626 = vrot.slane %v534, %v625
        %v627 = vmul.f32 %v617, %v622
        %v628 = vmul.f32 %v618, %v626
        %v629 = vadd.f32 %v615, %v627
        %v630 = vadd.f32 %v616, %v628
        %vm631 = vcmp.gt.f32.partialorder %v629, 0.0
        %vm632 = vcmp.gt.f32.partialorder %v630, 0.0
        %v633 = vmul.f32 %v629, 0.01
        %v634 = vmul.f32 %v630, 0.01
        %v635 = vsel %vm631, %v629, %v633
        %v636 = vsel %vm632, %v630, %v634
        %v637 = vld [vmem:[#allocation2 + $0x1e0] sm:$0xff]
        %v638 = vld [vmem:[#allocation2 + $0x1e8] sm:$0xff]
        %v639 = vlaneseq
        %v640 = vshrl.u32 %v639, 7
        %v641 = vsub.s32 0, %v640
        %v642 = vrot.slane %v635, %v641
        %v643 = vlaneseq
        %v644 = vshrl.u32 %v643, 7
        %v645 = vsub.s32 0, %v644
        %v646 = vrot.slane %v636, %v645
        %v647 = vmul.f32 %v637, %v642
        %v648 = vmul.f32 %v638, %v646
        %v649 = vld [vmem:[#allocation2 + $0x1f0] sm:$0xff]
        %v650 = vld [vmem:[#allocation2 + $0x1f8] sm:$0xff]
        %v651 = vlaneseq
        %v652 = vshrl.u32 %v651, 7
        %v653 = vsub.s32 1, %v652
        %v654 = vrot.slane %v635, %v653
        %v655 = vlaneseq
        %v656 = vshrl.u32 %v655, 7
        %v657 = vsub.s32 1, %v656
        %v658 = vrot.slane %v636, %v657
        %v659 = vmul.f32 %v649, %v654
        %v660 = vmul.f32 %v650, %v658
        %v661 = vadd.f32 %v647, %v659
        %v662 = vadd.f32 %v648, %v660
        %v663 = vld [vmem:[#allocation2 + $0x200] sm:$0xff]
        %v664 = vld [vmem:[#allocation2 + $0x208] sm:$0xff]
        %v665 = vlaneseq
        %v666 = vshrl.u32 %v665, 7
        %v667 = vsub.s32 2, %v666
        %v668 = vrot.slane %v635, %v667
        %v669 = vlaneseq
        %v670 = vshrl.u32 %v669, 7
        %v671 = vsub.s32 2, %v670
        %v672 = vrot.slane %v636, %v671
        %v673 = vmul.f32 %v663, %v668
        %v674 = vmul.f32 %v664, %v672
        %v675 = vadd.f32 %v661, %v673
        %v676 = vadd.f32 %v662, %v674
        %v677 = vld [vmem:[#allocation2 + $0x210] sm:$0xff]
        %v678 = vld [vmem:[#allocation2 + $0x218] sm:$0xff]
        %v679 = vlaneseq
        %v680 = vshrl.u32 %v679, 7
        %v681 = vsub.s32 3, %v680
        %v682 = vrot.slane %v635, %v681
        %v683 = vlaneseq
        %v684 = vshrl.u32 %v683, 7
        %v685 = vsub.s32 3, %v684
        %v686 = vrot.slane %v636, %v685
        %v687 = vmul.f32 %v677, %v682
        %v688 = vmul.f32 %v678, %v686
        %v689 = vadd.f32 %v675, %v687
        %v690 = vadd.f32 %v676, %v688
        %v691 = vld [vmem:[#allocation2 + $0x220] sm:$0xff]
        %v692 = vld [vmem:[#allocation2 + $0x228] sm:$0xff]
        %v693 = vlaneseq
        %v694 = vshrl.u32 %v693, 7
        %v695 = vsub.s32 4, %v694
        %v696 = vrot.slane %v635, %v695
        %v697 = vlaneseq
        %v698 = vshrl.u32 %v697, 7
        %v699 = vsub.s32 4, %v698
        %v700 = vrot.slane %v636, %v699
        %v701 = vmul.f32 %v691, %v696
        %v702 = vmul.f32 %v692, %v700
        %v703 = vadd.f32 %v689, %v701
        %v704 = vadd.f32 %v690, %v702
        %v705 = vld [vmem:[#allocation2 + $0x230] sm:$0xff]
        %v706 = vld [vmem:[#allocation2 + $0x238] sm:$0xff]
        %v707 = vlaneseq
        %v708 = vshrl.u32 %v707, 7
        %v709 = vsub.s32 5, %v708
        %v710 = vrot.slane %v635, %v709
        %v711 = vlaneseq
        %v712 = vshrl.u32 %v711, 7
        %v713 = vsub.s32 5, %v712
        %v714 = vrot.slane %v636, %v713
        %v715 = vmul.f32 %v705, %v710
        %v716 = vmul.f32 %v706, %v714
        %v717 = vadd.f32 %v703, %v715
        %v718 = vadd.f32 %v704, %v716
        %v719 = vld [vmem:[#allocation2 + $0x240] sm:$0xff]
        %v720 = vld [vmem:[#allocation2 + $0x248] sm:$0xff]
        %v721 = vlaneseq
        %v722 = vshrl.u32 %v721, 7
        %v723 = vsub.s32 6, %v722
        %v724 = vrot.slane %v635, %v723
        %v725 = vlaneseq
        %v726 = vshrl.u32 %v725, 7
        %v727 = vsub.s32 6, %v726
        %v728 = vrot.slane %v636, %v727
        %v729 = vmul.f32 %v719, %v724
        %v730 = vmul.f32 %v720, %v728
        %v731 = vadd.f32 %v717, %v729
        %v732 = vadd.f32 %v718, %v730
        %vm733 = vcmp.gt.f32.partialorder %v731, 0.0
        %vm734 = vcmp.gt.f32.partialorder %v732, 0.0
        %v735 = vmul.f32 %v731, 0.01
        %v736 = vmul.f32 %v732, 0.01
        %v737 = vsel %vm733, %v731, %v735
        %v738 = vsel %vm734, %v732, %v736
        %v739 = vld [vmem:[#allocation2 + $0x250] sm:$0xff]
        %v740 = vld [vmem:[#allocation2 + $0x258] sm:$0xff]
        %v741 = vlaneseq
        %v742 = vshrl.u32 %v741, 7
        %v743 = vsub.s32 0, %v742
        %v744 = vrot.slane %v737, %v743
        %v745 = vlaneseq
        %v746 = vshrl.u32 %v745, 7
        %v747 = vsub.s32 0, %v746
        %v748 = vrot.slane %v738, %v747
        %v749 = vmul.f32 %v739, %v744
        %v750 = vmul.f32 %v740, %v748
        %v751 = vld [vmem:[#allocation2 + $0x260] sm:$0xff]
        %v752 = vld [vmem:[#allocation2 + $0x268] sm:$0xff]
        %v753 = vlaneseq
        %v754 = vshrl.u32 %v753, 7
        %v755 = vsub.s32 1, %v754
        %v756 = vrot.slane %v737, %v755
        %v757 = vlaneseq
        %v758 = vshrl.u32 %v757, 7
        %v759 = vsub.s32 1, %v758
        %v760 = vrot.slane %v738, %v759
        %v761 = vmul.f32 %v751, %v756
        %v762 = vmul.f32 %v752, %v760
        %v763 = vadd.f32 %v749, %v761
        %v764 = vadd.f32 %v750, %v762
        %v765 = vld [vmem:[#allocation2 + $0x270] sm:$0xff]
        %v766 = vld [vmem:[#allocation2 + $0x278] sm:$0xff]
        %v767 = vlaneseq
        %v768 = vshrl.u32 %v767, 7
        %v769 = vsub.s32 2, %v768
        %v770 = vrot.slane %v737, %v769
        %v771 = vlaneseq
        %v772 = vshrl.u32 %v771, 7
        %v773 = vsub.s32 2, %v772
        %v774 = vrot.slane %v738, %v773
        %v775 = vmul.f32 %v765, %v770
        %v776 = vmul.f32 %v766, %v774
        %v777 = vadd.f32 %v763, %v775
        %v778 = vadd.f32 %v764, %v776
        %v779 = vld [vmem:[#allocation2 + $0x280] sm:$0xff]
        %v780 = vld [vmem:[#allocation2 + $0x288] sm:$0xff]
        %v781 = vlaneseq
        %v782 = vshrl.u32 %v781, 7
        %v783 = vsub.s32 3, %v782
        %v784 = vrot.slane %v737, %v783
        %v785 = vlaneseq
        %v786 = vshrl.u32 %v785, 7
        %v787 = vsub.s32 3, %v786
        %v788 = vrot.slane %v738, %v787
        %v789 = vmul.f32 %v779, %v784
        %v790 = vmul.f32 %v780, %v788
        %v791 = vadd.f32 %v777, %v789
        %v792 = vadd.f32 %v778, %v790
        %v793 = vld [vmem:[#allocation2 + $0x290] sm:$0xff]
        %v794 = vld [vmem:[#allocation2 + $0x298] sm:$0xff]
        %v795 = vlaneseq
        %v796 = vshrl.u32 %v795, 7
        %v797 = vsub.s32 4, %v796
        %v798 = vrot.slane %v737, %v797
        %v799 = vlaneseq
        %v800 = vshrl.u32 %v799, 7
        %v801 = vsub.s32 4, %v800
        %v802 = vrot.slane %v738, %v801
        %v803 = vmul.f32 %v793, %v798
        %v804 = vmul.f32 %v794, %v802
        %v805 = vadd.f32 %v791, %v803
        %v806 = vadd.f32 %v792, %v804
        %v807 = vld [vmem:[#allocation2 + $0x2a0] sm:$0xff]
        %v808 = vld [vmem:[#allocation2 + $0x2a8] sm:$0xff]
        %v809 = vlaneseq
        %v810 = vshrl.u32 %v809, 7
        %v811 = vsub.s32 5, %v810
        %v812 = vrot.slane %v737, %v811
        %v813 = vlaneseq
        %v814 = vshrl.u32 %v813, 7
        %v815 = vsub.s32 5, %v814
        %v816 = vrot.slane %v738, %v815
        %v817 = vmul.f32 %v807, %v812
        %v818 = vmul.f32 %v808, %v816
        %v819 = vadd.f32 %v805, %v817
        %v820 = vadd.f32 %v806, %v818
        %v821 = vld [vmem:[#allocation2 + $0x2b0] sm:$0xff]
        %v822 = vld [vmem:[#allocation2 + $0x2b8] sm:$0xff]
        %v823 = vlaneseq
        %v824 = vshrl.u32 %v823, 7
        %v825 = vsub.s32 6, %v824
        %v826 = vrot.slane %v737, %v825
        %v827 = vlaneseq
        %v828 = vshrl.u32 %v827, 7
        %v829 = vsub.s32 6, %v828
        %v830 = vrot.slane %v738, %v829
        %v831 = vmul.f32 %v821, %v826
        %v832 = vmul.f32 %v822, %v830
        %v833 = vadd.f32 %v819, %v831
        %v834 = vadd.f32 %v820, %v832
        %vm835 = vcmp.gt.f32.partialorder %v833, 0.0
        %vm836 = vcmp.gt.f32.partialorder %v834, 0.0
        %v837 = vmul.f32 %v833, 0.01
        %v838 = vmul.f32 %v834, 0.01
        %v839 = vsel %vm835, %v833, %v837
        %v840 = vsel %vm836, %v834, %v838
        %v841 = vld [vmem:[#allocation2 + $0x2c0] sm:$0xff]
        %v842 = vld [vmem:[#allocation2 + $0x2c8] sm:$0xff]
        %v843 = vlaneseq
        %v844 = vshrl.u32 %v843, 7
        %v845 = vsub.s32 0, %v844
        %v846 = vrot.slane %v839, %v845
        %v847 = vlaneseq
        %v848 = vshrl.u32 %v847, 7
        %v849 = vsub.s32 0, %v848
        %v850 = vrot.slane %v840, %v849
        %v851 = vmul.f32 %v841, %v846
        %v852 = vmul.f32 %v842, %v850
        %v853 = vld [vmem:[#allocation2 + $0x2d0] sm:$0xff]
        %v854 = vld [vmem:[#allocation2 + $0x2d8] sm:$0xff]
        %v855 = vlaneseq
        %v856 = vshrl.u32 %v855, 7
        %v857 = vsub.s32 1, %v856
        %v858 = vrot.slane %v839, %v857
        %v859 = vlaneseq
        %v860 = vshrl.u32 %v859, 7
        %v861 = vsub.s32 1, %v860
        %v862 = vrot.slane %v840, %v861
        %v863 = vmul.f32 %v853, %v858
        %v864 = vmul.f32 %v854, %v862
        %v865 = vadd.f32 %v851, %v863
        %v866 = vadd.f32 %v852, %v864
        %v867 = vld [vmem:[#allocation2 + $0x2e0] sm:$0xff]
        %v868 = vld [vmem:[#allocation2 + $0x2e8] sm:$0xff]
        %v869 = vlaneseq
        %v870 = vshrl.u32 %v869, 7
        %v871 = vsub.s32 2, %v870
        %v872 = vrot.slane %v839, %v871
        %v873 = vlaneseq
        %v874 = vshrl.u32 %v873, 7
        %v875 = vsub.s32 2, %v874
        %v876 = vrot.slane %v840, %v875
        %v877 = vmul.f32 %v867, %v872
        %v878 = vmul.f32 %v868, %v876
        %v879 = vadd.f32 %v865, %v877
        %v880 = vadd.f32 %v866, %v878
        %v881 = vld [vmem:[#allocation2 + $0x2f0] sm:$0xff]
        %v882 = vld [vmem:[#allocation2 + $0x2f8] sm:$0xff]
        %v883 = vlaneseq
        %v884 = vshrl.u32 %v883, 7
        %v885 = vsub.s32 3, %v884
        %v886 = vrot.slane %v839, %v885
        %v887 = vlaneseq
        %v888 = vshrl.u32 %v887, 7
        %v889 = vsub.s32 3, %v888
        %v890 = vrot.slane %v840, %v889
        %v891 = vmul.f32 %v881, %v886
        %v892 = vmul.f32 %v882, %v890
        %v893 = vadd.f32 %v879, %v891
        %v894 = vadd.f32 %v880, %v892
        %v895 = vld [vmem:[#allocation2 + $0x300] sm:$0xff]
        %v896 = vld [vmem:[#allocation2 + $0x308] sm:$0xff]
        %v897 = vlaneseq
        %v898 = vshrl.u32 %v897, 7
        %v899 = vsub.s32 4, %v898
        %v900 = vrot.slane %v839, %v899
        %v901 = vlaneseq
        %v902 = vshrl.u32 %v901, 7
        %v903 = vsub.s32 4, %v902
        %v904 = vrot.slane %v840, %v903
        %v905 = vmul.f32 %v895, %v900
        %v906 = vmul.f32 %v896, %v904
        %v907 = vadd.f32 %v893, %v905
        %v908 = vadd.f32 %v894, %v906
        %v909 = vld [vmem:[#allocation2 + $0x310] sm:$0xff]
        %v910 = vld [vmem:[#allocation2 + $0x318] sm:$0xff]
        %v911 = vlaneseq
        %v912 = vshrl.u32 %v911, 7
        %v913 = vsub.s32 5, %v912
        %v914 = vrot.slane %v839, %v913
        %v915 = vlaneseq
        %v916 = vshrl.u32 %v915, 7
        %v917 = vsub.s32 5, %v916
        %v918 = vrot.slane %v840, %v917
        %v919 = vmul.f32 %v909, %v914
        %v920 = vmul.f32 %v910, %v918
        %v921 = vadd.f32 %v907, %v919
        %v922 = vadd.f32 %v908, %v920
        %v923 = vld [vmem:[#allocation2 + $0x320] sm:$0xff]
        %v924 = vld [vmem:[#allocation2 + $0x328] sm:$0xff]
        %v925 = vlaneseq
        %v926 = vshrl.u32 %v925, 7
        %v927 = vsub.s32 6, %v926
        %v928 = vrot.slane %v839, %v927
        %v929 = vlaneseq
        %v930 = vshrl.u32 %v929, 7
        %v931 = vsub.s32 6, %v930
        %v932 = vrot.slane %v840, %v931
        %v933 = vmul.f32 %v923, %v928
        %v934 = vmul.f32 %v924, %v932
        %v935 = vadd.f32 %v921, %v933
        %v936 = vadd.f32 %v922, %v934
        %vm937 = vcmp.gt.f32.partialorder %v935, 0.0
        %vm938 = vcmp.gt.f32.partialorder %v936, 0.0
        %v939 = vmul.f32 %v935, 0.01
        %v940 = vmul.f32 %v936, 0.01
        %v941 = vsel %vm937, %v935, %v939
        %v942 = vsel %vm938, %v936, %v940
        %v943 = vld [vmem:[#allocation2 + $0x330] sm:$0xff]
        %v944 = vld [vmem:[#allocation2 + $0x338] sm:$0xff]
        %v945 = vlaneseq
        %v946 = vshrl.u32 %v945, 7
        %v947 = vsub.s32 0, %v946
        %v948 = vrot.slane %v941, %v947
        %v949 = vlaneseq
        %v950 = vshrl.u32 %v949, 7
        %v951 = vsub.s32 0, %v950
        %v952 = vrot.slane %v942, %v951
        %v953 = vmul.f32 %v943, %v948
        %v954 = vmul.f32 %v944, %v952
        %v955 = vld [vmem:[#allocation2 + $0x340] sm:$0xff]
        %v956 = vld [vmem:[#allocation2 + $0x348] sm:$0xff]
        %v957 = vlaneseq
        %v958 = vshrl.u32 %v957, 7
        %v959 = vsub.s32 1, %v958
        %v960 = vrot.slane %v941, %v959
        %v961 = vlaneseq
        %v962 = vshrl.u32 %v961, 7
        %v963 = vsub.s32 1, %v962
        %v964 = vrot.slane %v942, %v963
        %v965 = vmul.f32 %v955, %v960
        %v966 = vmul.f32 %v956, %v964
        %v967 = vadd.f32 %v953, %v965
        %v968 = vadd.f32 %v954, %v966
        %v969 = vld [vmem:[#allocation2 + $0x350] sm:$0xff]
        %v970 = vld [vmem:[#allocation2 + $0x358] sm:$0xff]
        %v971 = vlaneseq
        %v972 = vshrl.u32 %v971, 7
        %v973 = vsub.s32 2, %v972
        %v974 = vrot.slane %v941, %v973
        %v975 = vlaneseq
        %v976 = vshrl.u32 %v975, 7
        %v977 = vsub.s32 2, %v976
        %v978 = vrot.slane %v942, %v977
        %v979 = vmul.f32 %v969, %v974
        %v980 = vmul.f32 %v970, %v978
        %v981 = vadd.f32 %v967, %v979
        %v982 = vadd.f32 %v968, %v980
        %v983 = vld [vmem:[#allocation2 + $0x360] sm:$0xff]
        %v984 = vld [vmem:[#allocation2 + $0x368] sm:$0xff]
        %v985 = vlaneseq
        %v986 = vshrl.u32 %v985, 7
        %v987 = vsub.s32 3, %v986
        %v988 = vrot.slane %v941, %v987
        %v989 = vlaneseq
        %v990 = vshrl.u32 %v989, 7
        %v991 = vsub.s32 3, %v990
        %v992 = vrot.slane %v942, %v991
        %v993 = vmul.f32 %v983, %v988
        %v994 = vmul.f32 %v984, %v992
        %v995 = vadd.f32 %v981, %v993
        %v996 = vadd.f32 %v982, %v994
        %v997 = vld [vmem:[#allocation2 + $0x370] sm:$0xff]
        %v998 = vld [vmem:[#allocation2 + $0x378] sm:$0xff]
        %v999 = vlaneseq
        %v1000 = vshrl.u32 %v999, 7
        %v1001 = vsub.s32 4, %v1000
        %v1002 = vrot.slane %v941, %v1001
        %v1003 = vlaneseq
        %v1004 = vshrl.u32 %v1003, 7
        %v1005 = vsub.s32 4, %v1004
        %v1006 = vrot.slane %v942, %v1005
        %v1007 = vmul.f32 %v997, %v1002
        %v1008 = vmul.f32 %v998, %v1006
        %v1009 = vadd.f32 %v995, %v1007
        %v1010 = vadd.f32 %v996, %v1008
        %v1011 = vld [vmem:[#allocation2 + $0x380] sm:$0xff]
        %v1012 = vld [vmem:[#allocation2 + $0x388] sm:$0xff]
        %v1013 = vlaneseq
        %v1014 = vshrl.u32 %v1013, 7
        %v1015 = vsub.s32 5, %v1014
        %v1016 = vrot.slane %v941, %v1015
        %v1017 = vlaneseq
        %v1018 = vshrl.u32 %v1017, 7
        %v1019 = vsub.s32 5, %v1018
        %v1020 = vrot.slane %v942, %v1019
        %v1021 = vmul.f32 %v1011, %v1016
        %v1022 = vmul.f32 %v1012, %v1020
        %v1023 = vadd.f32 %v1009, %v1021
        %v1024 = vadd.f32 %v1010, %v1022
        %v1025 = vld [vmem:[#allocation2 + $0x390] sm:$0xff]
        %v1026 = vld [vmem:[#allocation2 + $0x398] sm:$0xff]
        %v1027 = vlaneseq
        %v1028 = vshrl.u32 %v1027, 7
        %v1029 = vsub.s32 6, %v1028
        %v1030 = vrot.slane %v941, %v1029
        %v1031 = vlaneseq
        %v1032 = vshrl.u32 %v1031, 7
        %v1033 = vsub.s32 6, %v1032
        %v1034 = vrot.slane %v942, %v1033
        %v1035 = vmul.f32 %v1025, %v1030
        %v1036 = vmul.f32 %v1026, %v1034
        %v1037 = vadd.f32 %v1023, %v1035
        %v1038 = vadd.f32 %v1024, %v1036
        %vm1039 = vcmp.gt.f32.partialorder %v1037, 0.0
        %vm1040 = vcmp.gt.f32.partialorder %v1038, 0.0
        %v1041 = vmul.f32 %v1037, 0.01
        %v1042 = vmul.f32 %v1038, 0.01
        %v1043 = vsel %vm1039, %v1037, %v1041
        %v1044 = vsel %vm1040, %v1038, %v1042
        %v1045 = vld [vmem:[#allocation2 + $0x3a0] sm:$0xff]
        %v1046 = vld [vmem:[#allocation2 + $0x3a8] sm:$0xff]
        %v1047 = vlaneseq
        %v1048 = vshrl.u32 %v1047, 7
        %v1049 = vsub.s32 0, %v1048
        %v1050 = vrot.slane %v1043, %v1049
        %v1051 = vlaneseq
        %v1052 = vshrl.u32 %v1051, 7
        %v1053 = vsub.s32 0, %v1052
        %v1054 = vrot.slane %v1044, %v1053
        %v1055 = vmul.f32 %v1045, %v1050
        %v1056 = vmul.f32 %v1046, %v1054
        %v1057 = vld [vmem:[#allocation2 + $0x3b0] sm:$0xff]
        %v1058 = vld [vmem:[#allocation2 + $0x3b8] sm:$0xff]
        %v1059 = vlaneseq
        %v1060 = vshrl.u32 %v1059, 7
        %v1061 = vsub.s32 1, %v1060
        %v1062 = vrot.slane %v1043, %v1061
        %v1063 = vlaneseq
        %v1064 = vshrl.u32 %v1063, 7
        %v1065 = vsub.s32 1, %v1064
        %v1066 = vrot.slane %v1044, %v1065
        %v1067 = vmul.f32 %v1057, %v1062
        %v1068 = vmul.f32 %v1058, %v1066
        %v1069 = vadd.f32 %v1055, %v1067
        %v1070 = vadd.f32 %v1056, %v1068
        %v1071 = vld [vmem:[#allocation2 + $0x3c0] sm:$0xff]
        %v1072 = vld [vmem:[#allocation2 + $0x3c8] sm:$0xff]
        %v1073 = vlaneseq
        %v1074 = vshrl.u32 %v1073, 7
        %v1075 = vsub.s32 2, %v1074
        %v1076 = vrot.slane %v1043, %v1075
        %v1077 = vlaneseq
        %v1078 = vshrl.u32 %v1077, 7
        %v1079 = vsub.s32 2, %v1078
        %v1080 = vrot.slane %v1044, %v1079
        %v1081 = vmul.f32 %v1071, %v1076
        %v1082 = vmul.f32 %v1072, %v1080
        %v1083 = vadd.f32 %v1069, %v1081
        %v1084 = vadd.f32 %v1070, %v1082
        %v1085 = vld [vmem:[#allocation2 + $0x3d0] sm:$0xff]
        %v1086 = vld [vmem:[#allocation2 + $0x3d8] sm:$0xff]
        %v1087 = vlaneseq
        %v1088 = vshrl.u32 %v1087, 7
        %v1089 = vsub.s32 3, %v1088
        %v1090 = vrot.slane %v1043, %v1089
        %v1091 = vlaneseq
        %v1092 = vshrl.u32 %v1091, 7
        %v1093 = vsub.s32 3, %v1092
        %v1094 = vrot.slane %v1044, %v1093
        %v1095 = vmul.f32 %v1085, %v1090
        %v1096 = vmul.f32 %v1086, %v1094
        %v1097 = vadd.f32 %v1083, %v1095
        %v1098 = vadd.f32 %v1084, %v1096
        %v1099 = vld [vmem:[#allocation2 + $0x3e0] sm:$0xff]
        %v1100 = vld [vmem:[#allocation2 + $0x3e8] sm:$0xff]
        %v1101 = vlaneseq
        %v1102 = vshrl.u32 %v1101, 7
        %v1103 = vsub.s32 4, %v1102
        %v1104 = vrot.slane %v1043, %v1103
        %v1105 = vlaneseq
        %v1106 = vshrl.u32 %v1105, 7
        %v1107 = vsub.s32 4, %v1106
        %v1108 = vrot.slane %v1044, %v1107
        %v1109 = vmul.f32 %v1099, %v1104
        %v1110 = vmul.f32 %v1100, %v1108
        %v1111 = vadd.f32 %v1097, %v1109
        %v1112 = vadd.f32 %v1098, %v1110
        %v1113 = vld [vmem:[#allocation2 + $0x3f0] sm:$0xff]
        %v1114 = vld [vmem:[#allocation2 + $0x3f8] sm:$0xff]
        %v1115 = vlaneseq
        %v1116 = vshrl.u32 %v1115, 7
        %v1117 = vsub.s32 5, %v1116
        %v1118 = vrot.slane %v1043, %v1117
        %v1119 = vlaneseq
        %v1120 = vshrl.u32 %v1119, 7
        %v1121 = vsub.s32 5, %v1120
        %v1122 = vrot.slane %v1044, %v1121
        %v1123 = vmul.f32 %v1113, %v1118
        %v1124 = vmul.f32 %v1114, %v1122
        %v1125 = vadd.f32 %v1111, %v1123
        %v1126 = vadd.f32 %v1112, %v1124
        %v1127 = vld [vmem:[#allocation2 + $0x400] sm:$0xff]
        %v1128 = vld [vmem:[#allocation2 + $0x408] sm:$0xff]
        %v1129 = vlaneseq
        %v1130 = vshrl.u32 %v1129, 7
        %v1131 = vsub.s32 6, %v1130
        %v1132 = vrot.slane %v1043, %v1131
        %v1133 = vlaneseq
        %v1134 = vshrl.u32 %v1133, 7
        %v1135 = vsub.s32 6, %v1134
        %v1136 = vrot.slane %v1044, %v1135
        %v1137 = vmul.f32 %v1127, %v1132
        %v1138 = vmul.f32 %v1128, %v1136
        %v1139 = vadd.f32 %v1125, %v1137
        %v1140 = vadd.f32 %v1126, %v1138
        %vm1141 = vcmp.gt.f32.partialorder %v1139, 0.0
        %vm1142 = vcmp.gt.f32.partialorder %v1140, 0.0
        %v1143 = vmul.f32 %v1139, 0.01
        %v1144 = vmul.f32 %v1140, 0.01
        %v1145 = vsel %vm1141, %v1139, %v1143
        %v1146 = vsel %vm1142, %v1140, %v1144
        %v1149 = vcombine.low %v1145, %v1146
        %v1151 = vunpack.c.l.s4 1966171168
        %v1152 = vunpack.c.0.s8 %v1151
        %v1153 = vlaneseq
        %v1154 = vshrl.u32 %v1153, 7
        %v1155 = vsub.s32 %v1152, %v1154
        %v1156 = vrot.slane %v1149, %v1155
        %v1158 = vunpack.c.l.s4 1966171168
        %v1159 = vunpack.c.0.s8 %v1158
        %v1160 = vlaneseq
        %v1161 = vshrl.u32 %v1160, 7
        %v1162 = vsub.s32 %v1159, %v1161
        %v1163 = vrot.slane %v1156, %v1162
        %v1165 = vlaneseq
        %vm1166 = vcmp.ge.s32.totalorder %v1165, 0
        %vm1167 = vcmp.lt.s32.totalorder %v1165, 256
        %vm1168 = vmand %vm1166, %vm1167
        %1169 = vst.msk [vmem:[%s172] sm:$0x3] %vm1168, %v1163
        %v1170 = vld [vmem:[%s152 + $0x4] sm:$0xf]
        %v1171 = vld [vmem:[#allocation2] sm:$0xff]
        %v1172 = vld [vmem:[#allocation2 + $0x8] sm:$0xff]
        %v1174 = vlaneseq
        %v1175 = vshrl.u32 %v1174, 7
        %v1176 = vsub.s32 0, %v1175
        %v1177 = vrot.slane %v1170, %v1176
        %v1178 = vlaneseq
        %v1179 = vshrl.u32 %v1178, 7
        %v1180 = vsub.s32 2, %v1179
        %v1181 = vrot.slane %v1170, %v1180
        %v1184 = vlaneseq
        %v1185 = vshrl.u32 %v1184, 7
        %v1186 = vsub.s32 0, %v1185
        %v1187 = vrot.slane %v1177, %v1186
        %v1188 = vlaneseq
        %v1189 = vshrl.u32 %v1188, 7
        %v1190 = vsub.s32 0, %v1189
        %v1191 = vrot.slane %v1181, %v1190
        %v1192 = vmul.f32 %v1171, %v1187
        %v1193 = vmul.f32 %v1172, %v1191
        %v1194 = vld [vmem:[#allocation2 + $0x10] sm:$0xff]
        %v1195 = vld [vmem:[#allocation2 + $0x18] sm:$0xff]
        %v1196 = vlaneseq
        %v1197 = vshrl.u32 %v1196, 7
        %v1198 = vsub.s32 1, %v1197
        %v1199 = vrot.slane %v1170, %v1198
        %v1200 = vlaneseq
        %v1201 = vshrl.u32 %v1200, 7
        %v1202 = vsub.s32 3, %v1201
        %v1203 = vrot.slane %v1170, %v1202
        %v1206 = vlaneseq
        %v1207 = vshrl.u32 %v1206, 7
        %v1208 = vsub.s32 1, %v1207
        %v1209 = vrot.slane %v1199, %v1208
        %v1210 = vlaneseq
        %v1211 = vshrl.u32 %v1210, 7
        %v1212 = vsub.s32 1, %v1211
        %v1213 = vrot.slane %v1203, %v1212
        %v1214 = vmul.f32 %v1194, %v1209
        %v1215 = vmul.f32 %v1195, %v1213
        %v1216 = vadd.f32 %v1192, %v1214
        %v1217 = vadd.f32 %v1193, %v1215
        %vm1218 = vcmp.gt.f32.partialorder %v1216, 0.0
        %vm1219 = vcmp.gt.f32.partialorder %v1217, 0.0
        %v1220 = vmul.f32 %v1216, 0.01
        %v1221 = vmul.f32 %v1217, 0.01
        %v1222 = vsel %vm1218, %v1216, %v1220
        %v1223 = vsel %vm1219, %v1217, %v1221
        %v1224 = vld [vmem:[#allocation2 + $0x20] sm:$0xff]
        %v1225 = vld [vmem:[#allocation2 + $0x28] sm:$0xff]
        %v1226 = vlaneseq
        %v1227 = vshrl.u32 %v1226, 7
        %v1228 = vsub.s32 0, %v1227
        %v1229 = vrot.slane %v1222, %v1228
        %v1230 = vlaneseq
        %v1231 = vshrl.u32 %v1230, 7
        %v1232 = vsub.s32 0, %v1231
        %v1233 = vrot.slane %v1223, %v1232
        %v1234 = vmul.f32 %v1224, %v1229
        %v1235 = vmul.f32 %v1225, %v1233
        %v1236 = vld [vmem:[#allocation2 + $0x30] sm:$0xff]
        %v1237 = vld [vmem:[#allocation2 + $0x38] sm:$0xff]
        %v1238 = vlaneseq
        %v1239 = vshrl.u32 %v1238, 7
        %v1240 = vsub.s32 1, %v1239
        %v1241 = vrot.slane %v1222, %v1240
        %v1242 = vlaneseq
        %v1243 = vshrl.u32 %v1242, 7
        %v1244 = vsub.s32 1, %v1243
        %v1245 = vrot.slane %v1223, %v1244
        %v1246 = vmul.f32 %v1236, %v1241
        %v1247 = vmul.f32 %v1237, %v1245
        %v1248 = vadd.f32 %v1234, %v1246
        %v1249 = vadd.f32 %v1235, %v1247
        %v1250 = vld [vmem:[#allocation2 + $0x40] sm:$0xff]
        %v1251 = vld [vmem:[#allocation2 + $0x48] sm:$0xff]
        %v1252 = vlaneseq
        %v1253 = vshrl.u32 %v1252, 7
        %v1254 = vsub.s32 2, %v1253
        %v1255 = vrot.slane %v1222, %v1254
        %v1256 = vlaneseq
        %v1257 = vshrl.u32 %v1256, 7
        %v1258 = vsub.s32 2, %v1257
        %v1259 = vrot.slane %v1223, %v1258
        %v1260 = vmul.f32 %v1250, %v1255
        %v1261 = vmul.f32 %v1251, %v1259
        %v1262 = vadd.f32 %v1248, %v1260
        %v1263 = vadd.f32 %v1249, %v1261
        %v1264 = vld [vmem:[#allocation2 + $0x50] sm:$0xff]
        %v1265 = vld [vmem:[#allocation2 + $0x58] sm:$0xff]
        %v1266 = vlaneseq
        %v1267 = vshrl.u32 %v1266, 7
        %v1268 = vsub.s32 3, %v1267
        %v1269 = vrot.slane %v1222, %v1268
        %v1270 = vlaneseq
        %v1271 = vshrl.u32 %v1270, 7
        %v1272 = vsub.s32 3, %v1271
        %v1273 = vrot.slane %v1223, %v1272
        %v1274 = vmul.f32 %v1264, %v1269
        %v1275 = vmul.f32 %v1265, %v1273
        %v1276 = vadd.f32 %v1262, %v1274
        %v1277 = vadd.f32 %v1263, %v1275
        %v1278 = vld [vmem:[#allocation2 + $0x60] sm:$0xff]
        %v1279 = vld [vmem:[#allocation2 + $0x68] sm:$0xff]
        %v1280 = vlaneseq
        %v1281 = vshrl.u32 %v1280, 7
        %v1282 = vsub.s32 4, %v1281
        %v1283 = vrot.slane %v1222, %v1282
        %v1284 = vlaneseq
        %v1285 = vshrl.u32 %v1284, 7
        %v1286 = vsub.s32 4, %v1285
        %v1287 = vrot.slane %v1223, %v1286
        %v1288 = vmul.f32 %v1278, %v1283
        %v1289 = vmul.f32 %v1279, %v1287
        %v1290 = vadd.f32 %v1276, %v1288
        %v1291 = vadd.f32 %v1277, %v1289
        %v1292 = vld [vmem:[#allocation2 + $0x70] sm:$0xff]
        %v1293 = vld [vmem:[#allocation2 + $0x78] sm:$0xff]
        %v1294 = vlaneseq
        %v1295 = vshrl.u32 %v1294, 7
        %v1296 = vsub.s32 5, %v1295
        %v1297 = vrot.slane %v1222, %v1296
        %v1298 = vlaneseq
        %v1299 = vshrl.u32 %v1298, 7
        %v1300 = vsub.s32 5, %v1299
        %v1301 = vrot.slane %v1223, %v1300
        %v1302 = vmul.f32 %v1292, %v1297
        %v1303 = vmul.f32 %v1293, %v1301
        %v1304 = vadd.f32 %v1290, %v1302
        %v1305 = vadd.f32 %v1291, %v1303
        %v1306 = vld [vmem:[#allocation2 + $0x80] sm:$0xff]
        %v1307 = vld [vmem:[#allocation2 + $0x88] sm:$0xff]
        %v1308 = vlaneseq
        %v1309 = vshrl.u32 %v1308, 7
        %v1310 = vsub.s32 6, %v1309
        %v1311 = vrot.slane %v1222, %v1310
        %v1312 = vlaneseq
        %v1313 = vshrl.u32 %v1312, 7
        %v1314 = vsub.s32 6, %v1313
        %v1315 = vrot.slane %v1223, %v1314
        %v1316 = vmul.f32 %v1306, %v1311
        %v1317 = vmul.f32 %v1307, %v1315
        %v1318 = vadd.f32 %v1304, %v1316
        %v1319 = vadd.f32 %v1305, %v1317
        %vm1320 = vcmp.gt.f32.partialorder %v1318, 0.0
        %vm1321 = vcmp.gt.f32.partialorder %v1319, 0.0
        %v1322 = vmul.f32 %v1318, 0.01
        %v1323 = vmul.f32 %v1319, 0.01
        %v1324 = vsel %vm1320, %v1318, %v1322
        %v1325 = vsel %vm1321, %v1319, %v1323
        %v1326 = vld [vmem:[#allocation2 + $0x90] sm:$0xff]
        %v1327 = vld [vmem:[#allocation2 + $0x98] sm:$0xff]
        %v1328 = vlaneseq
        %v1329 = vshrl.u32 %v1328, 7
        %v1330 = vsub.s32 0, %v1329
        %v1331 = vrot.slane %v1324, %v1330
        %v1332 = vlaneseq
        %v1333 = vshrl.u32 %v1332, 7
        %v1334 = vsub.s32 0, %v1333
        %v1335 = vrot.slane %v1325, %v1334
        %v1336 = vmul.f32 %v1326, %v1331
        %v1337 = vmul.f32 %v1327, %v1335
        %v1338 = vld [vmem:[#allocation2 + $0xa0] sm:$0xff]
        %v1339 = vld [vmem:[#allocation2 + $0xa8] sm:$0xff]
        %v1340 = vlaneseq
        %v1341 = vshrl.u32 %v1340, 7
        %v1342 = vsub.s32 1, %v1341
        %v1343 = vrot.slane %v1324, %v1342
        %v1344 = vlaneseq
        %v1345 = vshrl.u32 %v1344, 7
        %v1346 = vsub.s32 1, %v1345
        %v1347 = vrot.slane %v1325, %v1346
        %v1348 = vmul.f32 %v1338, %v1343
        %v1349 = vmul.f32 %v1339, %v1347
        %v1350 = vadd.f32 %v1336, %v1348
        %v1351 = vadd.f32 %v1337, %v1349
        %v1352 = vld [vmem:[#allocation2 + $0xb0] sm:$0xff]
        %v1353 = vld [vmem:[#allocation2 + $0xb8] sm:$0xff]
        %v1354 = vlaneseq
        %v1355 = vshrl.u32 %v1354, 7
        %v1356 = vsub.s32 2, %v1355
        %v1357 = vrot.slane %v1324, %v1356
        %v1358 = vlaneseq
        %v1359 = vshrl.u32 %v1358, 7
        %v1360 = vsub.s32 2, %v1359
        %v1361 = vrot.slane %v1325, %v1360
        %v1362 = vmul.f32 %v1352, %v1357
        %v1363 = vmul.f32 %v1353, %v1361
        %v1364 = vadd.f32 %v1350, %v1362
        %v1365 = vadd.f32 %v1351, %v1363
        %v1366 = vld [vmem:[#allocation2 + $0xc0] sm:$0xff]
        %v1367 = vld [vmem:[#allocation2 + $0xc8] sm:$0xff]
        %v1368 = vlaneseq
        %v1369 = vshrl.u32 %v1368, 7
        %v1370 = vsub.s32 3, %v1369
        %v1371 = vrot.slane %v1324, %v1370
        %v1372 = vlaneseq
        %v1373 = vshrl.u32 %v1372, 7
        %v1374 = vsub.s32 3, %v1373
        %v1375 = vrot.slane %v1325, %v1374
        %v1376 = vmul.f32 %v1366, %v1371
        %v1377 = vmul.f32 %v1367, %v1375
        %v1378 = vadd.f32 %v1364, %v1376
        %v1379 = vadd.f32 %v1365, %v1377
        %v1380 = vld [vmem:[#allocation2 + $0xd0] sm:$0xff]
        %v1381 = vld [vmem:[#allocation2 + $0xd8] sm:$0xff]
        %v1382 = vlaneseq
        %v1383 = vshrl.u32 %v1382, 7
        %v1384 = vsub.s32 4, %v1383
        %v1385 = vrot.slane %v1324, %v1384
        %v1386 = vlaneseq
        %v1387 = vshrl.u32 %v1386, 7
        %v1388 = vsub.s32 4, %v1387
        %v1389 = vrot.slane %v1325, %v1388
        %v1390 = vmul.f32 %v1380, %v1385
        %v1391 = vmul.f32 %v1381, %v1389
        %v1392 = vadd.f32 %v1378, %v1390
        %v1393 = vadd.f32 %v1379, %v1391
        %v1394 = vld [vmem:[#allocation2 + $0xe0] sm:$0xff]
        %v1395 = vld [vmem:[#allocation2 + $0xe8] sm:$0xff]
        %v1396 = vlaneseq
        %v1397 = vshrl.u32 %v1396, 7
        %v1398 = vsub.s32 5, %v1397
        %v1399 = vrot.slane %v1324, %v1398
        %v1400 = vlaneseq
        %v1401 = vshrl.u32 %v1400, 7
        %v1402 = vsub.s32 5, %v1401
        %v1403 = vrot.slane %v1325, %v1402
        %v1404 = vmul.f32 %v1394, %v1399
        %v1405 = vmul.f32 %v1395, %v1403
        %v1406 = vadd.f32 %v1392, %v1404
        %v1407 = vadd.f32 %v1393, %v1405
        %v1408 = vld [vmem:[#allocation2 + $0xf0] sm:$0xff]
        %v1409 = vld [vmem:[#allocation2 + $0xf8] sm:$0xff]
        %v1410 = vlaneseq
        %v1411 = vshrl.u32 %v1410, 7
        %v1412 = vsub.s32 6, %v1411
        %v1413 = vrot.slane %v1324, %v1412
        %v1414 = vlaneseq
        %v1415 = vshrl.u32 %v1414, 7
        %v1416 = vsub.s32 6, %v1415
        %v1417 = vrot.slane %v1325, %v1416
        %v1418 = vmul.f32 %v1408, %v1413
        %v1419 = vmul.f32 %v1409, %v1417
        %v1420 = vadd.f32 %v1406, %v1418
        %v1421 = vadd.f32 %v1407, %v1419
        %vm1422 = vcmp.gt.f32.partialorder %v1420, 0.0
        %vm1423 = vcmp.gt.f32.partialorder %v1421, 0.0
        %v1424 = vmul.f32 %v1420, 0.01
        %v1425 = vmul.f32 %v1421, 0.01
        %v1426 = vsel %vm1422, %v1420, %v1424
        %v1427 = vsel %vm1423, %v1421, %v1425
        %v1428 = vld [vmem:[#allocation2 + $0x100] sm:$0xff]
        %v1429 = vld [vmem:[#allocation2 + $0x108] sm:$0xff]
        %v1430 = vlaneseq
        %v1431 = vshrl.u32 %v1430, 7
        %v1432 = vsub.s32 0, %v1431
        %v1433 = vrot.slane %v1426, %v1432
        %v1434 = vlaneseq
        %v1435 = vshrl.u32 %v1434, 7
        %v1436 = vsub.s32 0, %v1435
        %v1437 = vrot.slane %v1427, %v1436
        %v1438 = vmul.f32 %v1428, %v1433
        %v1439 = vmul.f32 %v1429, %v1437
        %v1440 = vld [vmem:[#allocation2 + $0x110] sm:$0xff]
        %v1441 = vld [vmem:[#allocation2 + $0x118] sm:$0xff]
        %v1442 = vlaneseq
        %v1443 = vshrl.u32 %v1442, 7
        %v1444 = vsub.s32 1, %v1443
        %v1445 = vrot.slane %v1426, %v1444
        %v1446 = vlaneseq
        %v1447 = vshrl.u32 %v1446, 7
        %v1448 = vsub.s32 1, %v1447
        %v1449 = vrot.slane %v1427, %v1448
        %v1450 = vmul.f32 %v1440, %v1445
        %v1451 = vmul.f32 %v1441, %v1449
        %v1452 = vadd.f32 %v1438, %v1450
        %v1453 = vadd.f32 %v1439, %v1451
        %v1454 = vld [vmem:[#allocation2 + $0x120] sm:$0xff]
        %v1455 = vld [vmem:[#allocation2 + $0x128] sm:$0xff]
        %v1456 = vlaneseq
        %v1457 = vshrl.u32 %v1456, 7
        %v1458 = vsub.s32 2, %v1457
        %v1459 = vrot.slane %v1426, %v1458
        %v1460 = vlaneseq
        %v1461 = vshrl.u32 %v1460, 7
        %v1462 = vsub.s32 2, %v1461
        %v1463 = vrot.slane %v1427, %v1462
        %v1464 = vmul.f32 %v1454, %v1459
        %v1465 = vmul.f32 %v1455, %v1463
        %v1466 = vadd.f32 %v1452, %v1464
        %v1467 = vadd.f32 %v1453, %v1465
        %v1468 = vld [vmem:[#allocation2 + $0x130] sm:$0xff]
        %v1469 = vld [vmem:[#allocation2 + $0x138] sm:$0xff]
        %v1470 = vlaneseq
        %v1471 = vshrl.u32 %v1470, 7
        %v1472 = vsub.s32 3, %v1471
        %v1473 = vrot.slane %v1426, %v1472
        %v1474 = vlaneseq
        %v1475 = vshrl.u32 %v1474, 7
        %v1476 = vsub.s32 3, %v1475
        %v1477 = vrot.slane %v1427, %v1476
        %v1478 = vmul.f32 %v1468, %v1473
        %v1479 = vmul.f32 %v1469, %v1477
        %v1480 = vadd.f32 %v1466, %v1478
        %v1481 = vadd.f32 %v1467, %v1479
        %v1482 = vld [vmem:[#allocation2 + $0x140] sm:$0xff]
        %v1483 = vld [vmem:[#allocation2 + $0x148] sm:$0xff]
        %v1484 = vlaneseq
        %v1485 = vshrl.u32 %v1484, 7
        %v1486 = vsub.s32 4, %v1485
        %v1487 = vrot.slane %v1426, %v1486
        %v1488 = vlaneseq
        %v1489 = vshrl.u32 %v1488, 7
        %v1490 = vsub.s32 4, %v1489
        %v1491 = vrot.slane %v1427, %v1490
        %v1492 = vmul.f32 %v1482, %v1487
        %v1493 = vmul.f32 %v1483, %v1491
        %v1494 = vadd.f32 %v1480, %v1492
        %v1495 = vadd.f32 %v1481, %v1493
        %v1496 = vld [vmem:[#allocation2 + $0x150] sm:$0xff]
        %v1497 = vld [vmem:[#allocation2 + $0x158] sm:$0xff]
        %v1498 = vlaneseq
        %v1499 = vshrl.u32 %v1498, 7
        %v1500 = vsub.s32 5, %v1499
        %v1501 = vrot.slane %v1426, %v1500
        %v1502 = vlaneseq
        %v1503 = vshrl.u32 %v1502, 7
        %v1504 = vsub.s32 5, %v1503
        %v1505 = vrot.slane %v1427, %v1504
        %v1506 = vmul.f32 %v1496, %v1501
        %v1507 = vmul.f32 %v1497, %v1505
        %v1508 = vadd.f32 %v1494, %v1506
        %v1509 = vadd.f32 %v1495, %v1507
        %v1510 = vld [vmem:[#allocation2 + $0x160] sm:$0xff]
        %v1511 = vld [vmem:[#allocation2 + $0x168] sm:$0xff]
        %v1512 = vlaneseq
        %v1513 = vshrl.u32 %v1512, 7
        %v1514 = vsub.s32 6, %v1513
        %v1515 = vrot.slane %v1426, %v1514
        %v1516 = vlaneseq
        %v1517 = vshrl.u32 %v1516, 7
        %v1518 = vsub.s32 6, %v1517
        %v1519 = vrot.slane %v1427, %v1518
        %v1520 = vmul.f32 %v1510, %v1515
        %v1521 = vmul.f32 %v1511, %v1519
        %v1522 = vadd.f32 %v1508, %v1520
        %v1523 = vadd.f32 %v1509, %v1521
        %vm1524 = vcmp.gt.f32.partialorder %v1522, 0.0
        %vm1525 = vcmp.gt.f32.partialorder %v1523, 0.0
        %v1526 = vmul.f32 %v1522, 0.01
        %v1527 = vmul.f32 %v1523, 0.01
        %v1528 = vsel %vm1524, %v1522, %v1526
        %v1529 = vsel %vm1525, %v1523, %v1527
        %v1530 = vld [vmem:[#allocation2 + $0x170] sm:$0xff]
        %v1531 = vld [vmem:[#allocation2 + $0x178] sm:$0xff]
        %v1532 = vlaneseq
        %v1533 = vshrl.u32 %v1532, 7
        %v1534 = vsub.s32 0, %v1533
        %v1535 = vrot.slane %v1528, %v1534
        %v1536 = vlaneseq
        %v1537 = vshrl.u32 %v1536, 7
        %v1538 = vsub.s32 0, %v1537
        %v1539 = vrot.slane %v1529, %v1538
        %v1540 = vmul.f32 %v1530, %v1535
        %v1541 = vmul.f32 %v1531, %v1539
        %v1542 = vld [vmem:[#allocation2 + $0x180] sm:$0xff]
        %v1543 = vld [vmem:[#allocation2 + $0x188] sm:$0xff]
        %v1544 = vlaneseq
        %v1545 = vshrl.u32 %v1544, 7
        %v1546 = vsub.s32 1, %v1545
        %v1547 = vrot.slane %v1528, %v1546
        %v1548 = vlaneseq
        %v1549 = vshrl.u32 %v1548, 7
        %v1550 = vsub.s32 1, %v1549
        %v1551 = vrot.slane %v1529, %v1550
        %v1552 = vmul.f32 %v1542, %v1547
        %v1553 = vmul.f32 %v1543, %v1551
        %v1554 = vadd.f32 %v1540, %v1552
        %v1555 = vadd.f32 %v1541, %v1553
        %v1556 = vld [vmem:[#allocation2 + $0x190] sm:$0xff]
        %v1557 = vld [vmem:[#allocation2 + $0x198] sm:$0xff]
        %v1558 = vlaneseq
        %v1559 = vshrl.u32 %v1558, 7
        %v1560 = vsub.s32 2, %v1559
        %v1561 = vrot.slane %v1528, %v1560
        %v1562 = vlaneseq
        %v1563 = vshrl.u32 %v1562, 7
        %v1564 = vsub.s32 2, %v1563
        %v1565 = vrot.slane %v1529, %v1564
        %v1566 = vmul.f32 %v1556, %v1561
        %v1567 = vmul.f32 %v1557, %v1565
        %v1568 = vadd.f32 %v1554, %v1566
        %v1569 = vadd.f32 %v1555, %v1567
        %v1570 = vld [vmem:[#allocation2 + $0x1a0] sm:$0xff]
        %v1571 = vld [vmem:[#allocation2 + $0x1a8] sm:$0xff]
        %v1572 = vlaneseq
        %v1573 = vshrl.u32 %v1572, 7
        %v1574 = vsub.s32 3, %v1573
        %v1575 = vrot.slane %v1528, %v1574
        %v1576 = vlaneseq
        %v1577 = vshrl.u32 %v1576, 7
        %v1578 = vsub.s32 3, %v1577
        %v1579 = vrot.slane %v1529, %v1578
        %v1580 = vmul.f32 %v1570, %v1575
        %v1581 = vmul.f32 %v1571, %v1579
        %v1582 = vadd.f32 %v1568, %v1580
        %v1583 = vadd.f32 %v1569, %v1581
        %v1584 = vld [vmem:[#allocation2 + $0x1b0] sm:$0xff]
        %v1585 = vld [vmem:[#allocation2 + $0x1b8] sm:$0xff]
        %v1586 = vlaneseq
        %v1587 = vshrl.u32 %v1586, 7
        %v1588 = vsub.s32 4, %v1587
        %v1589 = vrot.slane %v1528, %v1588
        %v1590 = vlaneseq
        %v1591 = vshrl.u32 %v1590, 7
        %v1592 = vsub.s32 4, %v1591
        %v1593 = vrot.slane %v1529, %v1592
        %v1594 = vmul.f32 %v1584, %v1589
        %v1595 = vmul.f32 %v1585, %v1593
        %v1596 = vadd.f32 %v1582, %v1594
        %v1597 = vadd.f32 %v1583, %v1595
        %v1598 = vld [vmem:[#allocation2 + $0x1c0] sm:$0xff]
        %v1599 = vld [vmem:[#allocation2 + $0x1c8] sm:$0xff]
        %v1600 = vlaneseq
        %v1601 = vshrl.u32 %v1600, 7
        %v1602 = vsub.s32 5, %v1601
        %v1603 = vrot.slane %v1528, %v1602
        %v1604 = vlaneseq
        %v1605 = vshrl.u32 %v1604, 7
        %v1606 = vsub.s32 5, %v1605
        %v1607 = vrot.slane %v1529, %v1606
        %v1608 = vmul.f32 %v1598, %v1603
        %v1609 = vmul.f32 %v1599, %v1607
        %v1610 = vadd.f32 %v1596, %v1608
        %v1611 = vadd.f32 %v1597, %v1609
        %v1612 = vld [vmem:[#allocation2 + $0x1d0] sm:$0xff]
        %v1613 = vld [vmem:[#allocation2 + $0x1d8] sm:$0xff]
        %v1614 = vlaneseq
        %v1615 = vshrl.u32 %v1614, 7
        %v1616 = vsub.s32 6, %v1615
        %v1617 = vrot.slane %v1528, %v1616
        %v1618 = vlaneseq
        %v1619 = vshrl.u32 %v1618, 7
        %v1620 = vsub.s32 6, %v1619
        %v1621 = vrot.slane %v1529, %v1620
        %v1622 = vmul.f32 %v1612, %v1617
        %v1623 = vmul.f32 %v1613, %v1621
        %v1624 = vadd.f32 %v1610, %v1622
        %v1625 = vadd.f32 %v1611, %v1623
        %vm1626 = vcmp.gt.f32.partialorder %v1624, 0.0
        %vm1627 = vcmp.gt.f32.partialorder %v1625, 0.0
        %v1628 = vmul.f32 %v1624, 0.01
        %v1629 = vmul.f32 %v1625, 0.01
        %v1630 = vsel %vm1626, %v1624, %v1628
        %v1631 = vsel %vm1627, %v1625, %v1629
        %v1632 = vld [vmem:[#allocation2 + $0x1e0] sm:$0xff]
        %v1633 = vld [vmem:[#allocation2 + $0x1e8] sm:$0xff]
        %v1634 = vlaneseq
        %v1635 = vshrl.u32 %v1634, 7
        %v1636 = vsub.s32 0, %v1635
        %v1637 = vrot.slane %v1630, %v1636
        %v1638 = vlaneseq
        %v1639 = vshrl.u32 %v1638, 7
        %v1640 = vsub.s32 0, %v1639
        %v1641 = vrot.slane %v1631, %v1640
        %v1642 = vmul.f32 %v1632, %v1637
        %v1643 = vmul.f32 %v1633, %v1641
        %v1644 = vld [vmem:[#allocation2 + $0x1f0] sm:$0xff]
        %v1645 = vld [vmem:[#allocation2 + $0x1f8] sm:$0xff]
        %v1646 = vlaneseq
        %v1647 = vshrl.u32 %v1646, 7
        %v1648 = vsub.s32 1, %v1647
        %v1649 = vrot.slane %v1630, %v1648
        %v1650 = vlaneseq
        %v1651 = vshrl.u32 %v1650, 7
        %v1652 = vsub.s32 1, %v1651
        %v1653 = vrot.slane %v1631, %v1652
        %v1654 = vmul.f32 %v1644, %v1649
        %v1655 = vmul.f32 %v1645, %v1653
        %v1656 = vadd.f32 %v1642, %v1654
        %v1657 = vadd.f32 %v1643, %v1655
        %v1658 = vld [vmem:[#allocation2 + $0x200] sm:$0xff]
        %v1659 = vld [vmem:[#allocation2 + $0x208] sm:$0xff]
        %v1660 = vlaneseq
        %v1661 = vshrl.u32 %v1660, 7
        %v1662 = vsub.s32 2, %v1661
        %v1663 = vrot.slane %v1630, %v1662
        %v1664 = vlaneseq
        %v1665 = vshrl.u32 %v1664, 7
        %v1666 = vsub.s32 2, %v1665
        %v1667 = vrot.slane %v1631, %v1666
        %v1668 = vmul.f32 %v1658, %v1663
        %v1669 = vmul.f32 %v1659, %v1667
        %v1670 = vadd.f32 %v1656, %v1668
        %v1671 = vadd.f32 %v1657, %v1669
        %v1672 = vld [vmem:[#allocation2 + $0x210] sm:$0xff]
        %v1673 = vld [vmem:[#allocation2 + $0x218] sm:$0xff]
        %v1674 = vlaneseq
        %v1675 = vshrl.u32 %v1674, 7
        %v1676 = vsub.s32 3, %v1675
        %v1677 = vrot.slane %v1630, %v1676
        %v1678 = vlaneseq
        %v1679 = vshrl.u32 %v1678, 7
        %v1680 = vsub.s32 3, %v1679
        %v1681 = vrot.slane %v1631, %v1680
        %v1682 = vmul.f32 %v1672, %v1677
        %v1683 = vmul.f32 %v1673, %v1681
        %v1684 = vadd.f32 %v1670, %v1682
        %v1685 = vadd.f32 %v1671, %v1683
        %v1686 = vld [vmem:[#allocation2 + $0x220] sm:$0xff]
        %v1687 = vld [vmem:[#allocation2 + $0x228] sm:$0xff]
        %v1688 = vlaneseq
        %v1689 = vshrl.u32 %v1688, 7
        %v1690 = vsub.s32 4, %v1689
        %v1691 = vrot.slane %v1630, %v1690
        %v1692 = vlaneseq
        %v1693 = vshrl.u32 %v1692, 7
        %v1694 = vsub.s32 4, %v1693
        %v1695 = vrot.slane %v1631, %v1694
        %v1696 = vmul.f32 %v1686, %v1691
        %v1697 = vmul.f32 %v1687, %v1695
        %v1698 = vadd.f32 %v1684, %v1696
        %v1699 = vadd.f32 %v1685, %v1697
        %v1700 = vld [vmem:[#allocation2 + $0x230] sm:$0xff]
        %v1701 = vld [vmem:[#allocation2 + $0x238] sm:$0xff]
        %v1702 = vlaneseq
        %v1703 = vshrl.u32 %v1702, 7
        %v1704 = vsub.s32 5, %v1703
        %v1705 = vrot.slane %v1630, %v1704
        %v1706 = vlaneseq
        %v1707 = vshrl.u32 %v1706, 7
        %v1708 = vsub.s32 5, %v1707
        %v1709 = vrot.slane %v1631, %v1708
        %v1710 = vmul.f32 %v1700, %v1705
        %v1711 = vmul.f32 %v1701, %v1709
        %v1712 = vadd.f32 %v1698, %v1710
        %v1713 = vadd.f32 %v1699, %v1711
        %v1714 = vld [vmem:[#allocation2 + $0x240] sm:$0xff]
        %v1715 = vld [vmem:[#allocation2 + $0x248] sm:$0xff]
        %v1716 = vlaneseq
        %v1717 = vshrl.u32 %v1716, 7
        %v1718 = vsub.s32 6, %v1717
        %v1719 = vrot.slane %v1630, %v1718
        %v1720 = vlaneseq
        %v1721 = vshrl.u32 %v1720, 7
        %v1722 = vsub.s32 6, %v1721
        %v1723 = vrot.slane %v1631, %v1722
        %v1724 = vmul.f32 %v1714, %v1719
        %v1725 = vmul.f32 %v1715, %v1723
        %v1726 = vadd.f32 %v1712, %v1724
        %v1727 = vadd.f32 %v1713, %v1725
        %vm1728 = vcmp.gt.f32.partialorder %v1726, 0.0
        %vm1729 = vcmp.gt.f32.partialorder %v1727, 0.0
        %v1730 = vmul.f32 %v1726, 0.01
        %v1731 = vmul.f32 %v1727, 0.01
        %v1732 = vsel %vm1728, %v1726, %v1730
        %v1733 = vsel %vm1729, %v1727, %v1731
        %v1734 = vld [vmem:[#allocation2 + $0x250] sm:$0xff]
        %v1735 = vld [vmem:[#allocation2 + $0x258] sm:$0xff]
        %v1736 = vlaneseq
        %v1737 = vshrl.u32 %v1736, 7
        %v1738 = vsub.s32 0, %v1737
        %v1739 = vrot.slane %v1732, %v1738
        %v1740 = vlaneseq
        %v1741 = vshrl.u32 %v1740, 7
        %v1742 = vsub.s32 0, %v1741
        %v1743 = vrot.slane %v1733, %v1742
        %v1744 = vmul.f32 %v1734, %v1739
        %v1745 = vmul.f32 %v1735, %v1743
        %v1746 = vld [vmem:[#allocation2 + $0x260] sm:$0xff]
        %v1747 = vld [vmem:[#allocation2 + $0x268] sm:$0xff]
        %v1748 = vlaneseq
        %v1749 = vshrl.u32 %v1748, 7
        %v1750 = vsub.s32 1, %v1749
        %v1751 = vrot.slane %v1732, %v1750
        %v1752 = vlaneseq
        %v1753 = vshrl.u32 %v1752, 7
        %v1754 = vsub.s32 1, %v1753
        %v1755 = vrot.slane %v1733, %v1754
        %v1756 = vmul.f32 %v1746, %v1751
        %v1757 = vmul.f32 %v1747, %v1755
        %v1758 = vadd.f32 %v1744, %v1756
        %v1759 = vadd.f32 %v1745, %v1757
        %v1760 = vld [vmem:[#allocation2 + $0x270] sm:$0xff]
        %v1761 = vld [vmem:[#allocation2 + $0x278] sm:$0xff]
        %v1762 = vlaneseq
        %v1763 = vshrl.u32 %v1762, 7
        %v1764 = vsub.s32 2, %v1763
        %v1765 = vrot.slane %v1732, %v1764
        %v1766 = vlaneseq
        %v1767 = vshrl.u32 %v1766, 7
        %v1768 = vsub.s32 2, %v1767
        %v1769 = vrot.slane %v1733, %v1768
        %v1770 = vmul.f32 %v1760, %v1765
        %v1771 = vmul.f32 %v1761, %v1769
        %v1772 = vadd.f32 %v1758, %v1770
        %v1773 = vadd.f32 %v1759, %v1771
        %v1774 = vld [vmem:[#allocation2 + $0x280] sm:$0xff]
        %v1775 = vld [vmem:[#allocation2 + $0x288] sm:$0xff]
        %v1776 = vlaneseq
        %v1777 = vshrl.u32 %v1776, 7
        %v1778 = vsub.s32 3, %v1777
        %v1779 = vrot.slane %v1732, %v1778
        %v1780 = vlaneseq
        %v1781 = vshrl.u32 %v1780, 7
        %v1782 = vsub.s32 3, %v1781
        %v1783 = vrot.slane %v1733, %v1782
        %v1784 = vmul.f32 %v1774, %v1779
        %v1785 = vmul.f32 %v1775, %v1783
        %v1786 = vadd.f32 %v1772, %v1784
        %v1787 = vadd.f32 %v1773, %v1785
        %v1788 = vld [vmem:[#allocation2 + $0x290] sm:$0xff]
        %v1789 = vld [vmem:[#allocation2 + $0x298] sm:$0xff]
        %v1790 = vlaneseq
        %v1791 = vshrl.u32 %v1790, 7
        %v1792 = vsub.s32 4, %v1791
        %v1793 = vrot.slane %v1732, %v1792
        %v1794 = vlaneseq
        %v1795 = vshrl.u32 %v1794, 7
        %v1796 = vsub.s32 4, %v1795
        %v1797 = vrot.slane %v1733, %v1796
        %v1798 = vmul.f32 %v1788, %v1793
        %v1799 = vmul.f32 %v1789, %v1797
        %v1800 = vadd.f32 %v1786, %v1798
        %v1801 = vadd.f32 %v1787, %v1799
        %v1802 = vld [vmem:[#allocation2 + $0x2a0] sm:$0xff]
        %v1803 = vld [vmem:[#allocation2 + $0x2a8] sm:$0xff]
        %v1804 = vlaneseq
        %v1805 = vshrl.u32 %v1804, 7
        %v1806 = vsub.s32 5, %v1805
        %v1807 = vrot.slane %v1732, %v1806
        %v1808 = vlaneseq
        %v1809 = vshrl.u32 %v1808, 7
        %v1810 = vsub.s32 5, %v1809
        %v1811 = vrot.slane %v1733, %v1810
        %v1812 = vmul.f32 %v1802, %v1807
        %v1813 = vmul.f32 %v1803, %v1811
        %v1814 = vadd.f32 %v1800, %v1812
        %v1815 = vadd.f32 %v1801, %v1813
        %v1816 = vld [vmem:[#allocation2 + $0x2b0] sm:$0xff]
        %v1817 = vld [vmem:[#allocation2 + $0x2b8] sm:$0xff]
        %v1818 = vlaneseq
        %v1819 = vshrl.u32 %v1818, 7
        %v1820 = vsub.s32 6, %v1819
        %v1821 = vrot.slane %v1732, %v1820
        %v1822 = vlaneseq
        %v1823 = vshrl.u32 %v1822, 7
        %v1824 = vsub.s32 6, %v1823
        %v1825 = vrot.slane %v1733, %v1824
        %v1826 = vmul.f32 %v1816, %v1821
        %v1827 = vmul.f32 %v1817, %v1825
        %v1828 = vadd.f32 %v1814, %v1826
        %v1829 = vadd.f32 %v1815, %v1827
        %vm1830 = vcmp.gt.f32.partialorder %v1828, 0.0
        %vm1831 = vcmp.gt.f32.partialorder %v1829, 0.0
        %v1832 = vmul.f32 %v1828, 0.01
        %v1833 = vmul.f32 %v1829, 0.01
        %v1834 = vsel %vm1830, %v1828, %v1832
        %v1835 = vsel %vm1831, %v1829, %v1833
        %v1836 = vld [vmem:[#allocation2 + $0x2c0] sm:$0xff]
        %v1837 = vld [vmem:[#allocation2 + $0x2c8] sm:$0xff]
        %v1838 = vlaneseq
        %v1839 = vshrl.u32 %v1838, 7
        %v1840 = vsub.s32 0, %v1839
        %v1841 = vrot.slane %v1834, %v1840
        %v1842 = vlaneseq
        %v1843 = vshrl.u32 %v1842, 7
        %v1844 = vsub.s32 0, %v1843
        %v1845 = vrot.slane %v1835, %v1844
        %v1846 = vmul.f32 %v1836, %v1841
        %v1847 = vmul.f32 %v1837, %v1845
        %v1848 = vld [vmem:[#allocation2 + $0x2d0] sm:$0xff]
        %v1849 = vld [vmem:[#allocation2 + $0x2d8] sm:$0xff]
        %v1850 = vlaneseq
        %v1851 = vshrl.u32 %v1850, 7
        %v1852 = vsub.s32 1, %v1851
        %v1853 = vrot.slane %v1834, %v1852
        %v1854 = vlaneseq
        %v1855 = vshrl.u32 %v1854, 7
        %v1856 = vsub.s32 1, %v1855
        %v1857 = vrot.slane %v1835, %v1856
        %v1858 = vmul.f32 %v1848, %v1853
        %v1859 = vmul.f32 %v1849, %v1857
        %v1860 = vadd.f32 %v1846, %v1858
        %v1861 = vadd.f32 %v1847, %v1859
        %v1862 = vld [vmem:[#allocation2 + $0x2e0] sm:$0xff]
        %v1863 = vld [vmem:[#allocation2 + $0x2e8] sm:$0xff]
        %v1864 = vlaneseq
        %v1865 = vshrl.u32 %v1864, 7
        %v1866 = vsub.s32 2, %v1865
        %v1867 = vrot.slane %v1834, %v1866
        %v1868 = vlaneseq
        %v1869 = vshrl.u32 %v1868, 7
        %v1870 = vsub.s32 2, %v1869
        %v1871 = vrot.slane %v1835, %v1870
        %v1872 = vmul.f32 %v1862, %v1867
        %v1873 = vmul.f32 %v1863, %v1871
        %v1874 = vadd.f32 %v1860, %v1872
        %v1875 = vadd.f32 %v1861, %v1873
        %v1876 = vld [vmem:[#allocation2 + $0x2f0] sm:$0xff]
        %v1877 = vld [vmem:[#allocation2 + $0x2f8] sm:$0xff]
        %v1878 = vlaneseq
        %v1879 = vshrl.u32 %v1878, 7
        %v1880 = vsub.s32 3, %v1879
        %v1881 = vrot.slane %v1834, %v1880
        %v1882 = vlaneseq
        %v1883 = vshrl.u32 %v1882, 7
        %v1884 = vsub.s32 3, %v1883
        %v1885 = vrot.slane %v1835, %v1884
        %v1886 = vmul.f32 %v1876, %v1881
        %v1887 = vmul.f32 %v1877, %v1885
        %v1888 = vadd.f32 %v1874, %v1886
        %v1889 = vadd.f32 %v1875, %v1887
        %v1890 = vld [vmem:[#allocation2 + $0x300] sm:$0xff]
        %v1891 = vld [vmem:[#allocation2 + $0x308] sm:$0xff]
        %v1892 = vlaneseq
        %v1893 = vshrl.u32 %v1892, 7
        %v1894 = vsub.s32 4, %v1893
        %v1895 = vrot.slane %v1834, %v1894
        %v1896 = vlaneseq
        %v1897 = vshrl.u32 %v1896, 7
        %v1898 = vsub.s32 4, %v1897
        %v1899 = vrot.slane %v1835, %v1898
        %v1900 = vmul.f32 %v1890, %v1895
        %v1901 = vmul.f32 %v1891, %v1899
        %v1902 = vadd.f32 %v1888, %v1900
        %v1903 = vadd.f32 %v1889, %v1901
        %v1904 = vld [vmem:[#allocation2 + $0x310] sm:$0xff]
        %v1905 = vld [vmem:[#allocation2 + $0x318] sm:$0xff]
        %v1906 = vlaneseq
        %v1907 = vshrl.u32 %v1906, 7
        %v1908 = vsub.s32 5, %v1907
        %v1909 = vrot.slane %v1834, %v1908
        %v1910 = vlaneseq
        %v1911 = vshrl.u32 %v1910, 7
        %v1912 = vsub.s32 5, %v1911
        %v1913 = vrot.slane %v1835, %v1912
        %v1914 = vmul.f32 %v1904, %v1909
        %v1915 = vmul.f32 %v1905, %v1913
        %v1916 = vadd.f32 %v1902, %v1914
        %v1917 = vadd.f32 %v1903, %v1915
        %v1918 = vld [vmem:[#allocation2 + $0x320] sm:$0xff]
        %v1919 = vld [vmem:[#allocation2 + $0x328] sm:$0xff]
        %v1920 = vlaneseq
        %v1921 = vshrl.u32 %v1920, 7
        %v1922 = vsub.s32 6, %v1921
        %v1923 = vrot.slane %v1834, %v1922
        %v1924 = vlaneseq
        %v1925 = vshrl.u32 %v1924, 7
        %v1926 = vsub.s32 6, %v1925
        %v1927 = vrot.slane %v1835, %v1926
        %v1928 = vmul.f32 %v1918, %v1923
        %v1929 = vmul.f32 %v1919, %v1927
        %v1930 = vadd.f32 %v1916, %v1928
        %v1931 = vadd.f32 %v1917, %v1929
        %vm1932 = vcmp.gt.f32.partialorder %v1930, 0.0
        %vm1933 = vcmp.gt.f32.partialorder %v1931, 0.0
        %v1934 = vmul.f32 %v1930, 0.01
        %v1935 = vmul.f32 %v1931, 0.01
        %v1936 = vsel %vm1932, %v1930, %v1934
        %v1937 = vsel %vm1933, %v1931, %v1935
        %v1938 = vld [vmem:[#allocation2 + $0x330] sm:$0xff]
        %v1939 = vld [vmem:[#allocation2 + $0x338] sm:$0xff]
        %v1940 = vlaneseq
        %v1941 = vshrl.u32 %v1940, 7
        %v1942 = vsub.s32 0, %v1941
        %v1943 = vrot.slane %v1936, %v1942
        %v1944 = vlaneseq
        %v1945 = vshrl.u32 %v1944, 7
        %v1946 = vsub.s32 0, %v1945
        %v1947 = vrot.slane %v1937, %v1946
        %v1948 = vmul.f32 %v1938, %v1943
        %v1949 = vmul.f32 %v1939, %v1947
        %v1950 = vld [vmem:[#allocation2 + $0x340] sm:$0xff]
        %v1951 = vld [vmem:[#allocation2 + $0x348] sm:$0xff]
        %v1952 = vlaneseq
        %v1953 = vshrl.u32 %v1952, 7
        %v1954 = vsub.s32 1, %v1953
        %v1955 = vrot.slane %v1936, %v1954
        %v1956 = vlaneseq
        %v1957 = vshrl.u32 %v1956, 7
        %v1958 = vsub.s32 1, %v1957
        %v1959 = vrot.slane %v1937, %v1958
        %v1960 = vmul.f32 %v1950, %v1955
        %v1961 = vmul.f32 %v1951, %v1959
        %v1962 = vadd.f32 %v1948, %v1960
        %v1963 = vadd.f32 %v1949, %v1961
        %v1964 = vld [vmem:[#allocation2 + $0x350] sm:$0xff]
        %v1965 = vld [vmem:[#allocation2 + $0x358] sm:$0xff]
        %v1966 = vlaneseq
        %v1967 = vshrl.u32 %v1966, 7
        %v1968 = vsub.s32 2, %v1967
        %v1969 = vrot.slane %v1936, %v1968
        %v1970 = vlaneseq
        %v1971 = vshrl.u32 %v1970, 7
        %v1972 = vsub.s32 2, %v1971
        %v1973 = vrot.slane %v1937, %v1972
        %v1974 = vmul.f32 %v1964, %v1969
        %v1975 = vmul.f32 %v1965, %v1973
        %v1976 = vadd.f32 %v1962, %v1974
        %v1977 = vadd.f32 %v1963, %v1975
        %v1978 = vld [vmem:[#allocation2 + $0x360] sm:$0xff]
        %v1979 = vld [vmem:[#allocation2 + $0x368] sm:$0xff]
        %v1980 = vlaneseq
        %v1981 = vshrl.u32 %v1980, 7
        %v1982 = vsub.s32 3, %v1981
        %v1983 = vrot.slane %v1936, %v1982
        %v1984 = vlaneseq
        %v1985 = vshrl.u32 %v1984, 7
        %v1986 = vsub.s32 3, %v1985
        %v1987 = vrot.slane %v1937, %v1986
        %v1988 = vmul.f32 %v1978, %v1983
        %v1989 = vmul.f32 %v1979, %v1987
        %v1990 = vadd.f32 %v1976, %v1988
        %v1991 = vadd.f32 %v1977, %v1989
        %v1992 = vld [vmem:[#allocation2 + $0x370] sm:$0xff]
        %v1993 = vld [vmem:[#allocation2 + $0x378] sm:$0xff]
        %v1994 = vlaneseq
        %v1995 = vshrl.u32 %v1994, 7
        %v1996 = vsub.s32 4, %v1995
        %v1997 = vrot.slane %v1936, %v1996
        %v1998 = vlaneseq
        %v1999 = vshrl.u32 %v1998, 7
        %v2000 = vsub.s32 4, %v1999
        %v2001 = vrot.slane %v1937, %v2000
        %v2002 = vmul.f32 %v1992, %v1997
        %v2003 = vmul.f32 %v1993, %v2001
        %v2004 = vadd.f32 %v1990, %v2002
        %v2005 = vadd.f32 %v1991, %v2003
        %v2006 = vld [vmem:[#allocation2 + $0x380] sm:$0xff]
        %v2007 = vld [vmem:[#allocation2 + $0x388] sm:$0xff]
        %v2008 = vlaneseq
        %v2009 = vshrl.u32 %v2008, 7
        %v2010 = vsub.s32 5, %v2009
        %v2011 = vrot.slane %v1936, %v2010
        %v2012 = vlaneseq
        %v2013 = vshrl.u32 %v2012, 7
        %v2014 = vsub.s32 5, %v2013
        %v2015 = vrot.slane %v1937, %v2014
        %v2016 = vmul.f32 %v2006, %v2011
        %v2017 = vmul.f32 %v2007, %v2015
        %v2018 = vadd.f32 %v2004, %v2016
        %v2019 = vadd.f32 %v2005, %v2017
        %v2020 = vld [vmem:[#allocation2 + $0x390] sm:$0xff]
        %v2021 = vld [vmem:[#allocation2 + $0x398] sm:$0xff]
        %v2022 = vlaneseq
        %v2023 = vshrl.u32 %v2022, 7
        %v2024 = vsub.s32 6, %v2023
        %v2025 = vrot.slane %v1936, %v2024
        %v2026 = vlaneseq
        %v2027 = vshrl.u32 %v2026, 7
        %v2028 = vsub.s32 6, %v2027
        %v2029 = vrot.slane %v1937, %v2028
        %v2030 = vmul.f32 %v2020, %v2025
        %v2031 = vmul.f32 %v2021, %v2029
        %v2032 = vadd.f32 %v2018, %v2030
        %v2033 = vadd.f32 %v2019, %v2031
        %vm2034 = vcmp.gt.f32.partialorder %v2032, 0.0
        %vm2035 = vcmp.gt.f32.partialorder %v2033, 0.0
        %v2036 = vmul.f32 %v2032, 0.01
        %v2037 = vmul.f32 %v2033, 0.01
        %v2038 = vsel %vm2034, %v2032, %v2036
        %v2039 = vsel %vm2035, %v2033, %v2037
        %v2040 = vld [vmem:[#allocation2 + $0x3a0] sm:$0xff]
        %v2041 = vld [vmem:[#allocation2 + $0x3a8] sm:$0xff]
        %v2042 = vlaneseq
        %v2043 = vshrl.u32 %v2042, 7
        %v2044 = vsub.s32 0, %v2043
        %v2045 = vrot.slane %v2038, %v2044
        %v2046 = vlaneseq
        %v2047 = vshrl.u32 %v2046, 7
        %v2048 = vsub.s32 0, %v2047
        %v2049 = vrot.slane %v2039, %v2048
        %v2050 = vmul.f32 %v2040, %v2045
        %v2051 = vmul.f32 %v2041, %v2049
        %v2052 = vld [vmem:[#allocation2 + $0x3b0] sm:$0xff]
        %v2053 = vld [vmem:[#allocation2 + $0x3b8] sm:$0xff]
        %v2054 = vlaneseq
        %v2055 = vshrl.u32 %v2054, 7
        %v2056 = vsub.s32 1, %v2055
        %v2057 = vrot.slane %v2038, %v2056
        %v2058 = vlaneseq
        %v2059 = vshrl.u32 %v2058, 7
        %v2060 = vsub.s32 1, %v2059
        %v2061 = vrot.slane %v2039, %v2060
        %v2062 = vmul.f32 %v2052, %v2057
        %v2063 = vmul.f32 %v2053, %v2061
        %v2064 = vadd.f32 %v2050, %v2062
        %v2065 = vadd.f32 %v2051, %v2063
        %v2066 = vld [vmem:[#allocation2 + $0x3c0] sm:$0xff]
        %v2067 = vld [vmem:[#allocation2 + $0x3c8] sm:$0xff]
        %v2068 = vlaneseq
        %v2069 = vshrl.u32 %v2068, 7
        %v2070 = vsub.s32 2, %v2069
        %v2071 = vrot.slane %v2038, %v2070
        %v2072 = vlaneseq
        %v2073 = vshrl.u32 %v2072, 7
        %v2074 = vsub.s32 2, %v2073
        %v2075 = vrot.slane %v2039, %v2074
        %v2076 = vmul.f32 %v2066, %v2071
        %v2077 = vmul.f32 %v2067, %v2075
        %v2078 = vadd.f32 %v2064, %v2076
        %v2079 = vadd.f32 %v2065, %v2077
        %v2080 = vld [vmem:[#allocation2 + $0x3d0] sm:$0xff]
        %v2081 = vld [vmem:[#allocation2 + $0x3d8] sm:$0xff]
        %v2082 = vlaneseq
        %v2083 = vshrl.u32 %v2082, 7
        %v2084 = vsub.s32 3, %v2083
        %v2085 = vrot.slane %v2038, %v2084
        %v2086 = vlaneseq
        %v2087 = vshrl.u32 %v2086, 7
        %v2088 = vsub.s32 3, %v2087
        %v2089 = vrot.slane %v2039, %v2088
        %v2090 = vmul.f32 %v2080, %v2085
        %v2091 = vmul.f32 %v2081, %v2089
        %v2092 = vadd.f32 %v2078, %v2090
        %v2093 = vadd.f32 %v2079, %v2091
        %v2094 = vld [vmem:[#allocation2 + $0x3e0] sm:$0xff]
        %v2095 = vld [vmem:[#allocation2 + $0x3e8] sm:$0xff]
        %v2096 = vlaneseq
        %v2097 = vshrl.u32 %v2096, 7
        %v2098 = vsub.s32 4, %v2097
        %v2099 = vrot.slane %v2038, %v2098
        %v2100 = vlaneseq
        %v2101 = vshrl.u32 %v2100, 7
        %v2102 = vsub.s32 4, %v2101
        %v2103 = vrot.slane %v2039, %v2102
        %v2104 = vmul.f32 %v2094, %v2099
        %v2105 = vmul.f32 %v2095, %v2103
        %v2106 = vadd.f32 %v2092, %v2104
        %v2107 = vadd.f32 %v2093, %v2105
        %v2108 = vld [vmem:[#allocation2 + $0x3f0] sm:$0xff]
        %v2109 = vld [vmem:[#allocation2 + $0x3f8] sm:$0xff]
        %v2110 = vlaneseq
        %v2111 = vshrl.u32 %v2110, 7
        %v2112 = vsub.s32 5, %v2111
        %v2113 = vrot.slane %v2038, %v2112
        %v2114 = vlaneseq
        %v2115 = vshrl.u32 %v2114, 7
        %v2116 = vsub.s32 5, %v2115
        %v2117 = vrot.slane %v2039, %v2116
        %v2118 = vmul.f32 %v2108, %v2113
        %v2119 = vmul.f32 %v2109, %v2117
        %v2120 = vadd.f32 %v2106, %v2118
        %v2121 = vadd.f32 %v2107, %v2119
        %v2122 = vld [vmem:[#allocation2 + $0x400] sm:$0xff]
        %v2123 = vld [vmem:[#allocation2 + $0x408] sm:$0xff]
        %v2124 = vlaneseq
        %v2125 = vshrl.u32 %v2124, 7
        %v2126 = vsub.s32 6, %v2125
        %v2127 = vrot.slane %v2038, %v2126
        %v2128 = vlaneseq
        %v2129 = vshrl.u32 %v2128, 7
        %v2130 = vsub.s32 6, %v2129
        %v2131 = vrot.slane %v2039, %v2130
        %v2132 = vmul.f32 %v2122, %v2127
        %v2133 = vmul.f32 %v2123, %v2131
        %v2134 = vadd.f32 %v2120, %v2132
        %v2135 = vadd.f32 %v2121, %v2133
        %vm2136 = vcmp.gt.f32.partialorder %v2134, 0.0
        %vm2137 = vcmp.gt.f32.partialorder %v2135, 0.0
        %v2138 = vmul.f32 %v2134, 0.01
        %v2139 = vmul.f32 %v2135, 0.01
        %v2140 = vsel %vm2136, %v2134, %v2138
        %v2141 = vsel %vm2137, %v2135, %v2139
        %v2144 = vcombine.low %v2140, %v2141
        %v2146 = vunpack.c.l.s4 1966171168
        %v2147 = vunpack.c.0.s8 %v2146
        %v2148 = vlaneseq
        %v2149 = vshrl.u32 %v2148, 7
        %v2150 = vsub.s32 %v2147, %v2149
        %v2151 = vrot.slane %v2144, %v2150
        %v2153 = vunpack.c.l.s4 1966171168
        %v2154 = vunpack.c.0.s8 %v2153
        %v2155 = vlaneseq
        %v2156 = vshrl.u32 %v2155, 7
        %v2157 = vsub.s32 %v2154, %v2156
        %v2158 = vrot.slane %v2151, %v2157
        %2160 = vst.msk [vmem:[%s172 + $0x2] sm:$0x3] %vm1168, %v2158
        %v2161 = vld [vmem:[%s152 + $0x8] sm:$0xf]
        %v2162 = vld [vmem:[#allocation2] sm:$0xff]
        %v2163 = vld [vmem:[#allocation2 + $0x8] sm:$0xff]
        %v2165 = vlaneseq
        %v2166 = vshrl.u32 %v2165, 7
        %v2167 = vsub.s32 0, %v2166
        %v2168 = vrot.slane %v2161, %v2167
        %v2169 = vlaneseq
        %v2170 = vshrl.u32 %v2169, 7
        %v2171 = vsub.s32 2, %v2170
        %v2172 = vrot.slane %v2161, %v2171
        %v2175 = vlaneseq
        %v2176 = vshrl.u32 %v2175, 7
        %v2177 = vsub.s32 0, %v2176
        %v2178 = vrot.slane %v2168, %v2177
        %v2179 = vlaneseq
        %v2180 = vshrl.u32 %v2179, 7
        %v2181 = vsub.s32 0, %v2180
        %v2182 = vrot.slane %v2172, %v2181
        %v2183 = vmul.f32 %v2162, %v2178
        %v2184 = vmul.f32 %v2163, %v2182
        %v2185 = vld [vmem:[#allocation2 + $0x10] sm:$0xff]
        %v2186 = vld [vmem:[#allocation2 + $0x18] sm:$0xff]
        %v2187 = vlaneseq
        %v2188 = vshrl.u32 %v2187, 7
        %v2189 = vsub.s32 1, %v2188
        %v2190 = vrot.slane %v2161, %v2189
        %v2191 = vlaneseq
        %v2192 = vshrl.u32 %v2191, 7
        %v2193 = vsub.s32 3, %v2192
        %v2194 = vrot.slane %v2161, %v2193
        %v2197 = vlaneseq
        %v2198 = vshrl.u32 %v2197, 7
        %v2199 = vsub.s32 1, %v2198
        %v2200 = vrot.slane %v2190, %v2199
        %v2201 = vlaneseq
        %v2202 = vshrl.u32 %v2201, 7
        %v2203 = vsub.s32 1, %v2202
        %v2204 = vrot.slane %v2194, %v2203
        %v2205 = vmul.f32 %v2185, %v2200
        %v2206 = vmul.f32 %v2186, %v2204
        %v2207 = vadd.f32 %v2183, %v2205
        %v2208 = vadd.f32 %v2184, %v2206
        %vm2209 = vcmp.gt.f32.partialorder %v2207, 0.0
        %vm2210 = vcmp.gt.f32.partialorder %v2208, 0.0
        %v2211 = vmul.f32 %v2207, 0.01
        %v2212 = vmul.f32 %v2208, 0.01
        %v2213 = vsel %vm2209, %v2207, %v2211
        %v2214 = vsel %vm2210, %v2208, %v2212
        %v2215 = vld [vmem:[#allocation2 + $0x20] sm:$0xff]
        %v2216 = vld [vmem:[#allocation2 + $0x28] sm:$0xff]
        %v2217 = vlaneseq
        %v2218 = vshrl.u32 %v2217, 7
        %v2219 = vsub.s32 0, %v2218
        %v2220 = vrot.slane %v2213, %v2219
        %v2221 = vlaneseq
        %v2222 = vshrl.u32 %v2221, 7
        %v2223 = vsub.s32 0, %v2222
        %v2224 = vrot.slane %v2214, %v2223
        %v2225 = vmul.f32 %v2215, %v2220
        %v2226 = vmul.f32 %v2216, %v2224
        %v2227 = vld [vmem:[#allocation2 + $0x30] sm:$0xff]
        %v2228 = vld [vmem:[#allocation2 + $0x38] sm:$0xff]
        %v2229 = vlaneseq
        %v2230 = vshrl.u32 %v2229, 7
        %v2231 = vsub.s32 1, %v2230
        %v2232 = vrot.slane %v2213, %v2231
        %v2233 = vlaneseq
        %v2234 = vshrl.u32 %v2233, 7
        %v2235 = vsub.s32 1, %v2234
        %v2236 = vrot.slane %v2214, %v2235
        %v2237 = vmul.f32 %v2227, %v2232
        %v2238 = vmul.f32 %v2228, %v2236
        %v2239 = vadd.f32 %v2225, %v2237
        %v2240 = vadd.f32 %v2226, %v2238
        %v2241 = vld [vmem:[#allocation2 + $0x40] sm:$0xff]
        %v2242 = vld [vmem:[#allocation2 + $0x48] sm:$0xff]
        %v2243 = vlaneseq
        %v2244 = vshrl.u32 %v2243, 7
        %v2245 = vsub.s32 2, %v2244
        %v2246 = vrot.slane %v2213, %v2245
        %v2247 = vlaneseq
        %v2248 = vshrl.u32 %v2247, 7
        %v2249 = vsub.s32 2, %v2248
        %v2250 = vrot.slane %v2214, %v2249
        %v2251 = vmul.f32 %v2241, %v2246
        %v2252 = vmul.f32 %v2242, %v2250
        %v2253 = vadd.f32 %v2239, %v2251
        %v2254 = vadd.f32 %v2240, %v2252
        %v2255 = vld [vmem:[#allocation2 + $0x50] sm:$0xff]
        %v2256 = vld [vmem:[#allocation2 + $0x58] sm:$0xff]
        %v2257 = vlaneseq
        %v2258 = vshrl.u32 %v2257, 7
        %v2259 = vsub.s32 3, %v2258
        %v2260 = vrot.slane %v2213, %v2259
        %v2261 = vlaneseq
        %v2262 = vshrl.u32 %v2261, 7
        %v2263 = vsub.s32 3, %v2262
        %v2264 = vrot.slane %v2214, %v2263
        %v2265 = vmul.f32 %v2255, %v2260
        %v2266 = vmul.f32 %v2256, %v2264
        %v2267 = vadd.f32 %v2253, %v2265
        %v2268 = vadd.f32 %v2254, %v2266
        %v2269 = vld [vmem:[#allocation2 + $0x60] sm:$0xff]
        %v2270 = vld [vmem:[#allocation2 + $0x68] sm:$0xff]
        %v2271 = vlaneseq
        %v2272 = vshrl.u32 %v2271, 7
        %v2273 = vsub.s32 4, %v2272
        %v2274 = vrot.slane %v2213, %v2273
        %v2275 = vlaneseq
        %v2276 = vshrl.u32 %v2275, 7
        %v2277 = vsub.s32 4, %v2276
        %v2278 = vrot.slane %v2214, %v2277
        %v2279 = vmul.f32 %v2269, %v2274
        %v2280 = vmul.f32 %v2270, %v2278
        %v2281 = vadd.f32 %v2267, %v2279
        %v2282 = vadd.f32 %v2268, %v2280
        %v2283 = vld [vmem:[#allocation2 + $0x70] sm:$0xff]
        %v2284 = vld [vmem:[#allocation2 + $0x78] sm:$0xff]
        %v2285 = vlaneseq
        %v2286 = vshrl.u32 %v2285, 7
        %v2287 = vsub.s32 5, %v2286
        %v2288 = vrot.slane %v2213, %v2287
        %v2289 = vlaneseq
        %v2290 = vshrl.u32 %v2289, 7
        %v2291 = vsub.s32 5, %v2290
        %v2292 = vrot.slane %v2214, %v2291
        %v2293 = vmul.f32 %v2283, %v2288
        %v2294 = vmul.f32 %v2284, %v2292
        %v2295 = vadd.f32 %v2281, %v2293
        %v2296 = vadd.f32 %v2282, %v2294
        %v2297 = vld [vmem:[#allocation2 + $0x80] sm:$0xff]
        %v2298 = vld [vmem:[#allocation2 + $0x88] sm:$0xff]
        %v2299 = vlaneseq
        %v2300 = vshrl.u32 %v2299, 7
        %v2301 = vsub.s32 6, %v2300
        %v2302 = vrot.slane %v2213, %v2301
        %v2303 = vlaneseq
        %v2304 = vshrl.u32 %v2303, 7
        %v2305 = vsub.s32 6, %v2304
        %v2306 = vrot.slane %v2214, %v2305
        %v2307 = vmul.f32 %v2297, %v2302
        %v2308 = vmul.f32 %v2298, %v2306
        %v2309 = vadd.f32 %v2295, %v2307
        %v2310 = vadd.f32 %v2296, %v2308
        %vm2311 = vcmp.gt.f32.partialorder %v2309, 0.0
        %vm2312 = vcmp.gt.f32.partialorder %v2310, 0.0
        %v2313 = vmul.f32 %v2309, 0.01
        %v2314 = vmul.f32 %v2310, 0.01
        %v2315 = vsel %vm2311, %v2309, %v2313
        %v2316 = vsel %vm2312, %v2310, %v2314
        %v2317 = vld [vmem:[#allocation2 + $0x90] sm:$0xff]
        %v2318 = vld [vmem:[#allocation2 + $0x98] sm:$0xff]
        %v2319 = vlaneseq
        %v2320 = vshrl.u32 %v2319, 7
        %v2321 = vsub.s32 0, %v2320
        %v2322 = vrot.slane %v2315, %v2321
        %v2323 = vlaneseq
        %v2324 = vshrl.u32 %v2323, 7
        %v2325 = vsub.s32 0, %v2324
        %v2326 = vrot.slane %v2316, %v2325
        %v2327 = vmul.f32 %v2317, %v2322
        %v2328 = vmul.f32 %v2318, %v2326
        %v2329 = vld [vmem:[#allocation2 + $0xa0] sm:$0xff]
        %v2330 = vld [vmem:[#allocation2 + $0xa8] sm:$0xff]
        %v2331 = vlaneseq
        %v2332 = vshrl.u32 %v2331, 7
        %v2333 = vsub.s32 1, %v2332
        %v2334 = vrot.slane %v2315, %v2333
        %v2335 = vlaneseq
        %v2336 = vshrl.u32 %v2335, 7
        %v2337 = vsub.s32 1, %v2336
        %v2338 = vrot.slane %v2316, %v2337
        %v2339 = vmul.f32 %v2329, %v2334
        %v2340 = vmul.f32 %v2330, %v2338
        %v2341 = vadd.f32 %v2327, %v2339
        %v2342 = vadd.f32 %v2328, %v2340
        %v2343 = vld [vmem:[#allocation2 + $0xb0] sm:$0xff]
        %v2344 = vld [vmem:[#allocation2 + $0xb8] sm:$0xff]
        %v2345 = vlaneseq
        %v2346 = vshrl.u32 %v2345, 7
        %v2347 = vsub.s32 2, %v2346
        %v2348 = vrot.slane %v2315, %v2347
        %v2349 = vlaneseq
        %v2350 = vshrl.u32 %v2349, 7
        %v2351 = vsub.s32 2, %v2350
        %v2352 = vrot.slane %v2316, %v2351
        %v2353 = vmul.f32 %v2343, %v2348
        %v2354 = vmul.f32 %v2344, %v2352
        %v2355 = vadd.f32 %v2341, %v2353
        %v2356 = vadd.f32 %v2342, %v2354
        %v2357 = vld [vmem:[#allocation2 + $0xc0] sm:$0xff]
        %v2358 = vld [vmem:[#allocation2 + $0xc8] sm:$0xff]
        %v2359 = vlaneseq
        %v2360 = vshrl.u32 %v2359, 7
        %v2361 = vsub.s32 3, %v2360
        %v2362 = vrot.slane %v2315, %v2361
        %v2363 = vlaneseq
        %v2364 = vshrl.u32 %v2363, 7
        %v2365 = vsub.s32 3, %v2364
        %v2366 = vrot.slane %v2316, %v2365
        %v2367 = vmul.f32 %v2357, %v2362
        %v2368 = vmul.f32 %v2358, %v2366
        %v2369 = vadd.f32 %v2355, %v2367
        %v2370 = vadd.f32 %v2356, %v2368
        %v2371 = vld [vmem:[#allocation2 + $0xd0] sm:$0xff]
        %v2372 = vld [vmem:[#allocation2 + $0xd8] sm:$0xff]
        %v2373 = vlaneseq
        %v2374 = vshrl.u32 %v2373, 7
        %v2375 = vsub.s32 4, %v2374
        %v2376 = vrot.slane %v2315, %v2375
        %v2377 = vlaneseq
        %v2378 = vshrl.u32 %v2377, 7
        %v2379 = vsub.s32 4, %v2378
        %v2380 = vrot.slane %v2316, %v2379
        %v2381 = vmul.f32 %v2371, %v2376
        %v2382 = vmul.f32 %v2372, %v2380
        %v2383 = vadd.f32 %v2369, %v2381
        %v2384 = vadd.f32 %v2370, %v2382
        %v2385 = vld [vmem:[#allocation2 + $0xe0] sm:$0xff]
        %v2386 = vld [vmem:[#allocation2 + $0xe8] sm:$0xff]
        %v2387 = vlaneseq
        %v2388 = vshrl.u32 %v2387, 7
        %v2389 = vsub.s32 5, %v2388
        %v2390 = vrot.slane %v2315, %v2389
        %v2391 = vlaneseq
        %v2392 = vshrl.u32 %v2391, 7
        %v2393 = vsub.s32 5, %v2392
        %v2394 = vrot.slane %v2316, %v2393
        %v2395 = vmul.f32 %v2385, %v2390
        %v2396 = vmul.f32 %v2386, %v2394
        %v2397 = vadd.f32 %v2383, %v2395
        %v2398 = vadd.f32 %v2384, %v2396
        %v2399 = vld [vmem:[#allocation2 + $0xf0] sm:$0xff]
        %v2400 = vld [vmem:[#allocation2 + $0xf8] sm:$0xff]
        %v2401 = vlaneseq
        %v2402 = vshrl.u32 %v2401, 7
        %v2403 = vsub.s32 6, %v2402
        %v2404 = vrot.slane %v2315, %v2403
        %v2405 = vlaneseq
        %v2406 = vshrl.u32 %v2405, 7
        %v2407 = vsub.s32 6, %v2406
        %v2408 = vrot.slane %v2316, %v2407
        %v2409 = vmul.f32 %v2399, %v2404
        %v2410 = vmul.f32 %v2400, %v2408
        %v2411 = vadd.f32 %v2397, %v2409
        %v2412 = vadd.f32 %v2398, %v2410
        %vm2413 = vcmp.gt.f32.partialorder %v2411, 0.0
        %vm2414 = vcmp.gt.f32.partialorder %v2412, 0.0
        %v2415 = vmul.f32 %v2411, 0.01
        %v2416 = vmul.f32 %v2412, 0.01
        %v2417 = vsel %vm2413, %v2411, %v2415
        %v2418 = vsel %vm2414, %v2412, %v2416
        %v2419 = vld [vmem:[#allocation2 + $0x100] sm:$0xff]
        %v2420 = vld [vmem:[#allocation2 + $0x108] sm:$0xff]
        %v2421 = vlaneseq
        %v2422 = vshrl.u32 %v2421, 7
        %v2423 = vsub.s32 0, %v2422
        %v2424 = vrot.slane %v2417, %v2423
        %v2425 = vlaneseq
        %v2426 = vshrl.u32 %v2425, 7
        %v2427 = vsub.s32 0, %v2426
        %v2428 = vrot.slane %v2418, %v2427
        %v2429 = vmul.f32 %v2419, %v2424
        %v2430 = vmul.f32 %v2420, %v2428
        %v2431 = vld [vmem:[#allocation2 + $0x110] sm:$0xff]
        %v2432 = vld [vmem:[#allocation2 + $0x118] sm:$0xff]
        %v2433 = vlaneseq
        %v2434 = vshrl.u32 %v2433, 7
        %v2435 = vsub.s32 1, %v2434
        %v2436 = vrot.slane %v2417, %v2435
        %v2437 = vlaneseq
        %v2438 = vshrl.u32 %v2437, 7
        %v2439 = vsub.s32 1, %v2438
        %v2440 = vrot.slane %v2418, %v2439
        %v2441 = vmul.f32 %v2431, %v2436
        %v2442 = vmul.f32 %v2432, %v2440
        %v2443 = vadd.f32 %v2429, %v2441
        %v2444 = vadd.f32 %v2430, %v2442
        %v2445 = vld [vmem:[#allocation2 + $0x120] sm:$0xff]
        %v2446 = vld [vmem:[#allocation2 + $0x128] sm:$0xff]
        %v2447 = vlaneseq
        %v2448 = vshrl.u32 %v2447, 7
        %v2449 = vsub.s32 2, %v2448
        %v2450 = vrot.slane %v2417, %v2449
        %v2451 = vlaneseq
        %v2452 = vshrl.u32 %v2451, 7
        %v2453 = vsub.s32 2, %v2452
        %v2454 = vrot.slane %v2418, %v2453
        %v2455 = vmul.f32 %v2445, %v2450
        %v2456 = vmul.f32 %v2446, %v2454
        %v2457 = vadd.f32 %v2443, %v2455
        %v2458 = vadd.f32 %v2444, %v2456
        %v2459 = vld [vmem:[#allocation2 + $0x130] sm:$0xff]
        %v2460 = vld [vmem:[#allocation2 + $0x138] sm:$0xff]
        %v2461 = vlaneseq
        %v2462 = vshrl.u32 %v2461, 7
        %v2463 = vsub.s32 3, %v2462
        %v2464 = vrot.slane %v2417, %v2463
        %v2465 = vlaneseq
        %v2466 = vshrl.u32 %v2465, 7
        %v2467 = vsub.s32 3, %v2466
        %v2468 = vrot.slane %v2418, %v2467
        %v2469 = vmul.f32 %v2459, %v2464
        %v2470 = vmul.f32 %v2460, %v2468
        %v2471 = vadd.f32 %v2457, %v2469
        %v2472 = vadd.f32 %v2458, %v2470
        %v2473 = vld [vmem:[#allocation2 + $0x140] sm:$0xff]
        %v2474 = vld [vmem:[#allocation2 + $0x148] sm:$0xff]
        %v2475 = vlaneseq
        %v2476 = vshrl.u32 %v2475, 7
        %v2477 = vsub.s32 4, %v2476
        %v2478 = vrot.slane %v2417, %v2477
        %v2479 = vlaneseq
        %v2480 = vshrl.u32 %v2479, 7
        %v2481 = vsub.s32 4, %v2480
        %v2482 = vrot.slane %v2418, %v2481
        %v2483 = vmul.f32 %v2473, %v2478
        %v2484 = vmul.f32 %v2474, %v2482
        %v2485 = vadd.f32 %v2471, %v2483
        %v2486 = vadd.f32 %v2472, %v2484
        %v2487 = vld [vmem:[#allocation2 + $0x150] sm:$0xff]
        %v2488 = vld [vmem:[#allocation2 + $0x158] sm:$0xff]
        %v2489 = vlaneseq
        %v2490 = vshrl.u32 %v2489, 7
        %v2491 = vsub.s32 5, %v2490
        %v2492 = vrot.slane %v2417, %v2491
        %v2493 = vlaneseq
        %v2494 = vshrl.u32 %v2493, 7
        %v2495 = vsub.s32 5, %v2494
        %v2496 = vrot.slane %v2418, %v2495
        %v2497 = vmul.f32 %v2487, %v2492
        %v2498 = vmul.f32 %v2488, %v2496
        %v2499 = vadd.f32 %v2485, %v2497
        %v2500 = vadd.f32 %v2486, %v2498
        %v2501 = vld [vmem:[#allocation2 + $0x160] sm:$0xff]
        %v2502 = vld [vmem:[#allocation2 + $0x168] sm:$0xff]
        %v2503 = vlaneseq
        %v2504 = vshrl.u32 %v2503, 7
        %v2505 = vsub.s32 6, %v2504
        %v2506 = vrot.slane %v2417, %v2505
        %v2507 = vlaneseq
        %v2508 = vshrl.u32 %v2507, 7
        %v2509 = vsub.s32 6, %v2508
        %v2510 = vrot.slane %v2418, %v2509
        %v2511 = vmul.f32 %v2501, %v2506
        %v2512 = vmul.f32 %v2502, %v2510
        %v2513 = vadd.f32 %v2499, %v2511
        %v2514 = vadd.f32 %v2500, %v2512
        %vm2515 = vcmp.gt.f32.partialorder %v2513, 0.0
        %vm2516 = vcmp.gt.f32.partialorder %v2514, 0.0
        %v2517 = vmul.f32 %v2513, 0.01
        %v2518 = vmul.f32 %v2514, 0.01
        %v2519 = vsel %vm2515, %v2513, %v2517
        %v2520 = vsel %vm2516, %v2514, %v2518
        %v2521 = vld [vmem:[#allocation2 + $0x170] sm:$0xff]
        %v2522 = vld [vmem:[#allocation2 + $0x178] sm:$0xff]
        %v2523 = vlaneseq
        %v2524 = vshrl.u32 %v2523, 7
        %v2525 = vsub.s32 0, %v2524
        %v2526 = vrot.slane %v2519, %v2525
        %v2527 = vlaneseq
        %v2528 = vshrl.u32 %v2527, 7
        %v2529 = vsub.s32 0, %v2528
        %v2530 = vrot.slane %v2520, %v2529
        %v2531 = vmul.f32 %v2521, %v2526
        %v2532 = vmul.f32 %v2522, %v2530
        %v2533 = vld [vmem:[#allocation2 + $0x180] sm:$0xff]
        %v2534 = vld [vmem:[#allocation2 + $0x188] sm:$0xff]
        %v2535 = vlaneseq
        %v2536 = vshrl.u32 %v2535, 7
        %v2537 = vsub.s32 1, %v2536
        %v2538 = vrot.slane %v2519, %v2537
        %v2539 = vlaneseq
        %v2540 = vshrl.u32 %v2539, 7
        %v2541 = vsub.s32 1, %v2540
        %v2542 = vrot.slane %v2520, %v2541
        %v2543 = vmul.f32 %v2533, %v2538
        %v2544 = vmul.f32 %v2534, %v2542
        %v2545 = vadd.f32 %v2531, %v2543
        %v2546 = vadd.f32 %v2532, %v2544
        %v2547 = vld [vmem:[#allocation2 + $0x190] sm:$0xff]
        %v2548 = vld [vmem:[#allocation2 + $0x198] sm:$0xff]
        %v2549 = vlaneseq
        %v2550 = vshrl.u32 %v2549, 7
        %v2551 = vsub.s32 2, %v2550
        %v2552 = vrot.slane %v2519, %v2551
        %v2553 = vlaneseq
        %v2554 = vshrl.u32 %v2553, 7
        %v2555 = vsub.s32 2, %v2554
        %v2556 = vrot.slane %v2520, %v2555
        %v2557 = vmul.f32 %v2547, %v2552
        %v2558 = vmul.f32 %v2548, %v2556
        %v2559 = vadd.f32 %v2545, %v2557
        %v2560 = vadd.f32 %v2546, %v2558
        %v2561 = vld [vmem:[#allocation2 + $0x1a0] sm:$0xff]
        %v2562 = vld [vmem:[#allocation2 + $0x1a8] sm:$0xff]
        %v2563 = vlaneseq
        %v2564 = vshrl.u32 %v2563, 7
        %v2565 = vsub.s32 3, %v2564
        %v2566 = vrot.slane %v2519, %v2565
        %v2567 = vlaneseq
        %v2568 = vshrl.u32 %v2567, 7
        %v2569 = vsub.s32 3, %v2568
        %v2570 = vrot.slane %v2520, %v2569
        %v2571 = vmul.f32 %v2561, %v2566
        %v2572 = vmul.f32 %v2562, %v2570
        %v2573 = vadd.f32 %v2559, %v2571
        %v2574 = vadd.f32 %v2560, %v2572
        %v2575 = vld [vmem:[#allocation2 + $0x1b0] sm:$0xff]
        %v2576 = vld [vmem:[#allocation2 + $0x1b8] sm:$0xff]
        %v2577 = vlaneseq
        %v2578 = vshrl.u32 %v2577, 7
        %v2579 = vsub.s32 4, %v2578
        %v2580 = vrot.slane %v2519, %v2579
        %v2581 = vlaneseq
        %v2582 = vshrl.u32 %v2581, 7
        %v2583 = vsub.s32 4, %v2582
        %v2584 = vrot.slane %v2520, %v2583
        %v2585 = vmul.f32 %v2575, %v2580
        %v2586 = vmul.f32 %v2576, %v2584
        %v2587 = vadd.f32 %v2573, %v2585
        %v2588 = vadd.f32 %v2574, %v2586
        %v2589 = vld [vmem:[#allocation2 + $0x1c0] sm:$0xff]
        %v2590 = vld [vmem:[#allocation2 + $0x1c8] sm:$0xff]
        %v2591 = vlaneseq
        %v2592 = vshrl.u32 %v2591, 7
        %v2593 = vsub.s32 5, %v2592
        %v2594 = vrot.slane %v2519, %v2593
        %v2595 = vlaneseq
        %v2596 = vshrl.u32 %v2595, 7
        %v2597 = vsub.s32 5, %v2596
        %v2598 = vrot.slane %v2520, %v2597
        %v2599 = vmul.f32 %v2589, %v2594
        %v2600 = vmul.f32 %v2590, %v2598
        %v2601 = vadd.f32 %v2587, %v2599
        %v2602 = vadd.f32 %v2588, %v2600
        %v2603 = vld [vmem:[#allocation2 + $0x1d0] sm:$0xff]
        %v2604 = vld [vmem:[#allocation2 + $0x1d8] sm:$0xff]
        %v2605 = vlaneseq
        %v2606 = vshrl.u32 %v2605, 7
        %v2607 = vsub.s32 6, %v2606
        %v2608 = vrot.slane %v2519, %v2607
        %v2609 = vlaneseq
        %v2610 = vshrl.u32 %v2609, 7
        %v2611 = vsub.s32 6, %v2610
        %v2612 = vrot.slane %v2520, %v2611
        %v2613 = vmul.f32 %v2603, %v2608
        %v2614 = vmul.f32 %v2604, %v2612
        %v2615 = vadd.f32 %v2601, %v2613
        %v2616 = vadd.f32 %v2602, %v2614
        %vm2617 = vcmp.gt.f32.partialorder %v2615, 0.0
        %vm2618 = vcmp.gt.f32.partialorder %v2616, 0.0
        %v2619 = vmul.f32 %v2615, 0.01
        %v2620 = vmul.f32 %v2616, 0.01
        %v2621 = vsel %vm2617, %v2615, %v2619
        %v2622 = vsel %vm2618, %v2616, %v2620
        %v2623 = vld [vmem:[#allocation2 + $0x1e0] sm:$0xff]
        %v2624 = vld [vmem:[#allocation2 + $0x1e8] sm:$0xff]
        %v2625 = vlaneseq
        %v2626 = vshrl.u32 %v2625, 7
        %v2627 = vsub.s32 0, %v2626
        %v2628 = vrot.slane %v2621, %v2627
        %v2629 = vlaneseq
        %v2630 = vshrl.u32 %v2629, 7
        %v2631 = vsub.s32 0, %v2630
        %v2632 = vrot.slane %v2622, %v2631
        %v2633 = vmul.f32 %v2623, %v2628
        %v2634 = vmul.f32 %v2624, %v2632
        %v2635 = vld [vmem:[#allocation2 + $0x1f0] sm:$0xff]
        %v2636 = vld [vmem:[#allocation2 + $0x1f8] sm:$0xff]
        %v2637 = vlaneseq
        %v2638 = vshrl.u32 %v2637, 7
        %v2639 = vsub.s32 1, %v2638
        %v2640 = vrot.slane %v2621, %v2639
        %v2641 = vlaneseq
        %v2642 = vshrl.u32 %v2641, 7
        %v2643 = vsub.s32 1, %v2642
        %v2644 = vrot.slane %v2622, %v2643
        %v2645 = vmul.f32 %v2635, %v2640
        %v2646 = vmul.f32 %v2636, %v2644
        %v2647 = vadd.f32 %v2633, %v2645
        %v2648 = vadd.f32 %v2634, %v2646
        %v2649 = vld [vmem:[#allocation2 + $0x200] sm:$0xff]
        %v2650 = vld [vmem:[#allocation2 + $0x208] sm:$0xff]
        %v2651 = vlaneseq
        %v2652 = vshrl.u32 %v2651, 7
        %v2653 = vsub.s32 2, %v2652
        %v2654 = vrot.slane %v2621, %v2653
        %v2655 = vlaneseq
        %v2656 = vshrl.u32 %v2655, 7
        %v2657 = vsub.s32 2, %v2656
        %v2658 = vrot.slane %v2622, %v2657
        %v2659 = vmul.f32 %v2649, %v2654
        %v2660 = vmul.f32 %v2650, %v2658
        %v2661 = vadd.f32 %v2647, %v2659
        %v2662 = vadd.f32 %v2648, %v2660
        %v2663 = vld [vmem:[#allocation2 + $0x210] sm:$0xff]
        %v2664 = vld [vmem:[#allocation2 + $0x218] sm:$0xff]
        %v2665 = vlaneseq
        %v2666 = vshrl.u32 %v2665, 7
        %v2667 = vsub.s32 3, %v2666
        %v2668 = vrot.slane %v2621, %v2667
        %v2669 = vlaneseq
        %v2670 = vshrl.u32 %v2669, 7
        %v2671 = vsub.s32 3, %v2670
        %v2672 = vrot.slane %v2622, %v2671
        %v2673 = vmul.f32 %v2663, %v2668
        %v2674 = vmul.f32 %v2664, %v2672
        %v2675 = vadd.f32 %v2661, %v2673
        %v2676 = vadd.f32 %v2662, %v2674
        %v2677 = vld [vmem:[#allocation2 + $0x220] sm:$0xff]
        %v2678 = vld [vmem:[#allocation2 + $0x228] sm:$0xff]
        %v2679 = vlaneseq
        %v2680 = vshrl.u32 %v2679, 7
        %v2681 = vsub.s32 4, %v2680
        %v2682 = vrot.slane %v2621, %v2681
        %v2683 = vlaneseq
        %v2684 = vshrl.u32 %v2683, 7
        %v2685 = vsub.s32 4, %v2684
        %v2686 = vrot.slane %v2622, %v2685
        %v2687 = vmul.f32 %v2677, %v2682
        %v2688 = vmul.f32 %v2678, %v2686
        %v2689 = vadd.f32 %v2675, %v2687
        %v2690 = vadd.f32 %v2676, %v2688
        %v2691 = vld [vmem:[#allocation2 + $0x230] sm:$0xff]
        %v2692 = vld [vmem:[#allocation2 + $0x238] sm:$0xff]
        %v2693 = vlaneseq
        %v2694 = vshrl.u32 %v2693, 7
        %v2695 = vsub.s32 5, %v2694
        %v2696 = vrot.slane %v2621, %v2695
        %v2697 = vlaneseq
        %v2698 = vshrl.u32 %v2697, 7
        %v2699 = vsub.s32 5, %v2698
        %v2700 = vrot.slane %v2622, %v2699
        %v2701 = vmul.f32 %v2691, %v2696
        %v2702 = vmul.f32 %v2692, %v2700
        %v2703 = vadd.f32 %v2689, %v2701
        %v2704 = vadd.f32 %v2690, %v2702
        %v2705 = vld [vmem:[#allocation2 + $0x240] sm:$0xff]
        %v2706 = vld [vmem:[#allocation2 + $0x248] sm:$0xff]
        %v2707 = vlaneseq
        %v2708 = vshrl.u32 %v2707, 7
        %v2709 = vsub.s32 6, %v2708
        %v2710 = vrot.slane %v2621, %v2709
        %v2711 = vlaneseq
        %v2712 = vshrl.u32 %v2711, 7
        %v2713 = vsub.s32 6, %v2712
        %v2714 = vrot.slane %v2622, %v2713
        %v2715 = vmul.f32 %v2705, %v2710
        %v2716 = vmul.f32 %v2706, %v2714
        %v2717 = vadd.f32 %v2703, %v2715
        %v2718 = vadd.f32 %v2704, %v2716
        %vm2719 = vcmp.gt.f32.partialorder %v2717, 0.0
        %vm2720 = vcmp.gt.f32.partialorder %v2718, 0.0
        %v2721 = vmul.f32 %v2717, 0.01
        %v2722 = vmul.f32 %v2718, 0.01
        %v2723 = vsel %vm2719, %v2717, %v2721
        %v2724 = vsel %vm2720, %v2718, %v2722
        %v2725 = vld [vmem:[#allocation2 + $0x250] sm:$0xff]
        %v2726 = vld [vmem:[#allocation2 + $0x258] sm:$0xff]
        %v2727 = vlaneseq
        %v2728 = vshrl.u32 %v2727, 7
        %v2729 = vsub.s32 0, %v2728
        %v2730 = vrot.slane %v2723, %v2729
        %v2731 = vlaneseq
        %v2732 = vshrl.u32 %v2731, 7
        %v2733 = vsub.s32 0, %v2732
        %v2734 = vrot.slane %v2724, %v2733
        %v2735 = vmul.f32 %v2725, %v2730
        %v2736 = vmul.f32 %v2726, %v2734
        %v2737 = vld [vmem:[#allocation2 + $0x260] sm:$0xff]
        %v2738 = vld [vmem:[#allocation2 + $0x268] sm:$0xff]
        %v2739 = vlaneseq
        %v2740 = vshrl.u32 %v2739, 7
        %v2741 = vsub.s32 1, %v2740
        %v2742 = vrot.slane %v2723, %v2741
        %v2743 = vlaneseq
        %v2744 = vshrl.u32 %v2743, 7
        %v2745 = vsub.s32 1, %v2744
        %v2746 = vrot.slane %v2724, %v2745
        %v2747 = vmul.f32 %v2737, %v2742
        %v2748 = vmul.f32 %v2738, %v2746
        %v2749 = vadd.f32 %v2735, %v2747
        %v2750 = vadd.f32 %v2736, %v2748
        %v2751 = vld [vmem:[#allocation2 + $0x270] sm:$0xff]
        %v2752 = vld [vmem:[#allocation2 + $0x278] sm:$0xff]
        %v2753 = vlaneseq
        %v2754 = vshrl.u32 %v2753, 7
        %v2755 = vsub.s32 2, %v2754
        %v2756 = vrot.slane %v2723, %v2755
        %v2757 = vlaneseq
        %v2758 = vshrl.u32 %v2757, 7
        %v2759 = vsub.s32 2, %v2758
        %v2760 = vrot.slane %v2724, %v2759
        %v2761 = vmul.f32 %v2751, %v2756
        %v2762 = vmul.f32 %v2752, %v2760
        %v2763 = vadd.f32 %v2749, %v2761
        %v2764 = vadd.f32 %v2750, %v2762
        %v2765 = vld [vmem:[#allocation2 + $0x280] sm:$0xff]
        %v2766 = vld [vmem:[#allocation2 + $0x288] sm:$0xff]
        %v2767 = vlaneseq
        %v2768 = vshrl.u32 %v2767, 7
        %v2769 = vsub.s32 3, %v2768
        %v2770 = vrot.slane %v2723, %v2769
        %v2771 = vlaneseq
        %v2772 = vshrl.u32 %v2771, 7
        %v2773 = vsub.s32 3, %v2772
        %v2774 = vrot.slane %v2724, %v2773
        %v2775 = vmul.f32 %v2765, %v2770
        %v2776 = vmul.f32 %v2766, %v2774
        %v2777 = vadd.f32 %v2763, %v2775
        %v2778 = vadd.f32 %v2764, %v2776
        %v2779 = vld [vmem:[#allocation2 + $0x290] sm:$0xff]
        %v2780 = vld [vmem:[#allocation2 + $0x298] sm:$0xff]
        %v2781 = vlaneseq
        %v2782 = vshrl.u32 %v2781, 7
        %v2783 = vsub.s32 4, %v2782
        %v2784 = vrot.slane %v2723, %v2783
        %v2785 = vlaneseq
        %v2786 = vshrl.u32 %v2785, 7
        %v2787 = vsub.s32 4, %v2786
        %v2788 = vrot.slane %v2724, %v2787
        %v2789 = vmul.f32 %v2779, %v2784
        %v2790 = vmul.f32 %v2780, %v2788
        %v2791 = vadd.f32 %v2777, %v2789
        %v2792 = vadd.f32 %v2778, %v2790
        %v2793 = vld [vmem:[#allocation2 + $0x2a0] sm:$0xff]
        %v2794 = vld [vmem:[#allocation2 + $0x2a8] sm:$0xff]
        %v2795 = vlaneseq
        %v2796 = vshrl.u32 %v2795, 7
        %v2797 = vsub.s32 5, %v2796
        %v2798 = vrot.slane %v2723, %v2797
        %v2799 = vlaneseq
        %v2800 = vshrl.u32 %v2799, 7
        %v2801 = vsub.s32 5, %v2800
        %v2802 = vrot.slane %v2724, %v2801
        %v2803 = vmul.f32 %v2793, %v2798
        %v2804 = vmul.f32 %v2794, %v2802
        %v2805 = vadd.f32 %v2791, %v2803
        %v2806 = vadd.f32 %v2792, %v2804
        %v2807 = vld [vmem:[#allocation2 + $0x2b0] sm:$0xff]
        %v2808 = vld [vmem:[#allocation2 + $0x2b8] sm:$0xff]
        %v2809 = vlaneseq
        %v2810 = vshrl.u32 %v2809, 7
        %v2811 = vsub.s32 6, %v2810
        %v2812 = vrot.slane %v2723, %v2811
        %v2813 = vlaneseq
        %v2814 = vshrl.u32 %v2813, 7
        %v2815 = vsub.s32 6, %v2814
        %v2816 = vrot.slane %v2724, %v2815
        %v2817 = vmul.f32 %v2807, %v2812
        %v2818 = vmul.f32 %v2808, %v2816
        %v2819 = vadd.f32 %v2805, %v2817
        %v2820 = vadd.f32 %v2806, %v2818
        %vm2821 = vcmp.gt.f32.partialorder %v2819, 0.0
        %vm2822 = vcmp.gt.f32.partialorder %v2820, 0.0
        %v2823 = vmul.f32 %v2819, 0.01
        %v2824 = vmul.f32 %v2820, 0.01
        %v2825 = vsel %vm2821, %v2819, %v2823
        %v2826 = vsel %vm2822, %v2820, %v2824
        %v2827 = vld [vmem:[#allocation2 + $0x2c0] sm:$0xff]
        %v2828 = vld [vmem:[#allocation2 + $0x2c8] sm:$0xff]
        %v2829 = vlaneseq
        %v2830 = vshrl.u32 %v2829, 7
        %v2831 = vsub.s32 0, %v2830
        %v2832 = vrot.slane %v2825, %v2831
        %v2833 = vlaneseq
        %v2834 = vshrl.u32 %v2833, 7
        %v2835 = vsub.s32 0, %v2834
        %v2836 = vrot.slane %v2826, %v2835
        %v2837 = vmul.f32 %v2827, %v2832
        %v2838 = vmul.f32 %v2828, %v2836
        %v2839 = vld [vmem:[#allocation2 + $0x2d0] sm:$0xff]
        %v2840 = vld [vmem:[#allocation2 + $0x2d8] sm:$0xff]
        %v2841 = vlaneseq
        %v2842 = vshrl.u32 %v2841, 7
        %v2843 = vsub.s32 1, %v2842
        %v2844 = vrot.slane %v2825, %v2843
        %v2845 = vlaneseq
        %v2846 = vshrl.u32 %v2845, 7
        %v2847 = vsub.s32 1, %v2846
        %v2848 = vrot.slane %v2826, %v2847
        %v2849 = vmul.f32 %v2839, %v2844
        %v2850 = vmul.f32 %v2840, %v2848
        %v2851 = vadd.f32 %v2837, %v2849
        %v2852 = vadd.f32 %v2838, %v2850
        %v2853 = vld [vmem:[#allocation2 + $0x2e0] sm:$0xff]
        %v2854 = vld [vmem:[#allocation2 + $0x2e8] sm:$0xff]
        %v2855 = vlaneseq
        %v2856 = vshrl.u32 %v2855, 7
        %v2857 = vsub.s32 2, %v2856
        %v2858 = vrot.slane %v2825, %v2857
        %v2859 = vlaneseq
        %v2860 = vshrl.u32 %v2859, 7
        %v2861 = vsub.s32 2, %v2860
        %v2862 = vrot.slane %v2826, %v2861
        %v2863 = vmul.f32 %v2853, %v2858
        %v2864 = vmul.f32 %v2854, %v2862
        %v2865 = vadd.f32 %v2851, %v2863
        %v2866 = vadd.f32 %v2852, %v2864
        %v2867 = vld [vmem:[#allocation2 + $0x2f0] sm:$0xff]
        %v2868 = vld [vmem:[#allocation2 + $0x2f8] sm:$0xff]
        %v2869 = vlaneseq
        %v2870 = vshrl.u32 %v2869, 7
        %v2871 = vsub.s32 3, %v2870
        %v2872 = vrot.slane %v2825, %v2871
        %v2873 = vlaneseq
        %v2874 = vshrl.u32 %v2873, 7
        %v2875 = vsub.s32 3, %v2874
        %v2876 = vrot.slane %v2826, %v2875
        %v2877 = vmul.f32 %v2867, %v2872
        %v2878 = vmul.f32 %v2868, %v2876
        %v2879 = vadd.f32 %v2865, %v2877
        %v2880 = vadd.f32 %v2866, %v2878
        %v2881 = vld [vmem:[#allocation2 + $0x300] sm:$0xff]
        %v2882 = vld [vmem:[#allocation2 + $0x308] sm:$0xff]
        %v2883 = vlaneseq
        %v2884 = vshrl.u32 %v2883, 7
        %v2885 = vsub.s32 4, %v2884
        %v2886 = vrot.slane %v2825, %v2885
        %v2887 = vlaneseq
        %v2888 = vshrl.u32 %v2887, 7
        %v2889 = vsub.s32 4, %v2888
        %v2890 = vrot.slane %v2826, %v2889
        %v2891 = vmul.f32 %v2881, %v2886
        %v2892 = vmul.f32 %v2882, %v2890
        %v2893 = vadd.f32 %v2879, %v2891
        %v2894 = vadd.f32 %v2880, %v2892
        %v2895 = vld [vmem:[#allocation2 + $0x310] sm:$0xff]
        %v2896 = vld [vmem:[#allocation2 + $0x318] sm:$0xff]
        %v2897 = vlaneseq
        %v2898 = vshrl.u32 %v2897, 7
        %v2899 = vsub.s32 5, %v2898
        %v2900 = vrot.slane %v2825, %v2899
        %v2901 = vlaneseq
        %v2902 = vshrl.u32 %v2901, 7
        %v2903 = vsub.s32 5, %v2902
        %v2904 = vrot.slane %v2826, %v2903
        %v2905 = vmul.f32 %v2895, %v2900
        %v2906 = vmul.f32 %v2896, %v2904
        %v2907 = vadd.f32 %v2893, %v2905
        %v2908 = vadd.f32 %v2894, %v2906
        %v2909 = vld [vmem:[#allocation2 + $0x320] sm:$0xff]
        %v2910 = vld [vmem:[#allocation2 + $0x328] sm:$0xff]
        %v2911 = vlaneseq
        %v2912 = vshrl.u32 %v2911, 7
        %v2913 = vsub.s32 6, %v2912
        %v2914 = vrot.slane %v2825, %v2913
        %v2915 = vlaneseq
        %v2916 = vshrl.u32 %v2915, 7
        %v2917 = vsub.s32 6, %v2916
        %v2918 = vrot.slane %v2826, %v2917
        %v2919 = vmul.f32 %v2909, %v2914
        %v2920 = vmul.f32 %v2910, %v2918
        %v2921 = vadd.f32 %v2907, %v2919
        %v2922 = vadd.f32 %v2908, %v2920
        %vm2923 = vcmp.gt.f32.partialorder %v2921, 0.0
        %vm2924 = vcmp.gt.f32.partialorder %v2922, 0.0
        %v2925 = vmul.f32 %v2921, 0.01
        %v2926 = vmul.f32 %v2922, 0.01
        %v2927 = vsel %vm2923, %v2921, %v2925
        %v2928 = vsel %vm2924, %v2922, %v2926
        %v2929 = vld [vmem:[#allocation2 + $0x330] sm:$0xff]
        %v2930 = vld [vmem:[#allocation2 + $0x338] sm:$0xff]
        %v2931 = vlaneseq
        %v2932 = vshrl.u32 %v2931, 7
        %v2933 = vsub.s32 0, %v2932
        %v2934 = vrot.slane %v2927, %v2933
        %v2935 = vlaneseq
        %v2936 = vshrl.u32 %v2935, 7
        %v2937 = vsub.s32 0, %v2936
        %v2938 = vrot.slane %v2928, %v2937
        %v2939 = vmul.f32 %v2929, %v2934
        %v2940 = vmul.f32 %v2930, %v2938
        %v2941 = vld [vmem:[#allocation2 + $0x340] sm:$0xff]
        %v2942 = vld [vmem:[#allocation2 + $0x348] sm:$0xff]
        %v2943 = vlaneseq
        %v2944 = vshrl.u32 %v2943, 7
        %v2945 = vsub.s32 1, %v2944
        %v2946 = vrot.slane %v2927, %v2945
        %v2947 = vlaneseq
        %v2948 = vshrl.u32 %v2947, 7
        %v2949 = vsub.s32 1, %v2948
        %v2950 = vrot.slane %v2928, %v2949
        %v2951 = vmul.f32 %v2941, %v2946
        %v2952 = vmul.f32 %v2942, %v2950
        %v2953 = vadd.f32 %v2939, %v2951
        %v2954 = vadd.f32 %v2940, %v2952
        %v2955 = vld [vmem:[#allocation2 + $0x350] sm:$0xff]
        %v2956 = vld [vmem:[#allocation2 + $0x358] sm:$0xff]
        %v2957 = vlaneseq
        %v2958 = vshrl.u32 %v2957, 7
        %v2959 = vsub.s32 2, %v2958
        %v2960 = vrot.slane %v2927, %v2959
        %v2961 = vlaneseq
        %v2962 = vshrl.u32 %v2961, 7
        %v2963 = vsub.s32 2, %v2962
        %v2964 = vrot.slane %v2928, %v2963
        %v2965 = vmul.f32 %v2955, %v2960
        %v2966 = vmul.f32 %v2956, %v2964
        %v2967 = vadd.f32 %v2953, %v2965
        %v2968 = vadd.f32 %v2954, %v2966
        %v2969 = vld [vmem:[#allocation2 + $0x360] sm:$0xff]
        %v2970 = vld [vmem:[#allocation2 + $0x368] sm:$0xff]
        %v2971 = vlaneseq
        %v2972 = vshrl.u32 %v2971, 7
        %v2973 = vsub.s32 3, %v2972
        %v2974 = vrot.slane %v2927, %v2973
        %v2975 = vlaneseq
        %v2976 = vshrl.u32 %v2975, 7
        %v2977 = vsub.s32 3, %v2976
        %v2978 = vrot.slane %v2928, %v2977
        %v2979 = vmul.f32 %v2969, %v2974
        %v2980 = vmul.f32 %v2970, %v2978
        %v2981 = vadd.f32 %v2967, %v2979
        %v2982 = vadd.f32 %v2968, %v2980
        %v2983 = vld [vmem:[#allocation2 + $0x370] sm:$0xff]
        %v2984 = vld [vmem:[#allocation2 + $0x378] sm:$0xff]
        %v2985 = vlaneseq
        %v2986 = vshrl.u32 %v2985, 7
        %v2987 = vsub.s32 4, %v2986
        %v2988 = vrot.slane %v2927, %v2987
        %v2989 = vlaneseq
        %v2990 = vshrl.u32 %v2989, 7
        %v2991 = vsub.s32 4, %v2990
        %v2992 = vrot.slane %v2928, %v2991
        %v2993 = vmul.f32 %v2983, %v2988
        %v2994 = vmul.f32 %v2984, %v2992
        %v2995 = vadd.f32 %v2981, %v2993
        %v2996 = vadd.f32 %v2982, %v2994
        %v2997 = vld [vmem:[#allocation2 + $0x380] sm:$0xff]
        %v2998 = vld [vmem:[#allocation2 + $0x388] sm:$0xff]
        %v2999 = vlaneseq
        %v3000 = vshrl.u32 %v2999, 7
        %v3001 = vsub.s32 5, %v3000
        %v3002 = vrot.slane %v2927, %v3001
        %v3003 = vlaneseq
        %v3004 = vshrl.u32 %v3003, 7
        %v3005 = vsub.s32 5, %v3004
        %v3006 = vrot.slane %v2928, %v3005
        %v3007 = vmul.f32 %v2997, %v3002
        %v3008 = vmul.f32 %v2998, %v3006
        %v3009 = vadd.f32 %v2995, %v3007
        %v3010 = vadd.f32 %v2996, %v3008
        %v3011 = vld [vmem:[#allocation2 + $0x390] sm:$0xff]
        %v3012 = vld [vmem:[#allocation2 + $0x398] sm:$0xff]
        %v3013 = vlaneseq
        %v3014 = vshrl.u32 %v3013, 7
        %v3015 = vsub.s32 6, %v3014
        %v3016 = vrot.slane %v2927, %v3015
        %v3017 = vlaneseq
        %v3018 = vshrl.u32 %v3017, 7
        %v3019 = vsub.s32 6, %v3018
        %v3020 = vrot.slane %v2928, %v3019
        %v3021 = vmul.f32 %v3011, %v3016
        %v3022 = vmul.f32 %v3012, %v3020
        %v3023 = vadd.f32 %v3009, %v3021
        %v3024 = vadd.f32 %v3010, %v3022
        %vm3025 = vcmp.gt.f32.partialorder %v3023, 0.0
        %vm3026 = vcmp.gt.f32.partialorder %v3024, 0.0
        %v3027 = vmul.f32 %v3023, 0.01
        %v3028 = vmul.f32 %v3024, 0.01
        %v3029 = vsel %vm3025, %v3023, %v3027
        %v3030 = vsel %vm3026, %v3024, %v3028
        %v3031 = vld [vmem:[#allocation2 + $0x3a0] sm:$0xff]
        %v3032 = vld [vmem:[#allocation2 + $0x3a8] sm:$0xff]
        %v3033 = vlaneseq
        %v3034 = vshrl.u32 %v3033, 7
        %v3035 = vsub.s32 0, %v3034
        %v3036 = vrot.slane %v3029, %v3035
        %v3037 = vlaneseq
        %v3038 = vshrl.u32 %v3037, 7
        %v3039 = vsub.s32 0, %v3038
        %v3040 = vrot.slane %v3030, %v3039
        %v3041 = vmul.f32 %v3031, %v3036
        %v3042 = vmul.f32 %v3032, %v3040
        %v3043 = vld [vmem:[#allocation2 + $0x3b0] sm:$0xff]
        %v3044 = vld [vmem:[#allocation2 + $0x3b8] sm:$0xff]
        %v3045 = vlaneseq
        %v3046 = vshrl.u32 %v3045, 7
        %v3047 = vsub.s32 1, %v3046
        %v3048 = vrot.slane %v3029, %v3047
        %v3049 = vlaneseq
        %v3050 = vshrl.u32 %v3049, 7
        %v3051 = vsub.s32 1, %v3050
        %v3052 = vrot.slane %v3030, %v3051
        %v3053 = vmul.f32 %v3043, %v3048
        %v3054 = vmul.f32 %v3044, %v3052
        %v3055 = vadd.f32 %v3041, %v3053
        %v3056 = vadd.f32 %v3042, %v3054
        %v3057 = vld [vmem:[#allocation2 + $0x3c0] sm:$0xff]
        %v3058 = vld [vmem:[#allocation2 + $0x3c8] sm:$0xff]
        %v3059 = vlaneseq
        %v3060 = vshrl.u32 %v3059, 7
        %v3061 = vsub.s32 2, %v3060
        %v3062 = vrot.slane %v3029, %v3061
        %v3063 = vlaneseq
        %v3064 = vshrl.u32 %v3063, 7
        %v3065 = vsub.s32 2, %v3064
        %v3066 = vrot.slane %v3030, %v3065
        %v3067 = vmul.f32 %v3057, %v3062
        %v3068 = vmul.f32 %v3058, %v3066
        %v3069 = vadd.f32 %v3055, %v3067
        %v3070 = vadd.f32 %v3056, %v3068
        %v3071 = vld [vmem:[#allocation2 + $0x3d0] sm:$0xff]
        %v3072 = vld [vmem:[#allocation2 + $0x3d8] sm:$0xff]
        %v3073 = vlaneseq
        %v3074 = vshrl.u32 %v3073, 7
        %v3075 = vsub.s32 3, %v3074
        %v3076 = vrot.slane %v3029, %v3075
        %v3077 = vlaneseq
        %v3078 = vshrl.u32 %v3077, 7
        %v3079 = vsub.s32 3, %v3078
        %v3080 = vrot.slane %v3030, %v3079
        %v3081 = vmul.f32 %v3071, %v3076
        %v3082 = vmul.f32 %v3072, %v3080
        %v3083 = vadd.f32 %v3069, %v3081
        %v3084 = vadd.f32 %v3070, %v3082
        %v3085 = vld [vmem:[#allocation2 + $0x3e0] sm:$0xff]
        %v3086 = vld [vmem:[#allocation2 + $0x3e8] sm:$0xff]
        %v3087 = vlaneseq
        %v3088 = vshrl.u32 %v3087, 7
        %v3089 = vsub.s32 4, %v3088
        %v3090 = vrot.slane %v3029, %v3089
        %v3091 = vlaneseq
        %v3092 = vshrl.u32 %v3091, 7
        %v3093 = vsub.s32 4, %v3092
        %v3094 = vrot.slane %v3030, %v3093
        %v3095 = vmul.f32 %v3085, %v3090
        %v3096 = vmul.f32 %v3086, %v3094
        %v3097 = vadd.f32 %v3083, %v3095
        %v3098 = vadd.f32 %v3084, %v3096
        %v3099 = vld [vmem:[#allocation2 + $0x3f0] sm:$0xff]
        %v3100 = vld [vmem:[#allocation2 + $0x3f8] sm:$0xff]
        %v3101 = vlaneseq
        %v3102 = vshrl.u32 %v3101, 7
        %v3103 = vsub.s32 5, %v3102
        %v3104 = vrot.slane %v3029, %v3103
        %v3105 = vlaneseq
        %v3106 = vshrl.u32 %v3105, 7
        %v3107 = vsub.s32 5, %v3106
        %v3108 = vrot.slane %v3030, %v3107
        %v3109 = vmul.f32 %v3099, %v3104
        %v3110 = vmul.f32 %v3100, %v3108
        %v3111 = vadd.f32 %v3097, %v3109
        %v3112 = vadd.f32 %v3098, %v3110
        %v3113 = vld [vmem:[#allocation2 + $0x400] sm:$0xff]
        %v3114 = vld [vmem:[#allocation2 + $0x408] sm:$0xff]
        %v3115 = vlaneseq
        %v3116 = vshrl.u32 %v3115, 7
        %v3117 = vsub.s32 6, %v3116
        %v3118 = vrot.slane %v3029, %v3117
        %v3119 = vlaneseq
        %v3120 = vshrl.u32 %v3119, 7
        %v3121 = vsub.s32 6, %v3120
        %v3122 = vrot.slane %v3030, %v3121
        %v3123 = vmul.f32 %v3113, %v3118
        %v3124 = vmul.f32 %v3114, %v3122
        %v3125 = vadd.f32 %v3111, %v3123
        %v3126 = vadd.f32 %v3112, %v3124
        %vm3127 = vcmp.gt.f32.partialorder %v3125, 0.0
        %vm3128 = vcmp.gt.f32.partialorder %v3126, 0.0
        %v3129 = vmul.f32 %v3125, 0.01
        %v3130 = vmul.f32 %v3126, 0.01
        %v3131 = vsel %vm3127, %v3125, %v3129
        %v3132 = vsel %vm3128, %v3126, %v3130
        %v3135 = vcombine.low %v3131, %v3132
        %v3137 = vunpack.c.l.s4 1966171168
        %v3138 = vunpack.c.0.s8 %v3137
        %v3139 = vlaneseq
        %v3140 = vshrl.u32 %v3139, 7
        %v3141 = vsub.s32 %v3138, %v3140
        %v3142 = vrot.slane %v3135, %v3141
        %v3144 = vunpack.c.l.s4 1966171168
        %v3145 = vunpack.c.0.s8 %v3144
        %v3146 = vlaneseq
        %v3147 = vshrl.u32 %v3146, 7
        %v3148 = vsub.s32 %v3145, %v3147
        %v3149 = vrot.slane %v3142, %v3148
        %3151 = vst.msk [vmem:[%s172 + $0x4] sm:$0x3] %vm1168, %v3149
        %v3152 = vld [vmem:[%s152 + $0xc] sm:$0xf]
        %v3153 = vld [vmem:[#allocation2] sm:$0xff]
        %v3154 = vld [vmem:[#allocation2 + $0x8] sm:$0xff]
        %v3156 = vlaneseq
        %v3157 = vshrl.u32 %v3156, 7
        %v3158 = vsub.s32 0, %v3157
        %v3159 = vrot.slane %v3152, %v3158
        %v3160 = vlaneseq
        %v3161 = vshrl.u32 %v3160, 7
        %v3162 = vsub.s32 2, %v3161
        %v3163 = vrot.slane %v3152, %v3162
        %v3166 = vlaneseq
        %v3167 = vshrl.u32 %v3166, 7
        %v3168 = vsub.s32 0, %v3167
        %v3169 = vrot.slane %v3159, %v3168
        %v3170 = vlaneseq
        %v3171 = vshrl.u32 %v3170, 7
        %v3172 = vsub.s32 0, %v3171
        %v3173 = vrot.slane %v3163, %v3172
        %v3174 = vmul.f32 %v3153, %v3169
        %v3175 = vmul.f32 %v3154, %v3173
        %v3176 = vld [vmem:[#allocation2 + $0x10] sm:$0xff]
        %v3177 = vld [vmem:[#allocation2 + $0x18] sm:$0xff]
        %v3178 = vlaneseq
        %v3179 = vshrl.u32 %v3178, 7
        %v3180 = vsub.s32 1, %v3179
        %v3181 = vrot.slane %v3152, %v3180
        %v3182 = vlaneseq
        %v3183 = vshrl.u32 %v3182, 7
        %v3184 = vsub.s32 3, %v3183
        %v3185 = vrot.slane %v3152, %v3184
        %v3188 = vlaneseq
        %v3189 = vshrl.u32 %v3188, 7
        %v3190 = vsub.s32 1, %v3189
        %v3191 = vrot.slane %v3181, %v3190
        %v3192 = vlaneseq
        %v3193 = vshrl.u32 %v3192, 7
        %v3194 = vsub.s32 1, %v3193
        %v3195 = vrot.slane %v3185, %v3194
        %v3196 = vmul.f32 %v3176, %v3191
        %v3197 = vmul.f32 %v3177, %v3195
        %v3198 = vadd.f32 %v3174, %v3196
        %v3199 = vadd.f32 %v3175, %v3197
        %vm3200 = vcmp.gt.f32.partialorder %v3198, 0.0
        %vm3201 = vcmp.gt.f32.partialorder %v3199, 0.0
        %v3202 = vmul.f32 %v3198, 0.01
        %v3203 = vmul.f32 %v3199, 0.01
        %v3204 = vsel %vm3200, %v3198, %v3202
        %v3205 = vsel %vm3201, %v3199, %v3203
        %v3206 = vld [vmem:[#allocation2 + $0x20] sm:$0xff]
        %v3207 = vld [vmem:[#allocation2 + $0x28] sm:$0xff]
        %v3208 = vlaneseq
        %v3209 = vshrl.u32 %v3208, 7
        %v3210 = vsub.s32 0, %v3209
        %v3211 = vrot.slane %v3204, %v3210
        %v3212 = vlaneseq
        %v3213 = vshrl.u32 %v3212, 7
        %v3214 = vsub.s32 0, %v3213
        %v3215 = vrot.slane %v3205, %v3214
        %v3216 = vmul.f32 %v3206, %v3211
        %v3217 = vmul.f32 %v3207, %v3215
        %v3218 = vld [vmem:[#allocation2 + $0x30] sm:$0xff]
        %v3219 = vld [vmem:[#allocation2 + $0x38] sm:$0xff]
        %v3220 = vlaneseq
        %v3221 = vshrl.u32 %v3220, 7
        %v3222 = vsub.s32 1, %v3221
        %v3223 = vrot.slane %v3204, %v3222
        %v3224 = vlaneseq
        %v3225 = vshrl.u32 %v3224, 7
        %v3226 = vsub.s32 1, %v3225
        %v3227 = vrot.slane %v3205, %v3226
        %v3228 = vmul.f32 %v3218, %v3223
        %v3229 = vmul.f32 %v3219, %v3227
        %v3230 = vadd.f32 %v3216, %v3228
        %v3231 = vadd.f32 %v3217, %v3229
        %v3232 = vld [vmem:[#allocation2 + $0x40] sm:$0xff]
        %v3233 = vld [vmem:[#allocation2 + $0x48] sm:$0xff]
        %v3234 = vlaneseq
        %v3235 = vshrl.u32 %v3234, 7
        %v3236 = vsub.s32 2, %v3235
        %v3237 = vrot.slane %v3204, %v3236
        %v3238 = vlaneseq
        %v3239 = vshrl.u32 %v3238, 7
        %v3240 = vsub.s32 2, %v3239
        %v3241 = vrot.slane %v3205, %v3240
        %v3242 = vmul.f32 %v3232, %v3237
        %v3243 = vmul.f32 %v3233, %v3241
        %v3244 = vadd.f32 %v3230, %v3242
        %v3245 = vadd.f32 %v3231, %v3243
        %v3246 = vld [vmem:[#allocation2 + $0x50] sm:$0xff]
        %v3247 = vld [vmem:[#allocation2 + $0x58] sm:$0xff]
        %v3248 = vlaneseq
        %v3249 = vshrl.u32 %v3248, 7
        %v3250 = vsub.s32 3, %v3249
        %v3251 = vrot.slane %v3204, %v3250
        %v3252 = vlaneseq
        %v3253 = vshrl.u32 %v3252, 7
        %v3254 = vsub.s32 3, %v3253
        %v3255 = vrot.slane %v3205, %v3254
        %v3256 = vmul.f32 %v3246, %v3251
        %v3257 = vmul.f32 %v3247, %v3255
        %v3258 = vadd.f32 %v3244, %v3256
        %v3259 = vadd.f32 %v3245, %v3257
        %v3260 = vld [vmem:[#allocation2 + $0x60] sm:$0xff]
        %v3261 = vld [vmem:[#allocation2 + $0x68] sm:$0xff]
        %v3262 = vlaneseq
        %v3263 = vshrl.u32 %v3262, 7
        %v3264 = vsub.s32 4, %v3263
        %v3265 = vrot.slane %v3204, %v3264
        %v3266 = vlaneseq
        %v3267 = vshrl.u32 %v3266, 7
        %v3268 = vsub.s32 4, %v3267
        %v3269 = vrot.slane %v3205, %v3268
        %v3270 = vmul.f32 %v3260, %v3265
        %v3271 = vmul.f32 %v3261, %v3269
        %v3272 = vadd.f32 %v3258, %v3270
        %v3273 = vadd.f32 %v3259, %v3271
        %v3274 = vld [vmem:[#allocation2 + $0x70] sm:$0xff]
        %v3275 = vld [vmem:[#allocation2 + $0x78] sm:$0xff]
        %v3276 = vlaneseq
        %v3277 = vshrl.u32 %v3276, 7
        %v3278 = vsub.s32 5, %v3277
        %v3279 = vrot.slane %v3204, %v3278
        %v3280 = vlaneseq
        %v3281 = vshrl.u32 %v3280, 7
        %v3282 = vsub.s32 5, %v3281
        %v3283 = vrot.slane %v3205, %v3282
        %v3284 = vmul.f32 %v3274, %v3279
        %v3285 = vmul.f32 %v3275, %v3283
        %v3286 = vadd.f32 %v3272, %v3284
        %v3287 = vadd.f32 %v3273, %v3285
        %v3288 = vld [vmem:[#allocation2 + $0x80] sm:$0xff]
        %v3289 = vld [vmem:[#allocation2 + $0x88] sm:$0xff]
        %v3290 = vlaneseq
        %v3291 = vshrl.u32 %v3290, 7
        %v3292 = vsub.s32 6, %v3291
        %v3293 = vrot.slane %v3204, %v3292
        %v3294 = vlaneseq
        %v3295 = vshrl.u32 %v3294, 7
        %v3296 = vsub.s32 6, %v3295
        %v3297 = vrot.slane %v3205, %v3296
        %v3298 = vmul.f32 %v3288, %v3293
        %v3299 = vmul.f32 %v3289, %v3297
        %v3300 = vadd.f32 %v3286, %v3298
        %v3301 = vadd.f32 %v3287, %v3299
        %vm3302 = vcmp.gt.f32.partialorder %v3300, 0.0
        %vm3303 = vcmp.gt.f32.partialorder %v3301, 0.0
        %v3304 = vmul.f32 %v3300, 0.01
        %v3305 = vmul.f32 %v3301, 0.01
        %v3306 = vsel %vm3302, %v3300, %v3304
        %v3307 = vsel %vm3303, %v3301, %v3305
        %v3308 = vld [vmem:[#allocation2 + $0x90] sm:$0xff]
        %v3309 = vld [vmem:[#allocation2 + $0x98] sm:$0xff]
        %v3310 = vlaneseq
        %v3311 = vshrl.u32 %v3310, 7
        %v3312 = vsub.s32 0, %v3311
        %v3313 = vrot.slane %v3306, %v3312
        %v3314 = vlaneseq
        %v3315 = vshrl.u32 %v3314, 7
        %v3316 = vsub.s32 0, %v3315
        %v3317 = vrot.slane %v3307, %v3316
        %v3318 = vmul.f32 %v3308, %v3313
        %v3319 = vmul.f32 %v3309, %v3317
        %v3320 = vld [vmem:[#allocation2 + $0xa0] sm:$0xff]
        %v3321 = vld [vmem:[#allocation2 + $0xa8] sm:$0xff]
        %v3322 = vlaneseq
        %v3323 = vshrl.u32 %v3322, 7
        %v3324 = vsub.s32 1, %v3323
        %v3325 = vrot.slane %v3306, %v3324
        %v3326 = vlaneseq
        %v3327 = vshrl.u32 %v3326, 7
        %v3328 = vsub.s32 1, %v3327
        %v3329 = vrot.slane %v3307, %v3328
        %v3330 = vmul.f32 %v3320, %v3325
        %v3331 = vmul.f32 %v3321, %v3329
        %v3332 = vadd.f32 %v3318, %v3330
        %v3333 = vadd.f32 %v3319, %v3331
        %v3334 = vld [vmem:[#allocation2 + $0xb0] sm:$0xff]
        %v3335 = vld [vmem:[#allocation2 + $0xb8] sm:$0xff]
        %v3336 = vlaneseq
        %v3337 = vshrl.u32 %v3336, 7
        %v3338 = vsub.s32 2, %v3337
        %v3339 = vrot.slane %v3306, %v3338
        %v3340 = vlaneseq
        %v3341 = vshrl.u32 %v3340, 7
        %v3342 = vsub.s32 2, %v3341
        %v3343 = vrot.slane %v3307, %v3342
        %v3344 = vmul.f32 %v3334, %v3339
        %v3345 = vmul.f32 %v3335, %v3343
        %v3346 = vadd.f32 %v3332, %v3344
        %v3347 = vadd.f32 %v3333, %v3345
        %v3348 = vld [vmem:[#allocation2 + $0xc0] sm:$0xff]
        %v3349 = vld [vmem:[#allocation2 + $0xc8] sm:$0xff]
        %v3350 = vlaneseq
        %v3351 = vshrl.u32 %v3350, 7
        %v3352 = vsub.s32 3, %v3351
        %v3353 = vrot.slane %v3306, %v3352
        %v3354 = vlaneseq
        %v3355 = vshrl.u32 %v3354, 7
        %v3356 = vsub.s32 3, %v3355
        %v3357 = vrot.slane %v3307, %v3356
        %v3358 = vmul.f32 %v3348, %v3353
        %v3359 = vmul.f32 %v3349, %v3357
        %v3360 = vadd.f32 %v3346, %v3358
        %v3361 = vadd.f32 %v3347, %v3359
        %v3362 = vld [vmem:[#allocation2 + $0xd0] sm:$0xff]
        %v3363 = vld [vmem:[#allocation2 + $0xd8] sm:$0xff]
        %v3364 = vlaneseq
        %v3365 = vshrl.u32 %v3364, 7
        %v3366 = vsub.s32 4, %v3365
        %v3367 = vrot.slane %v3306, %v3366
        %v3368 = vlaneseq
        %v3369 = vshrl.u32 %v3368, 7
        %v3370 = vsub.s32 4, %v3369
        %v3371 = vrot.slane %v3307, %v3370
        %v3372 = vmul.f32 %v3362, %v3367
        %v3373 = vmul.f32 %v3363, %v3371
        %v3374 = vadd.f32 %v3360, %v3372
        %v3375 = vadd.f32 %v3361, %v3373
        %v3376 = vld [vmem:[#allocation2 + $0xe0] sm:$0xff]
        %v3377 = vld [vmem:[#allocation2 + $0xe8] sm:$0xff]
        %v3378 = vlaneseq
        %v3379 = vshrl.u32 %v3378, 7
        %v3380 = vsub.s32 5, %v3379
        %v3381 = vrot.slane %v3306, %v3380
        %v3382 = vlaneseq
        %v3383 = vshrl.u32 %v3382, 7
        %v3384 = vsub.s32 5, %v3383
        %v3385 = vrot.slane %v3307, %v3384
        %v3386 = vmul.f32 %v3376, %v3381
        %v3387 = vmul.f32 %v3377, %v3385
        %v3388 = vadd.f32 %v3374, %v3386
        %v3389 = vadd.f32 %v3375, %v3387
        %v3390 = vld [vmem:[#allocation2 + $0xf0] sm:$0xff]
        %v3391 = vld [vmem:[#allocation2 + $0xf8] sm:$0xff]
        %v3392 = vlaneseq
        %v3393 = vshrl.u32 %v3392, 7
        %v3394 = vsub.s32 6, %v3393
        %v3395 = vrot.slane %v3306, %v3394
        %v3396 = vlaneseq
        %v3397 = vshrl.u32 %v3396, 7
        %v3398 = vsub.s32 6, %v3397
        %v3399 = vrot.slane %v3307, %v3398
        %v3400 = vmul.f32 %v3390, %v3395
        %v3401 = vmul.f32 %v3391, %v3399
        %v3402 = vadd.f32 %v3388, %v3400
        %v3403 = vadd.f32 %v3389, %v3401
        %vm3404 = vcmp.gt.f32.partialorder %v3402, 0.0
        %vm3405 = vcmp.gt.f32.partialorder %v3403, 0.0
        %v3406 = vmul.f32 %v3402, 0.01
        %v3407 = vmul.f32 %v3403, 0.01
        %v3408 = vsel %vm3404, %v3402, %v3406
        %v3409 = vsel %vm3405, %v3403, %v3407
        %v3410 = vld [vmem:[#allocation2 + $0x100] sm:$0xff]
        %v3411 = vld [vmem:[#allocation2 + $0x108] sm:$0xff]
        %v3412 = vlaneseq
        %v3413 = vshrl.u32 %v3412, 7
        %v3414 = vsub.s32 0, %v3413
        %v3415 = vrot.slane %v3408, %v3414
        %v3416 = vlaneseq
        %v3417 = vshrl.u32 %v3416, 7
        %v3418 = vsub.s32 0, %v3417
        %v3419 = vrot.slane %v3409, %v3418
        %v3420 = vmul.f32 %v3410, %v3415
        %v3421 = vmul.f32 %v3411, %v3419
        %v3422 = vld [vmem:[#allocation2 + $0x110] sm:$0xff]
        %v3423 = vld [vmem:[#allocation2 + $0x118] sm:$0xff]
        %v3424 = vlaneseq
        %v3425 = vshrl.u32 %v3424, 7
        %v3426 = vsub.s32 1, %v3425
        %v3427 = vrot.slane %v3408, %v3426
        %v3428 = vlaneseq
        %v3429 = vshrl.u32 %v3428, 7
        %v3430 = vsub.s32 1, %v3429
        %v3431 = vrot.slane %v3409, %v3430
        %v3432 = vmul.f32 %v3422, %v3427
        %v3433 = vmul.f32 %v3423, %v3431
        %v3434 = vadd.f32 %v3420, %v3432
        %v3435 = vadd.f32 %v3421, %v3433
        %v3436 = vld [vmem:[#allocation2 + $0x120] sm:$0xff]
        %v3437 = vld [vmem:[#allocation2 + $0x128] sm:$0xff]
        %v3438 = vlaneseq
        %v3439 = vshrl.u32 %v3438, 7
        %v3440 = vsub.s32 2, %v3439
        %v3441 = vrot.slane %v3408, %v3440
        %v3442 = vlaneseq
        %v3443 = vshrl.u32 %v3442, 7
        %v3444 = vsub.s32 2, %v3443
        %v3445 = vrot.slane %v3409, %v3444
        %v3446 = vmul.f32 %v3436, %v3441
        %v3447 = vmul.f32 %v3437, %v3445
        %v3448 = vadd.f32 %v3434, %v3446
        %v3449 = vadd.f32 %v3435, %v3447
        %v3450 = vld [vmem:[#allocation2 + $0x130] sm:$0xff]
        %v3451 = vld [vmem:[#allocation2 + $0x138] sm:$0xff]
        %v3452 = vlaneseq
        %v3453 = vshrl.u32 %v3452, 7
        %v3454 = vsub.s32 3, %v3453
        %v3455 = vrot.slane %v3408, %v3454
        %v3456 = vlaneseq
        %v3457 = vshrl.u32 %v3456, 7
        %v3458 = vsub.s32 3, %v3457
        %v3459 = vrot.slane %v3409, %v3458
        %v3460 = vmul.f32 %v3450, %v3455
        %v3461 = vmul.f32 %v3451, %v3459
        %v3462 = vadd.f32 %v3448, %v3460
        %v3463 = vadd.f32 %v3449, %v3461
        %v3464 = vld [vmem:[#allocation2 + $0x140] sm:$0xff]
        %v3465 = vld [vmem:[#allocation2 + $0x148] sm:$0xff]
        %v3466 = vlaneseq
        %v3467 = vshrl.u32 %v3466, 7
        %v3468 = vsub.s32 4, %v3467
        %v3469 = vrot.slane %v3408, %v3468
        %v3470 = vlaneseq
        %v3471 = vshrl.u32 %v3470, 7
        %v3472 = vsub.s32 4, %v3471
        %v3473 = vrot.slane %v3409, %v3472
        %v3474 = vmul.f32 %v3464, %v3469
        %v3475 = vmul.f32 %v3465, %v3473
        %v3476 = vadd.f32 %v3462, %v3474
        %v3477 = vadd.f32 %v3463, %v3475
        %v3478 = vld [vmem:[#allocation2 + $0x150] sm:$0xff]
        %v3479 = vld [vmem:[#allocation2 + $0x158] sm:$0xff]
        %v3480 = vlaneseq
        %v3481 = vshrl.u32 %v3480, 7
        %v3482 = vsub.s32 5, %v3481
        %v3483 = vrot.slane %v3408, %v3482
        %v3484 = vlaneseq
        %v3485 = vshrl.u32 %v3484, 7
        %v3486 = vsub.s32 5, %v3485
        %v3487 = vrot.slane %v3409, %v3486
        %v3488 = vmul.f32 %v3478, %v3483
        %v3489 = vmul.f32 %v3479, %v3487
        %v3490 = vadd.f32 %v3476, %v3488
        %v3491 = vadd.f32 %v3477, %v3489
        %v3492 = vld [vmem:[#allocation2 + $0x160] sm:$0xff]
        %v3493 = vld [vmem:[#allocation2 + $0x168] sm:$0xff]
        %v3494 = vlaneseq
        %v3495 = vshrl.u32 %v3494, 7
        %v3496 = vsub.s32 6, %v3495
        %v3497 = vrot.slane %v3408, %v3496
        %v3498 = vlaneseq
        %v3499 = vshrl.u32 %v3498, 7
        %v3500 = vsub.s32 6, %v3499
        %v3501 = vrot.slane %v3409, %v3500
        %v3502 = vmul.f32 %v3492, %v3497
        %v3503 = vmul.f32 %v3493, %v3501
        %v3504 = vadd.f32 %v3490, %v3502
        %v3505 = vadd.f32 %v3491, %v3503
        %vm3506 = vcmp.gt.f32.partialorder %v3504, 0.0
        %vm3507 = vcmp.gt.f32.partialorder %v3505, 0.0
        %v3508 = vmul.f32 %v3504, 0.01
        %v3509 = vmul.f32 %v3505, 0.01
        %v3510 = vsel %vm3506, %v3504, %v3508
        %v3511 = vsel %vm3507, %v3505, %v3509
        %v3512 = vld [vmem:[#allocation2 + $0x170] sm:$0xff]
        %v3513 = vld [vmem:[#allocation2 + $0x178] sm:$0xff]
        %v3514 = vlaneseq
        %v3515 = vshrl.u32 %v3514, 7
        %v3516 = vsub.s32 0, %v3515
        %v3517 = vrot.slane %v3510, %v3516
        %v3518 = vlaneseq
        %v3519 = vshrl.u32 %v3518, 7
        %v3520 = vsub.s32 0, %v3519
        %v3521 = vrot.slane %v3511, %v3520
        %v3522 = vmul.f32 %v3512, %v3517
        %v3523 = vmul.f32 %v3513, %v3521
        %v3524 = vld [vmem:[#allocation2 + $0x180] sm:$0xff]
        %v3525 = vld [vmem:[#allocation2 + $0x188] sm:$0xff]
        %v3526 = vlaneseq
        %v3527 = vshrl.u32 %v3526, 7
        %v3528 = vsub.s32 1, %v3527
        %v3529 = vrot.slane %v3510, %v3528
        %v3530 = vlaneseq
        %v3531 = vshrl.u32 %v3530, 7
        %v3532 = vsub.s32 1, %v3531
        %v3533 = vrot.slane %v3511, %v3532
        %v3534 = vmul.f32 %v3524, %v3529
        %v3535 = vmul.f32 %v3525, %v3533
        %v3536 = vadd.f32 %v3522, %v3534
        %v3537 = vadd.f32 %v3523, %v3535
        %v3538 = vld [vmem:[#allocation2 + $0x190] sm:$0xff]
        %v3539 = vld [vmem:[#allocation2 + $0x198] sm:$0xff]
        %v3540 = vlaneseq
        %v3541 = vshrl.u32 %v3540, 7
        %v3542 = vsub.s32 2, %v3541
        %v3543 = vrot.slane %v3510, %v3542
        %v3544 = vlaneseq
        %v3545 = vshrl.u32 %v3544, 7
        %v3546 = vsub.s32 2, %v3545
        %v3547 = vrot.slane %v3511, %v3546
        %v3548 = vmul.f32 %v3538, %v3543
        %v3549 = vmul.f32 %v3539, %v3547
        %v3550 = vadd.f32 %v3536, %v3548
        %v3551 = vadd.f32 %v3537, %v3549
        %v3552 = vld [vmem:[#allocation2 + $0x1a0] sm:$0xff]
        %v3553 = vld [vmem:[#allocation2 + $0x1a8] sm:$0xff]
        %v3554 = vlaneseq
        %v3555 = vshrl.u32 %v3554, 7
        %v3556 = vsub.s32 3, %v3555
        %v3557 = vrot.slane %v3510, %v3556
        %v3558 = vlaneseq
        %v3559 = vshrl.u32 %v3558, 7
        %v3560 = vsub.s32 3, %v3559
        %v3561 = vrot.slane %v3511, %v3560
        %v3562 = vmul.f32 %v3552, %v3557
        %v3563 = vmul.f32 %v3553, %v3561
        %v3564 = vadd.f32 %v3550, %v3562
        %v3565 = vadd.f32 %v3551, %v3563
        %v3566 = vld [vmem:[#allocation2 + $0x1b0] sm:$0xff]
        %v3567 = vld [vmem:[#allocation2 + $0x1b8] sm:$0xff]
        %v3568 = vlaneseq
        %v3569 = vshrl.u32 %v3568, 7
        %v3570 = vsub.s32 4, %v3569
        %v3571 = vrot.slane %v3510, %v3570
        %v3572 = vlaneseq
        %v3573 = vshrl.u32 %v3572, 7
        %v3574 = vsub.s32 4, %v3573
        %v3575 = vrot.slane %v3511, %v3574
        %v3576 = vmul.f32 %v3566, %v3571
        %v3577 = vmul.f32 %v3567, %v3575
        %v3578 = vadd.f32 %v3564, %v3576
        %v3579 = vadd.f32 %v3565, %v3577
        %v3580 = vld [vmem:[#allocation2 + $0x1c0] sm:$0xff]
        %v3581 = vld [vmem:[#allocation2 + $0x1c8] sm:$0xff]
        %v3582 = vlaneseq
        %v3583 = vshrl.u32 %v3582, 7
        %v3584 = vsub.s32 5, %v3583
        %v3585 = vrot.slane %v3510, %v3584
        %v3586 = vlaneseq
        %v3587 = vshrl.u32 %v3586, 7
        %v3588 = vsub.s32 5, %v3587
        %v3589 = vrot.slane %v3511, %v3588
        %v3590 = vmul.f32 %v3580, %v3585
        %v3591 = vmul.f32 %v3581, %v3589
        %v3592 = vadd.f32 %v3578, %v3590
        %v3593 = vadd.f32 %v3579, %v3591
        %v3594 = vld [vmem:[#allocation2 + $0x1d0] sm:$0xff]
        %v3595 = vld [vmem:[#allocation2 + $0x1d8] sm:$0xff]
        %v3596 = vlaneseq
        %v3597 = vshrl.u32 %v3596, 7
        %v3598 = vsub.s32 6, %v3597
        %v3599 = vrot.slane %v3510, %v3598
        %v3600 = vlaneseq
        %v3601 = vshrl.u32 %v3600, 7
        %v3602 = vsub.s32 6, %v3601
        %v3603 = vrot.slane %v3511, %v3602
        %v3604 = vmul.f32 %v3594, %v3599
        %v3605 = vmul.f32 %v3595, %v3603
        %v3606 = vadd.f32 %v3592, %v3604
        %v3607 = vadd.f32 %v3593, %v3605
        %vm3608 = vcmp.gt.f32.partialorder %v3606, 0.0
        %vm3609 = vcmp.gt.f32.partialorder %v3607, 0.0
        %v3610 = vmul.f32 %v3606, 0.01
        %v3611 = vmul.f32 %v3607, 0.01
        %v3612 = vsel %vm3608, %v3606, %v3610
        %v3613 = vsel %vm3609, %v3607, %v3611
        %v3614 = vld [vmem:[#allocation2 + $0x1e0] sm:$0xff]
        %v3615 = vld [vmem:[#allocation2 + $0x1e8] sm:$0xff]
        %v3616 = vlaneseq
        %v3617 = vshrl.u32 %v3616, 7
        %v3618 = vsub.s32 0, %v3617
        %v3619 = vrot.slane %v3612, %v3618
        %v3620 = vlaneseq
        %v3621 = vshrl.u32 %v3620, 7
        %v3622 = vsub.s32 0, %v3621
        %v3623 = vrot.slane %v3613, %v3622
        %v3624 = vmul.f32 %v3614, %v3619
        %v3625 = vmul.f32 %v3615, %v3623
        %v3626 = vld [vmem:[#allocation2 + $0x1f0] sm:$0xff]
        %v3627 = vld [vmem:[#allocation2 + $0x1f8] sm:$0xff]
        %v3628 = vlaneseq
        %v3629 = vshrl.u32 %v3628, 7
        %v3630 = vsub.s32 1, %v3629
        %v3631 = vrot.slane %v3612, %v3630
        %v3632 = vlaneseq
        %v3633 = vshrl.u32 %v3632, 7
        %v3634 = vsub.s32 1, %v3633
        %v3635 = vrot.slane %v3613, %v3634
        %v3636 = vmul.f32 %v3626, %v3631
        %v3637 = vmul.f32 %v3627, %v3635
        %v3638 = vadd.f32 %v3624, %v3636
        %v3639 = vadd.f32 %v3625, %v3637
        %v3640 = vld [vmem:[#allocation2 + $0x200] sm:$0xff]
        %v3641 = vld [vmem:[#allocation2 + $0x208] sm:$0xff]
        %v3642 = vlaneseq
        %v3643 = vshrl.u32 %v3642, 7
        %v3644 = vsub.s32 2, %v3643
        %v3645 = vrot.slane %v3612, %v3644
        %v3646 = vlaneseq
        %v3647 = vshrl.u32 %v3646, 7
        %v3648 = vsub.s32 2, %v3647
        %v3649 = vrot.slane %v3613, %v3648
        %v3650 = vmul.f32 %v3640, %v3645
        %v3651 = vmul.f32 %v3641, %v3649
        %v3652 = vadd.f32 %v3638, %v3650
        %v3653 = vadd.f32 %v3639, %v3651
        %v3654 = vld [vmem:[#allocation2 + $0x210] sm:$0xff]
        %v3655 = vld [vmem:[#allocation2 + $0x218] sm:$0xff]
        %v3656 = vlaneseq
        %v3657 = vshrl.u32 %v3656, 7
        %v3658 = vsub.s32 3, %v3657
        %v3659 = vrot.slane %v3612, %v3658
        %v3660 = vlaneseq
        %v3661 = vshrl.u32 %v3660, 7
        %v3662 = vsub.s32 3, %v3661
        %v3663 = vrot.slane %v3613, %v3662
        %v3664 = vmul.f32 %v3654, %v3659
        %v3665 = vmul.f32 %v3655, %v3663
        %v3666 = vadd.f32 %v3652, %v3664
        %v3667 = vadd.f32 %v3653, %v3665
        %v3668 = vld [vmem:[#allocation2 + $0x220] sm:$0xff]
        %v3669 = vld [vmem:[#allocation2 + $0x228] sm:$0xff]
        %v3670 = vlaneseq
        %v3671 = vshrl.u32 %v3670, 7
        %v3672 = vsub.s32 4, %v3671
        %v3673 = vrot.slane %v3612, %v3672
        %v3674 = vlaneseq
        %v3675 = vshrl.u32 %v3674, 7
        %v3676 = vsub.s32 4, %v3675
        %v3677 = vrot.slane %v3613, %v3676
        %v3678 = vmul.f32 %v3668, %v3673
        %v3679 = vmul.f32 %v3669, %v3677
        %v3680 = vadd.f32 %v3666, %v3678
        %v3681 = vadd.f32 %v3667, %v3679
        %v3682 = vld [vmem:[#allocation2 + $0x230] sm:$0xff]
        %v3683 = vld [vmem:[#allocation2 + $0x238] sm:$0xff]
        %v3684 = vlaneseq
        %v3685 = vshrl.u32 %v3684, 7
        %v3686 = vsub.s32 5, %v3685
        %v3687 = vrot.slane %v3612, %v3686
        %v3688 = vlaneseq
        %v3689 = vshrl.u32 %v3688, 7
        %v3690 = vsub.s32 5, %v3689
        %v3691 = vrot.slane %v3613, %v3690
        %v3692 = vmul.f32 %v3682, %v3687
        %v3693 = vmul.f32 %v3683, %v3691
        %v3694 = vadd.f32 %v3680, %v3692
        %v3695 = vadd.f32 %v3681, %v3693
        %v3696 = vld [vmem:[#allocation2 + $0x240] sm:$0xff]
        %v3697 = vld [vmem:[#allocation2 + $0x248] sm:$0xff]
        %v3698 = vlaneseq
        %v3699 = vshrl.u32 %v3698, 7
        %v3700 = vsub.s32 6, %v3699
        %v3701 = vrot.slane %v3612, %v3700
        %v3702 = vlaneseq
        %v3703 = vshrl.u32 %v3702, 7
        %v3704 = vsub.s32 6, %v3703
        %v3705 = vrot.slane %v3613, %v3704
        %v3706 = vmul.f32 %v3696, %v3701
        %v3707 = vmul.f32 %v3697, %v3705
        %v3708 = vadd.f32 %v3694, %v3706
        %v3709 = vadd.f32 %v3695, %v3707
        %vm3710 = vcmp.gt.f32.partialorder %v3708, 0.0
        %vm3711 = vcmp.gt.f32.partialorder %v3709, 0.0
        %v3712 = vmul.f32 %v3708, 0.01
        %v3713 = vmul.f32 %v3709, 0.01
        %v3714 = vsel %vm3710, %v3708, %v3712
        %v3715 = vsel %vm3711, %v3709, %v3713
        %v3716 = vld [vmem:[#allocation2 + $0x250] sm:$0xff]
        %v3717 = vld [vmem:[#allocation2 + $0x258] sm:$0xff]
        %v3718 = vlaneseq
        %v3719 = vshrl.u32 %v3718, 7
        %v3720 = vsub.s32 0, %v3719
        %v3721 = vrot.slane %v3714, %v3720
        %v3722 = vlaneseq
        %v3723 = vshrl.u32 %v3722, 7
        %v3724 = vsub.s32 0, %v3723
        %v3725 = vrot.slane %v3715, %v3724
        %v3726 = vmul.f32 %v3716, %v3721
        %v3727 = vmul.f32 %v3717, %v3725
        %v3728 = vld [vmem:[#allocation2 + $0x260] sm:$0xff]
        %v3729 = vld [vmem:[#allocation2 + $0x268] sm:$0xff]
        %v3730 = vlaneseq
        %v3731 = vshrl.u32 %v3730, 7
        %v3732 = vsub.s32 1, %v3731
        %v3733 = vrot.slane %v3714, %v3732
        %v3734 = vlaneseq
        %v3735 = vshrl.u32 %v3734, 7
        %v3736 = vsub.s32 1, %v3735
        %v3737 = vrot.slane %v3715, %v3736
        %v3738 = vmul.f32 %v3728, %v3733
        %v3739 = vmul.f32 %v3729, %v3737
        %v3740 = vadd.f32 %v3726, %v3738
        %v3741 = vadd.f32 %v3727, %v3739
        %v3742 = vld [vmem:[#allocation2 + $0x270] sm:$0xff]
        %v3743 = vld [vmem:[#allocation2 + $0x278] sm:$0xff]
        %v3744 = vlaneseq
        %v3745 = vshrl.u32 %v3744, 7
        %v3746 = vsub.s32 2, %v3745
        %v3747 = vrot.slane %v3714, %v3746
        %v3748 = vlaneseq
        %v3749 = vshrl.u32 %v3748, 7
        %v3750 = vsub.s32 2, %v3749
        %v3751 = vrot.slane %v3715, %v3750
        %v3752 = vmul.f32 %v3742, %v3747
        %v3753 = vmul.f32 %v3743, %v3751
        %v3754 = vadd.f32 %v3740, %v3752
        %v3755 = vadd.f32 %v3741, %v3753
        %v3756 = vld [vmem:[#allocation2 + $0x280] sm:$0xff]
        %v3757 = vld [vmem:[#allocation2 + $0x288] sm:$0xff]
        %v3758 = vlaneseq
        %v3759 = vshrl.u32 %v3758, 7
        %v3760 = vsub.s32 3, %v3759
        %v3761 = vrot.slane %v3714, %v3760
        %v3762 = vlaneseq
        %v3763 = vshrl.u32 %v3762, 7
        %v3764 = vsub.s32 3, %v3763
        %v3765 = vrot.slane %v3715, %v3764
        %v3766 = vmul.f32 %v3756, %v3761
        %v3767 = vmul.f32 %v3757, %v3765
        %v3768 = vadd.f32 %v3754, %v3766
        %v3769 = vadd.f32 %v3755, %v3767
        %v3770 = vld [vmem:[#allocation2 + $0x290] sm:$0xff]
        %v3771 = vld [vmem:[#allocation2 + $0x298] sm:$0xff]
        %v3772 = vlaneseq
        %v3773 = vshrl.u32 %v3772, 7
        %v3774 = vsub.s32 4, %v3773
        %v3775 = vrot.slane %v3714, %v3774
        %v3776 = vlaneseq
        %v3777 = vshrl.u32 %v3776, 7
        %v3778 = vsub.s32 4, %v3777
        %v3779 = vrot.slane %v3715, %v3778
        %v3780 = vmul.f32 %v3770, %v3775
        %v3781 = vmul.f32 %v3771, %v3779
        %v3782 = vadd.f32 %v3768, %v3780
        %v3783 = vadd.f32 %v3769, %v3781
        %v3784 = vld [vmem:[#allocation2 + $0x2a0] sm:$0xff]
        %v3785 = vld [vmem:[#allocation2 + $0x2a8] sm:$0xff]
        %v3786 = vlaneseq
        %v3787 = vshrl.u32 %v3786, 7
        %v3788 = vsub.s32 5, %v3787
        %v3789 = vrot.slane %v3714, %v3788
        %v3790 = vlaneseq
        %v3791 = vshrl.u32 %v3790, 7
        %v3792 = vsub.s32 5, %v3791
        %v3793 = vrot.slane %v3715, %v3792
        %v3794 = vmul.f32 %v3784, %v3789
        %v3795 = vmul.f32 %v3785, %v3793
        %v3796 = vadd.f32 %v3782, %v3794
        %v3797 = vadd.f32 %v3783, %v3795
        %v3798 = vld [vmem:[#allocation2 + $0x2b0] sm:$0xff]
        %v3799 = vld [vmem:[#allocation2 + $0x2b8] sm:$0xff]
        %v3800 = vlaneseq
        %v3801 = vshrl.u32 %v3800, 7
        %v3802 = vsub.s32 6, %v3801
        %v3803 = vrot.slane %v3714, %v3802
        %v3804 = vlaneseq
        %v3805 = vshrl.u32 %v3804, 7
        %v3806 = vsub.s32 6, %v3805
        %v3807 = vrot.slane %v3715, %v3806
        %v3808 = vmul.f32 %v3798, %v3803
        %v3809 = vmul.f32 %v3799, %v3807
        %v3810 = vadd.f32 %v3796, %v3808
        %v3811 = vadd.f32 %v3797, %v3809
        %vm3812 = vcmp.gt.f32.partialorder %v3810, 0.0
        %vm3813 = vcmp.gt.f32.partialorder %v3811, 0.0
        %v3814 = vmul.f32 %v3810, 0.01
        %v3815 = vmul.f32 %v3811, 0.01
        %v3816 = vsel %vm3812, %v3810, %v3814
        %v3817 = vsel %vm3813, %v3811, %v3815
        %v3818 = vld [vmem:[#allocation2 + $0x2c0] sm:$0xff]
        %v3819 = vld [vmem:[#allocation2 + $0x2c8] sm:$0xff]
        %v3820 = vlaneseq
        %v3821 = vshrl.u32 %v3820, 7
        %v3822 = vsub.s32 0, %v3821
        %v3823 = vrot.slane %v3816, %v3822
        %v3824 = vlaneseq
        %v3825 = vshrl.u32 %v3824, 7
        %v3826 = vsub.s32 0, %v3825
        %v3827 = vrot.slane %v3817, %v3826
        %v3828 = vmul.f32 %v3818, %v3823
        %v3829 = vmul.f32 %v3819, %v3827
        %v3830 = vld [vmem:[#allocation2 + $0x2d0] sm:$0xff]
        %v3831 = vld [vmem:[#allocation2 + $0x2d8] sm:$0xff]
        %v3832 = vlaneseq
        %v3833 = vshrl.u32 %v3832, 7
        %v3834 = vsub.s32 1, %v3833
        %v3835 = vrot.slane %v3816, %v3834
        %v3836 = vlaneseq
        %v3837 = vshrl.u32 %v3836, 7
        %v3838 = vsub.s32 1, %v3837
        %v3839 = vrot.slane %v3817, %v3838
        %v3840 = vmul.f32 %v3830, %v3835
        %v3841 = vmul.f32 %v3831, %v3839
        %v3842 = vadd.f32 %v3828, %v3840
        %v3843 = vadd.f32 %v3829, %v3841
        %v3844 = vld [vmem:[#allocation2 + $0x2e0] sm:$0xff]
        %v3845 = vld [vmem:[#allocation2 + $0x2e8] sm:$0xff]
        %v3846 = vlaneseq
        %v3847 = vshrl.u32 %v3846, 7
        %v3848 = vsub.s32 2, %v3847
        %v3849 = vrot.slane %v3816, %v3848
        %v3850 = vlaneseq
        %v3851 = vshrl.u32 %v3850, 7
        %v3852 = vsub.s32 2, %v3851
        %v3853 = vrot.slane %v3817, %v3852
        %v3854 = vmul.f32 %v3844, %v3849
        %v3855 = vmul.f32 %v3845, %v3853
        %v3856 = vadd.f32 %v3842, %v3854
        %v3857 = vadd.f32 %v3843, %v3855
        %v3858 = vld [vmem:[#allocation2 + $0x2f0] sm:$0xff]
        %v3859 = vld [vmem:[#allocation2 + $0x2f8] sm:$0xff]
        %v3860 = vlaneseq
        %v3861 = vshrl.u32 %v3860, 7
        %v3862 = vsub.s32 3, %v3861
        %v3863 = vrot.slane %v3816, %v3862
        %v3864 = vlaneseq
        %v3865 = vshrl.u32 %v3864, 7
        %v3866 = vsub.s32 3, %v3865
        %v3867 = vrot.slane %v3817, %v3866
        %v3868 = vmul.f32 %v3858, %v3863
        %v3869 = vmul.f32 %v3859, %v3867
        %v3870 = vadd.f32 %v3856, %v3868
        %v3871 = vadd.f32 %v3857, %v3869
        %v3872 = vld [vmem:[#allocation2 + $0x300] sm:$0xff]
        %v3873 = vld [vmem:[#allocation2 + $0x308] sm:$0xff]
        %v3874 = vlaneseq
        %v3875 = vshrl.u32 %v3874, 7
        %v3876 = vsub.s32 4, %v3875
        %v3877 = vrot.slane %v3816, %v3876
        %v3878 = vlaneseq
        %v3879 = vshrl.u32 %v3878, 7
        %v3880 = vsub.s32 4, %v3879
        %v3881 = vrot.slane %v3817, %v3880
        %v3882 = vmul.f32 %v3872, %v3877
        %v3883 = vmul.f32 %v3873, %v3881
        %v3884 = vadd.f32 %v3870, %v3882
        %v3885 = vadd.f32 %v3871, %v3883
        %v3886 = vld [vmem:[#allocation2 + $0x310] sm:$0xff]
        %v3887 = vld [vmem:[#allocation2 + $0x318] sm:$0xff]
        %v3888 = vlaneseq
        %v3889 = vshrl.u32 %v3888, 7
        %v3890 = vsub.s32 5, %v3889
        %v3891 = vrot.slane %v3816, %v3890
        %v3892 = vlaneseq
        %v3893 = vshrl.u32 %v3892, 7
        %v3894 = vsub.s32 5, %v3893
        %v3895 = vrot.slane %v3817, %v3894
        %v3896 = vmul.f32 %v3886, %v3891
        %v3897 = vmul.f32 %v3887, %v3895
        %v3898 = vadd.f32 %v3884, %v3896
        %v3899 = vadd.f32 %v3885, %v3897
        %v3900 = vld [vmem:[#allocation2 + $0x320] sm:$0xff]
        %v3901 = vld [vmem:[#allocation2 + $0x328] sm:$0xff]
        %v3902 = vlaneseq
        %v3903 = vshrl.u32 %v3902, 7
        %v3904 = vsub.s32 6, %v3903
        %v3905 = vrot.slane %v3816, %v3904
        %v3906 = vlaneseq
        %v3907 = vshrl.u32 %v3906, 7
        %v3908 = vsub.s32 6, %v3907
        %v3909 = vrot.slane %v3817, %v3908
        %v3910 = vmul.f32 %v3900, %v3905
        %v3911 = vmul.f32 %v3901, %v3909
        %v3912 = vadd.f32 %v3898, %v3910
        %v3913 = vadd.f32 %v3899, %v3911
        %vm3914 = vcmp.gt.f32.partialorder %v3912, 0.0
        %vm3915 = vcmp.gt.f32.partialorder %v3913, 0.0
        %v3916 = vmul.f32 %v3912, 0.01
        %v3917 = vmul.f32 %v3913, 0.01
        %v3918 = vsel %vm3914, %v3912, %v3916
        %v3919 = vsel %vm3915, %v3913, %v3917
        %v3920 = vld [vmem:[#allocation2 + $0x330] sm:$0xff]
        %v3921 = vld [vmem:[#allocation2 + $0x338] sm:$0xff]
        %v3922 = vlaneseq
        %v3923 = vshrl.u32 %v3922, 7
        %v3924 = vsub.s32 0, %v3923
        %v3925 = vrot.slane %v3918, %v3924
        %v3926 = vlaneseq
        %v3927 = vshrl.u32 %v3926, 7
        %v3928 = vsub.s32 0, %v3927
        %v3929 = vrot.slane %v3919, %v3928
        %v3930 = vmul.f32 %v3920, %v3925
        %v3931 = vmul.f32 %v3921, %v3929
        %v3932 = vld [vmem:[#allocation2 + $0x340] sm:$0xff]
        %v3933 = vld [vmem:[#allocation2 + $0x348] sm:$0xff]
        %v3934 = vlaneseq
        %v3935 = vshrl.u32 %v3934, 7
        %v3936 = vsub.s32 1, %v3935
        %v3937 = vrot.slane %v3918, %v3936
        %v3938 = vlaneseq
        %v3939 = vshrl.u32 %v3938, 7
        %v3940 = vsub.s32 1, %v3939
        %v3941 = vrot.slane %v3919, %v3940
        %v3942 = vmul.f32 %v3932, %v3937
        %v3943 = vmul.f32 %v3933, %v3941
        %v3944 = vadd.f32 %v3930, %v3942
        %v3945 = vadd.f32 %v3931, %v3943
        %v3946 = vld [vmem:[#allocation2 + $0x350] sm:$0xff]
        %v3947 = vld [vmem:[#allocation2 + $0x358] sm:$0xff]
        %v3948 = vlaneseq
        %v3949 = vshrl.u32 %v3948, 7
        %v3950 = vsub.s32 2, %v3949
        %v3951 = vrot.slane %v3918, %v3950
        %v3952 = vlaneseq
        %v3953 = vshrl.u32 %v3952, 7
        %v3954 = vsub.s32 2, %v3953
        %v3955 = vrot.slane %v3919, %v3954
        %v3956 = vmul.f32 %v3946, %v3951
        %v3957 = vmul.f32 %v3947, %v3955
        %v3958 = vadd.f32 %v3944, %v3956
        %v3959 = vadd.f32 %v3945, %v3957
        %v3960 = vld [vmem:[#allocation2 + $0x360] sm:$0xff]
        %v3961 = vld [vmem:[#allocation2 + $0x368] sm:$0xff]
        %v3962 = vlaneseq
        %v3963 = vshrl.u32 %v3962, 7
        %v3964 = vsub.s32 3, %v3963
        %v3965 = vrot.slane %v3918, %v3964
        %v3966 = vlaneseq
        %v3967 = vshrl.u32 %v3966, 7
        %v3968 = vsub.s32 3, %v3967
        %v3969 = vrot.slane %v3919, %v3968
        %v3970 = vmul.f32 %v3960, %v3965
        %v3971 = vmul.f32 %v3961, %v3969
        %v3972 = vadd.f32 %v3958, %v3970
        %v3973 = vadd.f32 %v3959, %v3971
        %v3974 = vld [vmem:[#allocation2 + $0x370] sm:$0xff]
        %v3975 = vld [vmem:[#allocation2 + $0x378] sm:$0xff]
        %v3976 = vlaneseq
        %v3977 = vshrl.u32 %v3976, 7
        %v3978 = vsub.s32 4, %v3977
        %v3979 = vrot.slane %v3918, %v3978
        %v3980 = vlaneseq
        %v3981 = vshrl.u32 %v3980, 7
        %v3982 = vsub.s32 4, %v3981
        %v3983 = vrot.slane %v3919, %v3982
        %v3984 = vmul.f32 %v3974, %v3979
        %v3985 = vmul.f32 %v3975, %v3983
        %v3986 = vadd.f32 %v3972, %v3984
        %v3987 = vadd.f32 %v3973, %v3985
        %v3988 = vld [vmem:[#allocation2 + $0x380] sm:$0xff]
        %v3989 = vld [vmem:[#allocation2 + $0x388] sm:$0xff]
        %v3990 = vlaneseq
        %v3991 = vshrl.u32 %v3990, 7
        %v3992 = vsub.s32 5, %v3991
        %v3993 = vrot.slane %v3918, %v3992
        %v3994 = vlaneseq
        %v3995 = vshrl.u32 %v3994, 7
        %v3996 = vsub.s32 5, %v3995
        %v3997 = vrot.slane %v3919, %v3996
        %v3998 = vmul.f32 %v3988, %v3993
        %v3999 = vmul.f32 %v3989, %v3997
        %v4000 = vadd.f32 %v3986, %v3998
        %v4001 = vadd.f32 %v3987, %v3999
        %v4002 = vld [vmem:[#allocation2 + $0x390] sm:$0xff]
        %v4003 = vld [vmem:[#allocation2 + $0x398] sm:$0xff]
        %v4004 = vlaneseq
        %v4005 = vshrl.u32 %v4004, 7
        %v4006 = vsub.s32 6, %v4005
        %v4007 = vrot.slane %v3918, %v4006
        %v4008 = vlaneseq
        %v4009 = vshrl.u32 %v4008, 7
        %v4010 = vsub.s32 6, %v4009
        %v4011 = vrot.slane %v3919, %v4010
        %v4012 = vmul.f32 %v4002, %v4007
        %v4013 = vmul.f32 %v4003, %v4011
        %v4014 = vadd.f32 %v4000, %v4012
        %v4015 = vadd.f32 %v4001, %v4013
        %vm4016 = vcmp.gt.f32.partialorder %v4014, 0.0
        %vm4017 = vcmp.gt.f32.partialorder %v4015, 0.0
        %v4018 = vmul.f32 %v4014, 0.01
        %v4019 = vmul.f32 %v4015, 0.01
        %v4020 = vsel %vm4016, %v4014, %v4018
        %v4021 = vsel %vm4017, %v4015, %v4019
        %v4022 = vld [vmem:[#allocation2 + $0x3a0] sm:$0xff]
        %v4023 = vld [vmem:[#allocation2 + $0x3a8] sm:$0xff]
        %v4024 = vlaneseq
        %v4025 = vshrl.u32 %v4024, 7
        %v4026 = vsub.s32 0, %v4025
        %v4027 = vrot.slane %v4020, %v4026
        %v4028 = vlaneseq
        %v4029 = vshrl.u32 %v4028, 7
        %v4030 = vsub.s32 0, %v4029
        %v4031 = vrot.slane %v4021, %v4030
        %v4032 = vmul.f32 %v4022, %v4027
        %v4033 = vmul.f32 %v4023, %v4031
        %v4034 = vld [vmem:[#allocation2 + $0x3b0] sm:$0xff]
        %v4035 = vld [vmem:[#allocation2 + $0x3b8] sm:$0xff]
        %v4036 = vlaneseq
        %v4037 = vshrl.u32 %v4036, 7
        %v4038 = vsub.s32 1, %v4037
        %v4039 = vrot.slane %v4020, %v4038
        %v4040 = vlaneseq
        %v4041 = vshrl.u32 %v4040, 7
        %v4042 = vsub.s32 1, %v4041
        %v4043 = vrot.slane %v4021, %v4042
        %v4044 = vmul.f32 %v4034, %v4039
        %v4045 = vmul.f32 %v4035, %v4043
        %v4046 = vadd.f32 %v4032, %v4044
        %v4047 = vadd.f32 %v4033, %v4045
        %v4048 = vld [vmem:[#allocation2 + $0x3c0] sm:$0xff]
        %v4049 = vld [vmem:[#allocation2 + $0x3c8] sm:$0xff]
        %v4050 = vlaneseq
        %v4051 = vshrl.u32 %v4050, 7
        %v4052 = vsub.s32 2, %v4051
        %v4053 = vrot.slane %v4020, %v4052
        %v4054 = vlaneseq
        %v4055 = vshrl.u32 %v4054, 7
        %v4056 = vsub.s32 2, %v4055
        %v4057 = vrot.slane %v4021, %v4056
        %v4058 = vmul.f32 %v4048, %v4053
        %v4059 = vmul.f32 %v4049, %v4057
        %v4060 = vadd.f32 %v4046, %v4058
        %v4061 = vadd.f32 %v4047, %v4059
        %v4062 = vld [vmem:[#allocation2 + $0x3d0] sm:$0xff]
        %v4063 = vld [vmem:[#allocation2 + $0x3d8] sm:$0xff]
        %v4064 = vlaneseq
        %v4065 = vshrl.u32 %v4064, 7
        %v4066 = vsub.s32 3, %v4065
        %v4067 = vrot.slane %v4020, %v4066
        %v4068 = vlaneseq
        %v4069 = vshrl.u32 %v4068, 7
        %v4070 = vsub.s32 3, %v4069
        %v4071 = vrot.slane %v4021, %v4070
        %v4072 = vmul.f32 %v4062, %v4067
        %v4073 = vmul.f32 %v4063, %v4071
        %v4074 = vadd.f32 %v4060, %v4072
        %v4075 = vadd.f32 %v4061, %v4073
        %v4076 = vld [vmem:[#allocation2 + $0x3e0] sm:$0xff]
        %v4077 = vld [vmem:[#allocation2 + $0x3e8] sm:$0xff]
        %v4078 = vlaneseq
        %v4079 = vshrl.u32 %v4078, 7
        %v4080 = vsub.s32 4, %v4079
        %v4081 = vrot.slane %v4020, %v4080
        %v4082 = vlaneseq
        %v4083 = vshrl.u32 %v4082, 7
        %v4084 = vsub.s32 4, %v4083
        %v4085 = vrot.slane %v4021, %v4084
        %v4086 = vmul.f32 %v4076, %v4081
        %v4087 = vmul.f32 %v4077, %v4085
        %v4088 = vadd.f32 %v4074, %v4086
        %v4089 = vadd.f32 %v4075, %v4087
        %v4090 = vld [vmem:[#allocation2 + $0x3f0] sm:$0xff]
        %v4091 = vld [vmem:[#allocation2 + $0x3f8] sm:$0xff]
        %v4092 = vlaneseq
        %v4093 = vshrl.u32 %v4092, 7
        %v4094 = vsub.s32 5, %v4093
        %v4095 = vrot.slane %v4020, %v4094
        %v4096 = vlaneseq
        %v4097 = vshrl.u32 %v4096, 7
        %v4098 = vsub.s32 5, %v4097
        %v4099 = vrot.slane %v4021, %v4098
        %v4100 = vmul.f32 %v4090, %v4095
        %v4101 = vmul.f32 %v4091, %v4099
        %v4102 = vadd.f32 %v4088, %v4100
        %v4103 = vadd.f32 %v4089, %v4101
        %v4104 = vld [vmem:[#allocation2 + $0x400] sm:$0xff]
        %v4105 = vld [vmem:[#allocation2 + $0x408] sm:$0xff]
        %v4106 = vlaneseq
        %v4107 = vshrl.u32 %v4106, 7
        %v4108 = vsub.s32 6, %v4107
        %v4109 = vrot.slane %v4020, %v4108
        %v4110 = vlaneseq
        %v4111 = vshrl.u32 %v4110, 7
        %v4112 = vsub.s32 6, %v4111
        %v4113 = vrot.slane %v4021, %v4112
        %v4114 = vmul.f32 %v4104, %v4109
        %v4115 = vmul.f32 %v4105, %v4113
        %v4116 = vadd.f32 %v4102, %v4114
        %v4117 = vadd.f32 %v4103, %v4115
        %vm4118 = vcmp.gt.f32.partialorder %v4116, 0.0
        %vm4119 = vcmp.gt.f32.partialorder %v4117, 0.0
        %v4120 = vmul.f32 %v4116, 0.01
        %v4121 = vmul.f32 %v4117, 0.01
        %v4122 = vsel %vm4118, %v4116, %v4120
        %v4123 = vsel %vm4119, %v4117, %v4121
        %v4126 = vcombine.low %v4122, %v4123
        %v4128 = vunpack.c.l.s4 1966171168
        %v4129 = vunpack.c.0.s8 %v4128
        %v4130 = vlaneseq
        %v4131 = vshrl.u32 %v4130, 7
        %v4132 = vsub.s32 %v4129, %v4131
        %v4133 = vrot.slane %v4126, %v4132
        %v4135 = vunpack.c.l.s4 1966171168
        %v4136 = vunpack.c.0.s8 %v4135
        %v4137 = vlaneseq
        %v4138 = vshrl.u32 %v4137, 7
        %v4139 = vsub.s32 %v4136, %v4138
        %v4140 = vrot.slane %v4133, %v4139
        %4142 = vst.msk [vmem:[%s172 + $0x6] sm:$0x3] %vm1168, %v4140
        %s4143 = sand.u32 %s75, 1
        %s4144 = scalar_lea.sflag [#allocation4], %s4143
        %s4145 = sand.u32 %s75, 1
        %s4146 = smul.addr %s4145, 8
        %s4147 = scalar_lea.vmem [#allocation7], %s4146
        // Predicated region
        $region37: #{tpu_custom_call.1} parent=27 // pred_check
          %p4148 = pneg %p85
        $region38: #{tpu_custom_call.1} parent=27 // pred_check_branch
          %4150 = sbr.rel (%p4148) target = $region40
        $region39: #{tpu_custom_call.1} parent=27 // pred_region
          %s4151 = smul.u32 8, %s20
          %s4153 = ssub.s32 128, 128
          %4154 = vsyncadd %s4144, %s4153
          %s4155 = smul.addr %s4151, 16
          %s4156 = scalar_lea.hbm %s2, %s4155
          %s4158 = sshll.u32 %s4147, 4
          %s4159 = int_to_ptr.vmem [resolvable:$true] %s4158
          %4161 = dma.vmem_to_hbm [thread:$0]  %s4159, 128, %s4156, %s4144
        $region40: #{tpu_custom_call.1} parent=27 // pred_fallthru
          _
      $region28: #{tpu_custom_call.1} parent=5 // pred_fallthru
        _
      %p4162 = scmp.le.s32.totalorder 2, %s15
      // Predicated region
      $region41: #{tpu_custom_call.1} parent=5 // pred_check
        %p4163 = pneg %p4162
      $region42: #{tpu_custom_call.1} parent=5 // pred_check_branch
        %4165 = sbr.rel (%p4163) target = $region44
      $region43: #{tpu_custom_call.1} parent=5 // pred_region
        %s4166 = ssub.s32 %s15, 2
        // Predicated region
        $region45: #{tpu_custom_call.1} parent=43 // pred_check
          %p4167 = pneg %p91
        $region46: #{tpu_custom_call.1} parent=43 // pred_check_branch
          %4169 = sbr.rel (%p4167) target = $region48
        $region47: #{tpu_custom_call.1} parent=43 // pred_region
          %s4170 = sand.u32 %s76, 1
          %s4171 = scalar_lea.sflag [#allocation4], %s4170
          %s4172 = sand.u32 %s76, 1
          %s4173 = smul.addr %s4172, 8
          %s4174 = scalar_lea.vmem [#allocation7], %s4173
          %4175 = dma.done %s4171, 128
        $region48: #{tpu_custom_call.1} parent=43 // pred_fallthru
          _
      $region44: #{tpu_custom_call.1} parent=5 // pred_fallthru
        _
    $region6: #{tpu_custom_call.1} parent=1 // loop_footer
      %s19 = sadd.s32 1, %s15
    $region7: #{tpu_custom_call.1} parent=1 // loop_footer_branch
      %14 = sbr.rel target = $region3
    $region8: #{tpu_custom_call.1} parent=1 // loop_exit
      _
    %4176 = vsyncpa [#allocation3], 1
    %s4177 = scalar_lea.sflag [#allocation3], 1
    %4178 = vsyncpa %s4177, 1
    %4179 = vsyncpa [#allocation6], 1
    %s4180 = scalar_lea.sflag [#allocation6], 1
    %4181 = vsyncpa %s4180, 1
    %4182 = vsyncpa [#allocation4], 1
    %s4183 = scalar_lea.sflag [#allocation4], 1
    %4184 = vsyncpa %s4183, 1

</llo_original>
